<compile_context>
chip_gen: v7x
topology: tpu7x:2x2x1
jax: 0.10.0
libtpu: 0.0.40
codegen_flags: <defaults>
</compile_context>

<pallas_src>
import functools
import math

import jax
import jax.numpy as jnp
from jax.experimental import pallas as pl
from jax.experimental.pallas import tpu as pltpu


def _career_graph_kernel(
    x_bd_ref, bias_ref, tl_ref,
    w_fused_ref, b_fused_ref,
    ln_g_ref, ln_b_ref,
    w_proj_ref, b_proj_ref,
    out_ref,
    *, heads, d_model, n_nodes, text_weight, graph_weight,
):
    f32 = jnp.float32
    bf16 = jnp.bfloat16
    H, D, N = heads, d_model, n_nodes

    # ---- one fused projection matmul ---------------------------------------
    # x_bd = kron(I_H, x) [H*N, H*Din]; block row h of W_fused composes
    # input_proj with Q/K/V/skip of head h, plus a plain W_in slab for the
    # residual.  One MXU pass -> head-stacked activations, no reshapes.
    proj = jnp.dot(x_bd_ref[...], w_fused_ref[...],
                   preferred_element_type=f32) + b_fused_ref[...]      # [H*N, 5*D] f32

    q_st = proj[:, 0 * D:1 * D].astype(bf16)    # [H*N, D]; 1/sqrt(D) folded into W_q
    k_st = proj[:, 1 * D:2 * D].astype(bf16)
    v_st = proj[:, 2 * D:3 * D].astype(bf16)
    skip = proj[0:N, 3 * D:4 * D]               # lin_skip(input_proj(x)), [N, D]
    x_res = proj[0:N, 4 * D:5 * D]              # input_proj(x), residual branch

    # ---- attention: one QK^T, one 128-lane softmax, one alpha @ V ----------
    s = jax.lax.dot_general(q_st, k_st, (((1,), (1,)), ((), ())),
                            preferred_element_type=f32)                # [H*N, H*N]
    s = s + bias_ref[...]                       # -1e30 on non-edges / cross-head pairs
    m = jnp.maximum(jnp.max(s, axis=-1, keepdims=True), f32(-5e29))    # guard isolated nodes
    e = jnp.exp(s - m)                          # masked entries underflow to exactly 0
    denom = jnp.sum(e, axis=-1, keepdims=True)
    alpha = e * pl.reciprocal(jnp.maximum(denom, f32(1e-16)), approx=True)
    agg_st = jnp.dot(alpha.astype(bf16), v_st,
                     preferred_element_type=f32)                       # [H*N, D]

    # mean over heads (concat=False): sum the H stacked [N, D] sublane blocks
    agg = agg_st[0:N, :]
    for hh in range(1, H):
        agg = agg + agg_st[hh * N:(hh + 1) * N, :]
    agg = agg * f32(1.0 / H)

    t_out = agg + skip                          # + root/skip connection

    # ---- LayerNorm(D) (f32 statistics, eps matches nn.LayerNorm) -----------
    mu = jnp.mean(t_out, axis=-1, keepdims=True)
    var = jnp.mean((t_out - mu) ** 2, axis=-1, keepdims=True)
    ln = (t_out - mu) * jax.lax.rsqrt(var + f32(1e-5))
    ln = ln * ln_g_ref[...] + ln_b_ref[...]

    # ---- residual, mean-pool, graph_proj, fusion with text logits ----------
    gfeat = ln + x_res
    pooled = jnp.mean(gfeat, axis=0, keepdims=True)                    # [1, D]
    glogits = jnp.dot(pooled.astype(bf16), w_proj_ref[...],
                      preferred_element_type=f32) + b_proj_ref[...]    # [1, L_pad]
    out_ref[...] = f32(text_weight) * tl_ref[...] + f32(graph_weight) * glogits


def career_graph_forward(x, adj, text_logits, params, *,
                         heads=8, text_weight=0.8, graph_weight=0.2):
    f32, bf16 = jnp.float32, jnp.bfloat16
    N, d_in = x.shape
    D = params["w_in"].shape[1]          # model_dim == per-head out_channels (concat=False)
    H = heads
    L = params["w_proj"].shape[1]
    Lp = ((L + 127) // 128) * 128        # lane-dense (multiple-of-128) output width
    scale = 1.0 / math.sqrt(D)
    eye = jnp.eye(H, dtype=f32)

    # --- weight-only rearrangement (would be done once at model-load time) ---
    w_in = params["w_in"].astype(f32)                       # [Din, D]
    b_in = params["b_in"].astype(f32)                       # [1, D]

    def fold(w, b):
        # compose input_proj with a downstream Linear: y = (xW_in + b_in)W + b
        return w_in @ w.astype(f32), b_in @ w.astype(f32) + b.astype(f32)

    wq_f, bq_f = fold(params["w_q"], params["b_q"])         # [Din, H*D], [1, H*D]
    wk_f, bk_f = fold(params["w_k"], params["b_k"])
    wv_f, bv_f = fold(params["w_v"], params["b_v"])
    ws_f, bs_f = fold(params["w_skip"], params["b_skip"])   # [Din, D],  [1, D]
    wq_f, bq_f = wq_f * scale, bq_f * scale                 # fold attention 1/sqrt(D)

    def per_head(w):                                        # [Din, H*D] -> [H, Din, D]
        return w.reshape(d_in, H, D).transpose(1, 0, 2)

    w_fused = jnp.concatenate(
        [per_head(wq_f), per_head(wk_f), per_head(wv_f),
         jnp.broadcast_to(ws_f, (H, d_in, D)),
         jnp.broadcast_to(w_in, (H, d_in, D))],
        axis=2).reshape(H * d_in, 5 * D).astype(bf16)        # [H*Din, 5*D]

    b_head = jnp.concatenate(
        [bq_f.reshape(H, D), bk_f.reshape(H, D), bv_f.reshape(H, D),
         jnp.broadcast_to(bs_f, (H, D)),
         jnp.broadcast_to(b_in, (H, D))], axis=1)            # [H, 5*D]
    b_fused = jnp.repeat(b_head, N, axis=0).astype(f32)      # [H*N, 5*D]

    w_proj = jnp.pad(params["w_proj"], ((0, 0), (0, Lp - L))).astype(bf16)  # [D, Lp]
    b_proj = jnp.pad(params["b_proj"], ((0, 0), (0, Lp - L))).astype(f32)   # [1, Lp]

    # --- per-call layout plumbing (cheap, done outside the kernel) ---
    x_bd = jnp.kron(eye, x.astype(f32)).astype(bf16)                        # [H*N, H*Din]
    # additive attention bias; adj[src, tgt] != 0 means edge src->tgt, so query
    # (target) node i attends over source j iff adj[j, i] != 0, within its own head block.
    blk = jnp.kron(eye, adj.astype(f32).T)                                  # [H*N, H*N]
    attn_bias = jnp.where(blk > 0, f32(0.0), f32(-1e30)).astype(f32)
    tl_pad = jnp.pad(text_logits.astype(f32), ((0, 0), (0, Lp - L)))        # [1, Lp]

    kernel = functools.partial(
        _career_graph_kernel, heads=H, d_model=D, n_nodes=N,
        text_weight=text_weight, graph_weight=graph_weight)

    args = (x_bd, attn_bias, tl_pad,
            w_fused, b_fused,
            params["ln_g"].astype(f32), params["ln_b"].astype(f32),
            w_proj, b_proj)
    vmem = pl.BlockSpec(memory_space=pltpu.MemorySpace.VMEM)
    out = pl.pallas_call(
        kernel,
        out_shape=jax.ShapeDtypeStruct((1, Lp), f32),
        in_specs=[vmem] * len(args),
        out_specs=vmem,
    )(*args)
    return out[0, :L]   # squeeze(0) + drop label padding (matches PyTorch return)


def _make_params(key, d_in, d_model, heads, num_labels):
    ks = jax.random.split(key, 16)
    s = 0.05

    def w(k, shape):
        return jax.random.normal(k, shape, jnp.float32) * s

    return {
        # input_proj: Linear(input_dim, model_dim)   (stored [in, out])
        "w_in":   w(ks[0], (d_in, d_model)),
        "b_in":   w(ks[1], (1, d_model)),
        # TransformerConv lin_query / lin_key / lin_value: Linear(model_dim, heads*model_dim)
        "w_q":    w(ks[2], (d_model, heads * d_model)),
        "b_q":    w(ks[3], (1, heads * d_model)),
        "w_k":    w(ks[4], (d_model, heads * d_model)),
        "b_k":    w(ks[5], (1, heads * d_model)),
        "w_v":    w(ks[6], (d_model, heads * d_model)),
        "b_v":    w(ks[7], (1, heads * d_model)),
        # lin_skip (root weight): Linear(model_dim, model_dim) since concat=False
        "w_skip": w(ks[8], (d_model, d_model)),
        "b_skip": w(ks[9], (1, d_model)),
        # LayerNorm(model_dim)
        "ln_g":   jnp.ones((1, d_model), jnp.float32),
        "ln_b":   jnp.zeros((1, d_model), jnp.float32),
        # graph_proj: Linear(model_dim, num_labels)
        "w_proj": w(ks[10], (d_model, num_labels)),
        "b_proj": w(ks[11], (1, num_labels)),
    }


if __name__ == "__main__":
    # Small synthetic shapes consistent with the module defaults
    # (input_dim=256, model_dim=128, heads=8), toy graph + label count.
    N = 16            # number of graph nodes
    D_IN = 256        # graph_data.x feature dim (input_dim)
    D_MODEL = 128     # model_dim
    HEADS = 8
    NUM_LABELS = 16   # career_model.config.num_labels

    root = jax.random.PRNGKey(0)
    k_x, k_adj, k_txt, k_par = jax.random.split(root, 4)

    x = jax.random.normal(k_x, (N, D_IN), jnp.float32)

    # Deterministic sparse-ish adjacency; guarantee every node has an in-edge
    # (ring) so the graph is well-formed.
    adj = (jax.random.uniform(k_adj, (N, N)) < 0.25).astype(jnp.float32)
    ring_src = jnp.roll(jnp.arange(N), 1)
    adj = adj.at[ring_src, jnp.arange(N)].set(1.0)
    adj = adj.at[jnp.arange(N), jnp.arange(N)].set(0.0)

    # Pretrained text branch output (stand-in for DistilBERT logits).
    text_logits = jax.random.normal(k_txt, (1, NUM_LABELS), jnp.float32)

    params = _make_params(k_par, D_IN, D_MODEL, HEADS, NUM_LABELS)

    out = career_graph_forward(x, adj, text_logits, params,
                               heads=HEADS, text_weight=0.8, graph_weight=0.2)
    out = jax.block_until_ready(out)
    assert out.shape == (NUM_LABELS,)
    assert bool(jnp.all(jnp.isfinite(out)))
    print("KERNEL_OK")
</pallas_src>

<mosaic_0001>
module attributes {stable_mosaic.version = 11 : i64} {
  func.func @_career_graph_kernel(%arg0: memref<128x2048xbf16, #tpu.memory_space<vmem>>, %arg1: memref<128x128xf32, #tpu.memory_space<vmem>>, %arg2: memref<1x128xf32, #tpu.memory_space<vmem>>, %arg3: memref<2048x640xbf16, #tpu.memory_space<vmem>>, %arg4: memref<128x640xf32, #tpu.memory_space<vmem>>, %arg5: memref<1x128xf32, #tpu.memory_space<vmem>>, %arg6: memref<1x128xf32, #tpu.memory_space<vmem>>, %arg7: memref<128x128xbf16, #tpu.memory_space<vmem>>, %arg8: memref<1x128xf32, #tpu.memory_space<vmem>>, %arg9: memref<1x128xf32, #tpu.memory_space<vmem>>) attributes {dimension_semantics = [], scalar_prefetch = 0 : i64, scratch_operands = 0 : i64, tpu.core_type = #tpu.core_type<tc>} {
    %c0 = arith.constant 0 : index
    %c0_0 = arith.constant 0 : index
    %0 = vector.load %arg0[%c0, %c0_0] : memref<128x2048xbf16, #tpu.memory_space<vmem>>, vector<128x2048xbf16>
    %c0_1 = arith.constant 0 : index
    %c0_2 = arith.constant 0 : index
    %1 = vector.load %arg3[%c0_1, %c0_2] : memref<2048x640xbf16, #tpu.memory_space<vmem>>, vector<2048x640xbf16>
    %cst = arith.constant dense<0.000000e+00> : vector<128x640xf32>
    %2 = tpu.matmul %0, %1, %cst {dimension_numbers = #tpu.dot_dimension_numbers<[1], [0], [0], [1], [0, 0, 1, 1], [], []>} : vector<128x2048xbf16>, vector<2048x640xbf16>, vector<128x640xf32> -> vector<128x640xf32>
    %c0_3 = arith.constant 0 : index
    %c0_4 = arith.constant 0 : index
    %3 = vector.load %arg4[%c0_3, %c0_4] : memref<128x640xf32, #tpu.memory_space<vmem>>, vector<128x640xf32>
    %4 = arith.addf %2, %3 : vector<128x640xf32>
    %5 = vector.extract_strided_slice %4 {offsets = [0, 0], sizes = [128, 128], strides = [1, 1]} : vector<128x640xf32> to vector<128x128xf32>
    %6 = arith.truncf %5 : vector<128x128xf32> to vector<128x128xbf16>
    %7 = vector.extract_strided_slice %4 {offsets = [0, 128], sizes = [128, 128], strides = [1, 1]} : vector<128x640xf32> to vector<128x128xf32>
    %8 = arith.truncf %7 : vector<128x128xf32> to vector<128x128xbf16>
    %9 = vector.extract_strided_slice %4 {offsets = [0, 256], sizes = [128, 128], strides = [1, 1]} : vector<128x640xf32> to vector<128x128xf32>
    %10 = arith.truncf %9 : vector<128x128xf32> to vector<128x128xbf16>
    %11 = vector.extract_strided_slice %4 {offsets = [0, 384], sizes = [16, 128], strides = [1, 1]} : vector<128x640xf32> to vector<16x128xf32>
    %12 = vector.extract_strided_slice %4 {offsets = [0, 512], sizes = [16, 128], strides = [1, 1]} : vector<128x640xf32> to vector<16x128xf32>
    %cst_5 = arith.constant dense<0.000000e+00> : vector<128x128xf32>
    %13 = tpu.matmul %6, %8, %cst_5 {dimension_numbers = #tpu.dot_dimension_numbers<[1], [1], [0], [0], [0, 0, 1, 0], [], []>} : vector<128x128xbf16>, vector<128x128xbf16>, vector<128x128xf32> -> vector<128x128xf32>
    %c0_6 = arith.constant 0 : index
    %c0_7 = arith.constant 0 : index
    %14 = vector.load %arg1[%c0_6, %c0_7] : memref<128x128xf32, #tpu.memory_space<vmem>>, vector<128x128xf32>
    %15 = arith.addf %13, %14 : vector<128x128xf32>
    %cst_8 = arith.constant dense<0xFF800000> : vector<128xf32>
    %16 = vector.multi_reduction <maximumf>, %15, %cst_8 [1] : vector<128x128xf32> to vector<128xf32>
    %17 = vector.shape_cast %16 : vector<128xf32> to vector<128x1xf32>
    %cst_9 = arith.constant -5.000000e+29 : f32
    %18 = vector.broadcast %cst_9 : f32 to vector<128x1xf32>
    %19 = arith.maximumf %17, %18 : vector<128x1xf32>
    %20 = vector.broadcast %19 : vector<128x1xf32> to vector<128x128xf32>
    %21 = arith.subf %15, %20 : vector<128x128xf32>
    %22 = math.exp %21 : vector<128x128xf32>
    %cst_10 = arith.constant dense<0.000000e+00> : vector<128xf32>
    %23 = vector.multi_reduction <add>, %22, %cst_10 [1] : vector<128x128xf32> to vector<128xf32>
    %24 = vector.shape_cast %23 : vector<128xf32> to vector<128x1xf32>
    %cst_11 = arith.constant 1.000000e-16 : f32
    %25 = vector.broadcast %cst_11 : f32 to vector<128x1xf32>
    %26 = arith.maximumf %24, %25 : vector<128x1xf32>
    %27 = tpu.reciprocal %26 {approx = true} : vector<128x1xf32> -> vector<128x1xf32>
    %28 = vector.broadcast %27 : vector<128x1xf32> to vector<128x128xf32>
    %29 = arith.mulf %22, %28 : vector<128x128xf32>
    %30 = arith.truncf %29 : vector<128x128xf32> to vector<128x128xbf16>
    %cst_12 = arith.constant dense<0.000000e+00> : vector<128x128xf32>
    %31 = tpu.matmul %30, %10, %cst_12 {dimension_numbers = #tpu.dot_dimension_numbers<[1], [0], [0], [1], [0, 0, 1, 1], [], []>} : vector<128x128xbf16>, vector<128x128xbf16>, vector<128x128xf32> -> vector<128x128xf32>
    %32 = vector.extract_strided_slice %31 {offsets = [0, 0], sizes = [16, 128], strides = [1, 1]} : vector<128x128xf32> to vector<16x128xf32>
    %33 = vector.extract_strided_slice %31 {offsets = [16, 0], sizes = [16, 128], strides = [1, 1]} : vector<128x128xf32> to vector<16x128xf32>
    %34 = arith.addf %32, %33 : vector<16x128xf32>
    %35 = vector.extract_strided_slice %31 {offsets = [32, 0], sizes = [16, 128], strides = [1, 1]} : vector<128x128xf32> to vector<16x128xf32>
    %36 = arith.addf %34, %35 : vector<16x128xf32>
    %37 = vector.extract_strided_slice %31 {offsets = [48, 0], sizes = [16, 128], strides = [1, 1]} : vector<128x128xf32> to vector<16x128xf32>
    %38 = arith.addf %36, %37 : vector<16x128xf32>
    %39 = vector.extract_strided_slice %31 {offsets = [64, 0], sizes = [16, 128], strides = [1, 1]} : vector<128x128xf32> to vector<16x128xf32>
    %40 = arith.addf %38, %39 : vector<16x128xf32>
    %41 = vector.extract_strided_slice %31 {offsets = [80, 0], sizes = [16, 128], strides = [1, 1]} : vector<128x128xf32> to vector<16x128xf32>
    %42 = arith.addf %40, %41 : vector<16x128xf32>
    %43 = vector.extract_strided_slice %31 {offsets = [96, 0], sizes = [16, 128], strides = [1, 1]} : vector<128x128xf32> to vector<16x128xf32>
    %44 = arith.addf %42, %43 : vector<16x128xf32>
    %45 = vector.extract_strided_slice %31 {offsets = [112, 0], sizes = [16, 128], strides = [1, 1]} : vector<128x128xf32> to vector<16x128xf32>
    %46 = arith.addf %44, %45 : vector<16x128xf32>
    %cst_13 = arith.constant 1.250000e-01 : f32
    %47 = vector.broadcast %cst_13 : f32 to vector<16x128xf32>
    %48 = arith.mulf %46, %47 : vector<16x128xf32>
    %49 = arith.addf %48, %11 : vector<16x128xf32>
    %cst_14 = arith.constant dense<0.000000e+00> : vector<16xf32>
    %50 = vector.multi_reduction <add>, %49, %cst_14 [1] : vector<16x128xf32> to vector<16xf32>
    %51 = vector.shape_cast %50 : vector<16xf32> to vector<16x1xf32>
    %cst_15 = arith.constant 1.280000e+02 : f32
    %52 = vector.broadcast %cst_15 : f32 to vector<16x1xf32>
    %53 = arith.divf %51, %52 : vector<16x1xf32>
    %54 = vector.broadcast %53 : vector<16x1xf32> to vector<16x128xf32>
    %55 = arith.subf %49, %54 : vector<16x128xf32>
    %56 = arith.mulf %55, %55 : vector<16x128xf32>
    %cst_16 = arith.constant dense<0.000000e+00> : vector<16xf32>
    %57 = vector.multi_reduction <add>, %56, %cst_16 [1] : vector<16x128xf32> to vector<16xf32>
    %58 = vector.shape_cast %57 : vector<16xf32> to vector<16x1xf32>
    %cst_17 = arith.constant 1.280000e+02 : f32
    %59 = vector.broadcast %cst_17 : f32 to vector<16x1xf32>
    %60 = arith.divf %58, %59 : vector<16x1xf32>
    %61 = vector.broadcast %53 : vector<16x1xf32> to vector<16x128xf32>
    %62 = arith.subf %49, %61 : vector<16x128xf32>
    %cst_18 = arith.constant 9.99999974E-6 : f32
    %63 = vector.broadcast %cst_18 : f32 to vector<16x1xf32>
    %64 = arith.addf %60, %63 : vector<16x1xf32>
    %65 = math.rsqrt %64 : vector<16x1xf32>
    %66 = vector.broadcast %65 : vector<16x1xf32> to vector<16x128xf32>
    %67 = arith.mulf %62, %66 : vector<16x128xf32>
    %c0_19 = arith.constant 0 : index
    %c0_20 = arith.constant 0 : index
    %68 = vector.load %arg5[%c0_19, %c0_20] : memref<1x128xf32, #tpu.memory_space<vmem>>, vector<1x128xf32>
    %69 = vector.broadcast %68 : vector<1x128xf32> to vector<16x128xf32>
    %70 = arith.mulf %67, %69 : vector<16x128xf32>
    %c0_21 = arith.constant 0 : index
    %c0_22 = arith.constant 0 : index
    %71 = vector.load %arg6[%c0_21, %c0_22] : memref<1x128xf32, #tpu.memory_space<vmem>>, vector<1x128xf32>
    %72 = vector.broadcast %71 : vector<1x128xf32> to vector<16x128xf32>
    %73 = arith.addf %70, %72 : vector<16x128xf32>
    %74 = arith.addf %73, %12 : vector<16x128xf32>
    %cst_23 = arith.constant dense<0.000000e+00> : vector<128xf32>
    %75 = vector.multi_reduction <add>, %74, %cst_23 [0] : vector<16x128xf32> to vector<128xf32>
    %76 = vector.shape_cast %75 : vector<128xf32> to vector<1x128xf32>
    %cst_24 = arith.constant 1.600000e+01 : f32
    %77 = vector.broadcast %cst_24 : f32 to vector<1x128xf32>
    %78 = arith.divf %76, %77 : vector<1x128xf32>
    %79 = arith.truncf %78 : vector<1x128xf32> to vector<1x128xbf16>
    %c0_25 = arith.constant 0 : index
    %c0_26 = arith.constant 0 : index
    %80 = vector.load %arg7[%c0_25, %c0_26] : memref<128x128xbf16, #tpu.memory_space<vmem>>, vector<128x128xbf16>
    %cst_27 = arith.constant dense<0.000000e+00> : vector<1x128xf32>
    %81 = tpu.matmul %79, %80, %cst_27 {dimension_numbers = #tpu.dot_dimension_numbers<[1], [0], [0], [1], [0, 0, 1, 1], [], []>} : vector<1x128xbf16>, vector<128x128xbf16>, vector<1x128xf32> -> vector<1x128xf32>
    %c0_28 = arith.constant 0 : index
    %c0_29 = arith.constant 0 : index
    %82 = vector.load %arg8[%c0_28, %c0_29] : memref<1x128xf32, #tpu.memory_space<vmem>>, vector<1x128xf32>
    %83 = arith.addf %81, %82 : vector<1x128xf32>
    %c0_30 = arith.constant 0 : index
    %c0_31 = arith.constant 0 : index
    %84 = vector.load %arg2[%c0_30, %c0_31] : memref<1x128xf32, #tpu.memory_space<vmem>>, vector<1x128xf32>
    %cst_32 = arith.constant 8.000000e-01 : f32
    %85 = vector.broadcast %cst_32 : f32 to vector<1x128xf32>
    %86 = arith.mulf %85, %84 : vector<1x128xf32>
    %cst_33 = arith.constant 2.000000e-01 : f32
    %87 = vector.broadcast %cst_33 : f32 to vector<1x128xf32>
    %88 = arith.mulf %87, %83 : vector<1x128xf32>
    %89 = arith.addf %86, %88 : vector<1x128xf32>
    %c0_34 = arith.constant 0 : index
    %c0_35 = arith.constant 0 : index
    %90 = vector.load %arg9[%c0_34, %c0_35] : memref<1x128xf32, #tpu.memory_space<vmem>>, vector<1x128xf32>
    tpu.vector_store %arg9[%c0_34, %c0_35], %89 {strides = array<i32>} : memref<1x128xf32, #tpu.memory_space<vmem>>, vector<1x128xf32>,
    return
  }
}

</mosaic_0001>

<llo_original>
// kernel: tpu_custom_call.1
$region0: #{tpu_custom_call.1}
  #allocation0 [shape = 'u32[]', space=smem, size = 0x4, offset = 0x4, fixed_abs, tag = 'smem constant byte address 0x4 - core index']
  #allocation1 [shape = 'u32[144,128]{1,0:T(1,128)}', space=vmem, size = 0x12000, scoped, tag = 'internal scratch']
  %s0 = inlined_call_operand.hbm [shape: bf16[128,2048], index: 0, kind: input, shape index: {}]
  %s1 = inlined_call_operand.hbm [shape: f32[128,128], index: 1, kind: input, shape index: {}]
  %s2 = inlined_call_operand.hbm [shape: f32[1,128], index: 2, kind: input, shape index: {}]
  %s3 = inlined_call_operand.hbm [shape: bf16[2048,640], index: 3, kind: input, shape index: {}]
  %s4 = inlined_call_operand.hbm [shape: f32[128,640], index: 4, kind: input, shape index: {}]
  %s5 = inlined_call_operand.hbm [shape: f32[1,128], index: 5, kind: input, shape index: {}]
  %s6 = inlined_call_operand.hbm [shape: f32[1,128], index: 6, kind: input, shape index: {}]
  %s7 = inlined_call_operand.hbm [shape: bf16[128,128], index: 7, kind: input, shape index: {}]
  %s8 = inlined_call_operand.hbm [shape: f32[1,128], index: 8, kind: input, shape index: {}]
  %s9 = inlined_call_operand.hbm [shape: f32[1,128], index: 9, kind: output, shape index: {}]
  %s10 = sld [smem:[#allocation0]]
  $region82: #{tpu_custom_call.1} parent=0
    _
  %s12 = ssub.s32 1, %s10
  %s13 = scalar_select 0, %s12, %s10
  $region1: #{tpu_custom_call.1} parent=0
    #allocation2 [shape = 'u8[524288]{0}', space=vmem, size = 0x80000, scoped, tag = 'input window, operand 0, single buffered']
    #allocation3 [shape = 's32[1]{0}', space=sflag, size = 0x4, scoped, tag = 'scoped memory for tpu_custom_call.1']
    #allocation4 [shape = 's32[1]{0}', space=sflag, size = 0x4, scoped, tag = 'scoped memory for tpu_custom_call.1']
    #allocation5 [shape = 'u8[65536]{0}', space=vmem, size = 0x10000, scoped, tag = 'input window, operand 1, single buffered']
    #allocation6 [shape = 's32[1]{0}', space=sflag, size = 0x4, scoped, tag = 'scoped memory for tpu_custom_call.1']
    #allocation7 [shape = 'u8[512]{0}', space=vmem, size = 0x400, scoped, tag = 'input window, operand 2, single buffered']
    #allocation8 [shape = 'u8[2621440]{0}', space=vmem, size = 0x280000, scoped, tag = 'input window, operand 3, single buffered']
    #allocation9 [shape = 's32[1]{0}', space=sflag, size = 0x4, scoped, tag = 'scoped memory for tpu_custom_call.1']
    #allocation10 [shape = 'u8[327680]{0}', space=vmem, size = 0x50000, scoped, tag = 'input window, operand 4, single buffered']
    #allocation11 [shape = 'u8[512]{0}', space=vmem, size = 0x400, scoped, tag = 'input window, operand 5, single buffered']
    #allocation12 [shape = 's32[1]{0}', space=sflag, size = 0x4, scoped, tag = 'scoped memory for tpu_custom_call.1']
    #allocation13 [shape = 'u8[512]{0}', space=vmem, size = 0x400, scoped, tag = 'input window, operand 6, single buffered']
    #allocation14 [shape = 'u8[32768]{0}', space=vmem, size = 0x8000, scoped, tag = 'input window, operand 7, single buffered']
    #allocation15 [shape = 's32[1]{0}', space=sflag, size = 0x4, scoped, tag = 'scoped memory for tpu_custom_call.1']
    #allocation16 [shape = 'u8[512]{0}', space=vmem, size = 0x400, scoped, tag = 'input window, operand 8, single buffered']
    #allocation17 [shape = 'u8[512]{0}', space=vmem, size = 0x400, scoped, tag = 'output window, operand 0, single buffered']
    %14 = vsyncpa [#allocation3], 0
    %15 = vsyncpa [#allocation6], 0
    %16 = vsyncpa [#allocation9], 0
    %17 = vsyncpa [#allocation12], 0
    %18 = vsyncpa [#allocation15], 0
    %19 = vsyncpa [#allocation4], 0
    // Predicated region
    $region2: #{tpu_custom_call.1} parent=1 // pred_check
      _
    $region3: #{tpu_custom_call.1} parent=1 // pred_check_branch
      %21 = sbr.rel (0) target = $region5
    $region4: #{tpu_custom_call.1} parent=1 // pred_region
      %s23 = ssub.s32 16384, 16384
      %24 = vsyncadd [#allocation3], %s23
      %s25 = sshll.u32 [#allocation2], 4
      %s26 = int_to_ptr.vmem [resolvable:$true] %s25
      %31 = dma.hbm_to_vmem [thread:$0]  %s0, 16384, %s26, [#allocation3], 1024, 1024, 64
    $region5: #{tpu_custom_call.1} parent=1 // pred_fallthru
      _
    // Predicated region
    $region6: #{tpu_custom_call.1} parent=1 // pred_check
      _
    $region7: #{tpu_custom_call.1} parent=1 // pred_check_branch
      %33 = sbr.rel (0) target = $region9
    $region8: #{tpu_custom_call.1} parent=1 // pred_region
      %s35 = ssub.s32 2048, 2048
      %36 = vsyncadd [#allocation6], %s35
      %s37 = sshll.u32 [#allocation5], 4
      %s38 = int_to_ptr.vmem [resolvable:$true] %s37
      %43 = dma.hbm_to_vmem [thread:$0]  %s1, 2048, %s38, [#allocation6], 128, 128, 8
    $region9: #{tpu_custom_call.1} parent=1 // pred_fallthru
      _
    // Predicated region
    $region10: #{tpu_custom_call.1} parent=1 // pred_check
      _
    $region11: #{tpu_custom_call.1} parent=1 // pred_check_branch
      %45 = sbr.rel (0) target = $region13
    $region12: #{tpu_custom_call.1} parent=1 // pred_region
      %s47 = ssub.s32 16, 16
      %48 = vsyncadd [#allocation6], %s47
      %s50 = sshll.u32 [#allocation7], 4
      %s51 = int_to_ptr.vmem [resolvable:$true] %s50
      %53 = dma.hbm_to_vmem [thread:$0]  %s2, 16, %s51, [#allocation6]
    $region13: #{tpu_custom_call.1} parent=1 // pred_fallthru
      _
    // Predicated region
    $region14: #{tpu_custom_call.1} parent=1 // pred_check
      _
    $region15: #{tpu_custom_call.1} parent=1 // pred_check_branch
      %55 = sbr.rel (0) target = $region17
    $region16: #{tpu_custom_call.1} parent=1 // pred_region
      %s57 = ssub.s32 81920, 81920
      %58 = vsyncadd [#allocation9], %s57
      %s59 = sshll.u32 [#allocation8], 4
      %s60 = int_to_ptr.vmem [resolvable:$true] %s59
      %65 = dma.hbm_to_vmem [thread:$0]  %s3, 81920, %s60, [#allocation9], 320, 320, 20
    $region17: #{tpu_custom_call.1} parent=1 // pred_fallthru
      _
    // Predicated region
    $region18: #{tpu_custom_call.1} parent=1 // pred_check
      _
    $region19: #{tpu_custom_call.1} parent=1 // pred_check_branch
      %67 = sbr.rel (0) target = $region21
    $region20: #{tpu_custom_call.1} parent=1 // pred_region
      %s69 = ssub.s32 10240, 10240
      %70 = vsyncadd [#allocation9], %s69
      %s71 = sshll.u32 [#allocation10], 4
      %s72 = int_to_ptr.vmem [resolvable:$true] %s71
      %77 = dma.hbm_to_vmem [thread:$0]  %s4, 10240, %s72, [#allocation9], 640, 640, 40
    $region21: #{tpu_custom_call.1} parent=1 // pred_fallthru
      _
    // Predicated region
    $region22: #{tpu_custom_call.1} parent=1 // pred_check
      _
    $region23: #{tpu_custom_call.1} parent=1 // pred_check_branch
      %79 = sbr.rel (0) target = $region25
    $region24: #{tpu_custom_call.1} parent=1 // pred_region
      %s81 = ssub.s32 16, 16
      %82 = vsyncadd [#allocation12], %s81
      %s84 = sshll.u32 [#allocation11], 4
      %s85 = int_to_ptr.vmem [resolvable:$true] %s84
      %87 = dma.hbm_to_vmem [thread:$0]  %s5, 16, %s85, [#allocation12]
    $region25: #{tpu_custom_call.1} parent=1 // pred_fallthru
      _
    // Predicated region
    $region26: #{tpu_custom_call.1} parent=1 // pred_check
      _
    $region27: #{tpu_custom_call.1} parent=1 // pred_check_branch
      %89 = sbr.rel (0) target = $region29
    $region28: #{tpu_custom_call.1} parent=1 // pred_region
      %s91 = ssub.s32 16, 16
      %92 = vsyncadd [#allocation12], %s91
      %s94 = sshll.u32 [#allocation13], 4
      %s95 = int_to_ptr.vmem [resolvable:$true] %s94
      %97 = dma.hbm_to_vmem [thread:$0]  %s6, 16, %s95, [#allocation12]
    $region29: #{tpu_custom_call.1} parent=1 // pred_fallthru
      _
    // Predicated region
    $region30: #{tpu_custom_call.1} parent=1 // pred_check
      _
    $region31: #{tpu_custom_call.1} parent=1 // pred_check_branch
      %99 = sbr.rel (0) target = $region33
    $region32: #{tpu_custom_call.1} parent=1 // pred_region
      %s101 = ssub.s32 1024, 1024
      %102 = vsyncadd [#allocation15], %s101
      %s103 = sshll.u32 [#allocation14], 4
      %s104 = int_to_ptr.vmem [resolvable:$true] %s103
      %109 = dma.hbm_to_vmem [thread:$0]  %s7, 1024, %s104, [#allocation15], 64, 64, 4
    $region33: #{tpu_custom_call.1} parent=1 // pred_fallthru
      _
    // Predicated region
    $region34: #{tpu_custom_call.1} parent=1 // pred_check
      _
    $region35: #{tpu_custom_call.1} parent=1 // pred_check_branch
      %111 = sbr.rel (0) target = $region37
    $region36: #{tpu_custom_call.1} parent=1 // pred_region
      %s113 = ssub.s32 16, 16
      %114 = vsyncadd [#allocation15], %s113
      %s116 = sshll.u32 [#allocation16], 4
      %s117 = int_to_ptr.vmem [resolvable:$true] %s116
      %119 = dma.hbm_to_vmem [thread:$0]  %s8, 16, %s117, [#allocation15]
    $region37: #{tpu_custom_call.1} parent=1 // pred_fallthru
      _
    // Predicated region
    $region38: #{tpu_custom_call.1} parent=1 // pred_check
      _
    $region39: #{tpu_custom_call.1} parent=1 // pred_check_branch
      %121 = sbr.rel (0) target = $region41
    $region40: #{tpu_custom_call.1} parent=1 // pred_region
      %122 = dma.done [#allocation3], 16384
    $region41: #{tpu_custom_call.1} parent=1 // pred_fallthru
      _
    // Predicated region
    $region42: #{tpu_custom_call.1} parent=1 // pred_check
      _
    $region43: #{tpu_custom_call.1} parent=1 // pred_check_branch
      %124 = sbr.rel (0) target = $region45
    $region44: #{tpu_custom_call.1} parent=1 // pred_region
      %125 = dma.done [#allocation6], 2048
    $region45: #{tpu_custom_call.1} parent=1 // pred_fallthru
      _
    // Predicated region
    $region46: #{tpu_custom_call.1} parent=1 // pred_check
      _
    $region47: #{tpu_custom_call.1} parent=1 // pred_check_branch
      %127 = sbr.rel (0) target = $region49
    $region48: #{tpu_custom_call.1} parent=1 // pred_region
      %128 = dma.done [#allocation6], 16
    $region49: #{tpu_custom_call.1} parent=1 // pred_fallthru
      _
    // Predicated region
    $region50: #{tpu_custom_call.1} parent=1 // pred_check
      _
    $region51: #{tpu_custom_call.1} parent=1 // pred_check_branch
      %130 = sbr.rel (0) target = $region53
    $region52: #{tpu_custom_call.1} parent=1 // pred_region
      %131 = dma.done [#allocation9], 81920
    $region53: #{tpu_custom_call.1} parent=1 // pred_fallthru
      _
    // Predicated region
    $region54: #{tpu_custom_call.1} parent=1 // pred_check
      _
    $region55: #{tpu_custom_call.1} parent=1 // pred_check_branch
      %133 = sbr.rel (0) target = $region57
    $region56: #{tpu_custom_call.1} parent=1 // pred_region
      %134 = dma.done [#allocation9], 10240
    $region57: #{tpu_custom_call.1} parent=1 // pred_fallthru
      _
    // Predicated region
    $region58: #{tpu_custom_call.1} parent=1 // pred_check
      _
    $region59: #{tpu_custom_call.1} parent=1 // pred_check_branch
      %136 = sbr.rel (0) target = $region61
    $region60: #{tpu_custom_call.1} parent=1 // pred_region
      %137 = dma.done [#allocation12], 16
    $region61: #{tpu_custom_call.1} parent=1 // pred_fallthru
      _
    // Predicated region
    $region62: #{tpu_custom_call.1} parent=1 // pred_check
      _
    $region63: #{tpu_custom_call.1} parent=1 // pred_check_branch
      %139 = sbr.rel (0) target = $region65
    $region64: #{tpu_custom_call.1} parent=1 // pred_region
      %140 = dma.done [#allocation12], 16
    $region65: #{tpu_custom_call.1} parent=1 // pred_fallthru
      _
    // Predicated region
    $region66: #{tpu_custom_call.1} parent=1 // pred_check
      _
    $region67: #{tpu_custom_call.1} parent=1 // pred_check_branch
      %142 = sbr.rel (0) target = $region69
    $region68: #{tpu_custom_call.1} parent=1 // pred_region
      %143 = dma.done [#allocation15], 1024
    $region69: #{tpu_custom_call.1} parent=1 // pred_fallthru
      _
    // Predicated region
    $region70: #{tpu_custom_call.1} parent=1 // pred_check
      _
    $region71: #{tpu_custom_call.1} parent=1 // pred_check_branch
      %145 = sbr.rel (0) target = $region73
    $region72: #{tpu_custom_call.1} parent=1 // pred_region
      %146 = dma.done [#allocation15], 16
    $region73: #{tpu_custom_call.1} parent=1 // pred_fallthru
      _
    %v148 = vld [vmem:[#allocation2] sm:$0xff]
    %v149 = vld [vmem:[#allocation2 + $0x8] sm:$0xff]
    %v150 = vld [vmem:[#allocation2 + $0x10] sm:$0xff]
    %v151 = vld [vmem:[#allocation2 + $0x18] sm:$0xff]
    %v152 = vld [vmem:[#allocation2 + $0x20] sm:$0xff]
    %v153 = vld [vmem:[#allocation2 + $0x28] sm:$0xff]
    %v154 = vld [vmem:[#allocation2 + $0x30] sm:$0xff]
    %v155 = vld [vmem:[#allocation2 + $0x38] sm:$0xff]
    %v156 = vld [vmem:[#allocation2 + $0x40] sm:$0xff]
    %v157 = vld [vmem:[#allocation2 + $0x48] sm:$0xff]
    %v158 = vld [vmem:[#allocation2 + $0x50] sm:$0xff]
    %v159 = vld [vmem:[#allocation2 + $0x58] sm:$0xff]
    %v160 = vld [vmem:[#allocation2 + $0x60] sm:$0xff]
    %v161 = vld [vmem:[#allocation2 + $0x68] sm:$0xff]
    %v162 = vld [vmem:[#allocation2 + $0x70] sm:$0xff]
    %v163 = vld [vmem:[#allocation2 + $0x78] sm:$0xff]
    %v164 = vld [vmem:[#allocation2 + $0x80] sm:$0xff]
    %v165 = vld [vmem:[#allocation2 + $0x88] sm:$0xff]
    %v166 = vld [vmem:[#allocation2 + $0x90] sm:$0xff]
    %v167 = vld [vmem:[#allocation2 + $0x98] sm:$0xff]
    %v168 = vld [vmem:[#allocation2 + $0xa0] sm:$0xff]
    %v169 = vld [vmem:[#allocation2 + $0xa8] sm:$0xff]
    %v170 = vld [vmem:[#allocation2 + $0xb0] sm:$0xff]
    %v171 = vld [vmem:[#allocation2 + $0xb8] sm:$0xff]
    %v172 = vld [vmem:[#allocation2 + $0xc0] sm:$0xff]
    %v173 = vld [vmem:[#allocation2 + $0xc8] sm:$0xff]
    %v174 = vld [vmem:[#allocation2 + $0xd0] sm:$0xff]
    %v175 = vld [vmem:[#allocation2 + $0xd8] sm:$0xff]
    %v176 = vld [vmem:[#allocation2 + $0xe0] sm:$0xff]
    %v177 = vld [vmem:[#allocation2 + $0xe8] sm:$0xff]
    %v178 = vld [vmem:[#allocation2 + $0xf0] sm:$0xff]
    %v179 = vld [vmem:[#allocation2 + $0xf8] sm:$0xff]
    %v180 = vld [vmem:[#allocation2 + $0x100] sm:$0xff]
    %v181 = vld [vmem:[#allocation2 + $0x108] sm:$0xff]
    %v182 = vld [vmem:[#allocation2 + $0x110] sm:$0xff]
    %v183 = vld [vmem:[#allocation2 + $0x118] sm:$0xff]
    %v184 = vld [vmem:[#allocation2 + $0x120] sm:$0xff]
    %v185 = vld [vmem:[#allocation2 + $0x128] sm:$0xff]
    %v186 = vld [vmem:[#allocation2 + $0x130] sm:$0xff]
    %v187 = vld [vmem:[#allocation2 + $0x138] sm:$0xff]
    %v188 = vld [vmem:[#allocation2 + $0x140] sm:$0xff]
    %v189 = vld [vmem:[#allocation2 + $0x148] sm:$0xff]
    %v190 = vld [vmem:[#allocation2 + $0x150] sm:$0xff]
    %v191 = vld [vmem:[#allocation2 + $0x158] sm:$0xff]
    %v192 = vld [vmem:[#allocation2 + $0x160] sm:$0xff]
    %v193 = vld [vmem:[#allocation2 + $0x168] sm:$0xff]
    %v194 = vld [vmem:[#allocation2 + $0x170] sm:$0xff]
    %v195 = vld [vmem:[#allocation2 + $0x178] sm:$0xff]
    %v196 = vld [vmem:[#allocation2 + $0x180] sm:$0xff]
    %v197 = vld [vmem:[#allocation2 + $0x188] sm:$0xff]
    %v198 = vld [vmem:[#allocation2 + $0x190] sm:$0xff]
    %v199 = vld [vmem:[#allocation2 + $0x198] sm:$0xff]
    %v200 = vld [vmem:[#allocation2 + $0x1a0] sm:$0xff]
    %v201 = vld [vmem:[#allocation2 + $0x1a8] sm:$0xff]
    %v202 = vld [vmem:[#allocation2 + $0x1b0] sm:$0xff]
    %v203 = vld [vmem:[#allocation2 + $0x1b8] sm:$0xff]
    %v204 = vld [vmem:[#allocation2 + $0x1c0] sm:$0xff]
    %v205 = vld [vmem:[#allocation2 + $0x1c8] sm:$0xff]
    %v206 = vld [vmem:[#allocation2 + $0x1d0] sm:$0xff]
    %v207 = vld [vmem:[#allocation2 + $0x1d8] sm:$0xff]
    %v208 = vld [vmem:[#allocation2 + $0x1e0] sm:$0xff]
    %v209 = vld [vmem:[#allocation2 + $0x1e8] sm:$0xff]
    %v210 = vld [vmem:[#allocation2 + $0x1f0] sm:$0xff]
    %v211 = vld [vmem:[#allocation2 + $0x1f8] sm:$0xff]
    %v212 = vld [vmem:[#allocation2 + $0x200] sm:$0xff]
    %v213 = vld [vmem:[#allocation2 + $0x208] sm:$0xff]
    %v214 = vld [vmem:[#allocation2 + $0x210] sm:$0xff]
    %v215 = vld [vmem:[#allocation2 + $0x218] sm:$0xff]
    %v216 = vld [vmem:[#allocation2 + $0x220] sm:$0xff]
    %v217 = vld [vmem:[#allocation2 + $0x228] sm:$0xff]
    %v218 = vld [vmem:[#allocation2 + $0x230] sm:$0xff]
    %v219 = vld [vmem:[#allocation2 + $0x238] sm:$0xff]
    %v220 = vld [vmem:[#allocation2 + $0x240] sm:$0xff]
    %v221 = vld [vmem:[#allocation2 + $0x248] sm:$0xff]
    %v222 = vld [vmem:[#allocation2 + $0x250] sm:$0xff]
    %v223 = vld [vmem:[#allocation2 + $0x258] sm:$0xff]
    %v224 = vld [vmem:[#allocation2 + $0x260] sm:$0xff]
    %v225 = vld [vmem:[#allocation2 + $0x268] sm:$0xff]
    %v226 = vld [vmem:[#allocation2 + $0x270] sm:$0xff]
    %v227 = vld [vmem:[#allocation2 + $0x278] sm:$0xff]
    %v228 = vld [vmem:[#allocation2 + $0x280] sm:$0xff]
    %v229 = vld [vmem:[#allocation2 + $0x288] sm:$0xff]
    %v230 = vld [vmem:[#allocation2 + $0x290] sm:$0xff]
    %v231 = vld [vmem:[#allocation2 + $0x298] sm:$0xff]
    %v232 = vld [vmem:[#allocation2 + $0x2a0] sm:$0xff]
    %v233 = vld [vmem:[#allocation2 + $0x2a8] sm:$0xff]
    %v234 = vld [vmem:[#allocation2 + $0x2b0] sm:$0xff]
    %v235 = vld [vmem:[#allocation2 + $0x2b8] sm:$0xff]
    %v236 = vld [vmem:[#allocation2 + $0x2c0] sm:$0xff]
    %v237 = vld [vmem:[#allocation2 + $0x2c8] sm:$0xff]
    %v238 = vld [vmem:[#allocation2 + $0x2d0] sm:$0xff]
    %v239 = vld [vmem:[#allocation2 + $0x2d8] sm:$0xff]
    %v240 = vld [vmem:[#allocation2 + $0x2e0] sm:$0xff]
    %v241 = vld [vmem:[#allocation2 + $0x2e8] sm:$0xff]
    %v242 = vld [vmem:[#allocation2 + $0x2f0] sm:$0xff]
    %v243 = vld [vmem:[#allocation2 + $0x2f8] sm:$0xff]
    %v244 = vld [vmem:[#allocation2 + $0x300] sm:$0xff]
    %v245 = vld [vmem:[#allocation2 + $0x308] sm:$0xff]
    %v246 = vld [vmem:[#allocation2 + $0x310] sm:$0xff]
    %v247 = vld [vmem:[#allocation2 + $0x318] sm:$0xff]
    %v248 = vld [vmem:[#allocation2 + $0x320] sm:$0xff]
    %v249 = vld [vmem:[#allocation2 + $0x328] sm:$0xff]
    %v250 = vld [vmem:[#allocation2 + $0x330] sm:$0xff]
    %v251 = vld [vmem:[#allocation2 + $0x338] sm:$0xff]
    %v252 = vld [vmem:[#allocation2 + $0x340] sm:$0xff]
    %v253 = vld [vmem:[#allocation2 + $0x348] sm:$0xff]
    %v254 = vld [vmem:[#allocation2 + $0x350] sm:$0xff]
    %v255 = vld [vmem:[#allocation2 + $0x358] sm:$0xff]
    %v256 = vld [vmem:[#allocation2 + $0x360] sm:$0xff]
    %v257 = vld [vmem:[#allocation2 + $0x368] sm:$0xff]
    %v258 = vld [vmem:[#allocation2 + $0x370] sm:$0xff]
    %v259 = vld [vmem:[#allocation2 + $0x378] sm:$0xff]
    %v260 = vld [vmem:[#allocation2 + $0x380] sm:$0xff]
    %v261 = vld [vmem:[#allocation2 + $0x388] sm:$0xff]
    %v262 = vld [vmem:[#allocation2 + $0x390] sm:$0xff]
    %v263 = vld [vmem:[#allocation2 + $0x398] sm:$0xff]
    %v264 = vld [vmem:[#allocation2 + $0x3a0] sm:$0xff]
    %v265 = vld [vmem:[#allocation2 + $0x3a8] sm:$0xff]
    %v266 = vld [vmem:[#allocation2 + $0x3b0] sm:$0xff]
    %v267 = vld [vmem:[#allocation2 + $0x3b8] sm:$0xff]
    %v268 = vld [vmem:[#allocation2 + $0x3c0] sm:$0xff]
    %v269 = vld [vmem:[#allocation2 + $0x3c8] sm:$0xff]
    %v270 = vld [vmem:[#allocation2 + $0x3d0] sm:$0xff]
    %v271 = vld [vmem:[#allocation2 + $0x3d8] sm:$0xff]
    %v272 = vld [vmem:[#allocation2 + $0x3e0] sm:$0xff]
    %v273 = vld [vmem:[#allocation2 + $0x3e8] sm:$0xff]
    %v274 = vld [vmem:[#allocation2 + $0x3f0] sm:$0xff]
    %v275 = vld [vmem:[#allocation2 + $0x3f8] sm:$0xff]
    %v276 = vld [vmem:[#allocation8] sm:$0xff]
    %v277 = vld [vmem:[#allocation8 + $0x8] sm:$0xff]
    %v278 = vld [vmem:[#allocation8 + $0x10] sm:$0xf]
    %v279 = vld [vmem:[#allocation8 + $0x14] sm:$0xff]
    %v280 = vld [vmem:[#allocation8 + $0x1c] sm:$0xff]
    %v281 = vld [vmem:[#allocation8 + $0x24] sm:$0xf]
    %v282 = vld [vmem:[#allocation8 + $0x28] sm:$0xff]
    %v283 = vld [vmem:[#allocation8 + $0x30] sm:$0xff]
    %v284 = vld [vmem:[#allocation8 + $0x38] sm:$0xf]
    %v285 = vld [vmem:[#allocation8 + $0x3c] sm:$0xff]
    %v286 = vld [vmem:[#allocation8 + $0x44] sm:$0xff]
    %v287 = vld [vmem:[#allocation8 + $0x4c] sm:$0xf]
    %v288 = vld [vmem:[#allocation8 + $0x50] sm:$0xff]
    %v289 = vld [vmem:[#allocation8 + $0x58] sm:$0xff]
    %v290 = vld [vmem:[#allocation8 + $0x60] sm:$0xf]
    %v291 = vld [vmem:[#allocation8 + $0x64] sm:$0xff]
    %v292 = vld [vmem:[#allocation8 + $0x6c] sm:$0xff]
    %v293 = vld [vmem:[#allocation8 + $0x74] sm:$0xf]
    %v294 = vld [vmem:[#allocation8 + $0x78] sm:$0xff]
    %v295 = vld [vmem:[#allocation8 + $0x80] sm:$0xff]
    %v296 = vld [vmem:[#allocation8 + $0x88] sm:$0xf]
    %v297 = vld [vmem:[#allocation8 + $0x8c] sm:$0xff]
    %v298 = vld [vmem:[#allocation8 + $0x94] sm:$0xff]
    %v299 = vld [vmem:[#allocation8 + $0x9c] sm:$0xf]
    %v300 = vld [vmem:[#allocation8 + $0xa0] sm:$0xff]
    %v301 = vld [vmem:[#allocation8 + $0xa8] sm:$0xff]
    %v302 = vld [vmem:[#allocation8 + $0xb0] sm:$0xf]
    %v303 = vld [vmem:[#allocation8 + $0xb4] sm:$0xff]
    %v304 = vld [vmem:[#allocation8 + $0xbc] sm:$0xff]
    %v305 = vld [vmem:[#allocation8 + $0xc4] sm:$0xf]
    %v306 = vld [vmem:[#allocation8 + $0xc8] sm:$0xff]
    %v307 = vld [vmem:[#allocation8 + $0xd0] sm:$0xff]
    %v308 = vld [vmem:[#allocation8 + $0xd8] sm:$0xf]
    %v309 = vld [vmem:[#allocation8 + $0xdc] sm:$0xff]
    %v310 = vld [vmem:[#allocation8 + $0xe4] sm:$0xff]
    %v311 = vld [vmem:[#allocation8 + $0xec] sm:$0xf]
    %v312 = vld [vmem:[#allocation8 + $0xf0] sm:$0xff]
    %v313 = vld [vmem:[#allocation8 + $0xf8] sm:$0xff]
    %v314 = vld [vmem:[#allocation8 + $0x100] sm:$0xf]
    %v315 = vld [vmem:[#allocation8 + $0x104] sm:$0xff]
    %v316 = vld [vmem:[#allocation8 + $0x10c] sm:$0xff]
    %v317 = vld [vmem:[#allocation8 + $0x114] sm:$0xf]
    %v318 = vld [vmem:[#allocation8 + $0x118] sm:$0xff]
    %v319 = vld [vmem:[#allocation8 + $0x120] sm:$0xff]
    %v320 = vld [vmem:[#allocation8 + $0x128] sm:$0xf]
    %v321 = vld [vmem:[#allocation8 + $0x12c] sm:$0xff]
    %v322 = vld [vmem:[#allocation8 + $0x134] sm:$0xff]
    %v323 = vld [vmem:[#allocation8 + $0x13c] sm:$0xf]
    %v324 = vld [vmem:[#allocation8 + $0x140] sm:$0xff]
    %v325 = vld [vmem:[#allocation8 + $0x148] sm:$0xff]
    %v326 = vld [vmem:[#allocation8 + $0x150] sm:$0xf]
    %v327 = vld [vmem:[#allocation8 + $0x154] sm:$0xff]
    %v328 = vld [vmem:[#allocation8 + $0x15c] sm:$0xff]
    %v329 = vld [vmem:[#allocation8 + $0x164] sm:$0xf]
    %v330 = vld [vmem:[#allocation8 + $0x168] sm:$0xff]
    %v331 = vld [vmem:[#allocation8 + $0x170] sm:$0xff]
    %v332 = vld [vmem:[#allocation8 + $0x178] sm:$0xf]
    %v333 = vld [vmem:[#allocation8 + $0x17c] sm:$0xff]
    %v334 = vld [vmem:[#allocation8 + $0x184] sm:$0xff]
    %v335 = vld [vmem:[#allocation8 + $0x18c] sm:$0xf]
    %v336 = vld [vmem:[#allocation8 + $0x190] sm:$0xff]
    %v337 = vld [vmem:[#allocation8 + $0x198] sm:$0xff]
    %v338 = vld [vmem:[#allocation8 + $0x1a0] sm:$0xf]
    %v339 = vld [vmem:[#allocation8 + $0x1a4] sm:$0xff]
    %v340 = vld [vmem:[#allocation8 + $0x1ac] sm:$0xff]
    %v341 = vld [vmem:[#allocation8 + $0x1b4] sm:$0xf]
    %v342 = vld [vmem:[#allocation8 + $0x1b8] sm:$0xff]
    %v343 = vld [vmem:[#allocation8 + $0x1c0] sm:$0xff]
    %v344 = vld [vmem:[#allocation8 + $0x1c8] sm:$0xf]
    %v345 = vld [vmem:[#allocation8 + $0x1cc] sm:$0xff]
    %v346 = vld [vmem:[#allocation8 + $0x1d4] sm:$0xff]
    %v347 = vld [vmem:[#allocation8 + $0x1dc] sm:$0xf]
    %v348 = vld [vmem:[#allocation8 + $0x1e0] sm:$0xff]
    %v349 = vld [vmem:[#allocation8 + $0x1e8] sm:$0xff]
    %v350 = vld [vmem:[#allocation8 + $0x1f0] sm:$0xf]
    %v351 = vld [vmem:[#allocation8 + $0x1f4] sm:$0xff]
    %v352 = vld [vmem:[#allocation8 + $0x1fc] sm:$0xff]
    %v353 = vld [vmem:[#allocation8 + $0x204] sm:$0xf]
    %v354 = vld [vmem:[#allocation8 + $0x208] sm:$0xff]
    %v355 = vld [vmem:[#allocation8 + $0x210] sm:$0xff]
    %v356 = vld [vmem:[#allocation8 + $0x218] sm:$0xf]
    %v357 = vld [vmem:[#allocation8 + $0x21c] sm:$0xff]
    %v358 = vld [vmem:[#allocation8 + $0x224] sm:$0xff]
    %v359 = vld [vmem:[#allocation8 + $0x22c] sm:$0xf]
    %v360 = vld [vmem:[#allocation8 + $0x230] sm:$0xff]
    %v361 = vld [vmem:[#allocation8 + $0x238] sm:$0xff]
    %v362 = vld [vmem:[#allocation8 + $0x240] sm:$0xf]
    %v363 = vld [vmem:[#allocation8 + $0x244] sm:$0xff]
    %v364 = vld [vmem:[#allocation8 + $0x24c] sm:$0xff]
    %v365 = vld [vmem:[#allocation8 + $0x254] sm:$0xf]
    %v366 = vld [vmem:[#allocation8 + $0x258] sm:$0xff]
    %v367 = vld [vmem:[#allocation8 + $0x260] sm:$0xff]
    %v368 = vld [vmem:[#allocation8 + $0x268] sm:$0xf]
    %v369 = vld [vmem:[#allocation8 + $0x26c] sm:$0xff]
    %v370 = vld [vmem:[#allocation8 + $0x274] sm:$0xff]
    %v371 = vld [vmem:[#allocation8 + $0x27c] sm:$0xf]
    %v372 = vld [vmem:[#allocation8 + $0x280] sm:$0xff]
    %v373 = vld [vmem:[#allocation8 + $0x288] sm:$0xff]
    %v374 = vld [vmem:[#allocation8 + $0x290] sm:$0xf]
    %v375 = vld [vmem:[#allocation8 + $0x294] sm:$0xff]
    %v376 = vld [vmem:[#allocation8 + $0x29c] sm:$0xff]
    %v377 = vld [vmem:[#allocation8 + $0x2a4] sm:$0xf]
    %v378 = vld [vmem:[#allocation8 + $0x2a8] sm:$0xff]
    %v379 = vld [vmem:[#allocation8 + $0x2b0] sm:$0xff]
    %v380 = vld [vmem:[#allocation8 + $0x2b8] sm:$0xf]
    %v381 = vld [vmem:[#allocation8 + $0x2bc] sm:$0xff]
    %v382 = vld [vmem:[#allocation8 + $0x2c4] sm:$0xff]
    %v383 = vld [vmem:[#allocation8 + $0x2cc] sm:$0xf]
    %v384 = vld [vmem:[#allocation8 + $0x2d0] sm:$0xff]
    %v385 = vld [vmem:[#allocation8 + $0x2d8] sm:$0xff]
    %v386 = vld [vmem:[#allocation8 + $0x2e0] sm:$0xf]
    %v387 = vld [vmem:[#allocation8 + $0x2e4] sm:$0xff]
    %v388 = vld [vmem:[#allocation8 + $0x2ec] sm:$0xff]
    %v389 = vld [vmem:[#allocation8 + $0x2f4] sm:$0xf]
    %v390 = vld [vmem:[#allocation8 + $0x2f8] sm:$0xff]
    %v391 = vld [vmem:[#allocation8 + $0x300] sm:$0xff]
    %v392 = vld [vmem:[#allocation8 + $0x308] sm:$0xf]
    %v393 = vld [vmem:[#allocation8 + $0x30c] sm:$0xff]
    %v394 = vld [vmem:[#allocation8 + $0x314] sm:$0xff]
    %v395 = vld [vmem:[#allocation8 + $0x31c] sm:$0xf]
    %v396 = vld [vmem:[#allocation8 + $0x320] sm:$0xff]
    %v397 = vld [vmem:[#allocation8 + $0x328] sm:$0xff]
    %v398 = vld [vmem:[#allocation8 + $0x330] sm:$0xf]
    %v399 = vld [vmem:[#allocation8 + $0x334] sm:$0xff]
    %v400 = vld [vmem:[#allocation8 + $0x33c] sm:$0xff]
    %v401 = vld [vmem:[#allocation8 + $0x344] sm:$0xf]
    %v402 = vld [vmem:[#allocation8 + $0x348] sm:$0xff]
    %v403 = vld [vmem:[#allocation8 + $0x350] sm:$0xff]
    %v404 = vld [vmem:[#allocation8 + $0x358] sm:$0xf]
    %v405 = vld [vmem:[#allocation8 + $0x35c] sm:$0xff]
    %v406 = vld [vmem:[#allocation8 + $0x364] sm:$0xff]
    %v407 = vld [vmem:[#allocation8 + $0x36c] sm:$0xf]
    %v408 = vld [vmem:[#allocation8 + $0x370] sm:$0xff]
    %v409 = vld [vmem:[#allocation8 + $0x378] sm:$0xff]
    %v410 = vld [vmem:[#allocation8 + $0x380] sm:$0xf]
    %v411 = vld [vmem:[#allocation8 + $0x384] sm:$0xff]
    %v412 = vld [vmem:[#allocation8 + $0x38c] sm:$0xff]
    %v413 = vld [vmem:[#allocation8 + $0x394] sm:$0xf]
    %v414 = vld [vmem:[#allocation8 + $0x398] sm:$0xff]
    %v415 = vld [vmem:[#allocation8 + $0x3a0] sm:$0xff]
    %v416 = vld [vmem:[#allocation8 + $0x3a8] sm:$0xf]
    %v417 = vld [vmem:[#allocation8 + $0x3ac] sm:$0xff]
    %v418 = vld [vmem:[#allocation8 + $0x3b4] sm:$0xff]
    %v419 = vld [vmem:[#allocation8 + $0x3bc] sm:$0xf]
    %v420 = vld [vmem:[#allocation8 + $0x3c0] sm:$0xff]
    %v421 = vld [vmem:[#allocation8 + $0x3c8] sm:$0xff]
    %v422 = vld [vmem:[#allocation8 + $0x3d0] sm:$0xf]
    %v423 = vld [vmem:[#allocation8 + $0x3d4] sm:$0xff]
    %v424 = vld [vmem:[#allocation8 + $0x3dc] sm:$0xff]
    %v425 = vld [vmem:[#allocation8 + $0x3e4] sm:$0xf]
    %v426 = vld [vmem:[#allocation8 + $0x3e8] sm:$0xff]
    %v427 = vld [vmem:[#allocation8 + $0x3f0] sm:$0xff]
    %v428 = vld [vmem:[#allocation8 + $0x3f8] sm:$0xf]
    %v429 = vld [vmem:[#allocation8 + $0x3fc] sm:$0xff]
    %v430 = vld [vmem:[#allocation8 + $0x404] sm:$0xff]
    %v431 = vld [vmem:[#allocation8 + $0x40c] sm:$0xf]
    %v432 = vld [vmem:[#allocation8 + $0x410] sm:$0xff]
    %v433 = vld [vmem:[#allocation8 + $0x418] sm:$0xff]
    %v434 = vld [vmem:[#allocation8 + $0x420] sm:$0xf]
    %v435 = vld [vmem:[#allocation8 + $0x424] sm:$0xff]
    %v436 = vld [vmem:[#allocation8 + $0x42c] sm:$0xff]
    %v437 = vld [vmem:[#allocation8 + $0x434] sm:$0xf]
    %v438 = vld [vmem:[#allocation8 + $0x438] sm:$0xff]
    %v439 = vld [vmem:[#allocation8 + $0x440] sm:$0xff]
    %v440 = vld [vmem:[#allocation8 + $0x448] sm:$0xf]
    %v441 = vld [vmem:[#allocation8 + $0x44c] sm:$0xff]
    %v442 = vld [vmem:[#allocation8 + $0x454] sm:$0xff]
    %v443 = vld [vmem:[#allocation8 + $0x45c] sm:$0xf]
    %v444 = vld [vmem:[#allocation8 + $0x460] sm:$0xff]
    %v445 = vld [vmem:[#allocation8 + $0x468] sm:$0xff]
    %v446 = vld [vmem:[#allocation8 + $0x470] sm:$0xf]
    %v447 = vld [vmem:[#allocation8 + $0x474] sm:$0xff]
    %v448 = vld [vmem:[#allocation8 + $0x47c] sm:$0xff]
    %v449 = vld [vmem:[#allocation8 + $0x484] sm:$0xf]
    %v450 = vld [vmem:[#allocation8 + $0x488] sm:$0xff]
    %v451 = vld [vmem:[#allocation8 + $0x490] sm:$0xff]
    %v452 = vld [vmem:[#allocation8 + $0x498] sm:$0xf]
    %v453 = vld [vmem:[#allocation8 + $0x49c] sm:$0xff]
    %v454 = vld [vmem:[#allocation8 + $0x4a4] sm:$0xff]
    %v455 = vld [vmem:[#allocation8 + $0x4ac] sm:$0xf]
    %v456 = vld [vmem:[#allocation8 + $0x4b0] sm:$0xff]
    %v457 = vld [vmem:[#allocation8 + $0x4b8] sm:$0xff]
    %v458 = vld [vmem:[#allocation8 + $0x4c0] sm:$0xf]
    %v459 = vld [vmem:[#allocation8 + $0x4c4] sm:$0xff]
    %v460 = vld [vmem:[#allocation8 + $0x4cc] sm:$0xff]
    %v461 = vld [vmem:[#allocation8 + $0x4d4] sm:$0xf]
    %v462 = vld [vmem:[#allocation8 + $0x4d8] sm:$0xff]
    %v463 = vld [vmem:[#allocation8 + $0x4e0] sm:$0xff]
    %v464 = vld [vmem:[#allocation8 + $0x4e8] sm:$0xf]
    %v465 = vld [vmem:[#allocation8 + $0x4ec] sm:$0xff]
    %v466 = vld [vmem:[#allocation8 + $0x4f4] sm:$0xff]
    %v467 = vld [vmem:[#allocation8 + $0x4fc] sm:$0xf]
    %v468 = vld [vmem:[#allocation8 + $0x500] sm:$0xff]
    %v469 = vld [vmem:[#allocation8 + $0x508] sm:$0xff]
    %v470 = vld [vmem:[#allocation8 + $0x510] sm:$0xf]
    %v471 = vld [vmem:[#allocation8 + $0x514] sm:$0xff]
    %v472 = vld [vmem:[#allocation8 + $0x51c] sm:$0xff]
    %v473 = vld [vmem:[#allocation8 + $0x524] sm:$0xf]
    %v474 = vld [vmem:[#allocation8 + $0x528] sm:$0xff]
    %v475 = vld [vmem:[#allocation8 + $0x530] sm:$0xff]
    %v476 = vld [vmem:[#allocation8 + $0x538] sm:$0xf]
    %v477 = vld [vmem:[#allocation8 + $0x53c] sm:$0xff]
    %v478 = vld [vmem:[#allocation8 + $0x544] sm:$0xff]
    %v479 = vld [vmem:[#allocation8 + $0x54c] sm:$0xf]
    %v480 = vld [vmem:[#allocation8 + $0x550] sm:$0xff]
    %v481 = vld [vmem:[#allocation8 + $0x558] sm:$0xff]
    %v482 = vld [vmem:[#allocation8 + $0x560] sm:$0xf]
    %v483 = vld [vmem:[#allocation8 + $0x564] sm:$0xff]
    %v484 = vld [vmem:[#allocation8 + $0x56c] sm:$0xff]
    %v485 = vld [vmem:[#allocation8 + $0x574] sm:$0xf]
    %v486 = vld [vmem:[#allocation8 + $0x578] sm:$0xff]
    %v487 = vld [vmem:[#allocation8 + $0x580] sm:$0xff]
    %v488 = vld [vmem:[#allocation8 + $0x588] sm:$0xf]
    %v489 = vld [vmem:[#allocation8 + $0x58c] sm:$0xff]
    %v490 = vld [vmem:[#allocation8 + $0x594] sm:$0xff]
    %v491 = vld [vmem:[#allocation8 + $0x59c] sm:$0xf]
    %v492 = vld [vmem:[#allocation8 + $0x5a0] sm:$0xff]
    %v493 = vld [vmem:[#allocation8 + $0x5a8] sm:$0xff]
    %v494 = vld [vmem:[#allocation8 + $0x5b0] sm:$0xf]
    %v495 = vld [vmem:[#allocation8 + $0x5b4] sm:$0xff]
    %v496 = vld [vmem:[#allocation8 + $0x5bc] sm:$0xff]
    %v497 = vld [vmem:[#allocation8 + $0x5c4] sm:$0xf]
    %v498 = vld [vmem:[#allocation8 + $0x5c8] sm:$0xff]
    %v499 = vld [vmem:[#allocation8 + $0x5d0] sm:$0xff]
    %v500 = vld [vmem:[#allocation8 + $0x5d8] sm:$0xf]
    %v501 = vld [vmem:[#allocation8 + $0x5dc] sm:$0xff]
    %v502 = vld [vmem:[#allocation8 + $0x5e4] sm:$0xff]
    %v503 = vld [vmem:[#allocation8 + $0x5ec] sm:$0xf]
    %v504 = vld [vmem:[#allocation8 + $0x5f0] sm:$0xff]
    %v505 = vld [vmem:[#allocation8 + $0x5f8] sm:$0xff]
    %v506 = vld [vmem:[#allocation8 + $0x600] sm:$0xf]
    %v507 = vld [vmem:[#allocation8 + $0x604] sm:$0xff]
    %v508 = vld [vmem:[#allocation8 + $0x60c] sm:$0xff]
    %v509 = vld [vmem:[#allocation8 + $0x614] sm:$0xf]
    %v510 = vld [vmem:[#allocation8 + $0x618] sm:$0xff]
    %v511 = vld [vmem:[#allocation8 + $0x620] sm:$0xff]
    %v512 = vld [vmem:[#allocation8 + $0x628] sm:$0xf]
    %v513 = vld [vmem:[#allocation8 + $0x62c] sm:$0xff]
    %v514 = vld [vmem:[#allocation8 + $0x634] sm:$0xff]
    %v515 = vld [vmem:[#allocation8 + $0x63c] sm:$0xf]
    %v516 = vld [vmem:[#allocation8 + $0x640] sm:$0xff]
    %v517 = vld [vmem:[#allocation8 + $0x648] sm:$0xff]
    %v518 = vld [vmem:[#allocation8 + $0x650] sm:$0xf]
    %v519 = vld [vmem:[#allocation8 + $0x654] sm:$0xff]
    %v520 = vld [vmem:[#allocation8 + $0x65c] sm:$0xff]
    %v521 = vld [vmem:[#allocation8 + $0x664] sm:$0xf]
    %v522 = vld [vmem:[#allocation8 + $0x668] sm:$0xff]
    %v523 = vld [vmem:[#allocation8 + $0x670] sm:$0xff]
    %v524 = vld [vmem:[#allocation8 + $0x678] sm:$0xf]
    %v525 = vld [vmem:[#allocation8 + $0x67c] sm:$0xff]
    %v526 = vld [vmem:[#allocation8 + $0x684] sm:$0xff]
    %v527 = vld [vmem:[#allocation8 + $0x68c] sm:$0xf]
    %v528 = vld [vmem:[#allocation8 + $0x690] sm:$0xff]
    %v529 = vld [vmem:[#allocation8 + $0x698] sm:$0xff]
    %v530 = vld [vmem:[#allocation8 + $0x6a0] sm:$0xf]
    %v531 = vld [vmem:[#allocation8 + $0x6a4] sm:$0xff]
    %v532 = vld [vmem:[#allocation8 + $0x6ac] sm:$0xff]
    %v533 = vld [vmem:[#allocation8 + $0x6b4] sm:$0xf]
    %v534 = vld [vmem:[#allocation8 + $0x6b8] sm:$0xff]
    %v535 = vld [vmem:[#allocation8 + $0x6c0] sm:$0xff]
    %v536 = vld [vmem:[#allocation8 + $0x6c8] sm:$0xf]
    %v537 = vld [vmem:[#allocation8 + $0x6cc] sm:$0xff]
    %v538 = vld [vmem:[#allocation8 + $0x6d4] sm:$0xff]
    %v539 = vld [vmem:[#allocation8 + $0x6dc] sm:$0xf]
    %v540 = vld [vmem:[#allocation8 + $0x6e0] sm:$0xff]
    %v541 = vld [vmem:[#allocation8 + $0x6e8] sm:$0xff]
    %v542 = vld [vmem:[#allocation8 + $0x6f0] sm:$0xf]
    %v543 = vld [vmem:[#allocation8 + $0x6f4] sm:$0xff]
    %v544 = vld [vmem:[#allocation8 + $0x6fc] sm:$0xff]
    %v545 = vld [vmem:[#allocation8 + $0x704] sm:$0xf]
    %v546 = vld [vmem:[#allocation8 + $0x708] sm:$0xff]
    %v547 = vld [vmem:[#allocation8 + $0x710] sm:$0xff]
    %v548 = vld [vmem:[#allocation8 + $0x718] sm:$0xf]
    %v549 = vld [vmem:[#allocation8 + $0x71c] sm:$0xff]
    %v550 = vld [vmem:[#allocation8 + $0x724] sm:$0xff]
    %v551 = vld [vmem:[#allocation8 + $0x72c] sm:$0xf]
    %v552 = vld [vmem:[#allocation8 + $0x730] sm:$0xff]
    %v553 = vld [vmem:[#allocation8 + $0x738] sm:$0xff]
    %v554 = vld [vmem:[#allocation8 + $0x740] sm:$0xf]
    %v555 = vld [vmem:[#allocation8 + $0x744] sm:$0xff]
    %v556 = vld [vmem:[#allocation8 + $0x74c] sm:$0xff]
    %v557 = vld [vmem:[#allocation8 + $0x754] sm:$0xf]
    %v558 = vld [vmem:[#allocation8 + $0x758] sm:$0xff]
    %v559 = vld [vmem:[#allocation8 + $0x760] sm:$0xff]
    %v560 = vld [vmem:[#allocation8 + $0x768] sm:$0xf]
    %v561 = vld [vmem:[#allocation8 + $0x76c] sm:$0xff]
    %v562 = vld [vmem:[#allocation8 + $0x774] sm:$0xff]
    %v563 = vld [vmem:[#allocation8 + $0x77c] sm:$0xf]
    %v564 = vld [vmem:[#allocation8 + $0x780] sm:$0xff]
    %v565 = vld [vmem:[#allocation8 + $0x788] sm:$0xff]
    %v566 = vld [vmem:[#allocation8 + $0x790] sm:$0xf]
    %v567 = vld [vmem:[#allocation8 + $0x794] sm:$0xff]
    %v568 = vld [vmem:[#allocation8 + $0x79c] sm:$0xff]
    %v569 = vld [vmem:[#allocation8 + $0x7a4] sm:$0xf]
    %v570 = vld [vmem:[#allocation8 + $0x7a8] sm:$0xff]
    %v571 = vld [vmem:[#allocation8 + $0x7b0] sm:$0xff]
    %v572 = vld [vmem:[#allocation8 + $0x7b8] sm:$0xf]
    %v573 = vld [vmem:[#allocation8 + $0x7bc] sm:$0xff]
    %v574 = vld [vmem:[#allocation8 + $0x7c4] sm:$0xff]
    %v575 = vld [vmem:[#allocation8 + $0x7cc] sm:$0xf]
    %v576 = vld [vmem:[#allocation8 + $0x7d0] sm:$0xff]
    %v577 = vld [vmem:[#allocation8 + $0x7d8] sm:$0xff]
    %v578 = vld [vmem:[#allocation8 + $0x7e0] sm:$0xf]
    %v579 = vld [vmem:[#allocation8 + $0x7e4] sm:$0xff]
    %v580 = vld [vmem:[#allocation8 + $0x7ec] sm:$0xff]
    %v581 = vld [vmem:[#allocation8 + $0x7f4] sm:$0xf]
    %v582 = vld [vmem:[#allocation8 + $0x7f8] sm:$0xff]
    %v583 = vld [vmem:[#allocation8 + $0x800] sm:$0xff]
    %v584 = vld [vmem:[#allocation8 + $0x808] sm:$0xf]
    %v585 = vld [vmem:[#allocation8 + $0x80c] sm:$0xff]
    %v586 = vld [vmem:[#allocation8 + $0x814] sm:$0xff]
    %v587 = vld [vmem:[#allocation8 + $0x81c] sm:$0xf]
    %v588 = vld [vmem:[#allocation8 + $0x820] sm:$0xff]
    %v589 = vld [vmem:[#allocation8 + $0x828] sm:$0xff]
    %v590 = vld [vmem:[#allocation8 + $0x830] sm:$0xf]
    %v591 = vld [vmem:[#allocation8 + $0x834] sm:$0xff]
    %v592 = vld [vmem:[#allocation8 + $0x83c] sm:$0xff]
    %v593 = vld [vmem:[#allocation8 + $0x844] sm:$0xf]
    %v594 = vld [vmem:[#allocation8 + $0x848] sm:$0xff]
    %v595 = vld [vmem:[#allocation8 + $0x850] sm:$0xff]
    %v596 = vld [vmem:[#allocation8 + $0x858] sm:$0xf]
    %v597 = vld [vmem:[#allocation8 + $0x85c] sm:$0xff]
    %v598 = vld [vmem:[#allocation8 + $0x864] sm:$0xff]
    %v599 = vld [vmem:[#allocation8 + $0x86c] sm:$0xf]
    %v600 = vld [vmem:[#allocation8 + $0x870] sm:$0xff]
    %v601 = vld [vmem:[#allocation8 + $0x878] sm:$0xff]
    %v602 = vld [vmem:[#allocation8 + $0x880] sm:$0xf]
    %v603 = vld [vmem:[#allocation8 + $0x884] sm:$0xff]
    %v604 = vld [vmem:[#allocation8 + $0x88c] sm:$0xff]
    %v605 = vld [vmem:[#allocation8 + $0x894] sm:$0xf]
    %v606 = vld [vmem:[#allocation8 + $0x898] sm:$0xff]
    %v607 = vld [vmem:[#allocation8 + $0x8a0] sm:$0xff]
    %v608 = vld [vmem:[#allocation8 + $0x8a8] sm:$0xf]
    %v609 = vld [vmem:[#allocation8 + $0x8ac] sm:$0xff]
    %v610 = vld [vmem:[#allocation8 + $0x8b4] sm:$0xff]
    %v611 = vld [vmem:[#allocation8 + $0x8bc] sm:$0xf]
    %v612 = vld [vmem:[#allocation8 + $0x8c0] sm:$0xff]
    %v613 = vld [vmem:[#allocation8 + $0x8c8] sm:$0xff]
    %v614 = vld [vmem:[#allocation8 + $0x8d0] sm:$0xf]
    %v615 = vld [vmem:[#allocation8 + $0x8d4] sm:$0xff]
    %v616 = vld [vmem:[#allocation8 + $0x8dc] sm:$0xff]
    %v617 = vld [vmem:[#allocation8 + $0x8e4] sm:$0xf]
    %v618 = vld [vmem:[#allocation8 + $0x8e8] sm:$0xff]
    %v619 = vld [vmem:[#allocation8 + $0x8f0] sm:$0xff]
    %v620 = vld [vmem:[#allocation8 + $0x8f8] sm:$0xf]
    %v621 = vld [vmem:[#allocation8 + $0x8fc] sm:$0xff]
    %v622 = vld [vmem:[#allocation8 + $0x904] sm:$0xff]
    %v623 = vld [vmem:[#allocation8 + $0x90c] sm:$0xf]
    %v624 = vld [vmem:[#allocation8 + $0x910] sm:$0xff]
    %v625 = vld [vmem:[#allocation8 + $0x918] sm:$0xff]
    %v626 = vld [vmem:[#allocation8 + $0x920] sm:$0xf]
    %v627 = vld [vmem:[#allocation8 + $0x924] sm:$0xff]
    %v628 = vld [vmem:[#allocation8 + $0x92c] sm:$0xff]
    %v629 = vld [vmem:[#allocation8 + $0x934] sm:$0xf]
    %v630 = vld [vmem:[#allocation8 + $0x938] sm:$0xff]
    %v631 = vld [vmem:[#allocation8 + $0x940] sm:$0xff]
    %v632 = vld [vmem:[#allocation8 + $0x948] sm:$0xf]
    %v633 = vld [vmem:[#allocation8 + $0x94c] sm:$0xff]
    %v634 = vld [vmem:[#allocation8 + $0x954] sm:$0xff]
    %v635 = vld [vmem:[#allocation8 + $0x95c] sm:$0xf]
    %v636 = vld [vmem:[#allocation8 + $0x960] sm:$0xff]
    %v637 = vld [vmem:[#allocation8 + $0x968] sm:$0xff]
    %v638 = vld [vmem:[#allocation8 + $0x970] sm:$0xf]
    %v639 = vld [vmem:[#allocation8 + $0x974] sm:$0xff]
    %v640 = vld [vmem:[#allocation8 + $0x97c] sm:$0xff]
    %v641 = vld [vmem:[#allocation8 + $0x984] sm:$0xf]
    %v642 = vld [vmem:[#allocation8 + $0x988] sm:$0xff]
    %v643 = vld [vmem:[#allocation8 + $0x990] sm:$0xff]
    %v644 = vld [vmem:[#allocation8 + $0x998] sm:$0xf]
    %v645 = vld [vmem:[#allocation8 + $0x99c] sm:$0xff]
    %v646 = vld [vmem:[#allocation8 + $0x9a4] sm:$0xff]
    %v647 = vld [vmem:[#allocation8 + $0x9ac] sm:$0xf]
    %v648 = vld [vmem:[#allocation8 + $0x9b0] sm:$0xff]
    %v649 = vld [vmem:[#allocation8 + $0x9b8] sm:$0xff]
    %v650 = vld [vmem:[#allocation8 + $0x9c0] sm:$0xf]
    %v651 = vld [vmem:[#allocation8 + $0x9c4] sm:$0xff]
    %v652 = vld [vmem:[#allocation8 + $0x9cc] sm:$0xff]
    %v653 = vld [vmem:[#allocation8 + $0x9d4] sm:$0xf]
    %v654 = vld [vmem:[#allocation8 + $0x9d8] sm:$0xff]
    %v655 = vld [vmem:[#allocation8 + $0x9e0] sm:$0xff]
    %v656 = vld [vmem:[#allocation8 + $0x9e8] sm:$0xf]
    %v657 = vld [vmem:[#allocation8 + $0x9ec] sm:$0xff]
    %v658 = vld [vmem:[#allocation8 + $0x9f4] sm:$0xff]
    %v659 = vld [vmem:[#allocation8 + $0x9fc] sm:$0xf]
    %v660 = vld [vmem:[#allocation8 + $0xa00] sm:$0xff]
    %v661 = vld [vmem:[#allocation8 + $0xa08] sm:$0xff]
    %v662 = vld [vmem:[#allocation8 + $0xa10] sm:$0xf]
    %v663 = vld [vmem:[#allocation8 + $0xa14] sm:$0xff]
    %v664 = vld [vmem:[#allocation8 + $0xa1c] sm:$0xff]
    %v665 = vld [vmem:[#allocation8 + $0xa24] sm:$0xf]
    %v666 = vld [vmem:[#allocation8 + $0xa28] sm:$0xff]
    %v667 = vld [vmem:[#allocation8 + $0xa30] sm:$0xff]
    %v668 = vld [vmem:[#allocation8 + $0xa38] sm:$0xf]
    %v669 = vld [vmem:[#allocation8 + $0xa3c] sm:$0xff]
    %v670 = vld [vmem:[#allocation8 + $0xa44] sm:$0xff]
    %v671 = vld [vmem:[#allocation8 + $0xa4c] sm:$0xf]
    %v672 = vld [vmem:[#allocation8 + $0xa50] sm:$0xff]
    %v673 = vld [vmem:[#allocation8 + $0xa58] sm:$0xff]
    %v674 = vld [vmem:[#allocation8 + $0xa60] sm:$0xf]
    %v675 = vld [vmem:[#allocation8 + $0xa64] sm:$0xff]
    %v676 = vld [vmem:[#allocation8 + $0xa6c] sm:$0xff]
    %v677 = vld [vmem:[#allocation8 + $0xa74] sm:$0xf]
    %v678 = vld [vmem:[#allocation8 + $0xa78] sm:$0xff]
    %v679 = vld [vmem:[#allocation8 + $0xa80] sm:$0xff]
    %v680 = vld [vmem:[#allocation8 + $0xa88] sm:$0xf]
    %v681 = vld [vmem:[#allocation8 + $0xa8c] sm:$0xff]
    %v682 = vld [vmem:[#allocation8 + $0xa94] sm:$0xff]
    %v683 = vld [vmem:[#allocation8 + $0xa9c] sm:$0xf]
    %v684 = vld [vmem:[#allocation8 + $0xaa0] sm:$0xff]
    %v685 = vld [vmem:[#allocation8 + $0xaa8] sm:$0xff]
    %v686 = vld [vmem:[#allocation8 + $0xab0] sm:$0xf]
    %v687 = vld [vmem:[#allocation8 + $0xab4] sm:$0xff]
    %v688 = vld [vmem:[#allocation8 + $0xabc] sm:$0xff]
    %v689 = vld [vmem:[#allocation8 + $0xac4] sm:$0xf]
    %v690 = vld [vmem:[#allocation8 + $0xac8] sm:$0xff]
    %v691 = vld [vmem:[#allocation8 + $0xad0] sm:$0xff]
    %v692 = vld [vmem:[#allocation8 + $0xad8] sm:$0xf]
    %v693 = vld [vmem:[#allocation8 + $0xadc] sm:$0xff]
    %v694 = vld [vmem:[#allocation8 + $0xae4] sm:$0xff]
    %v695 = vld [vmem:[#allocation8 + $0xaec] sm:$0xf]
    %v696 = vld [vmem:[#allocation8 + $0xaf0] sm:$0xff]
    %v697 = vld [vmem:[#allocation8 + $0xaf8] sm:$0xff]
    %v698 = vld [vmem:[#allocation8 + $0xb00] sm:$0xf]
    %v699 = vld [vmem:[#allocation8 + $0xb04] sm:$0xff]
    %v700 = vld [vmem:[#allocation8 + $0xb0c] sm:$0xff]
    %v701 = vld [vmem:[#allocation8 + $0xb14] sm:$0xf]
    %v702 = vld [vmem:[#allocation8 + $0xb18] sm:$0xff]
    %v703 = vld [vmem:[#allocation8 + $0xb20] sm:$0xff]
    %v704 = vld [vmem:[#allocation8 + $0xb28] sm:$0xf]
    %v705 = vld [vmem:[#allocation8 + $0xb2c] sm:$0xff]
    %v706 = vld [vmem:[#allocation8 + $0xb34] sm:$0xff]
    %v707 = vld [vmem:[#allocation8 + $0xb3c] sm:$0xf]
    %v708 = vld [vmem:[#allocation8 + $0xb40] sm:$0xff]
    %v709 = vld [vmem:[#allocation8 + $0xb48] sm:$0xff]
    %v710 = vld [vmem:[#allocation8 + $0xb50] sm:$0xf]
    %v711 = vld [vmem:[#allocation8 + $0xb54] sm:$0xff]
    %v712 = vld [vmem:[#allocation8 + $0xb5c] sm:$0xff]
    %v713 = vld [vmem:[#allocation8 + $0xb64] sm:$0xf]
    %v714 = vld [vmem:[#allocation8 + $0xb68] sm:$0xff]
    %v715 = vld [vmem:[#allocation8 + $0xb70] sm:$0xff]
    %v716 = vld [vmem:[#allocation8 + $0xb78] sm:$0xf]
    %v717 = vld [vmem:[#allocation8 + $0xb7c] sm:$0xff]
    %v718 = vld [vmem:[#allocation8 + $0xb84] sm:$0xff]
    %v719 = vld [vmem:[#allocation8 + $0xb8c] sm:$0xf]
    %v720 = vld [vmem:[#allocation8 + $0xb90] sm:$0xff]
    %v721 = vld [vmem:[#allocation8 + $0xb98] sm:$0xff]
    %v722 = vld [vmem:[#allocation8 + $0xba0] sm:$0xf]
    %v723 = vld [vmem:[#allocation8 + $0xba4] sm:$0xff]
    %v724 = vld [vmem:[#allocation8 + $0xbac] sm:$0xff]
    %v725 = vld [vmem:[#allocation8 + $0xbb4] sm:$0xf]
    %v726 = vld [vmem:[#allocation8 + $0xbb8] sm:$0xff]
    %v727 = vld [vmem:[#allocation8 + $0xbc0] sm:$0xff]
    %v728 = vld [vmem:[#allocation8 + $0xbc8] sm:$0xf]
    %v729 = vld [vmem:[#allocation8 + $0xbcc] sm:$0xff]
    %v730 = vld [vmem:[#allocation8 + $0xbd4] sm:$0xff]
    %v731 = vld [vmem:[#allocation8 + $0xbdc] sm:$0xf]
    %v732 = vld [vmem:[#allocation8 + $0xbe0] sm:$0xff]
    %v733 = vld [vmem:[#allocation8 + $0xbe8] sm:$0xff]
    %v734 = vld [vmem:[#allocation8 + $0xbf0] sm:$0xf]
    %v735 = vld [vmem:[#allocation8 + $0xbf4] sm:$0xff]
    %v736 = vld [vmem:[#allocation8 + $0xbfc] sm:$0xff]
    %v737 = vld [vmem:[#allocation8 + $0xc04] sm:$0xf]
    %v738 = vld [vmem:[#allocation8 + $0xc08] sm:$0xff]
    %v739 = vld [vmem:[#allocation8 + $0xc10] sm:$0xff]
    %v740 = vld [vmem:[#allocation8 + $0xc18] sm:$0xf]
    %v741 = vld [vmem:[#allocation8 + $0xc1c] sm:$0xff]
    %v742 = vld [vmem:[#allocation8 + $0xc24] sm:$0xff]
    %v743 = vld [vmem:[#allocation8 + $0xc2c] sm:$0xf]
    %v744 = vld [vmem:[#allocation8 + $0xc30] sm:$0xff]
    %v745 = vld [vmem:[#allocation8 + $0xc38] sm:$0xff]
    %v746 = vld [vmem:[#allocation8 + $0xc40] sm:$0xf]
    %v747 = vld [vmem:[#allocation8 + $0xc44] sm:$0xff]
    %v748 = vld [vmem:[#allocation8 + $0xc4c] sm:$0xff]
    %v749 = vld [vmem:[#allocation8 + $0xc54] sm:$0xf]
    %v750 = vld [vmem:[#allocation8 + $0xc58] sm:$0xff]
    %v751 = vld [vmem:[#allocation8 + $0xc60] sm:$0xff]
    %v752 = vld [vmem:[#allocation8 + $0xc68] sm:$0xf]
    %v753 = vld [vmem:[#allocation8 + $0xc6c] sm:$0xff]
    %v754 = vld [vmem:[#allocation8 + $0xc74] sm:$0xff]
    %v755 = vld [vmem:[#allocation8 + $0xc7c] sm:$0xf]
    %v756 = vld [vmem:[#allocation8 + $0xc80] sm:$0xff]
    %v757 = vld [vmem:[#allocation8 + $0xc88] sm:$0xff]
    %v758 = vld [vmem:[#allocation8 + $0xc90] sm:$0xf]
    %v759 = vld [vmem:[#allocation8 + $0xc94] sm:$0xff]
    %v760 = vld [vmem:[#allocation8 + $0xc9c] sm:$0xff]
    %v761 = vld [vmem:[#allocation8 + $0xca4] sm:$0xf]
    %v762 = vld [vmem:[#allocation8 + $0xca8] sm:$0xff]
    %v763 = vld [vmem:[#allocation8 + $0xcb0] sm:$0xff]
    %v764 = vld [vmem:[#allocation8 + $0xcb8] sm:$0xf]
    %v765 = vld [vmem:[#allocation8 + $0xcbc] sm:$0xff]
    %v766 = vld [vmem:[#allocation8 + $0xcc4] sm:$0xff]
    %v767 = vld [vmem:[#allocation8 + $0xccc] sm:$0xf]
    %v768 = vld [vmem:[#allocation8 + $0xcd0] sm:$0xff]
    %v769 = vld [vmem:[#allocation8 + $0xcd8] sm:$0xff]
    %v770 = vld [vmem:[#allocation8 + $0xce0] sm:$0xf]
    %v771 = vld [vmem:[#allocation8 + $0xce4] sm:$0xff]
    %v772 = vld [vmem:[#allocation8 + $0xcec] sm:$0xff]
    %v773 = vld [vmem:[#allocation8 + $0xcf4] sm:$0xf]
    %v774 = vld [vmem:[#allocation8 + $0xcf8] sm:$0xff]
    %v775 = vld [vmem:[#allocation8 + $0xd00] sm:$0xff]
    %v776 = vld [vmem:[#allocation8 + $0xd08] sm:$0xf]
    %v777 = vld [vmem:[#allocation8 + $0xd0c] sm:$0xff]
    %v778 = vld [vmem:[#allocation8 + $0xd14] sm:$0xff]
    %v779 = vld [vmem:[#allocation8 + $0xd1c] sm:$0xf]
    %v780 = vld [vmem:[#allocation8 + $0xd20] sm:$0xff]
    %v781 = vld [vmem:[#allocation8 + $0xd28] sm:$0xff]
    %v782 = vld [vmem:[#allocation8 + $0xd30] sm:$0xf]
    %v783 = vld [vmem:[#allocation8 + $0xd34] sm:$0xff]
    %v784 = vld [vmem:[#allocation8 + $0xd3c] sm:$0xff]
    %v785 = vld [vmem:[#allocation8 + $0xd44] sm:$0xf]
    %v786 = vld [vmem:[#allocation8 + $0xd48] sm:$0xff]
    %v787 = vld [vmem:[#allocation8 + $0xd50] sm:$0xff]
    %v788 = vld [vmem:[#allocation8 + $0xd58] sm:$0xf]
    %v789 = vld [vmem:[#allocation8 + $0xd5c] sm:$0xff]
    %v790 = vld [vmem:[#allocation8 + $0xd64] sm:$0xff]
    %v791 = vld [vmem:[#allocation8 + $0xd6c] sm:$0xf]
    %v792 = vld [vmem:[#allocation8 + $0xd70] sm:$0xff]
    %v793 = vld [vmem:[#allocation8 + $0xd78] sm:$0xff]
    %v794 = vld [vmem:[#allocation8 + $0xd80] sm:$0xf]
    %v795 = vld [vmem:[#allocation8 + $0xd84] sm:$0xff]
    %v796 = vld [vmem:[#allocation8 + $0xd8c] sm:$0xff]
    %v797 = vld [vmem:[#allocation8 + $0xd94] sm:$0xf]
    %v798 = vld [vmem:[#allocation8 + $0xd98] sm:$0xff]
    %v799 = vld [vmem:[#allocation8 + $0xda0] sm:$0xff]
    %v800 = vld [vmem:[#allocation8 + $0xda8] sm:$0xf]
    %v801 = vld [vmem:[#allocation8 + $0xdac] sm:$0xff]
    %v802 = vld [vmem:[#allocation8 + $0xdb4] sm:$0xff]
    %v803 = vld [vmem:[#allocation8 + $0xdbc] sm:$0xf]
    %v804 = vld [vmem:[#allocation8 + $0xdc0] sm:$0xff]
    %v805 = vld [vmem:[#allocation8 + $0xdc8] sm:$0xff]
    %v806 = vld [vmem:[#allocation8 + $0xdd0] sm:$0xf]
    %v807 = vld [vmem:[#allocation8 + $0xdd4] sm:$0xff]
    %v808 = vld [vmem:[#allocation8 + $0xddc] sm:$0xff]
    %v809 = vld [vmem:[#allocation8 + $0xde4] sm:$0xf]
    %v810 = vld [vmem:[#allocation8 + $0xde8] sm:$0xff]
    %v811 = vld [vmem:[#allocation8 + $0xdf0] sm:$0xff]
    %v812 = vld [vmem:[#allocation8 + $0xdf8] sm:$0xf]
    %v813 = vld [vmem:[#allocation8 + $0xdfc] sm:$0xff]
    %v814 = vld [vmem:[#allocation8 + $0xe04] sm:$0xff]
    %v815 = vld [vmem:[#allocation8 + $0xe0c] sm:$0xf]
    %v816 = vld [vmem:[#allocation8 + $0xe10] sm:$0xff]
    %v817 = vld [vmem:[#allocation8 + $0xe18] sm:$0xff]
    %v818 = vld [vmem:[#allocation8 + $0xe20] sm:$0xf]
    %v819 = vld [vmem:[#allocation8 + $0xe24] sm:$0xff]
    %v820 = vld [vmem:[#allocation8 + $0xe2c] sm:$0xff]
    %v821 = vld [vmem:[#allocation8 + $0xe34] sm:$0xf]
    %v822 = vld [vmem:[#allocation8 + $0xe38] sm:$0xff]
    %v823 = vld [vmem:[#allocation8 + $0xe40] sm:$0xff]
    %v824 = vld [vmem:[#allocation8 + $0xe48] sm:$0xf]
    %v825 = vld [vmem:[#allocation8 + $0xe4c] sm:$0xff]
    %v826 = vld [vmem:[#allocation8 + $0xe54] sm:$0xff]
    %v827 = vld [vmem:[#allocation8 + $0xe5c] sm:$0xf]
    %v828 = vld [vmem:[#allocation8 + $0xe60] sm:$0xff]
    %v829 = vld [vmem:[#allocation8 + $0xe68] sm:$0xff]
    %v830 = vld [vmem:[#allocation8 + $0xe70] sm:$0xf]
    %v831 = vld [vmem:[#allocation8 + $0xe74] sm:$0xff]
    %v832 = vld [vmem:[#allocation8 + $0xe7c] sm:$0xff]
    %v833 = vld [vmem:[#allocation8 + $0xe84] sm:$0xf]
    %v834 = vld [vmem:[#allocation8 + $0xe88] sm:$0xff]
    %v835 = vld [vmem:[#allocation8 + $0xe90] sm:$0xff]
    %v836 = vld [vmem:[#allocation8 + $0xe98] sm:$0xf]
    %v837 = vld [vmem:[#allocation8 + $0xe9c] sm:$0xff]
    %v838 = vld [vmem:[#allocation8 + $0xea4] sm:$0xff]
    %v839 = vld [vmem:[#allocation8 + $0xeac] sm:$0xf]
    %v840 = vld [vmem:[#allocation8 + $0xeb0] sm:$0xff]
    %v841 = vld [vmem:[#allocation8 + $0xeb8] sm:$0xff]
    %v842 = vld [vmem:[#allocation8 + $0xec0] sm:$0xf]
    %v843 = vld [vmem:[#allocation8 + $0xec4] sm:$0xff]
    %v844 = vld [vmem:[#allocation8 + $0xecc] sm:$0xff]
    %v845 = vld [vmem:[#allocation8 + $0xed4] sm:$0xf]
    %v846 = vld [vmem:[#allocation8 + $0xed8] sm:$0xff]
    %v847 = vld [vmem:[#allocation8 + $0xee0] sm:$0xff]
    %v848 = vld [vmem:[#allocation8 + $0xee8] sm:$0xf]
    %v849 = vld [vmem:[#allocation8 + $0xeec] sm:$0xff]
    %v850 = vld [vmem:[#allocation8 + $0xef4] sm:$0xff]
    %v851 = vld [vmem:[#allocation8 + $0xefc] sm:$0xf]
    %v852 = vld [vmem:[#allocation8 + $0xf00] sm:$0xff]
    %v853 = vld [vmem:[#allocation8 + $0xf08] sm:$0xff]
    %v854 = vld [vmem:[#allocation8 + $0xf10] sm:$0xf]
    %v855 = vld [vmem:[#allocation8 + $0xf14] sm:$0xff]
    %v856 = vld [vmem:[#allocation8 + $0xf1c] sm:$0xff]
    %v857 = vld [vmem:[#allocation8 + $0xf24] sm:$0xf]
    %v858 = vld [vmem:[#allocation8 + $0xf28] sm:$0xff]
    %v859 = vld [vmem:[#allocation8 + $0xf30] sm:$0xff]
    %v860 = vld [vmem:[#allocation8 + $0xf38] sm:$0xf]
    %v861 = vld [vmem:[#allocation8 + $0xf3c] sm:$0xff]
    %v862 = vld [vmem:[#allocation8 + $0xf44] sm:$0xff]
    %v863 = vld [vmem:[#allocation8 + $0xf4c] sm:$0xf]
    %v864 = vld [vmem:[#allocation8 + $0xf50] sm:$0xff]
    %v865 = vld [vmem:[#allocation8 + $0xf58] sm:$0xff]
    %v866 = vld [vmem:[#allocation8 + $0xf60] sm:$0xf]
    %v867 = vld [vmem:[#allocation8 + $0xf64] sm:$0xff]
    %v868 = vld [vmem:[#allocation8 + $0xf6c] sm:$0xff]
    %v869 = vld [vmem:[#allocation8 + $0xf74] sm:$0xf]
    %v870 = vld [vmem:[#allocation8 + $0xf78] sm:$0xff]
    %v871 = vld [vmem:[#allocation8 + $0xf80] sm:$0xff]
    %v872 = vld [vmem:[#allocation8 + $0xf88] sm:$0xf]
    %v873 = vld [vmem:[#allocation8 + $0xf8c] sm:$0xff]
    %v874 = vld [vmem:[#allocation8 + $0xf94] sm:$0xff]
    %v875 = vld [vmem:[#allocation8 + $0xf9c] sm:$0xf]
    %v876 = vld [vmem:[#allocation8 + $0xfa0] sm:$0xff]
    %v877 = vld [vmem:[#allocation8 + $0xfa8] sm:$0xff]
    %v878 = vld [vmem:[#allocation8 + $0xfb0] sm:$0xf]
    %v879 = vld [vmem:[#allocation8 + $0xfb4] sm:$0xff]
    %v880 = vld [vmem:[#allocation8 + $0xfbc] sm:$0xff]
    %v881 = vld [vmem:[#allocation8 + $0xfc4] sm:$0xf]
    %v882 = vld [vmem:[#allocation8 + $0xfc8] sm:$0xff]
    %v883 = vld [vmem:[#allocation8 + $0xfd0] sm:$0xff]
    %v884 = vld [vmem:[#allocation8 + $0xfd8] sm:$0xf]
    %v885 = vld [vmem:[#allocation8 + $0xfdc] sm:$0xff]
    %v886 = vld [vmem:[#allocation8 + $0xfe4] sm:$0xff]
    %v887 = vld [vmem:[#allocation8 + $0xfec] sm:$0xf]
    %v888 = vld [vmem:[#allocation8 + $0xff0] sm:$0xff]
    %v889 = vld [vmem:[#allocation8 + $0xff8] sm:$0xff]
    %v890 = vld [vmem:[#allocation8 + $0x1000] sm:$0xf]
    %v891 = vld [vmem:[#allocation8 + $0x1004] sm:$0xff]
    %v892 = vld [vmem:[#allocation8 + $0x100c] sm:$0xff]
    %v893 = vld [vmem:[#allocation8 + $0x1014] sm:$0xf]
    %v894 = vld [vmem:[#allocation8 + $0x1018] sm:$0xff]
    %v895 = vld [vmem:[#allocation8 + $0x1020] sm:$0xff]
    %v896 = vld [vmem:[#allocation8 + $0x1028] sm:$0xf]
    %v897 = vld [vmem:[#allocation8 + $0x102c] sm:$0xff]
    %v898 = vld [vmem:[#allocation8 + $0x1034] sm:$0xff]
    %v899 = vld [vmem:[#allocation8 + $0x103c] sm:$0xf]
    %v900 = vld [vmem:[#allocation8 + $0x1040] sm:$0xff]
    %v901 = vld [vmem:[#allocation8 + $0x1048] sm:$0xff]
    %v902 = vld [vmem:[#allocation8 + $0x1050] sm:$0xf]
    %v903 = vld [vmem:[#allocation8 + $0x1054] sm:$0xff]
    %v904 = vld [vmem:[#allocation8 + $0x105c] sm:$0xff]
    %v905 = vld [vmem:[#allocation8 + $0x1064] sm:$0xf]
    %v906 = vld [vmem:[#allocation8 + $0x1068] sm:$0xff]
    %v907 = vld [vmem:[#allocation8 + $0x1070] sm:$0xff]
    %v908 = vld [vmem:[#allocation8 + $0x1078] sm:$0xf]
    %v909 = vld [vmem:[#allocation8 + $0x107c] sm:$0xff]
    %v910 = vld [vmem:[#allocation8 + $0x1084] sm:$0xff]
    %v911 = vld [vmem:[#allocation8 + $0x108c] sm:$0xf]
    %v912 = vld [vmem:[#allocation8 + $0x1090] sm:$0xff]
    %v913 = vld [vmem:[#allocation8 + $0x1098] sm:$0xff]
    %v914 = vld [vmem:[#allocation8 + $0x10a0] sm:$0xf]
    %v915 = vld [vmem:[#allocation8 + $0x10a4] sm:$0xff]
    %v916 = vld [vmem:[#allocation8 + $0x10ac] sm:$0xff]
    %v917 = vld [vmem:[#allocation8 + $0x10b4] sm:$0xf]
    %v918 = vld [vmem:[#allocation8 + $0x10b8] sm:$0xff]
    %v919 = vld [vmem:[#allocation8 + $0x10c0] sm:$0xff]
    %v920 = vld [vmem:[#allocation8 + $0x10c8] sm:$0xf]
    %v921 = vld [vmem:[#allocation8 + $0x10cc] sm:$0xff]
    %v922 = vld [vmem:[#allocation8 + $0x10d4] sm:$0xff]
    %v923 = vld [vmem:[#allocation8 + $0x10dc] sm:$0xf]
    %v924 = vld [vmem:[#allocation8 + $0x10e0] sm:$0xff]
    %v925 = vld [vmem:[#allocation8 + $0x10e8] sm:$0xff]
    %v926 = vld [vmem:[#allocation8 + $0x10f0] sm:$0xf]
    %v927 = vld [vmem:[#allocation8 + $0x10f4] sm:$0xff]
    %v928 = vld [vmem:[#allocation8 + $0x10fc] sm:$0xff]
    %v929 = vld [vmem:[#allocation8 + $0x1104] sm:$0xf]
    %v930 = vld [vmem:[#allocation8 + $0x1108] sm:$0xff]
    %v931 = vld [vmem:[#allocation8 + $0x1110] sm:$0xff]
    %v932 = vld [vmem:[#allocation8 + $0x1118] sm:$0xf]
    %v933 = vld [vmem:[#allocation8 + $0x111c] sm:$0xff]
    %v934 = vld [vmem:[#allocation8 + $0x1124] sm:$0xff]
    %v935 = vld [vmem:[#allocation8 + $0x112c] sm:$0xf]
    %v936 = vld [vmem:[#allocation8 + $0x1130] sm:$0xff]
    %v937 = vld [vmem:[#allocation8 + $0x1138] sm:$0xff]
    %v938 = vld [vmem:[#allocation8 + $0x1140] sm:$0xf]
    %v939 = vld [vmem:[#allocation8 + $0x1144] sm:$0xff]
    %v940 = vld [vmem:[#allocation8 + $0x114c] sm:$0xff]
    %v941 = vld [vmem:[#allocation8 + $0x1154] sm:$0xf]
    %v942 = vld [vmem:[#allocation8 + $0x1158] sm:$0xff]
    %v943 = vld [vmem:[#allocation8 + $0x1160] sm:$0xff]
    %v944 = vld [vmem:[#allocation8 + $0x1168] sm:$0xf]
    %v945 = vld [vmem:[#allocation8 + $0x116c] sm:$0xff]
    %v946 = vld [vmem:[#allocation8 + $0x1174] sm:$0xff]
    %v947 = vld [vmem:[#allocation8 + $0x117c] sm:$0xf]
    %v948 = vld [vmem:[#allocation8 + $0x1180] sm:$0xff]
    %v949 = vld [vmem:[#allocation8 + $0x1188] sm:$0xff]
    %v950 = vld [vmem:[#allocation8 + $0x1190] sm:$0xf]
    %v951 = vld [vmem:[#allocation8 + $0x1194] sm:$0xff]
    %v952 = vld [vmem:[#allocation8 + $0x119c] sm:$0xff]
    %v953 = vld [vmem:[#allocation8 + $0x11a4] sm:$0xf]
    %v954 = vld [vmem:[#allocation8 + $0x11a8] sm:$0xff]
    %v955 = vld [vmem:[#allocation8 + $0x11b0] sm:$0xff]
    %v956 = vld [vmem:[#allocation8 + $0x11b8] sm:$0xf]
    %v957 = vld [vmem:[#allocation8 + $0x11bc] sm:$0xff]
    %v958 = vld [vmem:[#allocation8 + $0x11c4] sm:$0xff]
    %v959 = vld [vmem:[#allocation8 + $0x11cc] sm:$0xf]
    %v960 = vld [vmem:[#allocation8 + $0x11d0] sm:$0xff]
    %v961 = vld [vmem:[#allocation8 + $0x11d8] sm:$0xff]
    %v962 = vld [vmem:[#allocation8 + $0x11e0] sm:$0xf]
    %v963 = vld [vmem:[#allocation8 + $0x11e4] sm:$0xff]
    %v964 = vld [vmem:[#allocation8 + $0x11ec] sm:$0xff]
    %v965 = vld [vmem:[#allocation8 + $0x11f4] sm:$0xf]
    %v966 = vld [vmem:[#allocation8 + $0x11f8] sm:$0xff]
    %v967 = vld [vmem:[#allocation8 + $0x1200] sm:$0xff]
    %v968 = vld [vmem:[#allocation8 + $0x1208] sm:$0xf]
    %v969 = vld [vmem:[#allocation8 + $0x120c] sm:$0xff]
    %v970 = vld [vmem:[#allocation8 + $0x1214] sm:$0xff]
    %v971 = vld [vmem:[#allocation8 + $0x121c] sm:$0xf]
    %v972 = vld [vmem:[#allocation8 + $0x1220] sm:$0xff]
    %v973 = vld [vmem:[#allocation8 + $0x1228] sm:$0xff]
    %v974 = vld [vmem:[#allocation8 + $0x1230] sm:$0xf]
    %v975 = vld [vmem:[#allocation8 + $0x1234] sm:$0xff]
    %v976 = vld [vmem:[#allocation8 + $0x123c] sm:$0xff]
    %v977 = vld [vmem:[#allocation8 + $0x1244] sm:$0xf]
    %v978 = vld [vmem:[#allocation8 + $0x1248] sm:$0xff]
    %v979 = vld [vmem:[#allocation8 + $0x1250] sm:$0xff]
    %v980 = vld [vmem:[#allocation8 + $0x1258] sm:$0xf]
    %v981 = vld [vmem:[#allocation8 + $0x125c] sm:$0xff]
    %v982 = vld [vmem:[#allocation8 + $0x1264] sm:$0xff]
    %v983 = vld [vmem:[#allocation8 + $0x126c] sm:$0xf]
    %v984 = vld [vmem:[#allocation8 + $0x1270] sm:$0xff]
    %v985 = vld [vmem:[#allocation8 + $0x1278] sm:$0xff]
    %v986 = vld [vmem:[#allocation8 + $0x1280] sm:$0xf]
    %v987 = vld [vmem:[#allocation8 + $0x1284] sm:$0xff]
    %v988 = vld [vmem:[#allocation8 + $0x128c] sm:$0xff]
    %v989 = vld [vmem:[#allocation8 + $0x1294] sm:$0xf]
    %v990 = vld [vmem:[#allocation8 + $0x1298] sm:$0xff]
    %v991 = vld [vmem:[#allocation8 + $0x12a0] sm:$0xff]
    %v992 = vld [vmem:[#allocation8 + $0x12a8] sm:$0xf]
    %v993 = vld [vmem:[#allocation8 + $0x12ac] sm:$0xff]
    %v994 = vld [vmem:[#allocation8 + $0x12b4] sm:$0xff]
    %v995 = vld [vmem:[#allocation8 + $0x12bc] sm:$0xf]
    %v996 = vld [vmem:[#allocation8 + $0x12c0] sm:$0xff]
    %v997 = vld [vmem:[#allocation8 + $0x12c8] sm:$0xff]
    %v998 = vld [vmem:[#allocation8 + $0x12d0] sm:$0xf]
    %v999 = vld [vmem:[#allocation8 + $0x12d4] sm:$0xff]
    %v1000 = vld [vmem:[#allocation8 + $0x12dc] sm:$0xff]
    %v1001 = vld [vmem:[#allocation8 + $0x12e4] sm:$0xf]
    %v1002 = vld [vmem:[#allocation8 + $0x12e8] sm:$0xff]
    %v1003 = vld [vmem:[#allocation8 + $0x12f0] sm:$0xff]
    %v1004 = vld [vmem:[#allocation8 + $0x12f8] sm:$0xf]
    %v1005 = vld [vmem:[#allocation8 + $0x12fc] sm:$0xff]
    %v1006 = vld [vmem:[#allocation8 + $0x1304] sm:$0xff]
    %v1007 = vld [vmem:[#allocation8 + $0x130c] sm:$0xf]
    %v1008 = vld [vmem:[#allocation8 + $0x1310] sm:$0xff]
    %v1009 = vld [vmem:[#allocation8 + $0x1318] sm:$0xff]
    %v1010 = vld [vmem:[#allocation8 + $0x1320] sm:$0xf]
    %v1011 = vld [vmem:[#allocation8 + $0x1324] sm:$0xff]
    %v1012 = vld [vmem:[#allocation8 + $0x132c] sm:$0xff]
    %v1013 = vld [vmem:[#allocation8 + $0x1334] sm:$0xf]
    %v1014 = vld [vmem:[#allocation8 + $0x1338] sm:$0xff]
    %v1015 = vld [vmem:[#allocation8 + $0x1340] sm:$0xff]
    %v1016 = vld [vmem:[#allocation8 + $0x1348] sm:$0xf]
    %v1017 = vld [vmem:[#allocation8 + $0x134c] sm:$0xff]
    %v1018 = vld [vmem:[#allocation8 + $0x1354] sm:$0xff]
    %v1019 = vld [vmem:[#allocation8 + $0x135c] sm:$0xf]
    %v1020 = vld [vmem:[#allocation8 + $0x1360] sm:$0xff]
    %v1021 = vld [vmem:[#allocation8 + $0x1368] sm:$0xff]
    %v1022 = vld [vmem:[#allocation8 + $0x1370] sm:$0xf]
    %v1023 = vld [vmem:[#allocation8 + $0x1374] sm:$0xff]
    %v1024 = vld [vmem:[#allocation8 + $0x137c] sm:$0xff]
    %v1025 = vld [vmem:[#allocation8 + $0x1384] sm:$0xf]
    %v1026 = vld [vmem:[#allocation8 + $0x1388] sm:$0xff]
    %v1027 = vld [vmem:[#allocation8 + $0x1390] sm:$0xff]
    %v1028 = vld [vmem:[#allocation8 + $0x1398] sm:$0xf]
    %v1029 = vld [vmem:[#allocation8 + $0x139c] sm:$0xff]
    %v1030 = vld [vmem:[#allocation8 + $0x13a4] sm:$0xff]
    %v1031 = vld [vmem:[#allocation8 + $0x13ac] sm:$0xf]
    %v1032 = vld [vmem:[#allocation8 + $0x13b0] sm:$0xff]
    %v1033 = vld [vmem:[#allocation8 + $0x13b8] sm:$0xff]
    %v1034 = vld [vmem:[#allocation8 + $0x13c0] sm:$0xf]
    %v1035 = vld [vmem:[#allocation8 + $0x13c4] sm:$0xff]
    %v1036 = vld [vmem:[#allocation8 + $0x13cc] sm:$0xff]
    %v1037 = vld [vmem:[#allocation8 + $0x13d4] sm:$0xf]
    %v1038 = vld [vmem:[#allocation8 + $0x13d8] sm:$0xff]
    %v1039 = vld [vmem:[#allocation8 + $0x13e0] sm:$0xff]
    %v1040 = vld [vmem:[#allocation8 + $0x13e8] sm:$0xf]
    %v1041 = vld [vmem:[#allocation8 + $0x13ec] sm:$0xff]
    %v1042 = vld [vmem:[#allocation8 + $0x13f4] sm:$0xff]
    %v1043 = vld [vmem:[#allocation8 + $0x13fc] sm:$0xf]
    %v1044 = vld [vmem:[#allocation10] sm:$0xff]
    %v1045 = vld [vmem:[#allocation10 + $0x8] sm:$0xff]
    %v1046 = vld [vmem:[#allocation10 + $0x10] sm:$0xff]
    %v1047 = vld [vmem:[#allocation10 + $0x18] sm:$0xff]
    %v1048 = vld [vmem:[#allocation10 + $0x20] sm:$0xff]
    %v1049 = vld [vmem:[#allocation10 + $0x28] sm:$0xff]
    %v1050 = vld [vmem:[#allocation10 + $0x30] sm:$0xff]
    %v1051 = vld [vmem:[#allocation10 + $0x38] sm:$0xff]
    %v1052 = vld [vmem:[#allocation10 + $0x40] sm:$0xff]
    %v1053 = vld [vmem:[#allocation10 + $0x48] sm:$0xff]
    %v1054 = vld [vmem:[#allocation10 + $0x50] sm:$0xff]
    %v1055 = vld [vmem:[#allocation10 + $0x58] sm:$0xff]
    %v1056 = vld [vmem:[#allocation10 + $0x60] sm:$0xff]
    %v1057 = vld [vmem:[#allocation10 + $0x78] sm:$0xff]
    %v1058 = vld [vmem:[#allocation10 + $0x80] sm:$0xff]
    %v1059 = vld [vmem:[#allocation10 + $0x88] sm:$0xff]
    %v1060 = vld [vmem:[#allocation10 + $0xa0] sm:$0xff]
    %v1061 = vld [vmem:[#allocation10 + $0xa8] sm:$0xff]
    %v1062 = vld [vmem:[#allocation10 + $0xb0] sm:$0xff]
    %v1063 = vld [vmem:[#allocation10 + $0xc8] sm:$0xff]
    %v1064 = vld [vmem:[#allocation10 + $0xd0] sm:$0xff]
    %v1065 = vld [vmem:[#allocation10 + $0xd8] sm:$0xff]
    %v1066 = vld [vmem:[#allocation10 + $0xf0] sm:$0xff]
    %v1067 = vld [vmem:[#allocation10 + $0xf8] sm:$0xff]
    %v1068 = vld [vmem:[#allocation10 + $0x100] sm:$0xff]
    %v1069 = vld [vmem:[#allocation10 + $0x118] sm:$0xff]
    %v1070 = vld [vmem:[#allocation10 + $0x120] sm:$0xff]
    %v1071 = vld [vmem:[#allocation10 + $0x128] sm:$0xff]
    %v1072 = vld [vmem:[#allocation10 + $0x140] sm:$0xff]
    %v1073 = vld [vmem:[#allocation10 + $0x148] sm:$0xff]
    %v1074 = vld [vmem:[#allocation10 + $0x150] sm:$0xff]
    %v1075 = vld [vmem:[#allocation10 + $0x168] sm:$0xff]
    %v1076 = vld [vmem:[#allocation10 + $0x170] sm:$0xff]
    %v1077 = vld [vmem:[#allocation10 + $0x178] sm:$0xff]
    %v1078 = vld [vmem:[#allocation10 + $0x190] sm:$0xff]
    %v1079 = vld [vmem:[#allocation10 + $0x198] sm:$0xff]
    %v1080 = vld [vmem:[#allocation10 + $0x1a0] sm:$0xff]
    %v1081 = vld [vmem:[#allocation10 + $0x1b8] sm:$0xff]
    %v1082 = vld [vmem:[#allocation10 + $0x1c0] sm:$0xff]
    %v1083 = vld [vmem:[#allocation10 + $0x1c8] sm:$0xff]
    %v1084 = vld [vmem:[#allocation10 + $0x1e0] sm:$0xff]
    %v1085 = vld [vmem:[#allocation10 + $0x1e8] sm:$0xff]
    %v1086 = vld [vmem:[#allocation10 + $0x1f0] sm:$0xff]
    %v1087 = vld [vmem:[#allocation10 + $0x208] sm:$0xff]
    %v1088 = vld [vmem:[#allocation10 + $0x210] sm:$0xff]
    %v1089 = vld [vmem:[#allocation10 + $0x218] sm:$0xff]
    %v1090 = vld [vmem:[#allocation10 + $0x230] sm:$0xff]
    %v1091 = vld [vmem:[#allocation10 + $0x238] sm:$0xff]
    %v1092 = vld [vmem:[#allocation10 + $0x240] sm:$0xff]
    %v1093 = vld [vmem:[#allocation10 + $0x258] sm:$0xff]
    %v1094 = vld [vmem:[#allocation10 + $0x260] sm:$0xff]
    %v1095 = vld [vmem:[#allocation10 + $0x268] sm:$0xff]
    %v1224 = vunpack.c.l.b16 %v148
    %v1225 = vunpack.c.h.b16 %v148
    %v1226 = vunpack.c.l.b16 %v149
    %v1227 = vunpack.c.h.b16 %v149
    %v1228 = vunpack.c.l.b16 %v150
    %v1229 = vunpack.c.h.b16 %v150
    %v1230 = vunpack.c.l.b16 %v151
    %v1231 = vunpack.c.h.b16 %v151
    %v1232 = vunpack.c.l.b16 %v152
    %v1233 = vunpack.c.h.b16 %v152
    %v1234 = vunpack.c.l.b16 %v153
    %v1235 = vunpack.c.h.b16 %v153
    %v1236 = vunpack.c.l.b16 %v154
    %v1237 = vunpack.c.h.b16 %v154
    %v1238 = vunpack.c.l.b16 %v155
    %v1239 = vunpack.c.h.b16 %v155
    %v1240 = vunpack.c.l.b16 %v156
    %v1241 = vunpack.c.h.b16 %v156
    %v1242 = vunpack.c.l.b16 %v157
    %v1243 = vunpack.c.h.b16 %v157
    %v1244 = vunpack.c.l.b16 %v158
    %v1245 = vunpack.c.h.b16 %v158
    %v1246 = vunpack.c.l.b16 %v159
    %v1247 = vunpack.c.h.b16 %v159
    %v1248 = vunpack.c.l.b16 %v160
    %v1249 = vunpack.c.h.b16 %v160
    %v1250 = vunpack.c.l.b16 %v161
    %v1251 = vunpack.c.h.b16 %v161
    %v1252 = vunpack.c.l.b16 %v162
    %v1253 = vunpack.c.h.b16 %v162
    %v1254 = vunpack.c.l.b16 %v163
    %v1255 = vunpack.c.h.b16 %v163
    %v1256 = vunpack.c.l.b16 %v164
    %v1257 = vunpack.c.h.b16 %v164
    %v1258 = vunpack.c.l.b16 %v165
    %v1259 = vunpack.c.h.b16 %v165
    %v1260 = vunpack.c.l.b16 %v166
    %v1261 = vunpack.c.h.b16 %v166
    %v1262 = vunpack.c.l.b16 %v167
    %v1263 = vunpack.c.h.b16 %v167
    %v1264 = vunpack.c.l.b16 %v168
    %v1265 = vunpack.c.h.b16 %v168
    %v1266 = vunpack.c.l.b16 %v169
    %v1267 = vunpack.c.h.b16 %v169
    %v1268 = vunpack.c.l.b16 %v170
    %v1269 = vunpack.c.h.b16 %v170
    %v1270 = vunpack.c.l.b16 %v171
    %v1271 = vunpack.c.h.b16 %v171
    %v1272 = vunpack.c.l.b16 %v172
    %v1273 = vunpack.c.h.b16 %v172
    %v1274 = vunpack.c.l.b16 %v173
    %v1275 = vunpack.c.h.b16 %v173
    %v1276 = vunpack.c.l.b16 %v174
    %v1277 = vunpack.c.h.b16 %v174
    %v1278 = vunpack.c.l.b16 %v175
    %v1279 = vunpack.c.h.b16 %v175
    %v1280 = vunpack.c.l.b16 %v176
    %v1281 = vunpack.c.h.b16 %v176
    %v1282 = vunpack.c.l.b16 %v177
    %v1283 = vunpack.c.h.b16 %v177
    %v1284 = vunpack.c.l.b16 %v178
    %v1285 = vunpack.c.h.b16 %v178
    %v1286 = vunpack.c.l.b16 %v179
    %v1287 = vunpack.c.h.b16 %v179
    %v1288 = vunpack.c.l.b16 %v180
    %v1289 = vunpack.c.h.b16 %v180
    %v1290 = vunpack.c.l.b16 %v181
    %v1291 = vunpack.c.h.b16 %v181
    %v1292 = vunpack.c.l.b16 %v182
    %v1293 = vunpack.c.h.b16 %v182
    %v1294 = vunpack.c.l.b16 %v183
    %v1295 = vunpack.c.h.b16 %v183
    %v1296 = vunpack.c.l.b16 %v184
    %v1297 = vunpack.c.h.b16 %v184
    %v1298 = vunpack.c.l.b16 %v185
    %v1299 = vunpack.c.h.b16 %v185
    %v1300 = vunpack.c.l.b16 %v186
    %v1301 = vunpack.c.h.b16 %v186
    %v1302 = vunpack.c.l.b16 %v187
    %v1303 = vunpack.c.h.b16 %v187
    %v1304 = vunpack.c.l.b16 %v188
    %v1305 = vunpack.c.h.b16 %v188
    %v1306 = vunpack.c.l.b16 %v189
    %v1307 = vunpack.c.h.b16 %v189
    %v1308 = vunpack.c.l.b16 %v190
    %v1309 = vunpack.c.h.b16 %v190
    %v1310 = vunpack.c.l.b16 %v191
    %v1311 = vunpack.c.h.b16 %v191
    %v1312 = vunpack.c.l.b16 %v192
    %v1313 = vunpack.c.h.b16 %v192
    %v1314 = vunpack.c.l.b16 %v193
    %v1315 = vunpack.c.h.b16 %v193
    %v1316 = vunpack.c.l.b16 %v194
    %v1317 = vunpack.c.h.b16 %v194
    %v1318 = vunpack.c.l.b16 %v195
    %v1319 = vunpack.c.h.b16 %v195
    %v1320 = vunpack.c.l.b16 %v196
    %v1321 = vunpack.c.h.b16 %v196
    %v1322 = vunpack.c.l.b16 %v197
    %v1323 = vunpack.c.h.b16 %v197
    %v1324 = vunpack.c.l.b16 %v198
    %v1325 = vunpack.c.h.b16 %v198
    %v1326 = vunpack.c.l.b16 %v199
    %v1327 = vunpack.c.h.b16 %v199
    %v1328 = vunpack.c.l.b16 %v200
    %v1329 = vunpack.c.h.b16 %v200
    %v1330 = vunpack.c.l.b16 %v201
    %v1331 = vunpack.c.h.b16 %v201
    %v1332 = vunpack.c.l.b16 %v202
    %v1333 = vunpack.c.h.b16 %v202
    %v1334 = vunpack.c.l.b16 %v203
    %v1335 = vunpack.c.h.b16 %v203
    %v1336 = vunpack.c.l.b16 %v204
    %v1337 = vunpack.c.h.b16 %v204
    %v1338 = vunpack.c.l.b16 %v205
    %v1339 = vunpack.c.h.b16 %v205
    %v1340 = vunpack.c.l.b16 %v206
    %v1341 = vunpack.c.h.b16 %v206
    %v1342 = vunpack.c.l.b16 %v207
    %v1343 = vunpack.c.h.b16 %v207
    %v1344 = vunpack.c.l.b16 %v208
    %v1345 = vunpack.c.h.b16 %v208
    %v1346 = vunpack.c.l.b16 %v209
    %v1347 = vunpack.c.h.b16 %v209
    %v1348 = vunpack.c.l.b16 %v210
    %v1349 = vunpack.c.h.b16 %v210
    %v1350 = vunpack.c.l.b16 %v211
    %v1351 = vunpack.c.h.b16 %v211
    %v1352 = vunpack.c.l.b16 %v212
    %v1353 = vunpack.c.h.b16 %v212
    %v1354 = vunpack.c.l.b16 %v213
    %v1355 = vunpack.c.h.b16 %v213
    %v1356 = vunpack.c.l.b16 %v214
    %v1357 = vunpack.c.h.b16 %v214
    %v1358 = vunpack.c.l.b16 %v215
    %v1359 = vunpack.c.h.b16 %v215
    %v1360 = vunpack.c.l.b16 %v216
    %v1361 = vunpack.c.h.b16 %v216
    %v1362 = vunpack.c.l.b16 %v217
    %v1363 = vunpack.c.h.b16 %v217
    %v1364 = vunpack.c.l.b16 %v218
    %v1365 = vunpack.c.h.b16 %v218
    %v1366 = vunpack.c.l.b16 %v219
    %v1367 = vunpack.c.h.b16 %v219
    %v1368 = vunpack.c.l.b16 %v220
    %v1369 = vunpack.c.h.b16 %v220
    %v1370 = vunpack.c.l.b16 %v221
    %v1371 = vunpack.c.h.b16 %v221
    %v1372 = vunpack.c.l.b16 %v222
    %v1373 = vunpack.c.h.b16 %v222
    %v1374 = vunpack.c.l.b16 %v223
    %v1375 = vunpack.c.h.b16 %v223
    %v1376 = vunpack.c.l.b16 %v224
    %v1377 = vunpack.c.h.b16 %v224
    %v1378 = vunpack.c.l.b16 %v225
    %v1379 = vunpack.c.h.b16 %v225
    %v1380 = vunpack.c.l.b16 %v226
    %v1381 = vunpack.c.h.b16 %v226
    %v1382 = vunpack.c.l.b16 %v227
    %v1383 = vunpack.c.h.b16 %v227
    %v1384 = vunpack.c.l.b16 %v228
    %v1385 = vunpack.c.h.b16 %v228
    %v1386 = vunpack.c.l.b16 %v229
    %v1387 = vunpack.c.h.b16 %v229
    %v1388 = vunpack.c.l.b16 %v230
    %v1389 = vunpack.c.h.b16 %v230
    %v1390 = vunpack.c.l.b16 %v231
    %v1391 = vunpack.c.h.b16 %v231
    %v1392 = vunpack.c.l.b16 %v232
    %v1393 = vunpack.c.h.b16 %v232
    %v1394 = vunpack.c.l.b16 %v233
    %v1395 = vunpack.c.h.b16 %v233
    %v1396 = vunpack.c.l.b16 %v234
    %v1397 = vunpack.c.h.b16 %v234
    %v1398 = vunpack.c.l.b16 %v235
    %v1399 = vunpack.c.h.b16 %v235
    %v1400 = vunpack.c.l.b16 %v236
    %v1401 = vunpack.c.h.b16 %v236
    %v1402 = vunpack.c.l.b16 %v237
    %v1403 = vunpack.c.h.b16 %v237
    %v1404 = vunpack.c.l.b16 %v238
    %v1405 = vunpack.c.h.b16 %v238
    %v1406 = vunpack.c.l.b16 %v239
    %v1407 = vunpack.c.h.b16 %v239
    %v1408 = vunpack.c.l.b16 %v240
    %v1409 = vunpack.c.h.b16 %v240
    %v1410 = vunpack.c.l.b16 %v241
    %v1411 = vunpack.c.h.b16 %v241
    %v1412 = vunpack.c.l.b16 %v242
    %v1413 = vunpack.c.h.b16 %v242
    %v1414 = vunpack.c.l.b16 %v243
    %v1415 = vunpack.c.h.b16 %v243
    %v1416 = vunpack.c.l.b16 %v244
    %v1417 = vunpack.c.h.b16 %v244
    %v1418 = vunpack.c.l.b16 %v245
    %v1419 = vunpack.c.h.b16 %v245
    %v1420 = vunpack.c.l.b16 %v246
    %v1421 = vunpack.c.h.b16 %v246
    %v1422 = vunpack.c.l.b16 %v247
    %v1423 = vunpack.c.h.b16 %v247
    %v1424 = vunpack.c.l.b16 %v248
    %v1425 = vunpack.c.h.b16 %v248
    %v1426 = vunpack.c.l.b16 %v249
    %v1427 = vunpack.c.h.b16 %v249
    %v1428 = vunpack.c.l.b16 %v250
    %v1429 = vunpack.c.h.b16 %v250
    %v1430 = vunpack.c.l.b16 %v251
    %v1431 = vunpack.c.h.b16 %v251
    %v1432 = vunpack.c.l.b16 %v252
    %v1433 = vunpack.c.h.b16 %v252
    %v1434 = vunpack.c.l.b16 %v253
    %v1435 = vunpack.c.h.b16 %v253
    %v1436 = vunpack.c.l.b16 %v254
    %v1437 = vunpack.c.h.b16 %v254
    %v1438 = vunpack.c.l.b16 %v255
    %v1439 = vunpack.c.h.b16 %v255
    %v1440 = vunpack.c.l.b16 %v256
    %v1441 = vunpack.c.h.b16 %v256
    %v1442 = vunpack.c.l.b16 %v257
    %v1443 = vunpack.c.h.b16 %v257
    %v1444 = vunpack.c.l.b16 %v258
    %v1445 = vunpack.c.h.b16 %v258
    %v1446 = vunpack.c.l.b16 %v259
    %v1447 = vunpack.c.h.b16 %v259
    %v1448 = vunpack.c.l.b16 %v260
    %v1449 = vunpack.c.h.b16 %v260
    %v1450 = vunpack.c.l.b16 %v261
    %v1451 = vunpack.c.h.b16 %v261
    %v1452 = vunpack.c.l.b16 %v262
    %v1453 = vunpack.c.h.b16 %v262
    %v1454 = vunpack.c.l.b16 %v263
    %v1455 = vunpack.c.h.b16 %v263
    %v1456 = vunpack.c.l.b16 %v264
    %v1457 = vunpack.c.h.b16 %v264
    %v1458 = vunpack.c.l.b16 %v265
    %v1459 = vunpack.c.h.b16 %v265
    %v1460 = vunpack.c.l.b16 %v266
    %v1461 = vunpack.c.h.b16 %v266
    %v1462 = vunpack.c.l.b16 %v267
    %v1463 = vunpack.c.h.b16 %v267
    %v1464 = vunpack.c.l.b16 %v268
    %v1465 = vunpack.c.h.b16 %v268
    %v1466 = vunpack.c.l.b16 %v269
    %v1467 = vunpack.c.h.b16 %v269
    %v1468 = vunpack.c.l.b16 %v270
    %v1469 = vunpack.c.h.b16 %v270
    %v1470 = vunpack.c.l.b16 %v271
    %v1471 = vunpack.c.h.b16 %v271
    %v1472 = vunpack.c.l.b16 %v272
    %v1473 = vunpack.c.h.b16 %v272
    %v1474 = vunpack.c.l.b16 %v273
    %v1475 = vunpack.c.h.b16 %v273
    %v1476 = vunpack.c.l.b16 %v274
    %v1477 = vunpack.c.h.b16 %v274
    %v1478 = vunpack.c.l.b16 %v275
    %v1479 = vunpack.c.h.b16 %v275
    %v1480 = vpack.c.b16 %v1240, %v1224
    %v1481 = vpack.c.b16 %v1241, %v1225
    %v1482 = vpack.c.b16 %v1242, %v1226
    %v1483 = vpack.c.b16 %v1243, %v1227
    %v1484 = vpack.c.b16 %v1244, %v1228
    %v1485 = vpack.c.b16 %v1245, %v1229
    %v1486 = vpack.c.b16 %v1246, %v1230
    %v1487 = vpack.c.b16 %v1247, %v1231
    %v1488 = vpack.c.b16 %v1248, %v1232
    %v1489 = vpack.c.b16 %v1249, %v1233
    %v1490 = vpack.c.b16 %v1250, %v1234
    %v1491 = vpack.c.b16 %v1251, %v1235
    %v1492 = vpack.c.b16 %v1252, %v1236
    %v1493 = vpack.c.b16 %v1253, %v1237
    %v1494 = vpack.c.b16 %v1254, %v1238
    %v1495 = vpack.c.b16 %v1255, %v1239
    %v1496 = vpack.c.b16 %v1272, %v1256
    %v1497 = vpack.c.b16 %v1273, %v1257
    %v1498 = vpack.c.b16 %v1274, %v1258
    %v1499 = vpack.c.b16 %v1275, %v1259
    %v1500 = vpack.c.b16 %v1276, %v1260
    %v1501 = vpack.c.b16 %v1277, %v1261
    %v1502 = vpack.c.b16 %v1278, %v1262
    %v1503 = vpack.c.b16 %v1279, %v1263
    %v1504 = vpack.c.b16 %v1280, %v1264
    %v1505 = vpack.c.b16 %v1281, %v1265
    %v1506 = vpack.c.b16 %v1282, %v1266
    %v1507 = vpack.c.b16 %v1283, %v1267
    %v1508 = vpack.c.b16 %v1284, %v1268
    %v1509 = vpack.c.b16 %v1285, %v1269
    %v1510 = vpack.c.b16 %v1286, %v1270
    %v1511 = vpack.c.b16 %v1287, %v1271
    %v1512 = vpack.c.b16 %v1304, %v1288
    %v1513 = vpack.c.b16 %v1305, %v1289
    %v1514 = vpack.c.b16 %v1306, %v1290
    %v1515 = vpack.c.b16 %v1307, %v1291
    %v1516 = vpack.c.b16 %v1308, %v1292
    %v1517 = vpack.c.b16 %v1309, %v1293
    %v1518 = vpack.c.b16 %v1310, %v1294
    %v1519 = vpack.c.b16 %v1311, %v1295
    %v1520 = vpack.c.b16 %v1312, %v1296
    %v1521 = vpack.c.b16 %v1313, %v1297
    %v1522 = vpack.c.b16 %v1314, %v1298
    %v1523 = vpack.c.b16 %v1315, %v1299
    %v1524 = vpack.c.b16 %v1316, %v1300
    %v1525 = vpack.c.b16 %v1317, %v1301
    %v1526 = vpack.c.b16 %v1318, %v1302
    %v1527 = vpack.c.b16 %v1319, %v1303
    %v1528 = vpack.c.b16 %v1336, %v1320
    %v1529 = vpack.c.b16 %v1337, %v1321
    %v1530 = vpack.c.b16 %v1338, %v1322
    %v1531 = vpack.c.b16 %v1339, %v1323
    %v1532 = vpack.c.b16 %v1340, %v1324
    %v1533 = vpack.c.b16 %v1341, %v1325
    %v1534 = vpack.c.b16 %v1342, %v1326
    %v1535 = vpack.c.b16 %v1343, %v1327
    %v1536 = vpack.c.b16 %v1344, %v1328
    %v1537 = vpack.c.b16 %v1345, %v1329
    %v1538 = vpack.c.b16 %v1346, %v1330
    %v1539 = vpack.c.b16 %v1347, %v1331
    %v1540 = vpack.c.b16 %v1348, %v1332
    %v1541 = vpack.c.b16 %v1349, %v1333
    %v1542 = vpack.c.b16 %v1350, %v1334
    %v1543 = vpack.c.b16 %v1351, %v1335
    %v1544 = vpack.c.b16 %v1368, %v1352
    %v1545 = vpack.c.b16 %v1369, %v1353
    %v1546 = vpack.c.b16 %v1370, %v1354
    %v1547 = vpack.c.b16 %v1371, %v1355
    %v1548 = vpack.c.b16 %v1372, %v1356
    %v1549 = vpack.c.b16 %v1373, %v1357
    %v1550 = vpack.c.b16 %v1374, %v1358
    %v1551 = vpack.c.b16 %v1375, %v1359
    %v1552 = vpack.c.b16 %v1376, %v1360
    %v1553 = vpack.c.b16 %v1377, %v1361
    %v1554 = vpack.c.b16 %v1378, %v1362
    %v1555 = vpack.c.b16 %v1379, %v1363
    %v1556 = vpack.c.b16 %v1380, %v1364
    %v1557 = vpack.c.b16 %v1381, %v1365
    %v1558 = vpack.c.b16 %v1382, %v1366
    %v1559 = vpack.c.b16 %v1383, %v1367
    %v1560 = vpack.c.b16 %v1400, %v1384
    %v1561 = vpack.c.b16 %v1401, %v1385
    %v1562 = vpack.c.b16 %v1402, %v1386
    %v1563 = vpack.c.b16 %v1403, %v1387
    %v1564 = vpack.c.b16 %v1404, %v1388
    %v1565 = vpack.c.b16 %v1405, %v1389
    %v1566 = vpack.c.b16 %v1406, %v1390
    %v1567 = vpack.c.b16 %v1407, %v1391
    %v1568 = vpack.c.b16 %v1408, %v1392
    %v1569 = vpack.c.b16 %v1409, %v1393
    %v1570 = vpack.c.b16 %v1410, %v1394
    %v1571 = vpack.c.b16 %v1411, %v1395
    %v1572 = vpack.c.b16 %v1412, %v1396
    %v1573 = vpack.c.b16 %v1413, %v1397
    %v1574 = vpack.c.b16 %v1414, %v1398
    %v1575 = vpack.c.b16 %v1415, %v1399
    %v1576 = vpack.c.b16 %v1432, %v1416
    %v1577 = vpack.c.b16 %v1433, %v1417
    %v1578 = vpack.c.b16 %v1434, %v1418
    %v1579 = vpack.c.b16 %v1435, %v1419
    %v1580 = vpack.c.b16 %v1436, %v1420
    %v1581 = vpack.c.b16 %v1437, %v1421
    %v1582 = vpack.c.b16 %v1438, %v1422
    %v1583 = vpack.c.b16 %v1439, %v1423
    %v1584 = vpack.c.b16 %v1440, %v1424
    %v1585 = vpack.c.b16 %v1441, %v1425
    %v1586 = vpack.c.b16 %v1442, %v1426
    %v1587 = vpack.c.b16 %v1443, %v1427
    %v1588 = vpack.c.b16 %v1444, %v1428
    %v1589 = vpack.c.b16 %v1445, %v1429
    %v1590 = vpack.c.b16 %v1446, %v1430
    %v1591 = vpack.c.b16 %v1447, %v1431
    %v1592 = vpack.c.b16 %v1464, %v1448
    %v1593 = vpack.c.b16 %v1465, %v1449
    %v1594 = vpack.c.b16 %v1466, %v1450
    %v1595 = vpack.c.b16 %v1467, %v1451
    %v1596 = vpack.c.b16 %v1468, %v1452
    %v1597 = vpack.c.b16 %v1469, %v1453
    %v1598 = vpack.c.b16 %v1470, %v1454
    %v1599 = vpack.c.b16 %v1471, %v1455
    %v1600 = vpack.c.b16 %v1472, %v1456
    %v1601 = vpack.c.b16 %v1473, %v1457
    %v1602 = vpack.c.b16 %v1474, %v1458
    %v1603 = vpack.c.b16 %v1475, %v1459
    %v1604 = vpack.c.b16 %v1476, %v1460
    %v1605 = vpack.c.b16 %v1477, %v1461
    %v1606 = vpack.c.b16 %v1478, %v1462
    %v1607 = vpack.c.b16 %v1479, %v1463
    %v2504 = vunpack.c.l.b16 %v276
    %v2505 = vunpack.c.h.b16 %v276
    %v2506 = vunpack.c.l.b16 %v277
    %v2507 = vunpack.c.h.b16 %v277
    %v2508 = vunpack.c.l.b16 %v278
    %v2509 = vunpack.c.l.b16 %v279
    %v2510 = vunpack.c.h.b16 %v279
    %v2511 = vunpack.c.l.b16 %v280
    %v2512 = vunpack.c.h.b16 %v280
    %v2513 = vunpack.c.l.b16 %v281
    %v2514 = vunpack.c.l.b16 %v282
    %v2515 = vunpack.c.h.b16 %v282
    %v2516 = vunpack.c.l.b16 %v283
    %v2517 = vunpack.c.h.b16 %v283
    %v2518 = vunpack.c.l.b16 %v284
    %v2519 = vunpack.c.l.b16 %v285
    %v2520 = vunpack.c.h.b16 %v285
    %v2521 = vunpack.c.l.b16 %v286
    %v2522 = vunpack.c.h.b16 %v286
    %v2523 = vunpack.c.l.b16 %v287
    %v2524 = vunpack.c.l.b16 %v288
    %v2525 = vunpack.c.h.b16 %v288
    %v2526 = vunpack.c.l.b16 %v289
    %v2527 = vunpack.c.h.b16 %v289
    %v2528 = vunpack.c.l.b16 %v290
    %v2529 = vunpack.c.l.b16 %v291
    %v2530 = vunpack.c.h.b16 %v291
    %v2531 = vunpack.c.l.b16 %v292
    %v2532 = vunpack.c.h.b16 %v292
    %v2533 = vunpack.c.l.b16 %v293
    %v2534 = vunpack.c.l.b16 %v294
    %v2535 = vunpack.c.h.b16 %v294
    %v2536 = vunpack.c.l.b16 %v295
    %v2537 = vunpack.c.h.b16 %v295
    %v2538 = vunpack.c.l.b16 %v296
    %v2539 = vunpack.c.l.b16 %v297
    %v2540 = vunpack.c.h.b16 %v297
    %v2541 = vunpack.c.l.b16 %v298
    %v2542 = vunpack.c.h.b16 %v298
    %v2543 = vunpack.c.l.b16 %v299
    %v2544 = vunpack.c.l.b16 %v300
    %v2545 = vunpack.c.h.b16 %v300
    %v2546 = vunpack.c.l.b16 %v301
    %v2547 = vunpack.c.h.b16 %v301
    %v2548 = vunpack.c.l.b16 %v302
    %v2549 = vunpack.c.l.b16 %v303
    %v2550 = vunpack.c.h.b16 %v303
    %v2551 = vunpack.c.l.b16 %v304
    %v2552 = vunpack.c.h.b16 %v304
    %v2553 = vunpack.c.l.b16 %v305
    %v2554 = vunpack.c.l.b16 %v306
    %v2555 = vunpack.c.h.b16 %v306
    %v2556 = vunpack.c.l.b16 %v307
    %v2557 = vunpack.c.h.b16 %v307
    %v2558 = vunpack.c.l.b16 %v308
    %v2559 = vunpack.c.l.b16 %v309
    %v2560 = vunpack.c.h.b16 %v309
    %v2561 = vunpack.c.l.b16 %v310
    %v2562 = vunpack.c.h.b16 %v310
    %v2563 = vunpack.c.l.b16 %v311
    %v2564 = vunpack.c.l.b16 %v312
    %v2565 = vunpack.c.h.b16 %v312
    %v2566 = vunpack.c.l.b16 %v313
    %v2567 = vunpack.c.h.b16 %v313
    %v2568 = vunpack.c.l.b16 %v314
    %v2569 = vunpack.c.l.b16 %v315
    %v2570 = vunpack.c.h.b16 %v315
    %v2571 = vunpack.c.l.b16 %v316
    %v2572 = vunpack.c.h.b16 %v316
    %v2573 = vunpack.c.l.b16 %v317
    %v2574 = vunpack.c.l.b16 %v318
    %v2575 = vunpack.c.h.b16 %v318
    %v2576 = vunpack.c.l.b16 %v319
    %v2577 = vunpack.c.h.b16 %v319
    %v2578 = vunpack.c.l.b16 %v320
    %v2579 = vunpack.c.l.b16 %v321
    %v2580 = vunpack.c.h.b16 %v321
    %v2581 = vunpack.c.l.b16 %v322
    %v2582 = vunpack.c.h.b16 %v322
    %v2583 = vunpack.c.l.b16 %v323
    %v2584 = vunpack.c.l.b16 %v324
    %v2585 = vunpack.c.h.b16 %v324
    %v2586 = vunpack.c.l.b16 %v325
    %v2587 = vunpack.c.h.b16 %v325
    %v2588 = vunpack.c.l.b16 %v326
    %v2589 = vunpack.c.l.b16 %v327
    %v2590 = vunpack.c.h.b16 %v327
    %v2591 = vunpack.c.l.b16 %v328
    %v2592 = vunpack.c.h.b16 %v328
    %v2593 = vunpack.c.l.b16 %v329
    %v2594 = vunpack.c.l.b16 %v330
    %v2595 = vunpack.c.h.b16 %v330
    %v2596 = vunpack.c.l.b16 %v331
    %v2597 = vunpack.c.h.b16 %v331
    %v2598 = vunpack.c.l.b16 %v332
    %v2599 = vunpack.c.l.b16 %v333
    %v2600 = vunpack.c.h.b16 %v333
    %v2601 = vunpack.c.l.b16 %v334
    %v2602 = vunpack.c.h.b16 %v334
    %v2603 = vunpack.c.l.b16 %v335
    %v2604 = vunpack.c.l.b16 %v336
    %v2605 = vunpack.c.h.b16 %v336
    %v2606 = vunpack.c.l.b16 %v337
    %v2607 = vunpack.c.h.b16 %v337
    %v2608 = vunpack.c.l.b16 %v338
    %v2609 = vunpack.c.l.b16 %v339
    %v2610 = vunpack.c.h.b16 %v339
    %v2611 = vunpack.c.l.b16 %v340
    %v2612 = vunpack.c.h.b16 %v340
    %v2613 = vunpack.c.l.b16 %v341
    %v2614 = vunpack.c.l.b16 %v342
    %v2615 = vunpack.c.h.b16 %v342
    %v2616 = vunpack.c.l.b16 %v343
    %v2617 = vunpack.c.h.b16 %v343
    %v2618 = vunpack.c.l.b16 %v344
    %v2619 = vunpack.c.l.b16 %v345
    %v2620 = vunpack.c.h.b16 %v345
    %v2621 = vunpack.c.l.b16 %v346
    %v2622 = vunpack.c.h.b16 %v346
    %v2623 = vunpack.c.l.b16 %v347
    %v2624 = vunpack.c.l.b16 %v348
    %v2625 = vunpack.c.h.b16 %v348
    %v2626 = vunpack.c.l.b16 %v349
    %v2627 = vunpack.c.h.b16 %v349
    %v2628 = vunpack.c.l.b16 %v350
    %v2629 = vunpack.c.l.b16 %v351
    %v2630 = vunpack.c.h.b16 %v351
    %v2631 = vunpack.c.l.b16 %v352
    %v2632 = vunpack.c.h.b16 %v352
    %v2633 = vunpack.c.l.b16 %v353
    %v2634 = vunpack.c.l.b16 %v354
    %v2635 = vunpack.c.h.b16 %v354
    %v2636 = vunpack.c.l.b16 %v355
    %v2637 = vunpack.c.h.b16 %v355
    %v2638 = vunpack.c.l.b16 %v356
    %v2639 = vunpack.c.l.b16 %v357
    %v2640 = vunpack.c.h.b16 %v357
    %v2641 = vunpack.c.l.b16 %v358
    %v2642 = vunpack.c.h.b16 %v358
    %v2643 = vunpack.c.l.b16 %v359
    %v2644 = vunpack.c.l.b16 %v360
    %v2645 = vunpack.c.h.b16 %v360
    %v2646 = vunpack.c.l.b16 %v361
    %v2647 = vunpack.c.h.b16 %v361
    %v2648 = vunpack.c.l.b16 %v362
    %v2649 = vunpack.c.l.b16 %v363
    %v2650 = vunpack.c.h.b16 %v363
    %v2651 = vunpack.c.l.b16 %v364
    %v2652 = vunpack.c.h.b16 %v364
    %v2653 = vunpack.c.l.b16 %v365
    %v2654 = vunpack.c.l.b16 %v366
    %v2655 = vunpack.c.h.b16 %v366
    %v2656 = vunpack.c.l.b16 %v367
    %v2657 = vunpack.c.h.b16 %v367
    %v2658 = vunpack.c.l.b16 %v368
    %v2659 = vunpack.c.l.b16 %v369
    %v2660 = vunpack.c.h.b16 %v369
    %v2661 = vunpack.c.l.b16 %v370
    %v2662 = vunpack.c.h.b16 %v370
    %v2663 = vunpack.c.l.b16 %v371
    %v2664 = vunpack.c.l.b16 %v372
    %v2665 = vunpack.c.h.b16 %v372
    %v2666 = vunpack.c.l.b16 %v373
    %v2667 = vunpack.c.h.b16 %v373
    %v2668 = vunpack.c.l.b16 %v374
    %v2669 = vunpack.c.l.b16 %v375
    %v2670 = vunpack.c.h.b16 %v375
    %v2671 = vunpack.c.l.b16 %v376
    %v2672 = vunpack.c.h.b16 %v376
    %v2673 = vunpack.c.l.b16 %v377
    %v2674 = vunpack.c.l.b16 %v378
    %v2675 = vunpack.c.h.b16 %v378
    %v2676 = vunpack.c.l.b16 %v379
    %v2677 = vunpack.c.h.b16 %v379
    %v2678 = vunpack.c.l.b16 %v380
    %v2679 = vunpack.c.l.b16 %v381
    %v2680 = vunpack.c.h.b16 %v381
    %v2681 = vunpack.c.l.b16 %v382
    %v2682 = vunpack.c.h.b16 %v382
    %v2683 = vunpack.c.l.b16 %v383
    %v2684 = vunpack.c.l.b16 %v384
    %v2685 = vunpack.c.h.b16 %v384
    %v2686 = vunpack.c.l.b16 %v385
    %v2687 = vunpack.c.h.b16 %v385
    %v2688 = vunpack.c.l.b16 %v386
    %v2689 = vunpack.c.l.b16 %v387
    %v2690 = vunpack.c.h.b16 %v387
    %v2691 = vunpack.c.l.b16 %v388
    %v2692 = vunpack.c.h.b16 %v388
    %v2693 = vunpack.c.l.b16 %v389
    %v2694 = vunpack.c.l.b16 %v390
    %v2695 = vunpack.c.h.b16 %v390
    %v2696 = vunpack.c.l.b16 %v391
    %v2697 = vunpack.c.h.b16 %v391
    %v2698 = vunpack.c.l.b16 %v392
    %v2699 = vunpack.c.l.b16 %v393
    %v2700 = vunpack.c.h.b16 %v393
    %v2701 = vunpack.c.l.b16 %v394
    %v2702 = vunpack.c.h.b16 %v394
    %v2703 = vunpack.c.l.b16 %v395
    %v2704 = vunpack.c.l.b16 %v396
    %v2705 = vunpack.c.h.b16 %v396
    %v2706 = vunpack.c.l.b16 %v397
    %v2707 = vunpack.c.h.b16 %v397
    %v2708 = vunpack.c.l.b16 %v398
    %v2709 = vunpack.c.l.b16 %v399
    %v2710 = vunpack.c.h.b16 %v399
    %v2711 = vunpack.c.l.b16 %v400
    %v2712 = vunpack.c.h.b16 %v400
    %v2713 = vunpack.c.l.b16 %v401
    %v2714 = vunpack.c.l.b16 %v402
    %v2715 = vunpack.c.h.b16 %v402
    %v2716 = vunpack.c.l.b16 %v403
    %v2717 = vunpack.c.h.b16 %v403
    %v2718 = vunpack.c.l.b16 %v404
    %v2719 = vunpack.c.l.b16 %v405
    %v2720 = vunpack.c.h.b16 %v405
    %v2721 = vunpack.c.l.b16 %v406
    %v2722 = vunpack.c.h.b16 %v406
    %v2723 = vunpack.c.l.b16 %v407
    %v2724 = vunpack.c.l.b16 %v408
    %v2725 = vunpack.c.h.b16 %v408
    %v2726 = vunpack.c.l.b16 %v409
    %v2727 = vunpack.c.h.b16 %v409
    %v2728 = vunpack.c.l.b16 %v410
    %v2729 = vunpack.c.l.b16 %v411
    %v2730 = vunpack.c.h.b16 %v411
    %v2731 = vunpack.c.l.b16 %v412
    %v2732 = vunpack.c.h.b16 %v412
    %v2733 = vunpack.c.l.b16 %v413
    %v2734 = vunpack.c.l.b16 %v414
    %v2735 = vunpack.c.h.b16 %v414
    %v2736 = vunpack.c.l.b16 %v415
    %v2737 = vunpack.c.h.b16 %v415
    %v2738 = vunpack.c.l.b16 %v416
    %v2739 = vunpack.c.l.b16 %v417
    %v2740 = vunpack.c.h.b16 %v417
    %v2741 = vunpack.c.l.b16 %v418
    %v2742 = vunpack.c.h.b16 %v418
    %v2743 = vunpack.c.l.b16 %v419
    %v2744 = vunpack.c.l.b16 %v420
    %v2745 = vunpack.c.h.b16 %v420
    %v2746 = vunpack.c.l.b16 %v421
    %v2747 = vunpack.c.h.b16 %v421
    %v2748 = vunpack.c.l.b16 %v422
    %v2749 = vunpack.c.l.b16 %v423
    %v2750 = vunpack.c.h.b16 %v423
    %v2751 = vunpack.c.l.b16 %v424
    %v2752 = vunpack.c.h.b16 %v424
    %v2753 = vunpack.c.l.b16 %v425
    %v2754 = vunpack.c.l.b16 %v426
    %v2755 = vunpack.c.h.b16 %v426
    %v2756 = vunpack.c.l.b16 %v427
    %v2757 = vunpack.c.h.b16 %v427
    %v2758 = vunpack.c.l.b16 %v428
    %v2759 = vunpack.c.l.b16 %v429
    %v2760 = vunpack.c.h.b16 %v429
    %v2761 = vunpack.c.l.b16 %v430
    %v2762 = vunpack.c.h.b16 %v430
    %v2763 = vunpack.c.l.b16 %v431
    %v2764 = vunpack.c.l.b16 %v432
    %v2765 = vunpack.c.h.b16 %v432
    %v2766 = vunpack.c.l.b16 %v433
    %v2767 = vunpack.c.h.b16 %v433
    %v2768 = vunpack.c.l.b16 %v434
    %v2769 = vunpack.c.l.b16 %v435
    %v2770 = vunpack.c.h.b16 %v435
    %v2771 = vunpack.c.l.b16 %v436
    %v2772 = vunpack.c.h.b16 %v436
    %v2773 = vunpack.c.l.b16 %v437
    %v2774 = vunpack.c.l.b16 %v438
    %v2775 = vunpack.c.h.b16 %v438
    %v2776 = vunpack.c.l.b16 %v439
    %v2777 = vunpack.c.h.b16 %v439
    %v2778 = vunpack.c.l.b16 %v440
    %v2779 = vunpack.c.l.b16 %v441
    %v2780 = vunpack.c.h.b16 %v441
    %v2781 = vunpack.c.l.b16 %v442
    %v2782 = vunpack.c.h.b16 %v442
    %v2783 = vunpack.c.l.b16 %v443
    %v2784 = vunpack.c.l.b16 %v444
    %v2785 = vunpack.c.h.b16 %v444
    %v2786 = vunpack.c.l.b16 %v445
    %v2787 = vunpack.c.h.b16 %v445
    %v2788 = vunpack.c.l.b16 %v446
    %v2789 = vunpack.c.l.b16 %v447
    %v2790 = vunpack.c.h.b16 %v447
    %v2791 = vunpack.c.l.b16 %v448
    %v2792 = vunpack.c.h.b16 %v448
    %v2793 = vunpack.c.l.b16 %v449
    %v2794 = vunpack.c.l.b16 %v450
    %v2795 = vunpack.c.h.b16 %v450
    %v2796 = vunpack.c.l.b16 %v451
    %v2797 = vunpack.c.h.b16 %v451
    %v2798 = vunpack.c.l.b16 %v452
    %v2799 = vunpack.c.l.b16 %v453
    %v2800 = vunpack.c.h.b16 %v453
    %v2801 = vunpack.c.l.b16 %v454
    %v2802 = vunpack.c.h.b16 %v454
    %v2803 = vunpack.c.l.b16 %v455
    %v2804 = vunpack.c.l.b16 %v456
    %v2805 = vunpack.c.h.b16 %v456
    %v2806 = vunpack.c.l.b16 %v457
    %v2807 = vunpack.c.h.b16 %v457
    %v2808 = vunpack.c.l.b16 %v458
    %v2809 = vunpack.c.l.b16 %v459
    %v2810 = vunpack.c.h.b16 %v459
    %v2811 = vunpack.c.l.b16 %v460
    %v2812 = vunpack.c.h.b16 %v460
    %v2813 = vunpack.c.l.b16 %v461
    %v2814 = vunpack.c.l.b16 %v462
    %v2815 = vunpack.c.h.b16 %v462
    %v2816 = vunpack.c.l.b16 %v463
    %v2817 = vunpack.c.h.b16 %v463
    %v2818 = vunpack.c.l.b16 %v464
    %v2819 = vunpack.c.l.b16 %v465
    %v2820 = vunpack.c.h.b16 %v465
    %v2821 = vunpack.c.l.b16 %v466
    %v2822 = vunpack.c.h.b16 %v466
    %v2823 = vunpack.c.l.b16 %v467
    %v2824 = vunpack.c.l.b16 %v468
    %v2825 = vunpack.c.h.b16 %v468
    %v2826 = vunpack.c.l.b16 %v469
    %v2827 = vunpack.c.h.b16 %v469
    %v2828 = vunpack.c.l.b16 %v470
    %v2829 = vunpack.c.l.b16 %v471
    %v2830 = vunpack.c.h.b16 %v471
    %v2831 = vunpack.c.l.b16 %v472
    %v2832 = vunpack.c.h.b16 %v472
    %v2833 = vunpack.c.l.b16 %v473
    %v2834 = vunpack.c.l.b16 %v474
    %v2835 = vunpack.c.h.b16 %v474
    %v2836 = vunpack.c.l.b16 %v475
    %v2837 = vunpack.c.h.b16 %v475
    %v2838 = vunpack.c.l.b16 %v476
    %v2839 = vunpack.c.l.b16 %v477
    %v2840 = vunpack.c.h.b16 %v477
    %v2841 = vunpack.c.l.b16 %v478
    %v2842 = vunpack.c.h.b16 %v478
    %v2843 = vunpack.c.l.b16 %v479
    %v2844 = vunpack.c.l.b16 %v480
    %v2845 = vunpack.c.h.b16 %v480
    %v2846 = vunpack.c.l.b16 %v481
    %v2847 = vunpack.c.h.b16 %v481
    %v2848 = vunpack.c.l.b16 %v482
    %v2849 = vunpack.c.l.b16 %v483
    %v2850 = vunpack.c.h.b16 %v483
    %v2851 = vunpack.c.l.b16 %v484
    %v2852 = vunpack.c.h.b16 %v484
    %v2853 = vunpack.c.l.b16 %v485
    %v2854 = vunpack.c.l.b16 %v486
    %v2855 = vunpack.c.h.b16 %v486
    %v2856 = vunpack.c.l.b16 %v487
    %v2857 = vunpack.c.h.b16 %v487
    %v2858 = vunpack.c.l.b16 %v488
    %v2859 = vunpack.c.l.b16 %v489
    %v2860 = vunpack.c.h.b16 %v489
    %v2861 = vunpack.c.l.b16 %v490
    %v2862 = vunpack.c.h.b16 %v490
    %v2863 = vunpack.c.l.b16 %v491
    %v2864 = vunpack.c.l.b16 %v492
    %v2865 = vunpack.c.h.b16 %v492
    %v2866 = vunpack.c.l.b16 %v493
    %v2867 = vunpack.c.h.b16 %v493
    %v2868 = vunpack.c.l.b16 %v494
    %v2869 = vunpack.c.l.b16 %v495
    %v2870 = vunpack.c.h.b16 %v495
    %v2871 = vunpack.c.l.b16 %v496
    %v2872 = vunpack.c.h.b16 %v496
    %v2873 = vunpack.c.l.b16 %v497
    %v2874 = vunpack.c.l.b16 %v498
    %v2875 = vunpack.c.h.b16 %v498
    %v2876 = vunpack.c.l.b16 %v499
    %v2877 = vunpack.c.h.b16 %v499
    %v2878 = vunpack.c.l.b16 %v500
    %v2879 = vunpack.c.l.b16 %v501
    %v2880 = vunpack.c.h.b16 %v501
    %v2881 = vunpack.c.l.b16 %v502
    %v2882 = vunpack.c.h.b16 %v502
    %v2883 = vunpack.c.l.b16 %v503
    %v2884 = vunpack.c.l.b16 %v504
    %v2885 = vunpack.c.h.b16 %v504
    %v2886 = vunpack.c.l.b16 %v505
    %v2887 = vunpack.c.h.b16 %v505
    %v2888 = vunpack.c.l.b16 %v506
    %v2889 = vunpack.c.l.b16 %v507
    %v2890 = vunpack.c.h.b16 %v507
    %v2891 = vunpack.c.l.b16 %v508
    %v2892 = vunpack.c.h.b16 %v508
    %v2893 = vunpack.c.l.b16 %v509
    %v2894 = vunpack.c.l.b16 %v510
    %v2895 = vunpack.c.h.b16 %v510
    %v2896 = vunpack.c.l.b16 %v511
    %v2897 = vunpack.c.h.b16 %v511
    %v2898 = vunpack.c.l.b16 %v512
    %v2899 = vunpack.c.l.b16 %v513
    %v2900 = vunpack.c.h.b16 %v513
    %v2901 = vunpack.c.l.b16 %v514
    %v2902 = vunpack.c.h.b16 %v514
    %v2903 = vunpack.c.l.b16 %v515
    %v2904 = vunpack.c.l.b16 %v516
    %v2905 = vunpack.c.h.b16 %v516
    %v2906 = vunpack.c.l.b16 %v517
    %v2907 = vunpack.c.h.b16 %v517
    %v2908 = vunpack.c.l.b16 %v518
    %v2909 = vunpack.c.l.b16 %v519
    %v2910 = vunpack.c.h.b16 %v519
    %v2911 = vunpack.c.l.b16 %v520
    %v2912 = vunpack.c.h.b16 %v520
    %v2913 = vunpack.c.l.b16 %v521
    %v2914 = vunpack.c.l.b16 %v522
    %v2915 = vunpack.c.h.b16 %v522
    %v2916 = vunpack.c.l.b16 %v523
    %v2917 = vunpack.c.h.b16 %v523
    %v2918 = vunpack.c.l.b16 %v524
    %v2919 = vunpack.c.l.b16 %v525
    %v2920 = vunpack.c.h.b16 %v525
    %v2921 = vunpack.c.l.b16 %v526
    %v2922 = vunpack.c.h.b16 %v526
    %v2923 = vunpack.c.l.b16 %v527
    %v2924 = vunpack.c.l.b16 %v528
    %v2925 = vunpack.c.h.b16 %v528
    %v2926 = vunpack.c.l.b16 %v529
    %v2927 = vunpack.c.h.b16 %v529
    %v2928 = vunpack.c.l.b16 %v530
    %v2929 = vunpack.c.l.b16 %v531
    %v2930 = vunpack.c.h.b16 %v531
    %v2931 = vunpack.c.l.b16 %v532
    %v2932 = vunpack.c.h.b16 %v532
    %v2933 = vunpack.c.l.b16 %v533
    %v2934 = vunpack.c.l.b16 %v534
    %v2935 = vunpack.c.h.b16 %v534
    %v2936 = vunpack.c.l.b16 %v535
    %v2937 = vunpack.c.h.b16 %v535
    %v2938 = vunpack.c.l.b16 %v536
    %v2939 = vunpack.c.l.b16 %v537
    %v2940 = vunpack.c.h.b16 %v537
    %v2941 = vunpack.c.l.b16 %v538
    %v2942 = vunpack.c.h.b16 %v538
    %v2943 = vunpack.c.l.b16 %v539
    %v2944 = vunpack.c.l.b16 %v540
    %v2945 = vunpack.c.h.b16 %v540
    %v2946 = vunpack.c.l.b16 %v541
    %v2947 = vunpack.c.h.b16 %v541
    %v2948 = vunpack.c.l.b16 %v542
    %v2949 = vunpack.c.l.b16 %v543
    %v2950 = vunpack.c.h.b16 %v543
    %v2951 = vunpack.c.l.b16 %v544
    %v2952 = vunpack.c.h.b16 %v544
    %v2953 = vunpack.c.l.b16 %v545
    %v2954 = vunpack.c.l.b16 %v546
    %v2955 = vunpack.c.h.b16 %v546
    %v2956 = vunpack.c.l.b16 %v547
    %v2957 = vunpack.c.h.b16 %v547
    %v2958 = vunpack.c.l.b16 %v548
    %v2959 = vunpack.c.l.b16 %v549
    %v2960 = vunpack.c.h.b16 %v549
    %v2961 = vunpack.c.l.b16 %v550
    %v2962 = vunpack.c.h.b16 %v550
    %v2963 = vunpack.c.l.b16 %v551
    %v2964 = vunpack.c.l.b16 %v552
    %v2965 = vunpack.c.h.b16 %v552
    %v2966 = vunpack.c.l.b16 %v553
    %v2967 = vunpack.c.h.b16 %v553
    %v2968 = vunpack.c.l.b16 %v554
    %v2969 = vunpack.c.l.b16 %v555
    %v2970 = vunpack.c.h.b16 %v555
    %v2971 = vunpack.c.l.b16 %v556
    %v2972 = vunpack.c.h.b16 %v556
    %v2973 = vunpack.c.l.b16 %v557
    %v2974 = vunpack.c.l.b16 %v558
    %v2975 = vunpack.c.h.b16 %v558
    %v2976 = vunpack.c.l.b16 %v559
    %v2977 = vunpack.c.h.b16 %v559
    %v2978 = vunpack.c.l.b16 %v560
    %v2979 = vunpack.c.l.b16 %v561
    %v2980 = vunpack.c.h.b16 %v561
    %v2981 = vunpack.c.l.b16 %v562
    %v2982 = vunpack.c.h.b16 %v562
    %v2983 = vunpack.c.l.b16 %v563
    %v2984 = vunpack.c.l.b16 %v564
    %v2985 = vunpack.c.h.b16 %v564
    %v2986 = vunpack.c.l.b16 %v565
    %v2987 = vunpack.c.h.b16 %v565
    %v2988 = vunpack.c.l.b16 %v566
    %v2989 = vunpack.c.l.b16 %v567
    %v2990 = vunpack.c.h.b16 %v567
    %v2991 = vunpack.c.l.b16 %v568
    %v2992 = vunpack.c.h.b16 %v568
    %v2993 = vunpack.c.l.b16 %v569
    %v2994 = vunpack.c.l.b16 %v570
    %v2995 = vunpack.c.h.b16 %v570
    %v2996 = vunpack.c.l.b16 %v571
    %v2997 = vunpack.c.h.b16 %v571
    %v2998 = vunpack.c.l.b16 %v572
    %v2999 = vunpack.c.l.b16 %v573
    %v3000 = vunpack.c.h.b16 %v573
    %v3001 = vunpack.c.l.b16 %v574
    %v3002 = vunpack.c.h.b16 %v574
    %v3003 = vunpack.c.l.b16 %v575
    %v3004 = vunpack.c.l.b16 %v576
    %v3005 = vunpack.c.h.b16 %v576
    %v3006 = vunpack.c.l.b16 %v577
    %v3007 = vunpack.c.h.b16 %v577
    %v3008 = vunpack.c.l.b16 %v578
    %v3009 = vunpack.c.l.b16 %v579
    %v3010 = vunpack.c.h.b16 %v579
    %v3011 = vunpack.c.l.b16 %v580
    %v3012 = vunpack.c.h.b16 %v580
    %v3013 = vunpack.c.l.b16 %v581
    %v3014 = vunpack.c.l.b16 %v582
    %v3015 = vunpack.c.h.b16 %v582
    %v3016 = vunpack.c.l.b16 %v583
    %v3017 = vunpack.c.h.b16 %v583
    %v3018 = vunpack.c.l.b16 %v584
    %v3019 = vunpack.c.l.b16 %v585
    %v3020 = vunpack.c.h.b16 %v585
    %v3021 = vunpack.c.l.b16 %v586
    %v3022 = vunpack.c.h.b16 %v586
    %v3023 = vunpack.c.l.b16 %v587
    %v3024 = vunpack.c.l.b16 %v588
    %v3025 = vunpack.c.h.b16 %v588
    %v3026 = vunpack.c.l.b16 %v589
    %v3027 = vunpack.c.h.b16 %v589
    %v3028 = vunpack.c.l.b16 %v590
    %v3029 = vunpack.c.l.b16 %v591
    %v3030 = vunpack.c.h.b16 %v591
    %v3031 = vunpack.c.l.b16 %v592
    %v3032 = vunpack.c.h.b16 %v592
    %v3033 = vunpack.c.l.b16 %v593
    %v3034 = vunpack.c.l.b16 %v594
    %v3035 = vunpack.c.h.b16 %v594
    %v3036 = vunpack.c.l.b16 %v595
    %v3037 = vunpack.c.h.b16 %v595
    %v3038 = vunpack.c.l.b16 %v596
    %v3039 = vunpack.c.l.b16 %v597
    %v3040 = vunpack.c.h.b16 %v597
    %v3041 = vunpack.c.l.b16 %v598
    %v3042 = vunpack.c.h.b16 %v598
    %v3043 = vunpack.c.l.b16 %v599
    %v3044 = vunpack.c.l.b16 %v600
    %v3045 = vunpack.c.h.b16 %v600
    %v3046 = vunpack.c.l.b16 %v601
    %v3047 = vunpack.c.h.b16 %v601
    %v3048 = vunpack.c.l.b16 %v602
    %v3049 = vunpack.c.l.b16 %v603
    %v3050 = vunpack.c.h.b16 %v603
    %v3051 = vunpack.c.l.b16 %v604
    %v3052 = vunpack.c.h.b16 %v604
    %v3053 = vunpack.c.l.b16 %v605
    %v3054 = vunpack.c.l.b16 %v606
    %v3055 = vunpack.c.h.b16 %v606
    %v3056 = vunpack.c.l.b16 %v607
    %v3057 = vunpack.c.h.b16 %v607
    %v3058 = vunpack.c.l.b16 %v608
    %v3059 = vunpack.c.l.b16 %v609
    %v3060 = vunpack.c.h.b16 %v609
    %v3061 = vunpack.c.l.b16 %v610
    %v3062 = vunpack.c.h.b16 %v610
    %v3063 = vunpack.c.l.b16 %v611
    %v3064 = vunpack.c.l.b16 %v612
    %v3065 = vunpack.c.h.b16 %v612
    %v3066 = vunpack.c.l.b16 %v613
    %v3067 = vunpack.c.h.b16 %v613
    %v3068 = vunpack.c.l.b16 %v614
    %v3069 = vunpack.c.l.b16 %v615
    %v3070 = vunpack.c.h.b16 %v615
    %v3071 = vunpack.c.l.b16 %v616
    %v3072 = vunpack.c.h.b16 %v616
    %v3073 = vunpack.c.l.b16 %v617
    %v3074 = vunpack.c.l.b16 %v618
    %v3075 = vunpack.c.h.b16 %v618
    %v3076 = vunpack.c.l.b16 %v619
    %v3077 = vunpack.c.h.b16 %v619
    %v3078 = vunpack.c.l.b16 %v620
    %v3079 = vunpack.c.l.b16 %v621
    %v3080 = vunpack.c.h.b16 %v621
    %v3081 = vunpack.c.l.b16 %v622
    %v3082 = vunpack.c.h.b16 %v622
    %v3083 = vunpack.c.l.b16 %v623
    %v3084 = vunpack.c.l.b16 %v624
    %v3085 = vunpack.c.h.b16 %v624
    %v3086 = vunpack.c.l.b16 %v625
    %v3087 = vunpack.c.h.b16 %v625
    %v3088 = vunpack.c.l.b16 %v626
    %v3089 = vunpack.c.l.b16 %v627
    %v3090 = vunpack.c.h.b16 %v627
    %v3091 = vunpack.c.l.b16 %v628
    %v3092 = vunpack.c.h.b16 %v628
    %v3093 = vunpack.c.l.b16 %v629
    %v3094 = vunpack.c.l.b16 %v630
    %v3095 = vunpack.c.h.b16 %v630
    %v3096 = vunpack.c.l.b16 %v631
    %v3097 = vunpack.c.h.b16 %v631
    %v3098 = vunpack.c.l.b16 %v632
    %v3099 = vunpack.c.l.b16 %v633
    %v3100 = vunpack.c.h.b16 %v633
    %v3101 = vunpack.c.l.b16 %v634
    %v3102 = vunpack.c.h.b16 %v634
    %v3103 = vunpack.c.l.b16 %v635
    %v3104 = vunpack.c.l.b16 %v636
    %v3105 = vunpack.c.h.b16 %v636
    %v3106 = vunpack.c.l.b16 %v637
    %v3107 = vunpack.c.h.b16 %v637
    %v3108 = vunpack.c.l.b16 %v638
    %v3109 = vunpack.c.l.b16 %v639
    %v3110 = vunpack.c.h.b16 %v639
    %v3111 = vunpack.c.l.b16 %v640
    %v3112 = vunpack.c.h.b16 %v640
    %v3113 = vunpack.c.l.b16 %v641
    %v3114 = vunpack.c.l.b16 %v642
    %v3115 = vunpack.c.h.b16 %v642
    %v3116 = vunpack.c.l.b16 %v643
    %v3117 = vunpack.c.h.b16 %v643
    %v3118 = vunpack.c.l.b16 %v644
    %v3119 = vunpack.c.l.b16 %v645
    %v3120 = vunpack.c.h.b16 %v645
    %v3121 = vunpack.c.l.b16 %v646
    %v3122 = vunpack.c.h.b16 %v646
    %v3123 = vunpack.c.l.b16 %v647
    %v3124 = vunpack.c.l.b16 %v648
    %v3125 = vunpack.c.h.b16 %v648
    %v3126 = vunpack.c.l.b16 %v649
    %v3127 = vunpack.c.h.b16 %v649
    %v3128 = vunpack.c.l.b16 %v650
    %v3129 = vunpack.c.l.b16 %v651
    %v3130 = vunpack.c.h.b16 %v651
    %v3131 = vunpack.c.l.b16 %v652
    %v3132 = vunpack.c.h.b16 %v652
    %v3133 = vunpack.c.l.b16 %v653
    %v3134 = vunpack.c.l.b16 %v654
    %v3135 = vunpack.c.h.b16 %v654
    %v3136 = vunpack.c.l.b16 %v655
    %v3137 = vunpack.c.h.b16 %v655
    %v3138 = vunpack.c.l.b16 %v656
    %v3139 = vunpack.c.l.b16 %v657
    %v3140 = vunpack.c.h.b16 %v657
    %v3141 = vunpack.c.l.b16 %v658
    %v3142 = vunpack.c.h.b16 %v658
    %v3143 = vunpack.c.l.b16 %v659
    %v3144 = vunpack.c.l.b16 %v660
    %v3145 = vunpack.c.h.b16 %v660
    %v3146 = vunpack.c.l.b16 %v661
    %v3147 = vunpack.c.h.b16 %v661
    %v3148 = vunpack.c.l.b16 %v662
    %v3149 = vunpack.c.l.b16 %v663
    %v3150 = vunpack.c.h.b16 %v663
    %v3151 = vunpack.c.l.b16 %v664
    %v3152 = vunpack.c.h.b16 %v664
    %v3153 = vunpack.c.l.b16 %v665
    %v3154 = vunpack.c.l.b16 %v666
    %v3155 = vunpack.c.h.b16 %v666
    %v3156 = vunpack.c.l.b16 %v667
    %v3157 = vunpack.c.h.b16 %v667
    %v3158 = vunpack.c.l.b16 %v668
    %v3159 = vunpack.c.l.b16 %v669
    %v3160 = vunpack.c.h.b16 %v669
    %v3161 = vunpack.c.l.b16 %v670
    %v3162 = vunpack.c.h.b16 %v670
    %v3163 = vunpack.c.l.b16 %v671
    %v3164 = vunpack.c.l.b16 %v672
    %v3165 = vunpack.c.h.b16 %v672
    %v3166 = vunpack.c.l.b16 %v673
    %v3167 = vunpack.c.h.b16 %v673
    %v3168 = vunpack.c.l.b16 %v674
    %v3169 = vunpack.c.l.b16 %v675
    %v3170 = vunpack.c.h.b16 %v675
    %v3171 = vunpack.c.l.b16 %v676
    %v3172 = vunpack.c.h.b16 %v676
    %v3173 = vunpack.c.l.b16 %v677
    %v3174 = vunpack.c.l.b16 %v678
    %v3175 = vunpack.c.h.b16 %v678
    %v3176 = vunpack.c.l.b16 %v679
    %v3177 = vunpack.c.h.b16 %v679
    %v3178 = vunpack.c.l.b16 %v680
    %v3179 = vunpack.c.l.b16 %v681
    %v3180 = vunpack.c.h.b16 %v681
    %v3181 = vunpack.c.l.b16 %v682
    %v3182 = vunpack.c.h.b16 %v682
    %v3183 = vunpack.c.l.b16 %v683
    %v3184 = vunpack.c.l.b16 %v684
    %v3185 = vunpack.c.h.b16 %v684
    %v3186 = vunpack.c.l.b16 %v685
    %v3187 = vunpack.c.h.b16 %v685
    %v3188 = vunpack.c.l.b16 %v686
    %v3189 = vunpack.c.l.b16 %v687
    %v3190 = vunpack.c.h.b16 %v687
    %v3191 = vunpack.c.l.b16 %v688
    %v3192 = vunpack.c.h.b16 %v688
    %v3193 = vunpack.c.l.b16 %v689
    %v3194 = vunpack.c.l.b16 %v690
    %v3195 = vunpack.c.h.b16 %v690
    %v3196 = vunpack.c.l.b16 %v691
    %v3197 = vunpack.c.h.b16 %v691
    %v3198 = vunpack.c.l.b16 %v692
    %v3199 = vunpack.c.l.b16 %v693
    %v3200 = vunpack.c.h.b16 %v693
    %v3201 = vunpack.c.l.b16 %v694
    %v3202 = vunpack.c.h.b16 %v694
    %v3203 = vunpack.c.l.b16 %v695
    %v3204 = vunpack.c.l.b16 %v696
    %v3205 = vunpack.c.h.b16 %v696
    %v3206 = vunpack.c.l.b16 %v697
    %v3207 = vunpack.c.h.b16 %v697
    %v3208 = vunpack.c.l.b16 %v698
    %v3209 = vunpack.c.l.b16 %v699
    %v3210 = vunpack.c.h.b16 %v699
    %v3211 = vunpack.c.l.b16 %v700
    %v3212 = vunpack.c.h.b16 %v700
    %v3213 = vunpack.c.l.b16 %v701
    %v3214 = vunpack.c.l.b16 %v702
    %v3215 = vunpack.c.h.b16 %v702
    %v3216 = vunpack.c.l.b16 %v703
    %v3217 = vunpack.c.h.b16 %v703
    %v3218 = vunpack.c.l.b16 %v704
    %v3219 = vunpack.c.l.b16 %v705
    %v3220 = vunpack.c.h.b16 %v705
    %v3221 = vunpack.c.l.b16 %v706
    %v3222 = vunpack.c.h.b16 %v706
    %v3223 = vunpack.c.l.b16 %v707
    %v3224 = vunpack.c.l.b16 %v708
    %v3225 = vunpack.c.h.b16 %v708
    %v3226 = vunpack.c.l.b16 %v709
    %v3227 = vunpack.c.h.b16 %v709
    %v3228 = vunpack.c.l.b16 %v710
    %v3229 = vunpack.c.l.b16 %v711
    %v3230 = vunpack.c.h.b16 %v711
    %v3231 = vunpack.c.l.b16 %v712
    %v3232 = vunpack.c.h.b16 %v712
    %v3233 = vunpack.c.l.b16 %v713
    %v3234 = vunpack.c.l.b16 %v714
    %v3235 = vunpack.c.h.b16 %v714
    %v3236 = vunpack.c.l.b16 %v715
    %v3237 = vunpack.c.h.b16 %v715
    %v3238 = vunpack.c.l.b16 %v716
    %v3239 = vunpack.c.l.b16 %v717
    %v3240 = vunpack.c.h.b16 %v717
    %v3241 = vunpack.c.l.b16 %v718
    %v3242 = vunpack.c.h.b16 %v718
    %v3243 = vunpack.c.l.b16 %v719
    %v3244 = vunpack.c.l.b16 %v720
    %v3245 = vunpack.c.h.b16 %v720
    %v3246 = vunpack.c.l.b16 %v721
    %v3247 = vunpack.c.h.b16 %v721
    %v3248 = vunpack.c.l.b16 %v722
    %v3249 = vunpack.c.l.b16 %v723
    %v3250 = vunpack.c.h.b16 %v723
    %v3251 = vunpack.c.l.b16 %v724
    %v3252 = vunpack.c.h.b16 %v724
    %v3253 = vunpack.c.l.b16 %v725
    %v3254 = vunpack.c.l.b16 %v726
    %v3255 = vunpack.c.h.b16 %v726
    %v3256 = vunpack.c.l.b16 %v727
    %v3257 = vunpack.c.h.b16 %v727
    %v3258 = vunpack.c.l.b16 %v728
    %v3259 = vunpack.c.l.b16 %v729
    %v3260 = vunpack.c.h.b16 %v729
    %v3261 = vunpack.c.l.b16 %v730
    %v3262 = vunpack.c.h.b16 %v730
    %v3263 = vunpack.c.l.b16 %v731
    %v3264 = vunpack.c.l.b16 %v732
    %v3265 = vunpack.c.h.b16 %v732
    %v3266 = vunpack.c.l.b16 %v733
    %v3267 = vunpack.c.h.b16 %v733
    %v3268 = vunpack.c.l.b16 %v734
    %v3269 = vunpack.c.l.b16 %v735
    %v3270 = vunpack.c.h.b16 %v735
    %v3271 = vunpack.c.l.b16 %v736
    %v3272 = vunpack.c.h.b16 %v736
    %v3273 = vunpack.c.l.b16 %v737
    %v3274 = vunpack.c.l.b16 %v738
    %v3275 = vunpack.c.h.b16 %v738
    %v3276 = vunpack.c.l.b16 %v739
    %v3277 = vunpack.c.h.b16 %v739
    %v3278 = vunpack.c.l.b16 %v740
    %v3279 = vunpack.c.l.b16 %v741
    %v3280 = vunpack.c.h.b16 %v741
    %v3281 = vunpack.c.l.b16 %v742
    %v3282 = vunpack.c.h.b16 %v742
    %v3283 = vunpack.c.l.b16 %v743
    %v3284 = vunpack.c.l.b16 %v744
    %v3285 = vunpack.c.h.b16 %v744
    %v3286 = vunpack.c.l.b16 %v745
    %v3287 = vunpack.c.h.b16 %v745
    %v3288 = vunpack.c.l.b16 %v746
    %v3289 = vunpack.c.l.b16 %v747
    %v3290 = vunpack.c.h.b16 %v747
    %v3291 = vunpack.c.l.b16 %v748
    %v3292 = vunpack.c.h.b16 %v748
    %v3293 = vunpack.c.l.b16 %v749
    %v3294 = vunpack.c.l.b16 %v750
    %v3295 = vunpack.c.h.b16 %v750
    %v3296 = vunpack.c.l.b16 %v751
    %v3297 = vunpack.c.h.b16 %v751
    %v3298 = vunpack.c.l.b16 %v752
    %v3299 = vunpack.c.l.b16 %v753
    %v3300 = vunpack.c.h.b16 %v753
    %v3301 = vunpack.c.l.b16 %v754
    %v3302 = vunpack.c.h.b16 %v754
    %v3303 = vunpack.c.l.b16 %v755
    %v3304 = vunpack.c.l.b16 %v756
    %v3305 = vunpack.c.h.b16 %v756
    %v3306 = vunpack.c.l.b16 %v757
    %v3307 = vunpack.c.h.b16 %v757
    %v3308 = vunpack.c.l.b16 %v758
    %v3309 = vunpack.c.l.b16 %v759
    %v3310 = vunpack.c.h.b16 %v759
    %v3311 = vunpack.c.l.b16 %v760
    %v3312 = vunpack.c.h.b16 %v760
    %v3313 = vunpack.c.l.b16 %v761
    %v3314 = vunpack.c.l.b16 %v762
    %v3315 = vunpack.c.h.b16 %v762
    %v3316 = vunpack.c.l.b16 %v763
    %v3317 = vunpack.c.h.b16 %v763
    %v3318 = vunpack.c.l.b16 %v764
    %v3319 = vunpack.c.l.b16 %v765
    %v3320 = vunpack.c.h.b16 %v765
    %v3321 = vunpack.c.l.b16 %v766
    %v3322 = vunpack.c.h.b16 %v766
    %v3323 = vunpack.c.l.b16 %v767
    %v3324 = vunpack.c.l.b16 %v768
    %v3325 = vunpack.c.h.b16 %v768
    %v3326 = vunpack.c.l.b16 %v769
    %v3327 = vunpack.c.h.b16 %v769
    %v3328 = vunpack.c.l.b16 %v770
    %v3329 = vunpack.c.l.b16 %v771
    %v3330 = vunpack.c.h.b16 %v771
    %v3331 = vunpack.c.l.b16 %v772
    %v3332 = vunpack.c.h.b16 %v772
    %v3333 = vunpack.c.l.b16 %v773
    %v3334 = vunpack.c.l.b16 %v774
    %v3335 = vunpack.c.h.b16 %v774
    %v3336 = vunpack.c.l.b16 %v775
    %v3337 = vunpack.c.h.b16 %v775
    %v3338 = vunpack.c.l.b16 %v776
    %v3339 = vunpack.c.l.b16 %v777
    %v3340 = vunpack.c.h.b16 %v777
    %v3341 = vunpack.c.l.b16 %v778
    %v3342 = vunpack.c.h.b16 %v778
    %v3343 = vunpack.c.l.b16 %v779
    %v3344 = vunpack.c.l.b16 %v780
    %v3345 = vunpack.c.h.b16 %v780
    %v3346 = vunpack.c.l.b16 %v781
    %v3347 = vunpack.c.h.b16 %v781
    %v3348 = vunpack.c.l.b16 %v782
    %v3349 = vunpack.c.l.b16 %v783
    %v3350 = vunpack.c.h.b16 %v783
    %v3351 = vunpack.c.l.b16 %v784
    %v3352 = vunpack.c.h.b16 %v784
    %v3353 = vunpack.c.l.b16 %v785
    %v3354 = vunpack.c.l.b16 %v786
    %v3355 = vunpack.c.h.b16 %v786
    %v3356 = vunpack.c.l.b16 %v787
    %v3357 = vunpack.c.h.b16 %v787
    %v3358 = vunpack.c.l.b16 %v788
    %v3359 = vunpack.c.l.b16 %v789
    %v3360 = vunpack.c.h.b16 %v789
    %v3361 = vunpack.c.l.b16 %v790
    %v3362 = vunpack.c.h.b16 %v790
    %v3363 = vunpack.c.l.b16 %v791
    %v3364 = vunpack.c.l.b16 %v792
    %v3365 = vunpack.c.h.b16 %v792
    %v3366 = vunpack.c.l.b16 %v793
    %v3367 = vunpack.c.h.b16 %v793
    %v3368 = vunpack.c.l.b16 %v794
    %v3369 = vunpack.c.l.b16 %v795
    %v3370 = vunpack.c.h.b16 %v795
    %v3371 = vunpack.c.l.b16 %v796
    %v3372 = vunpack.c.h.b16 %v796
    %v3373 = vunpack.c.l.b16 %v797
    %v3374 = vunpack.c.l.b16 %v798
    %v3375 = vunpack.c.h.b16 %v798
    %v3376 = vunpack.c.l.b16 %v799
    %v3377 = vunpack.c.h.b16 %v799
    %v3378 = vunpack.c.l.b16 %v800
    %v3379 = vunpack.c.l.b16 %v801
    %v3380 = vunpack.c.h.b16 %v801
    %v3381 = vunpack.c.l.b16 %v802
    %v3382 = vunpack.c.h.b16 %v802
    %v3383 = vunpack.c.l.b16 %v803
    %v3384 = vunpack.c.l.b16 %v804
    %v3385 = vunpack.c.h.b16 %v804
    %v3386 = vunpack.c.l.b16 %v805
    %v3387 = vunpack.c.h.b16 %v805
    %v3388 = vunpack.c.l.b16 %v806
    %v3389 = vunpack.c.l.b16 %v807
    %v3390 = vunpack.c.h.b16 %v807
    %v3391 = vunpack.c.l.b16 %v808
    %v3392 = vunpack.c.h.b16 %v808
    %v3393 = vunpack.c.l.b16 %v809
    %v3394 = vunpack.c.l.b16 %v810
    %v3395 = vunpack.c.h.b16 %v810
    %v3396 = vunpack.c.l.b16 %v811
    %v3397 = vunpack.c.h.b16 %v811
    %v3398 = vunpack.c.l.b16 %v812
    %v3399 = vunpack.c.l.b16 %v813
    %v3400 = vunpack.c.h.b16 %v813
    %v3401 = vunpack.c.l.b16 %v814
    %v3402 = vunpack.c.h.b16 %v814
    %v3403 = vunpack.c.l.b16 %v815
    %v3404 = vunpack.c.l.b16 %v816
    %v3405 = vunpack.c.h.b16 %v816
    %v3406 = vunpack.c.l.b16 %v817
    %v3407 = vunpack.c.h.b16 %v817
    %v3408 = vunpack.c.l.b16 %v818
    %v3409 = vunpack.c.l.b16 %v819
    %v3410 = vunpack.c.h.b16 %v819
    %v3411 = vunpack.c.l.b16 %v820
    %v3412 = vunpack.c.h.b16 %v820
    %v3413 = vunpack.c.l.b16 %v821
    %v3414 = vunpack.c.l.b16 %v822
    %v3415 = vunpack.c.h.b16 %v822
    %v3416 = vunpack.c.l.b16 %v823
    %v3417 = vunpack.c.h.b16 %v823
    %v3418 = vunpack.c.l.b16 %v824
    %v3419 = vunpack.c.l.b16 %v825
    %v3420 = vunpack.c.h.b16 %v825
    %v3421 = vunpack.c.l.b16 %v826
    %v3422 = vunpack.c.h.b16 %v826
    %v3423 = vunpack.c.l.b16 %v827
    %v3424 = vunpack.c.l.b16 %v828
    %v3425 = vunpack.c.h.b16 %v828
    %v3426 = vunpack.c.l.b16 %v829
    %v3427 = vunpack.c.h.b16 %v829
    %v3428 = vunpack.c.l.b16 %v830
    %v3429 = vunpack.c.l.b16 %v831
    %v3430 = vunpack.c.h.b16 %v831
    %v3431 = vunpack.c.l.b16 %v832
    %v3432 = vunpack.c.h.b16 %v832
    %v3433 = vunpack.c.l.b16 %v833
    %v3434 = vunpack.c.l.b16 %v834
    %v3435 = vunpack.c.h.b16 %v834
    %v3436 = vunpack.c.l.b16 %v835
    %v3437 = vunpack.c.h.b16 %v835
    %v3438 = vunpack.c.l.b16 %v836
    %v3439 = vunpack.c.l.b16 %v837
    %v3440 = vunpack.c.h.b16 %v837
    %v3441 = vunpack.c.l.b16 %v838
    %v3442 = vunpack.c.h.b16 %v838
    %v3443 = vunpack.c.l.b16 %v839
    %v3444 = vunpack.c.l.b16 %v840
    %v3445 = vunpack.c.h.b16 %v840
    %v3446 = vunpack.c.l.b16 %v841
    %v3447 = vunpack.c.h.b16 %v841
    %v3448 = vunpack.c.l.b16 %v842
    %v3449 = vunpack.c.l.b16 %v843
    %v3450 = vunpack.c.h.b16 %v843
    %v3451 = vunpack.c.l.b16 %v844
    %v3452 = vunpack.c.h.b16 %v844
    %v3453 = vunpack.c.l.b16 %v845
    %v3454 = vunpack.c.l.b16 %v846
    %v3455 = vunpack.c.h.b16 %v846
    %v3456 = vunpack.c.l.b16 %v847
    %v3457 = vunpack.c.h.b16 %v847
    %v3458 = vunpack.c.l.b16 %v848
    %v3459 = vunpack.c.l.b16 %v849
    %v3460 = vunpack.c.h.b16 %v849
    %v3461 = vunpack.c.l.b16 %v850
    %v3462 = vunpack.c.h.b16 %v850
    %v3463 = vunpack.c.l.b16 %v851
    %v3464 = vunpack.c.l.b16 %v852
    %v3465 = vunpack.c.h.b16 %v852
    %v3466 = vunpack.c.l.b16 %v853
    %v3467 = vunpack.c.h.b16 %v853
    %v3468 = vunpack.c.l.b16 %v854
    %v3469 = vunpack.c.l.b16 %v855
    %v3470 = vunpack.c.h.b16 %v855
    %v3471 = vunpack.c.l.b16 %v856
    %v3472 = vunpack.c.h.b16 %v856
    %v3473 = vunpack.c.l.b16 %v857
    %v3474 = vunpack.c.l.b16 %v858
    %v3475 = vunpack.c.h.b16 %v858
    %v3476 = vunpack.c.l.b16 %v859
    %v3477 = vunpack.c.h.b16 %v859
    %v3478 = vunpack.c.l.b16 %v860
    %v3479 = vunpack.c.l.b16 %v861
    %v3480 = vunpack.c.h.b16 %v861
    %v3481 = vunpack.c.l.b16 %v862
    %v3482 = vunpack.c.h.b16 %v862
    %v3483 = vunpack.c.l.b16 %v863
    %v3484 = vunpack.c.l.b16 %v864
    %v3485 = vunpack.c.h.b16 %v864
    %v3486 = vunpack.c.l.b16 %v865
    %v3487 = vunpack.c.h.b16 %v865
    %v3488 = vunpack.c.l.b16 %v866
    %v3489 = vunpack.c.l.b16 %v867
    %v3490 = vunpack.c.h.b16 %v867
    %v3491 = vunpack.c.l.b16 %v868
    %v3492 = vunpack.c.h.b16 %v868
    %v3493 = vunpack.c.l.b16 %v869
    %v3494 = vunpack.c.l.b16 %v870
    %v3495 = vunpack.c.h.b16 %v870
    %v3496 = vunpack.c.l.b16 %v871
    %v3497 = vunpack.c.h.b16 %v871
    %v3498 = vunpack.c.l.b16 %v872
    %v3499 = vunpack.c.l.b16 %v873
    %v3500 = vunpack.c.h.b16 %v873
    %v3501 = vunpack.c.l.b16 %v874
    %v3502 = vunpack.c.h.b16 %v874
    %v3503 = vunpack.c.l.b16 %v875
    %v3504 = vunpack.c.l.b16 %v876
    %v3505 = vunpack.c.h.b16 %v876
    %v3506 = vunpack.c.l.b16 %v877
    %v3507 = vunpack.c.h.b16 %v877
    %v3508 = vunpack.c.l.b16 %v878
    %v3509 = vunpack.c.l.b16 %v879
    %v3510 = vunpack.c.h.b16 %v879
    %v3511 = vunpack.c.l.b16 %v880
    %v3512 = vunpack.c.h.b16 %v880
    %v3513 = vunpack.c.l.b16 %v881
    %v3514 = vunpack.c.l.b16 %v882
    %v3515 = vunpack.c.h.b16 %v882
    %v3516 = vunpack.c.l.b16 %v883
    %v3517 = vunpack.c.h.b16 %v883
    %v3518 = vunpack.c.l.b16 %v884
    %v3519 = vunpack.c.l.b16 %v885
    %v3520 = vunpack.c.h.b16 %v885
    %v3521 = vunpack.c.l.b16 %v886
    %v3522 = vunpack.c.h.b16 %v886
    %v3523 = vunpack.c.l.b16 %v887
    %v3524 = vunpack.c.l.b16 %v888
    %v3525 = vunpack.c.h.b16 %v888
    %v3526 = vunpack.c.l.b16 %v889
    %v3527 = vunpack.c.h.b16 %v889
    %v3528 = vunpack.c.l.b16 %v890
    %v3529 = vunpack.c.l.b16 %v891
    %v3530 = vunpack.c.h.b16 %v891
    %v3531 = vunpack.c.l.b16 %v892
    %v3532 = vunpack.c.h.b16 %v892
    %v3533 = vunpack.c.l.b16 %v893
    %v3534 = vunpack.c.l.b16 %v894
    %v3535 = vunpack.c.h.b16 %v894
    %v3536 = vunpack.c.l.b16 %v895
    %v3537 = vunpack.c.h.b16 %v895
    %v3538 = vunpack.c.l.b16 %v896
    %v3539 = vunpack.c.l.b16 %v897
    %v3540 = vunpack.c.h.b16 %v897
    %v3541 = vunpack.c.l.b16 %v898
    %v3542 = vunpack.c.h.b16 %v898
    %v3543 = vunpack.c.l.b16 %v899
    %v3544 = vunpack.c.l.b16 %v900
    %v3545 = vunpack.c.h.b16 %v900
    %v3546 = vunpack.c.l.b16 %v901
    %v3547 = vunpack.c.h.b16 %v901
    %v3548 = vunpack.c.l.b16 %v902
    %v3549 = vunpack.c.l.b16 %v903
    %v3550 = vunpack.c.h.b16 %v903
    %v3551 = vunpack.c.l.b16 %v904
    %v3552 = vunpack.c.h.b16 %v904
    %v3553 = vunpack.c.l.b16 %v905
    %v3554 = vunpack.c.l.b16 %v906
    %v3555 = vunpack.c.h.b16 %v906
    %v3556 = vunpack.c.l.b16 %v907
    %v3557 = vunpack.c.h.b16 %v907
    %v3558 = vunpack.c.l.b16 %v908
    %v3559 = vunpack.c.l.b16 %v909
    %v3560 = vunpack.c.h.b16 %v909
    %v3561 = vunpack.c.l.b16 %v910
    %v3562 = vunpack.c.h.b16 %v910
    %v3563 = vunpack.c.l.b16 %v911
    %v3564 = vunpack.c.l.b16 %v912
    %v3565 = vunpack.c.h.b16 %v912
    %v3566 = vunpack.c.l.b16 %v913
    %v3567 = vunpack.c.h.b16 %v913
    %v3568 = vunpack.c.l.b16 %v914
    %v3569 = vunpack.c.l.b16 %v915
    %v3570 = vunpack.c.h.b16 %v915
    %v3571 = vunpack.c.l.b16 %v916
    %v3572 = vunpack.c.h.b16 %v916
    %v3573 = vunpack.c.l.b16 %v917
    %v3574 = vunpack.c.l.b16 %v918
    %v3575 = vunpack.c.h.b16 %v918
    %v3576 = vunpack.c.l.b16 %v919
    %v3577 = vunpack.c.h.b16 %v919
    %v3578 = vunpack.c.l.b16 %v920
    %v3579 = vunpack.c.l.b16 %v921
    %v3580 = vunpack.c.h.b16 %v921
    %v3581 = vunpack.c.l.b16 %v922
    %v3582 = vunpack.c.h.b16 %v922
    %v3583 = vunpack.c.l.b16 %v923
    %v3584 = vunpack.c.l.b16 %v924
    %v3585 = vunpack.c.h.b16 %v924
    %v3586 = vunpack.c.l.b16 %v925
    %v3587 = vunpack.c.h.b16 %v925
    %v3588 = vunpack.c.l.b16 %v926
    %v3589 = vunpack.c.l.b16 %v927
    %v3590 = vunpack.c.h.b16 %v927
    %v3591 = vunpack.c.l.b16 %v928
    %v3592 = vunpack.c.h.b16 %v928
    %v3593 = vunpack.c.l.b16 %v929
    %v3594 = vunpack.c.l.b16 %v930
    %v3595 = vunpack.c.h.b16 %v930
    %v3596 = vunpack.c.l.b16 %v931
    %v3597 = vunpack.c.h.b16 %v931
    %v3598 = vunpack.c.l.b16 %v932
    %v3599 = vunpack.c.l.b16 %v933
    %v3600 = vunpack.c.h.b16 %v933
    %v3601 = vunpack.c.l.b16 %v934
    %v3602 = vunpack.c.h.b16 %v934
    %v3603 = vunpack.c.l.b16 %v935
    %v3604 = vunpack.c.l.b16 %v936
    %v3605 = vunpack.c.h.b16 %v936
    %v3606 = vunpack.c.l.b16 %v937
    %v3607 = vunpack.c.h.b16 %v937
    %v3608 = vunpack.c.l.b16 %v938
    %v3609 = vunpack.c.l.b16 %v939
    %v3610 = vunpack.c.h.b16 %v939
    %v3611 = vunpack.c.l.b16 %v940
    %v3612 = vunpack.c.h.b16 %v940
    %v3613 = vunpack.c.l.b16 %v941
    %v3614 = vunpack.c.l.b16 %v942
    %v3615 = vunpack.c.h.b16 %v942
    %v3616 = vunpack.c.l.b16 %v943
    %v3617 = vunpack.c.h.b16 %v943
    %v3618 = vunpack.c.l.b16 %v944
    %v3619 = vunpack.c.l.b16 %v945
    %v3620 = vunpack.c.h.b16 %v945
    %v3621 = vunpack.c.l.b16 %v946
    %v3622 = vunpack.c.h.b16 %v946
    %v3623 = vunpack.c.l.b16 %v947
    %v3624 = vunpack.c.l.b16 %v948
    %v3625 = vunpack.c.h.b16 %v948
    %v3626 = vunpack.c.l.b16 %v949
    %v3627 = vunpack.c.h.b16 %v949
    %v3628 = vunpack.c.l.b16 %v950
    %v3629 = vunpack.c.l.b16 %v951
    %v3630 = vunpack.c.h.b16 %v951
    %v3631 = vunpack.c.l.b16 %v952
    %v3632 = vunpack.c.h.b16 %v952
    %v3633 = vunpack.c.l.b16 %v953
    %v3634 = vunpack.c.l.b16 %v954
    %v3635 = vunpack.c.h.b16 %v954
    %v3636 = vunpack.c.l.b16 %v955
    %v3637 = vunpack.c.h.b16 %v955
    %v3638 = vunpack.c.l.b16 %v956
    %v3639 = vunpack.c.l.b16 %v957
    %v3640 = vunpack.c.h.b16 %v957
    %v3641 = vunpack.c.l.b16 %v958
    %v3642 = vunpack.c.h.b16 %v958
    %v3643 = vunpack.c.l.b16 %v959
    %v3644 = vunpack.c.l.b16 %v960
    %v3645 = vunpack.c.h.b16 %v960
    %v3646 = vunpack.c.l.b16 %v961
    %v3647 = vunpack.c.h.b16 %v961
    %v3648 = vunpack.c.l.b16 %v962
    %v3649 = vunpack.c.l.b16 %v963
    %v3650 = vunpack.c.h.b16 %v963
    %v3651 = vunpack.c.l.b16 %v964
    %v3652 = vunpack.c.h.b16 %v964
    %v3653 = vunpack.c.l.b16 %v965
    %v3654 = vunpack.c.l.b16 %v966
    %v3655 = vunpack.c.h.b16 %v966
    %v3656 = vunpack.c.l.b16 %v967
    %v3657 = vunpack.c.h.b16 %v967
    %v3658 = vunpack.c.l.b16 %v968
    %v3659 = vunpack.c.l.b16 %v969
    %v3660 = vunpack.c.h.b16 %v969
    %v3661 = vunpack.c.l.b16 %v970
    %v3662 = vunpack.c.h.b16 %v970
    %v3663 = vunpack.c.l.b16 %v971
    %v3664 = vunpack.c.l.b16 %v972
    %v3665 = vunpack.c.h.b16 %v972
    %v3666 = vunpack.c.l.b16 %v973
    %v3667 = vunpack.c.h.b16 %v973
    %v3668 = vunpack.c.l.b16 %v974
    %v3669 = vunpack.c.l.b16 %v975
    %v3670 = vunpack.c.h.b16 %v975
    %v3671 = vunpack.c.l.b16 %v976
    %v3672 = vunpack.c.h.b16 %v976
    %v3673 = vunpack.c.l.b16 %v977
    %v3674 = vunpack.c.l.b16 %v978
    %v3675 = vunpack.c.h.b16 %v978
    %v3676 = vunpack.c.l.b16 %v979
    %v3677 = vunpack.c.h.b16 %v979
    %v3678 = vunpack.c.l.b16 %v980
    %v3679 = vunpack.c.l.b16 %v981
    %v3680 = vunpack.c.h.b16 %v981
    %v3681 = vunpack.c.l.b16 %v982
    %v3682 = vunpack.c.h.b16 %v982
    %v3683 = vunpack.c.l.b16 %v983
    %v3684 = vunpack.c.l.b16 %v984
    %v3685 = vunpack.c.h.b16 %v984
    %v3686 = vunpack.c.l.b16 %v985
    %v3687 = vunpack.c.h.b16 %v985
    %v3688 = vunpack.c.l.b16 %v986
    %v3689 = vunpack.c.l.b16 %v987
    %v3690 = vunpack.c.h.b16 %v987
    %v3691 = vunpack.c.l.b16 %v988
    %v3692 = vunpack.c.h.b16 %v988
    %v3693 = vunpack.c.l.b16 %v989
    %v3694 = vunpack.c.l.b16 %v990
    %v3695 = vunpack.c.h.b16 %v990
    %v3696 = vunpack.c.l.b16 %v991
    %v3697 = vunpack.c.h.b16 %v991
    %v3698 = vunpack.c.l.b16 %v992
    %v3699 = vunpack.c.l.b16 %v993
    %v3700 = vunpack.c.h.b16 %v993
    %v3701 = vunpack.c.l.b16 %v994
    %v3702 = vunpack.c.h.b16 %v994
    %v3703 = vunpack.c.l.b16 %v995
    %v3704 = vunpack.c.l.b16 %v996
    %v3705 = vunpack.c.h.b16 %v996
    %v3706 = vunpack.c.l.b16 %v997
    %v3707 = vunpack.c.h.b16 %v997
    %v3708 = vunpack.c.l.b16 %v998
    %v3709 = vunpack.c.l.b16 %v999
    %v3710 = vunpack.c.h.b16 %v999
    %v3711 = vunpack.c.l.b16 %v1000
    %v3712 = vunpack.c.h.b16 %v1000
    %v3713 = vunpack.c.l.b16 %v1001
    %v3714 = vunpack.c.l.b16 %v1002
    %v3715 = vunpack.c.h.b16 %v1002
    %v3716 = vunpack.c.l.b16 %v1003
    %v3717 = vunpack.c.h.b16 %v1003
    %v3718 = vunpack.c.l.b16 %v1004
    %v3719 = vunpack.c.l.b16 %v1005
    %v3720 = vunpack.c.h.b16 %v1005
    %v3721 = vunpack.c.l.b16 %v1006
    %v3722 = vunpack.c.h.b16 %v1006
    %v3723 = vunpack.c.l.b16 %v1007
    %v3724 = vunpack.c.l.b16 %v1008
    %v3725 = vunpack.c.h.b16 %v1008
    %v3726 = vunpack.c.l.b16 %v1009
    %v3727 = vunpack.c.h.b16 %v1009
    %v3728 = vunpack.c.l.b16 %v1010
    %v3729 = vunpack.c.l.b16 %v1011
    %v3730 = vunpack.c.h.b16 %v1011
    %v3731 = vunpack.c.l.b16 %v1012
    %v3732 = vunpack.c.h.b16 %v1012
    %v3733 = vunpack.c.l.b16 %v1013
    %v3734 = vunpack.c.l.b16 %v1014
    %v3735 = vunpack.c.h.b16 %v1014
    %v3736 = vunpack.c.l.b16 %v1015
    %v3737 = vunpack.c.h.b16 %v1015
    %v3738 = vunpack.c.l.b16 %v1016
    %v3739 = vunpack.c.l.b16 %v1017
    %v3740 = vunpack.c.h.b16 %v1017
    %v3741 = vunpack.c.l.b16 %v1018
    %v3742 = vunpack.c.h.b16 %v1018
    %v3743 = vunpack.c.l.b16 %v1019
    %v3744 = vunpack.c.l.b16 %v1020
    %v3745 = vunpack.c.h.b16 %v1020
    %v3746 = vunpack.c.l.b16 %v1021
    %v3747 = vunpack.c.h.b16 %v1021
    %v3748 = vunpack.c.l.b16 %v1022
    %v3749 = vunpack.c.l.b16 %v1023
    %v3750 = vunpack.c.h.b16 %v1023
    %v3751 = vunpack.c.l.b16 %v1024
    %v3752 = vunpack.c.h.b16 %v1024
    %v3753 = vunpack.c.l.b16 %v1025
    %v3754 = vunpack.c.l.b16 %v1026
    %v3755 = vunpack.c.h.b16 %v1026
    %v3756 = vunpack.c.l.b16 %v1027
    %v3757 = vunpack.c.h.b16 %v1027
    %v3758 = vunpack.c.l.b16 %v1028
    %v3759 = vunpack.c.l.b16 %v1029
    %v3760 = vunpack.c.h.b16 %v1029
    %v3761 = vunpack.c.l.b16 %v1030
    %v3762 = vunpack.c.h.b16 %v1030
    %v3763 = vunpack.c.l.b16 %v1031
    %v3764 = vunpack.c.l.b16 %v1032
    %v3765 = vunpack.c.h.b16 %v1032
    %v3766 = vunpack.c.l.b16 %v1033
    %v3767 = vunpack.c.h.b16 %v1033
    %v3768 = vunpack.c.l.b16 %v1034
    %v3769 = vunpack.c.l.b16 %v1035
    %v3770 = vunpack.c.h.b16 %v1035
    %v3771 = vunpack.c.l.b16 %v1036
    %v3772 = vunpack.c.h.b16 %v1036
    %v3773 = vunpack.c.l.b16 %v1037
    %v3774 = vunpack.c.l.b16 %v1038
    %v3775 = vunpack.c.h.b16 %v1038
    %v3776 = vunpack.c.l.b16 %v1039
    %v3777 = vunpack.c.h.b16 %v1039
    %v3778 = vunpack.c.l.b16 %v1040
    %v3779 = vunpack.c.l.b16 %v1041
    %v3780 = vunpack.c.h.b16 %v1041
    %v3781 = vunpack.c.l.b16 %v1042
    %v3782 = vunpack.c.h.b16 %v1042
    %v3783 = vunpack.c.l.b16 %v1043
    %v3784 = vpack.c.b16 %v2509, %v2504
    %v3785 = vpack.c.b16 %v2510, %v2505
    %v3786 = vpack.c.b16 %v2511, %v2506
    %v3787 = vpack.c.b16 %v2512, %v2507
    %v3788 = vpack.c.b16 %v2513, %v2508
    %v3789 = vpack.c.b16 %v2519, %v2514
    %v3790 = vpack.c.b16 %v2520, %v2515
    %v3791 = vpack.c.b16 %v2521, %v2516
    %v3792 = vpack.c.b16 %v2522, %v2517
    %v3793 = vpack.c.b16 %v2523, %v2518
    %v3794 = vpack.c.b16 %v2529, %v2524
    %v3795 = vpack.c.b16 %v2530, %v2525
    %v3796 = vpack.c.b16 %v2531, %v2526
    %v3797 = vpack.c.b16 %v2532, %v2527
    %v3798 = vpack.c.b16 %v2533, %v2528
    %v3799 = vpack.c.b16 %v2539, %v2534
    %v3800 = vpack.c.b16 %v2540, %v2535
    %v3801 = vpack.c.b16 %v2541, %v2536
    %v3802 = vpack.c.b16 %v2542, %v2537
    %v3803 = vpack.c.b16 %v2543, %v2538
    %v3804 = vpack.c.b16 %v2549, %v2544
    %v3805 = vpack.c.b16 %v2550, %v2545
    %v3806 = vpack.c.b16 %v2551, %v2546
    %v3807 = vpack.c.b16 %v2552, %v2547
    %v3808 = vpack.c.b16 %v2553, %v2548
    %v3809 = vpack.c.b16 %v2559, %v2554
    %v3810 = vpack.c.b16 %v2560, %v2555
    %v3811 = vpack.c.b16 %v2561, %v2556
    %v3812 = vpack.c.b16 %v2562, %v2557
    %v3813 = vpack.c.b16 %v2563, %v2558
    %v3814 = vpack.c.b16 %v2569, %v2564
    %v3815 = vpack.c.b16 %v2570, %v2565
    %v3816 = vpack.c.b16 %v2571, %v2566
    %v3817 = vpack.c.b16 %v2572, %v2567
    %v3818 = vpack.c.b16 %v2573, %v2568
    %v3819 = vpack.c.b16 %v2579, %v2574
    %v3820 = vpack.c.b16 %v2580, %v2575
    %v3821 = vpack.c.b16 %v2581, %v2576
    %v3822 = vpack.c.b16 %v2582, %v2577
    %v3823 = vpack.c.b16 %v2583, %v2578
    %v3824 = vpack.c.b16 %v2589, %v2584
    %v3825 = vpack.c.b16 %v2590, %v2585
    %v3826 = vpack.c.b16 %v2591, %v2586
    %v3827 = vpack.c.b16 %v2592, %v2587
    %v3828 = vpack.c.b16 %v2593, %v2588
    %v3829 = vpack.c.b16 %v2599, %v2594
    %v3830 = vpack.c.b16 %v2600, %v2595
    %v3831 = vpack.c.b16 %v2601, %v2596
    %v3832 = vpack.c.b16 %v2602, %v2597
    %v3833 = vpack.c.b16 %v2603, %v2598
    %v3834 = vpack.c.b16 %v2609, %v2604
    %v3835 = vpack.c.b16 %v2610, %v2605
    %v3836 = vpack.c.b16 %v2611, %v2606
    %v3837 = vpack.c.b16 %v2612, %v2607
    %v3838 = vpack.c.b16 %v2613, %v2608
    %v3839 = vpack.c.b16 %v2619, %v2614
    %v3840 = vpack.c.b16 %v2620, %v2615
    %v3841 = vpack.c.b16 %v2621, %v2616
    %v3842 = vpack.c.b16 %v2622, %v2617
    %v3843 = vpack.c.b16 %v2623, %v2618
    %v3844 = vpack.c.b16 %v2629, %v2624
    %v3845 = vpack.c.b16 %v2630, %v2625
    %v3846 = vpack.c.b16 %v2631, %v2626
    %v3847 = vpack.c.b16 %v2632, %v2627
    %v3848 = vpack.c.b16 %v2633, %v2628
    %v3849 = vpack.c.b16 %v2639, %v2634
    %v3850 = vpack.c.b16 %v2640, %v2635
    %v3851 = vpack.c.b16 %v2641, %v2636
    %v3852 = vpack.c.b16 %v2642, %v2637
    %v3853 = vpack.c.b16 %v2643, %v2638
    %v3854 = vpack.c.b16 %v2649, %v2644
    %v3855 = vpack.c.b16 %v2650, %v2645
    %v3856 = vpack.c.b16 %v2651, %v2646
    %v3857 = vpack.c.b16 %v2652, %v2647
    %v3858 = vpack.c.b16 %v2653, %v2648
    %v3859 = vpack.c.b16 %v2659, %v2654
    %v3860 = vpack.c.b16 %v2660, %v2655
    %v3861 = vpack.c.b16 %v2661, %v2656
    %v3862 = vpack.c.b16 %v2662, %v2657
    %v3863 = vpack.c.b16 %v2663, %v2658
    %v3864 = vpack.c.b16 %v2669, %v2664
    %v3865 = vpack.c.b16 %v2670, %v2665
    %v3866 = vpack.c.b16 %v2671, %v2666
    %v3867 = vpack.c.b16 %v2672, %v2667
    %v3868 = vpack.c.b16 %v2673, %v2668
    %v3869 = vpack.c.b16 %v2679, %v2674
    %v3870 = vpack.c.b16 %v2680, %v2675
    %v3871 = vpack.c.b16 %v2681, %v2676
    %v3872 = vpack.c.b16 %v2682, %v2677
    %v3873 = vpack.c.b16 %v2683, %v2678
    %v3874 = vpack.c.b16 %v2689, %v2684
    %v3875 = vpack.c.b16 %v2690, %v2685
    %v3876 = vpack.c.b16 %v2691, %v2686
    %v3877 = vpack.c.b16 %v2692, %v2687
    %v3878 = vpack.c.b16 %v2693, %v2688
    %v3879 = vpack.c.b16 %v2699, %v2694
    %v3880 = vpack.c.b16 %v2700, %v2695
    %v3881 = vpack.c.b16 %v2701, %v2696
    %v3882 = vpack.c.b16 %v2702, %v2697
    %v3883 = vpack.c.b16 %v2703, %v2698
    %v3884 = vpack.c.b16 %v2709, %v2704
    %v3885 = vpack.c.b16 %v2710, %v2705
    %v3886 = vpack.c.b16 %v2711, %v2706
    %v3887 = vpack.c.b16 %v2712, %v2707
    %v3888 = vpack.c.b16 %v2713, %v2708
    %v3889 = vpack.c.b16 %v2719, %v2714
    %v3890 = vpack.c.b16 %v2720, %v2715
    %v3891 = vpack.c.b16 %v2721, %v2716
    %v3892 = vpack.c.b16 %v2722, %v2717
    %v3893 = vpack.c.b16 %v2723, %v2718
    %v3894 = vpack.c.b16 %v2729, %v2724
    %v3895 = vpack.c.b16 %v2730, %v2725
    %v3896 = vpack.c.b16 %v2731, %v2726
    %v3897 = vpack.c.b16 %v2732, %v2727
    %v3898 = vpack.c.b16 %v2733, %v2728
    %v3899 = vpack.c.b16 %v2739, %v2734
    %v3900 = vpack.c.b16 %v2740, %v2735
    %v3901 = vpack.c.b16 %v2741, %v2736
    %v3902 = vpack.c.b16 %v2742, %v2737
    %v3903 = vpack.c.b16 %v2743, %v2738
    %v3904 = vpack.c.b16 %v2749, %v2744
    %v3905 = vpack.c.b16 %v2750, %v2745
    %v3906 = vpack.c.b16 %v2751, %v2746
    %v3907 = vpack.c.b16 %v2752, %v2747
    %v3908 = vpack.c.b16 %v2753, %v2748
    %v3909 = vpack.c.b16 %v2759, %v2754
    %v3910 = vpack.c.b16 %v2760, %v2755
    %v3911 = vpack.c.b16 %v2761, %v2756
    %v3912 = vpack.c.b16 %v2762, %v2757
    %v3913 = vpack.c.b16 %v2763, %v2758
    %v3914 = vpack.c.b16 %v2769, %v2764
    %v3915 = vpack.c.b16 %v2770, %v2765
    %v3916 = vpack.c.b16 %v2771, %v2766
    %v3917 = vpack.c.b16 %v2772, %v2767
    %v3918 = vpack.c.b16 %v2773, %v2768
    %v3919 = vpack.c.b16 %v2779, %v2774
    %v3920 = vpack.c.b16 %v2780, %v2775
    %v3921 = vpack.c.b16 %v2781, %v2776
    %v3922 = vpack.c.b16 %v2782, %v2777
    %v3923 = vpack.c.b16 %v2783, %v2778
    %v3924 = vpack.c.b16 %v2789, %v2784
    %v3925 = vpack.c.b16 %v2790, %v2785
    %v3926 = vpack.c.b16 %v2791, %v2786
    %v3927 = vpack.c.b16 %v2792, %v2787
    %v3928 = vpack.c.b16 %v2793, %v2788
    %v3929 = vpack.c.b16 %v2799, %v2794
    %v3930 = vpack.c.b16 %v2800, %v2795
    %v3931 = vpack.c.b16 %v2801, %v2796
    %v3932 = vpack.c.b16 %v2802, %v2797
    %v3933 = vpack.c.b16 %v2803, %v2798
    %v3934 = vpack.c.b16 %v2809, %v2804
    %v3935 = vpack.c.b16 %v2810, %v2805
    %v3936 = vpack.c.b16 %v2811, %v2806
    %v3937 = vpack.c.b16 %v2812, %v2807
    %v3938 = vpack.c.b16 %v2813, %v2808
    %v3939 = vpack.c.b16 %v2819, %v2814
    %v3940 = vpack.c.b16 %v2820, %v2815
    %v3941 = vpack.c.b16 %v2821, %v2816
    %v3942 = vpack.c.b16 %v2822, %v2817
    %v3943 = vpack.c.b16 %v2823, %v2818
    %v3944 = vpack.c.b16 %v2829, %v2824
    %v3945 = vpack.c.b16 %v2830, %v2825
    %v3946 = vpack.c.b16 %v2831, %v2826
    %v3947 = vpack.c.b16 %v2832, %v2827
    %v3948 = vpack.c.b16 %v2833, %v2828
    %v3949 = vpack.c.b16 %v2839, %v2834
    %v3950 = vpack.c.b16 %v2840, %v2835
    %v3951 = vpack.c.b16 %v2841, %v2836
    %v3952 = vpack.c.b16 %v2842, %v2837
    %v3953 = vpack.c.b16 %v2843, %v2838
    %v3954 = vpack.c.b16 %v2849, %v2844
    %v3955 = vpack.c.b16 %v2850, %v2845
    %v3956 = vpack.c.b16 %v2851, %v2846
    %v3957 = vpack.c.b16 %v2852, %v2847
    %v3958 = vpack.c.b16 %v2853, %v2848
    %v3959 = vpack.c.b16 %v2859, %v2854
    %v3960 = vpack.c.b16 %v2860, %v2855
    %v3961 = vpack.c.b16 %v2861, %v2856
    %v3962 = vpack.c.b16 %v2862, %v2857
    %v3963 = vpack.c.b16 %v2863, %v2858
    %v3964 = vpack.c.b16 %v2869, %v2864
    %v3965 = vpack.c.b16 %v2870, %v2865
    %v3966 = vpack.c.b16 %v2871, %v2866
    %v3967 = vpack.c.b16 %v2872, %v2867
    %v3968 = vpack.c.b16 %v2873, %v2868
    %v3969 = vpack.c.b16 %v2879, %v2874
    %v3970 = vpack.c.b16 %v2880, %v2875
    %v3971 = vpack.c.b16 %v2881, %v2876
    %v3972 = vpack.c.b16 %v2882, %v2877
    %v3973 = vpack.c.b16 %v2883, %v2878
    %v3974 = vpack.c.b16 %v2889, %v2884
    %v3975 = vpack.c.b16 %v2890, %v2885
    %v3976 = vpack.c.b16 %v2891, %v2886
    %v3977 = vpack.c.b16 %v2892, %v2887
    %v3978 = vpack.c.b16 %v2893, %v2888
    %v3979 = vpack.c.b16 %v2899, %v2894
    %v3980 = vpack.c.b16 %v2900, %v2895
    %v3981 = vpack.c.b16 %v2901, %v2896
    %v3982 = vpack.c.b16 %v2902, %v2897
    %v3983 = vpack.c.b16 %v2903, %v2898
    %v3984 = vpack.c.b16 %v2909, %v2904
    %v3985 = vpack.c.b16 %v2910, %v2905
    %v3986 = vpack.c.b16 %v2911, %v2906
    %v3987 = vpack.c.b16 %v2912, %v2907
    %v3988 = vpack.c.b16 %v2913, %v2908
    %v3989 = vpack.c.b16 %v2919, %v2914
    %v3990 = vpack.c.b16 %v2920, %v2915
    %v3991 = vpack.c.b16 %v2921, %v2916
    %v3992 = vpack.c.b16 %v2922, %v2917
    %v3993 = vpack.c.b16 %v2923, %v2918
    %v3994 = vpack.c.b16 %v2929, %v2924
    %v3995 = vpack.c.b16 %v2930, %v2925
    %v3996 = vpack.c.b16 %v2931, %v2926
    %v3997 = vpack.c.b16 %v2932, %v2927
    %v3998 = vpack.c.b16 %v2933, %v2928
    %v3999 = vpack.c.b16 %v2939, %v2934
    %v4000 = vpack.c.b16 %v2940, %v2935
    %v4001 = vpack.c.b16 %v2941, %v2936
    %v4002 = vpack.c.b16 %v2942, %v2937
    %v4003 = vpack.c.b16 %v2943, %v2938
    %v4004 = vpack.c.b16 %v2949, %v2944
    %v4005 = vpack.c.b16 %v2950, %v2945
    %v4006 = vpack.c.b16 %v2951, %v2946
    %v4007 = vpack.c.b16 %v2952, %v2947
    %v4008 = vpack.c.b16 %v2953, %v2948
    %v4009 = vpack.c.b16 %v2959, %v2954
    %v4010 = vpack.c.b16 %v2960, %v2955
    %v4011 = vpack.c.b16 %v2961, %v2956
    %v4012 = vpack.c.b16 %v2962, %v2957
    %v4013 = vpack.c.b16 %v2963, %v2958
    %v4014 = vpack.c.b16 %v2969, %v2964
    %v4015 = vpack.c.b16 %v2970, %v2965
    %v4016 = vpack.c.b16 %v2971, %v2966
    %v4017 = vpack.c.b16 %v2972, %v2967
    %v4018 = vpack.c.b16 %v2973, %v2968
    %v4019 = vpack.c.b16 %v2979, %v2974
    %v4020 = vpack.c.b16 %v2980, %v2975
    %v4021 = vpack.c.b16 %v2981, %v2976
    %v4022 = vpack.c.b16 %v2982, %v2977
    %v4023 = vpack.c.b16 %v2983, %v2978
    %v4024 = vpack.c.b16 %v2989, %v2984
    %v4025 = vpack.c.b16 %v2990, %v2985
    %v4026 = vpack.c.b16 %v2991, %v2986
    %v4027 = vpack.c.b16 %v2992, %v2987
    %v4028 = vpack.c.b16 %v2993, %v2988
    %v4029 = vpack.c.b16 %v2999, %v2994
    %v4030 = vpack.c.b16 %v3000, %v2995
    %v4031 = vpack.c.b16 %v3001, %v2996
    %v4032 = vpack.c.b16 %v3002, %v2997
    %v4033 = vpack.c.b16 %v3003, %v2998
    %v4034 = vpack.c.b16 %v3009, %v3004
    %v4035 = vpack.c.b16 %v3010, %v3005
    %v4036 = vpack.c.b16 %v3011, %v3006
    %v4037 = vpack.c.b16 %v3012, %v3007
    %v4038 = vpack.c.b16 %v3013, %v3008
    %v4039 = vpack.c.b16 %v3019, %v3014
    %v4040 = vpack.c.b16 %v3020, %v3015
    %v4041 = vpack.c.b16 %v3021, %v3016
    %v4042 = vpack.c.b16 %v3022, %v3017
    %v4043 = vpack.c.b16 %v3023, %v3018
    %v4044 = vpack.c.b16 %v3029, %v3024
    %v4045 = vpack.c.b16 %v3030, %v3025
    %v4046 = vpack.c.b16 %v3031, %v3026
    %v4047 = vpack.c.b16 %v3032, %v3027
    %v4048 = vpack.c.b16 %v3033, %v3028
    %v4049 = vpack.c.b16 %v3039, %v3034
    %v4050 = vpack.c.b16 %v3040, %v3035
    %v4051 = vpack.c.b16 %v3041, %v3036
    %v4052 = vpack.c.b16 %v3042, %v3037
    %v4053 = vpack.c.b16 %v3043, %v3038
    %v4054 = vpack.c.b16 %v3049, %v3044
    %v4055 = vpack.c.b16 %v3050, %v3045
    %v4056 = vpack.c.b16 %v3051, %v3046
    %v4057 = vpack.c.b16 %v3052, %v3047
    %v4058 = vpack.c.b16 %v3053, %v3048
    %v4059 = vpack.c.b16 %v3059, %v3054
    %v4060 = vpack.c.b16 %v3060, %v3055
    %v4061 = vpack.c.b16 %v3061, %v3056
    %v4062 = vpack.c.b16 %v3062, %v3057
    %v4063 = vpack.c.b16 %v3063, %v3058
    %v4064 = vpack.c.b16 %v3069, %v3064
    %v4065 = vpack.c.b16 %v3070, %v3065
    %v4066 = vpack.c.b16 %v3071, %v3066
    %v4067 = vpack.c.b16 %v3072, %v3067
    %v4068 = vpack.c.b16 %v3073, %v3068
    %v4069 = vpack.c.b16 %v3079, %v3074
    %v4070 = vpack.c.b16 %v3080, %v3075
    %v4071 = vpack.c.b16 %v3081, %v3076
    %v4072 = vpack.c.b16 %v3082, %v3077
    %v4073 = vpack.c.b16 %v3083, %v3078
    %v4074 = vpack.c.b16 %v3089, %v3084
    %v4075 = vpack.c.b16 %v3090, %v3085
    %v4076 = vpack.c.b16 %v3091, %v3086
    %v4077 = vpack.c.b16 %v3092, %v3087
    %v4078 = vpack.c.b16 %v3093, %v3088
    %v4079 = vpack.c.b16 %v3099, %v3094
    %v4080 = vpack.c.b16 %v3100, %v3095
    %v4081 = vpack.c.b16 %v3101, %v3096
    %v4082 = vpack.c.b16 %v3102, %v3097
    %v4083 = vpack.c.b16 %v3103, %v3098
    %v4084 = vpack.c.b16 %v3109, %v3104
    %v4085 = vpack.c.b16 %v3110, %v3105
    %v4086 = vpack.c.b16 %v3111, %v3106
    %v4087 = vpack.c.b16 %v3112, %v3107
    %v4088 = vpack.c.b16 %v3113, %v3108
    %v4089 = vpack.c.b16 %v3119, %v3114
    %v4090 = vpack.c.b16 %v3120, %v3115
    %v4091 = vpack.c.b16 %v3121, %v3116
    %v4092 = vpack.c.b16 %v3122, %v3117
    %v4093 = vpack.c.b16 %v3123, %v3118
    %v4094 = vpack.c.b16 %v3129, %v3124
    %v4095 = vpack.c.b16 %v3130, %v3125
    %v4096 = vpack.c.b16 %v3131, %v3126
    %v4097 = vpack.c.b16 %v3132, %v3127
    %v4098 = vpack.c.b16 %v3133, %v3128
    %v4099 = vpack.c.b16 %v3139, %v3134
    %v4100 = vpack.c.b16 %v3140, %v3135
    %v4101 = vpack.c.b16 %v3141, %v3136
    %v4102 = vpack.c.b16 %v3142, %v3137
    %v4103 = vpack.c.b16 %v3143, %v3138
    %v4104 = vpack.c.b16 %v3149, %v3144
    %v4105 = vpack.c.b16 %v3150, %v3145
    %v4106 = vpack.c.b16 %v3151, %v3146
    %v4107 = vpack.c.b16 %v3152, %v3147
    %v4108 = vpack.c.b16 %v3153, %v3148
    %v4109 = vpack.c.b16 %v3159, %v3154
    %v4110 = vpack.c.b16 %v3160, %v3155
    %v4111 = vpack.c.b16 %v3161, %v3156
    %v4112 = vpack.c.b16 %v3162, %v3157
    %v4113 = vpack.c.b16 %v3163, %v3158
    %v4114 = vpack.c.b16 %v3169, %v3164
    %v4115 = vpack.c.b16 %v3170, %v3165
    %v4116 = vpack.c.b16 %v3171, %v3166
    %v4117 = vpack.c.b16 %v3172, %v3167
    %v4118 = vpack.c.b16 %v3173, %v3168
    %v4119 = vpack.c.b16 %v3179, %v3174
    %v4120 = vpack.c.b16 %v3180, %v3175
    %v4121 = vpack.c.b16 %v3181, %v3176
    %v4122 = vpack.c.b16 %v3182, %v3177
    %v4123 = vpack.c.b16 %v3183, %v3178
    %v4124 = vpack.c.b16 %v3189, %v3184
    %v4125 = vpack.c.b16 %v3190, %v3185
    %v4126 = vpack.c.b16 %v3191, %v3186
    %v4127 = vpack.c.b16 %v3192, %v3187
    %v4128 = vpack.c.b16 %v3193, %v3188
    %v4129 = vpack.c.b16 %v3199, %v3194
    %v4130 = vpack.c.b16 %v3200, %v3195
    %v4131 = vpack.c.b16 %v3201, %v3196
    %v4132 = vpack.c.b16 %v3202, %v3197
    %v4133 = vpack.c.b16 %v3203, %v3198
    %v4134 = vpack.c.b16 %v3209, %v3204
    %v4135 = vpack.c.b16 %v3210, %v3205
    %v4136 = vpack.c.b16 %v3211, %v3206
    %v4137 = vpack.c.b16 %v3212, %v3207
    %v4138 = vpack.c.b16 %v3213, %v3208
    %v4139 = vpack.c.b16 %v3219, %v3214
    %v4140 = vpack.c.b16 %v3220, %v3215
    %v4141 = vpack.c.b16 %v3221, %v3216
    %v4142 = vpack.c.b16 %v3222, %v3217
    %v4143 = vpack.c.b16 %v3223, %v3218
    %v4144 = vpack.c.b16 %v3229, %v3224
    %v4145 = vpack.c.b16 %v3230, %v3225
    %v4146 = vpack.c.b16 %v3231, %v3226
    %v4147 = vpack.c.b16 %v3232, %v3227
    %v4148 = vpack.c.b16 %v3233, %v3228
    %v4149 = vpack.c.b16 %v3239, %v3234
    %v4150 = vpack.c.b16 %v3240, %v3235
    %v4151 = vpack.c.b16 %v3241, %v3236
    %v4152 = vpack.c.b16 %v3242, %v3237
    %v4153 = vpack.c.b16 %v3243, %v3238
    %v4154 = vpack.c.b16 %v3249, %v3244
    %v4155 = vpack.c.b16 %v3250, %v3245
    %v4156 = vpack.c.b16 %v3251, %v3246
    %v4157 = vpack.c.b16 %v3252, %v3247
    %v4158 = vpack.c.b16 %v3253, %v3248
    %v4159 = vpack.c.b16 %v3259, %v3254
    %v4160 = vpack.c.b16 %v3260, %v3255
    %v4161 = vpack.c.b16 %v3261, %v3256
    %v4162 = vpack.c.b16 %v3262, %v3257
    %v4163 = vpack.c.b16 %v3263, %v3258
    %v4164 = vpack.c.b16 %v3269, %v3264
    %v4165 = vpack.c.b16 %v3270, %v3265
    %v4166 = vpack.c.b16 %v3271, %v3266
    %v4167 = vpack.c.b16 %v3272, %v3267
    %v4168 = vpack.c.b16 %v3273, %v3268
    %v4169 = vpack.c.b16 %v3279, %v3274
    %v4170 = vpack.c.b16 %v3280, %v3275
    %v4171 = vpack.c.b16 %v3281, %v3276
    %v4172 = vpack.c.b16 %v3282, %v3277
    %v4173 = vpack.c.b16 %v3283, %v3278
    %v4174 = vpack.c.b16 %v3289, %v3284
    %v4175 = vpack.c.b16 %v3290, %v3285
    %v4176 = vpack.c.b16 %v3291, %v3286
    %v4177 = vpack.c.b16 %v3292, %v3287
    %v4178 = vpack.c.b16 %v3293, %v3288
    %v4179 = vpack.c.b16 %v3299, %v3294
    %v4180 = vpack.c.b16 %v3300, %v3295
    %v4181 = vpack.c.b16 %v3301, %v3296
    %v4182 = vpack.c.b16 %v3302, %v3297
    %v4183 = vpack.c.b16 %v3303, %v3298
    %v4184 = vpack.c.b16 %v3309, %v3304
    %v4185 = vpack.c.b16 %v3310, %v3305
    %v4186 = vpack.c.b16 %v3311, %v3306
    %v4187 = vpack.c.b16 %v3312, %v3307
    %v4188 = vpack.c.b16 %v3313, %v3308
    %v4189 = vpack.c.b16 %v3319, %v3314
    %v4190 = vpack.c.b16 %v3320, %v3315
    %v4191 = vpack.c.b16 %v3321, %v3316
    %v4192 = vpack.c.b16 %v3322, %v3317
    %v4193 = vpack.c.b16 %v3323, %v3318
    %v4194 = vpack.c.b16 %v3329, %v3324
    %v4195 = vpack.c.b16 %v3330, %v3325
    %v4196 = vpack.c.b16 %v3331, %v3326
    %v4197 = vpack.c.b16 %v3332, %v3327
    %v4198 = vpack.c.b16 %v3333, %v3328
    %v4199 = vpack.c.b16 %v3339, %v3334
    %v4200 = vpack.c.b16 %v3340, %v3335
    %v4201 = vpack.c.b16 %v3341, %v3336
    %v4202 = vpack.c.b16 %v3342, %v3337
    %v4203 = vpack.c.b16 %v3343, %v3338
    %v4204 = vpack.c.b16 %v3349, %v3344
    %v4205 = vpack.c.b16 %v3350, %v3345
    %v4206 = vpack.c.b16 %v3351, %v3346
    %v4207 = vpack.c.b16 %v3352, %v3347
    %v4208 = vpack.c.b16 %v3353, %v3348
    %v4209 = vpack.c.b16 %v3359, %v3354
    %v4210 = vpack.c.b16 %v3360, %v3355
    %v4211 = vpack.c.b16 %v3361, %v3356
    %v4212 = vpack.c.b16 %v3362, %v3357
    %v4213 = vpack.c.b16 %v3363, %v3358
    %v4214 = vpack.c.b16 %v3369, %v3364
    %v4215 = vpack.c.b16 %v3370, %v3365
    %v4216 = vpack.c.b16 %v3371, %v3366
    %v4217 = vpack.c.b16 %v3372, %v3367
    %v4218 = vpack.c.b16 %v3373, %v3368
    %v4219 = vpack.c.b16 %v3379, %v3374
    %v4220 = vpack.c.b16 %v3380, %v3375
    %v4221 = vpack.c.b16 %v3381, %v3376
    %v4222 = vpack.c.b16 %v3382, %v3377
    %v4223 = vpack.c.b16 %v3383, %v3378
    %v4224 = vpack.c.b16 %v3389, %v3384
    %v4225 = vpack.c.b16 %v3390, %v3385
    %v4226 = vpack.c.b16 %v3391, %v3386
    %v4227 = vpack.c.b16 %v3392, %v3387
    %v4228 = vpack.c.b16 %v3393, %v3388
    %v4229 = vpack.c.b16 %v3399, %v3394
    %v4230 = vpack.c.b16 %v3400, %v3395
    %v4231 = vpack.c.b16 %v3401, %v3396
    %v4232 = vpack.c.b16 %v3402, %v3397
    %v4233 = vpack.c.b16 %v3403, %v3398
    %v4234 = vpack.c.b16 %v3409, %v3404
    %v4235 = vpack.c.b16 %v3410, %v3405
    %v4236 = vpack.c.b16 %v3411, %v3406
    %v4237 = vpack.c.b16 %v3412, %v3407
    %v4238 = vpack.c.b16 %v3413, %v3408
    %v4239 = vpack.c.b16 %v3419, %v3414
    %v4240 = vpack.c.b16 %v3420, %v3415
    %v4241 = vpack.c.b16 %v3421, %v3416
    %v4242 = vpack.c.b16 %v3422, %v3417
    %v4243 = vpack.c.b16 %v3423, %v3418
    %v4244 = vpack.c.b16 %v3429, %v3424
    %v4245 = vpack.c.b16 %v3430, %v3425
    %v4246 = vpack.c.b16 %v3431, %v3426
    %v4247 = vpack.c.b16 %v3432, %v3427
    %v4248 = vpack.c.b16 %v3433, %v3428
    %v4249 = vpack.c.b16 %v3439, %v3434
    %v4250 = vpack.c.b16 %v3440, %v3435
    %v4251 = vpack.c.b16 %v3441, %v3436
    %v4252 = vpack.c.b16 %v3442, %v3437
    %v4253 = vpack.c.b16 %v3443, %v3438
    %v4254 = vpack.c.b16 %v3449, %v3444
    %v4255 = vpack.c.b16 %v3450, %v3445
    %v4256 = vpack.c.b16 %v3451, %v3446
    %v4257 = vpack.c.b16 %v3452, %v3447
    %v4258 = vpack.c.b16 %v3453, %v3448
    %v4259 = vpack.c.b16 %v3459, %v3454
    %v4260 = vpack.c.b16 %v3460, %v3455
    %v4261 = vpack.c.b16 %v3461, %v3456
    %v4262 = vpack.c.b16 %v3462, %v3457
    %v4263 = vpack.c.b16 %v3463, %v3458
    %v4264 = vpack.c.b16 %v3469, %v3464
    %v4265 = vpack.c.b16 %v3470, %v3465
    %v4266 = vpack.c.b16 %v3471, %v3466
    %v4267 = vpack.c.b16 %v3472, %v3467
    %v4268 = vpack.c.b16 %v3473, %v3468
    %v4269 = vpack.c.b16 %v3479, %v3474
    %v4270 = vpack.c.b16 %v3480, %v3475
    %v4271 = vpack.c.b16 %v3481, %v3476
    %v4272 = vpack.c.b16 %v3482, %v3477
    %v4273 = vpack.c.b16 %v3483, %v3478
    %v4274 = vpack.c.b16 %v3489, %v3484
    %v4275 = vpack.c.b16 %v3490, %v3485
    %v4276 = vpack.c.b16 %v3491, %v3486
    %v4277 = vpack.c.b16 %v3492, %v3487
    %v4278 = vpack.c.b16 %v3493, %v3488
    %v4279 = vpack.c.b16 %v3499, %v3494
    %v4280 = vpack.c.b16 %v3500, %v3495
    %v4281 = vpack.c.b16 %v3501, %v3496
    %v4282 = vpack.c.b16 %v3502, %v3497
    %v4283 = vpack.c.b16 %v3503, %v3498
    %v4284 = vpack.c.b16 %v3509, %v3504
    %v4285 = vpack.c.b16 %v3510, %v3505
    %v4286 = vpack.c.b16 %v3511, %v3506
    %v4287 = vpack.c.b16 %v3512, %v3507
    %v4288 = vpack.c.b16 %v3513, %v3508
    %v4289 = vpack.c.b16 %v3519, %v3514
    %v4290 = vpack.c.b16 %v3520, %v3515
    %v4291 = vpack.c.b16 %v3521, %v3516
    %v4292 = vpack.c.b16 %v3522, %v3517
    %v4293 = vpack.c.b16 %v3523, %v3518
    %v4294 = vpack.c.b16 %v3529, %v3524
    %v4295 = vpack.c.b16 %v3530, %v3525
    %v4296 = vpack.c.b16 %v3531, %v3526
    %v4297 = vpack.c.b16 %v3532, %v3527
    %v4298 = vpack.c.b16 %v3533, %v3528
    %v4299 = vpack.c.b16 %v3539, %v3534
    %v4300 = vpack.c.b16 %v3540, %v3535
    %v4301 = vpack.c.b16 %v3541, %v3536
    %v4302 = vpack.c.b16 %v3542, %v3537
    %v4303 = vpack.c.b16 %v3543, %v3538
    %v4304 = vpack.c.b16 %v3549, %v3544
    %v4305 = vpack.c.b16 %v3550, %v3545
    %v4306 = vpack.c.b16 %v3551, %v3546
    %v4307 = vpack.c.b16 %v3552, %v3547
    %v4308 = vpack.c.b16 %v3553, %v3548
    %v4309 = vpack.c.b16 %v3559, %v3554
    %v4310 = vpack.c.b16 %v3560, %v3555
    %v4311 = vpack.c.b16 %v3561, %v3556
    %v4312 = vpack.c.b16 %v3562, %v3557
    %v4313 = vpack.c.b16 %v3563, %v3558
    %v4314 = vpack.c.b16 %v3569, %v3564
    %v4315 = vpack.c.b16 %v3570, %v3565
    %v4316 = vpack.c.b16 %v3571, %v3566
    %v4317 = vpack.c.b16 %v3572, %v3567
    %v4318 = vpack.c.b16 %v3573, %v3568
    %v4319 = vpack.c.b16 %v3579, %v3574
    %v4320 = vpack.c.b16 %v3580, %v3575
    %v4321 = vpack.c.b16 %v3581, %v3576
    %v4322 = vpack.c.b16 %v3582, %v3577
    %v4323 = vpack.c.b16 %v3583, %v3578
    %v4324 = vpack.c.b16 %v3589, %v3584
    %v4325 = vpack.c.b16 %v3590, %v3585
    %v4326 = vpack.c.b16 %v3591, %v3586
    %v4327 = vpack.c.b16 %v3592, %v3587
    %v4328 = vpack.c.b16 %v3593, %v3588
    %v4329 = vpack.c.b16 %v3599, %v3594
    %v4330 = vpack.c.b16 %v3600, %v3595
    %v4331 = vpack.c.b16 %v3601, %v3596
    %v4332 = vpack.c.b16 %v3602, %v3597
    %v4333 = vpack.c.b16 %v3603, %v3598
    %v4334 = vpack.c.b16 %v3609, %v3604
    %v4335 = vpack.c.b16 %v3610, %v3605
    %v4336 = vpack.c.b16 %v3611, %v3606
    %v4337 = vpack.c.b16 %v3612, %v3607
    %v4338 = vpack.c.b16 %v3613, %v3608
    %v4339 = vpack.c.b16 %v3619, %v3614
    %v4340 = vpack.c.b16 %v3620, %v3615
    %v4341 = vpack.c.b16 %v3621, %v3616
    %v4342 = vpack.c.b16 %v3622, %v3617
    %v4343 = vpack.c.b16 %v3623, %v3618
    %v4344 = vpack.c.b16 %v3629, %v3624
    %v4345 = vpack.c.b16 %v3630, %v3625
    %v4346 = vpack.c.b16 %v3631, %v3626
    %v4347 = vpack.c.b16 %v3632, %v3627
    %v4348 = vpack.c.b16 %v3633, %v3628
    %v4349 = vpack.c.b16 %v3639, %v3634
    %v4350 = vpack.c.b16 %v3640, %v3635
    %v4351 = vpack.c.b16 %v3641, %v3636
    %v4352 = vpack.c.b16 %v3642, %v3637
    %v4353 = vpack.c.b16 %v3643, %v3638
    %v4354 = vpack.c.b16 %v3649, %v3644
    %v4355 = vpack.c.b16 %v3650, %v3645
    %v4356 = vpack.c.b16 %v3651, %v3646
    %v4357 = vpack.c.b16 %v3652, %v3647
    %v4358 = vpack.c.b16 %v3653, %v3648
    %v4359 = vpack.c.b16 %v3659, %v3654
    %v4360 = vpack.c.b16 %v3660, %v3655
    %v4361 = vpack.c.b16 %v3661, %v3656
    %v4362 = vpack.c.b16 %v3662, %v3657
    %v4363 = vpack.c.b16 %v3663, %v3658
    %v4364 = vpack.c.b16 %v3669, %v3664
    %v4365 = vpack.c.b16 %v3670, %v3665
    %v4366 = vpack.c.b16 %v3671, %v3666
    %v4367 = vpack.c.b16 %v3672, %v3667
    %v4368 = vpack.c.b16 %v3673, %v3668
    %v4369 = vpack.c.b16 %v3679, %v3674
    %v4370 = vpack.c.b16 %v3680, %v3675
    %v4371 = vpack.c.b16 %v3681, %v3676
    %v4372 = vpack.c.b16 %v3682, %v3677
    %v4373 = vpack.c.b16 %v3683, %v3678
    %v4374 = vpack.c.b16 %v3689, %v3684
    %v4375 = vpack.c.b16 %v3690, %v3685
    %v4376 = vpack.c.b16 %v3691, %v3686
    %v4377 = vpack.c.b16 %v3692, %v3687
    %v4378 = vpack.c.b16 %v3693, %v3688
    %v4379 = vpack.c.b16 %v3699, %v3694
    %v4380 = vpack.c.b16 %v3700, %v3695
    %v4381 = vpack.c.b16 %v3701, %v3696
    %v4382 = vpack.c.b16 %v3702, %v3697
    %v4383 = vpack.c.b16 %v3703, %v3698
    %v4384 = vpack.c.b16 %v3709, %v3704
    %v4385 = vpack.c.b16 %v3710, %v3705
    %v4386 = vpack.c.b16 %v3711, %v3706
    %v4387 = vpack.c.b16 %v3712, %v3707
    %v4388 = vpack.c.b16 %v3713, %v3708
    %v4389 = vpack.c.b16 %v3719, %v3714
    %v4390 = vpack.c.b16 %v3720, %v3715
    %v4391 = vpack.c.b16 %v3721, %v3716
    %v4392 = vpack.c.b16 %v3722, %v3717
    %v4393 = vpack.c.b16 %v3723, %v3718
    %v4394 = vpack.c.b16 %v3729, %v3724
    %v4395 = vpack.c.b16 %v3730, %v3725
    %v4396 = vpack.c.b16 %v3731, %v3726
    %v4397 = vpack.c.b16 %v3732, %v3727
    %v4398 = vpack.c.b16 %v3733, %v3728
    %v4399 = vpack.c.b16 %v3739, %v3734
    %v4400 = vpack.c.b16 %v3740, %v3735
    %v4401 = vpack.c.b16 %v3741, %v3736
    %v4402 = vpack.c.b16 %v3742, %v3737
    %v4403 = vpack.c.b16 %v3743, %v3738
    %v4404 = vpack.c.b16 %v3749, %v3744
    %v4405 = vpack.c.b16 %v3750, %v3745
    %v4406 = vpack.c.b16 %v3751, %v3746
    %v4407 = vpack.c.b16 %v3752, %v3747
    %v4408 = vpack.c.b16 %v3753, %v3748
    %v4409 = vpack.c.b16 %v3759, %v3754
    %v4410 = vpack.c.b16 %v3760, %v3755
    %v4411 = vpack.c.b16 %v3761, %v3756
    %v4412 = vpack.c.b16 %v3762, %v3757
    %v4413 = vpack.c.b16 %v3763, %v3758
    %v4414 = vpack.c.b16 %v3769, %v3764
    %v4415 = vpack.c.b16 %v3770, %v3765
    %v4416 = vpack.c.b16 %v3771, %v3766
    %v4417 = vpack.c.b16 %v3772, %v3767
    %v4418 = vpack.c.b16 %v3773, %v3768
    %v4419 = vpack.c.b16 %v3779, %v3774
    %v4420 = vpack.c.b16 %v3780, %v3775
    %v4421 = vpack.c.b16 %v3781, %v3776
    %v4422 = vpack.c.b16 %v3782, %v3777
    %v4423 = vpack.c.b16 %v3783, %v3778
    %5064 = vmatprep.subr.bf16.mxu0 %v3785
    %5065 = vmatpush1.bf16.msra.mxu0 %v3784
    %5066 = vmatprep.subr.bf16.mxu0 %v3790
    %5067 = vmatpush1.bf16.msra.mxu0 %v3789
    %5068 = vmatprep.subr.bf16.mxu0 %v3795
    %5069 = vmatpush1.bf16.msra.mxu0 %v3794
    %5070 = vmatprep.subr.bf16.mxu0 %v3800
    %5071 = vmatpush1.bf16.msra.mxu0 %v3799
    %5072 = vmatprep.subr.bf16.mxu0 %v3805
    %5073 = vmatpush1.bf16.msra.mxu0 %v3804
    %5074 = vmatprep.subr.bf16.mxu0 %v3810
    %5075 = vmatpush1.bf16.msra.mxu0 %v3809
    %5076 = vmatprep.subr.bf16.mxu0 %v3815
    %5077 = vmatpush1.bf16.msra.mxu0 %v3814
    %5078 = vmatprep.subr.bf16.mxu0 %v3820
    %5079 = vmatpush1.bf16.msra.mxu0 %v3819
    %5080 = vmatprep.subr.bf16.mxu0 %v3825
    %5081 = vmatpush1.bf16.msra.mxu0 %v3824
    %5082 = vmatprep.subr.bf16.mxu0 %v3830
    %5083 = vmatpush1.bf16.msra.mxu0 %v3829
    %5084 = vmatprep.subr.bf16.mxu0 %v3835
    %5085 = vmatpush1.bf16.msra.mxu0 %v3834
    %5086 = vmatprep.subr.bf16.mxu0 %v3840
    %5087 = vmatpush1.bf16.msra.mxu0 %v3839
    %5088 = vmatprep.subr.bf16.mxu0 %v3845
    %5089 = vmatpush1.bf16.msra.mxu0 %v3844
    %5090 = vmatprep.subr.bf16.mxu0 %v3850
    %5091 = vmatpush1.bf16.msra.mxu0 %v3849
    %5092 = vmatprep.subr.bf16.mxu0 %v3855
    %5093 = vmatpush1.bf16.msra.mxu0 %v3854
    %5094 = vmatprep.subr.bf16.mxu0 %v3860
    %5095 = vmatpush1.bf16.msra.mxu0 %v3859
    %5096 = vmatprep.mubr.bf16.mxu0 %v1481
    %5097 = vmatmul.mubr.bf16.gmra.mrb[0].mxu0 %v1480
    %v5098 = vpop.f32.mrb[0].mxu0
    %v5099 = vadd.f32 %v1044, %v5098
    %v5100 = vpop.f32.mrb[0].mxu0
    %v5101 = vadd.f32 %v1045, %v5100
    %v5102 = vpop.f32.mrb[0].mxu0
    %v5103 = vadd.f32 %v1049, %v5102
    %v5104 = vpop.f32.mrb[0].mxu0
    %v5105 = vadd.f32 %v1050, %v5104
    %5106 = vmatprep.mubr.bf16.mxu0 %v1497
    %5107 = vmatmul.mubr.bf16.gmra.mrb[0].mxu0 %v1496
    %v5108 = vpop.f32.mrb[0].mxu0
    %v5109 = vadd.f32 %v1054, %v5108
    %v5110 = vpop.f32.mrb[0].mxu0
    %v5111 = vadd.f32 %v1055, %v5110
    %v5112 = vpop.f32.mrb[0].mxu0
    %v5113 = vadd.f32 %v1057, %v5112
    %v5114 = vpop.f32.mrb[0].mxu0
    %v5115 = vadd.f32 %v1058, %v5114
    %5116 = vmatprep.mubr.bf16.mxu0 %v1513
    %5117 = vmatmul.mubr.bf16.gmra.mrb[0].mxu0 %v1512
    %v5118 = vpop.f32.mrb[0].mxu0
    %v5119 = vadd.f32 %v1060, %v5118
    %v5120 = vpop.f32.mrb[0].mxu0
    %v5121 = vadd.f32 %v1061, %v5120
    %v5122 = vpop.f32.mrb[0].mxu0
    %v5123 = vadd.f32 %v1063, %v5122
    %v5124 = vpop.f32.mrb[0].mxu0
    %v5125 = vadd.f32 %v1064, %v5124
    %5126 = vmatprep.mubr.bf16.mxu0 %v1529
    %5127 = vmatmul.mubr.bf16.gmra.mrb[0].mxu0 %v1528
    %v5128 = vpop.f32.mrb[0].mxu0
    %v5129 = vadd.f32 %v1066, %v5128
    %v5130 = vpop.f32.mrb[0].mxu0
    %v5131 = vadd.f32 %v1067, %v5130
    %v5132 = vpop.f32.mrb[0].mxu0
    %v5133 = vadd.f32 %v1069, %v5132
    %v5134 = vpop.f32.mrb[0].mxu0
    %v5135 = vadd.f32 %v1070, %v5134
    %5136 = vmatprep.mubr.bf16.mxu0 %v1545
    %5137 = vmatmul.mubr.bf16.gmra.mrb[0].mxu0 %v1544
    %v5138 = vpop.f32.mrb[0].mxu0
    %v5139 = vadd.f32 %v1072, %v5138
    %v5140 = vpop.f32.mrb[0].mxu0
    %v5141 = vadd.f32 %v1073, %v5140
    %v5142 = vpop.f32.mrb[0].mxu0
    %v5143 = vadd.f32 %v1075, %v5142
    %v5144 = vpop.f32.mrb[0].mxu0
    %v5145 = vadd.f32 %v1076, %v5144
    %5146 = vmatprep.mubr.bf16.mxu0 %v1561
    %5147 = vmatmul.mubr.bf16.gmra.mrb[0].mxu0 %v1560
    %v5148 = vpop.f32.mrb[0].mxu0
    %v5149 = vadd.f32 %v1078, %v5148
    %v5150 = vpop.f32.mrb[0].mxu0
    %v5151 = vadd.f32 %v1079, %v5150
    %v5152 = vpop.f32.mrb[0].mxu0
    %v5153 = vadd.f32 %v1081, %v5152
    %v5154 = vpop.f32.mrb[0].mxu0
    %v5155 = vadd.f32 %v1082, %v5154
    %5156 = vmatprep.mubr.bf16.mxu0 %v1577
    %5157 = vmatmul.mubr.bf16.gmra.mrb[0].mxu0 %v1576
    %v5158 = vpop.f32.mrb[0].mxu0
    %v5159 = vadd.f32 %v1084, %v5158
    %v5160 = vpop.f32.mrb[0].mxu0
    %v5161 = vadd.f32 %v1085, %v5160
    %v5162 = vpop.f32.mrb[0].mxu0
    %v5163 = vadd.f32 %v1087, %v5162
    %v5164 = vpop.f32.mrb[0].mxu0
    %v5165 = vadd.f32 %v1088, %v5164
    %5166 = vmatprep.mubr.bf16.mxu0 %v1593
    %5167 = vmatmul.mubr.bf16.gmra.mrb[0].mxu0 %v1592
    %v5168 = vpop.f32.mrb[0].mxu0
    %v5169 = vadd.f32 %v1090, %v5168
    %v5170 = vpop.f32.mrb[0].mxu0
    %v5171 = vadd.f32 %v1091, %v5170
    %v5172 = vpop.f32.mrb[0].mxu0
    %v5173 = vadd.f32 %v1093, %v5172
    %v5174 = vpop.f32.mrb[0].mxu0
    %v5175 = vadd.f32 %v1094, %v5174
    %5176 = vdwg.mxu0
    %5177 = vmatprep.subr.bf16.mxu0 %v3865
    %5178 = vmatpush1.bf16.msra.mxu0 %v3864
    %5179 = vmatprep.subr.bf16.mxu0 %v3870
    %5180 = vmatpush1.bf16.msra.mxu0 %v3869
    %5181 = vmatprep.subr.bf16.mxu0 %v3875
    %5182 = vmatpush1.bf16.msra.mxu0 %v3874
    %5183 = vmatprep.subr.bf16.mxu0 %v3880
    %5184 = vmatpush1.bf16.msra.mxu0 %v3879
    %5185 = vmatprep.subr.bf16.mxu0 %v3885
    %5186 = vmatpush1.bf16.msra.mxu0 %v3884
    %5187 = vmatprep.subr.bf16.mxu0 %v3890
    %5188 = vmatpush1.bf16.msra.mxu0 %v3889
    %5189 = vmatprep.subr.bf16.mxu0 %v3895
    %5190 = vmatpush1.bf16.msra.mxu0 %v3894
    %5191 = vmatprep.subr.bf16.mxu0 %v3900
    %5192 = vmatpush1.bf16.msra.mxu0 %v3899
    %5193 = vmatprep.subr.bf16.mxu0 %v3905
    %5194 = vmatpush1.bf16.msra.mxu0 %v3904
    %5195 = vmatprep.subr.bf16.mxu0 %v3910
    %5196 = vmatpush1.bf16.msra.mxu0 %v3909
    %5197 = vmatprep.subr.bf16.mxu0 %v3915
    %5198 = vmatpush1.bf16.msra.mxu0 %v3914
    %5199 = vmatprep.subr.bf16.mxu0 %v3920
    %5200 = vmatpush1.bf16.msra.mxu0 %v3919
    %5201 = vmatprep.subr.bf16.mxu0 %v3925
    %5202 = vmatpush1.bf16.msra.mxu0 %v3924
    %5203 = vmatprep.subr.bf16.mxu0 %v3930
    %5204 = vmatpush1.bf16.msra.mxu0 %v3929
    %5205 = vmatprep.subr.bf16.mxu0 %v3935
    %5206 = vmatpush1.bf16.msra.mxu0 %v3934
    %5207 = vmatprep.subr.bf16.mxu0 %v3940
    %5208 = vmatpush1.bf16.msra.mxu0 %v3939
    %5209 = vmatprep.mubr.bf16.mxu0 %v1483
    %5210 = vmatmul.mubr.bf16.gmra.mrb[0].mxu0 %v1482
    %v5211 = vpop.f32.mrb[0].mxu0
    %v5212 = vadd.f32 %v5099, %v5211
    %v5213 = vpop.f32.mrb[0].mxu0
    %v5214 = vadd.f32 %v5101, %v5213
    %v5215 = vpop.f32.mrb[0].mxu0
    %v5216 = vadd.f32 %v5103, %v5215
    %v5217 = vpop.f32.mrb[0].mxu0
    %v5218 = vadd.f32 %v5105, %v5217
    %5219 = vmatprep.mubr.bf16.mxu0 %v1499
    %5220 = vmatmul.mubr.bf16.gmra.mrb[0].mxu0 %v1498
    %v5221 = vpop.f32.mrb[0].mxu0
    %v5222 = vadd.f32 %v5109, %v5221
    %v5223 = vpop.f32.mrb[0].mxu0
    %v5224 = vadd.f32 %v5111, %v5223
    %v5225 = vpop.f32.mrb[0].mxu0
    %v5226 = vadd.f32 %v5113, %v5225
    %v5227 = vpop.f32.mrb[0].mxu0
    %v5228 = vadd.f32 %v5115, %v5227
    %5229 = vmatprep.mubr.bf16.mxu0 %v1515
    %5230 = vmatmul.mubr.bf16.gmra.mrb[0].mxu0 %v1514
    %v5231 = vpop.f32.mrb[0].mxu0
    %v5232 = vadd.f32 %v5119, %v5231
    %v5233 = vpop.f32.mrb[0].mxu0
    %v5234 = vadd.f32 %v5121, %v5233
    %v5235 = vpop.f32.mrb[0].mxu0
    %v5236 = vadd.f32 %v5123, %v5235
    %v5237 = vpop.f32.mrb[0].mxu0
    %v5238 = vadd.f32 %v5125, %v5237
    %5239 = vmatprep.mubr.bf16.mxu0 %v1531
    %5240 = vmatmul.mubr.bf16.gmra.mrb[0].mxu0 %v1530
    %v5241 = vpop.f32.mrb[0].mxu0
    %v5242 = vadd.f32 %v5129, %v5241
    %v5243 = vpop.f32.mrb[0].mxu0
    %v5244 = vadd.f32 %v5131, %v5243
    %v5245 = vpop.f32.mrb[0].mxu0
    %v5246 = vadd.f32 %v5133, %v5245
    %v5247 = vpop.f32.mrb[0].mxu0
    %v5248 = vadd.f32 %v5135, %v5247
    %5249 = vmatprep.mubr.bf16.mxu0 %v1547
    %5250 = vmatmul.mubr.bf16.gmra.mrb[0].mxu0 %v1546
    %v5251 = vpop.f32.mrb[0].mxu0
    %v5252 = vadd.f32 %v5139, %v5251
    %v5253 = vpop.f32.mrb[0].mxu0
    %v5254 = vadd.f32 %v5141, %v5253
    %v5255 = vpop.f32.mrb[0].mxu0
    %v5256 = vadd.f32 %v5143, %v5255
    %v5257 = vpop.f32.mrb[0].mxu0
    %v5258 = vadd.f32 %v5145, %v5257
    %5259 = vmatprep.mubr.bf16.mxu0 %v1563
    %5260 = vmatmul.mubr.bf16.gmra.mrb[0].mxu0 %v1562
    %v5261 = vpop.f32.mrb[0].mxu0
    %v5262 = vadd.f32 %v5149, %v5261
    %v5263 = vpop.f32.mrb[0].mxu0
    %v5264 = vadd.f32 %v5151, %v5263
    %v5265 = vpop.f32.mrb[0].mxu0
    %v5266 = vadd.f32 %v5153, %v5265
    %v5267 = vpop.f32.mrb[0].mxu0
    %v5268 = vadd.f32 %v5155, %v5267
    %5269 = vmatprep.mubr.bf16.mxu0 %v1579
    %5270 = vmatmul.mubr.bf16.gmra.mrb[0].mxu0 %v1578
    %v5271 = vpop.f32.mrb[0].mxu0
    %v5272 = vadd.f32 %v5159, %v5271
    %v5273 = vpop.f32.mrb[0].mxu0
    %v5274 = vadd.f32 %v5161, %v5273
    %v5275 = vpop.f32.mrb[0].mxu0
    %v5276 = vadd.f32 %v5163, %v5275
    %v5277 = vpop.f32.mrb[0].mxu0
    %v5278 = vadd.f32 %v5165, %v5277
    %5279 = vmatprep.mubr.bf16.mxu0 %v1595
    %5280 = vmatmul.mubr.bf16.gmra.mrb[0].mxu0 %v1594
    %v5281 = vpop.f32.mrb[0].mxu0
    %v5282 = vadd.f32 %v5169, %v5281
    %v5283 = vpop.f32.mrb[0].mxu0
    %v5284 = vadd.f32 %v5171, %v5283
    %v5285 = vpop.f32.mrb[0].mxu0
    %v5286 = vadd.f32 %v5173, %v5285
    %v5287 = vpop.f32.mrb[0].mxu0
    %v5288 = vadd.f32 %v5175, %v5287
    %5289 = vdwg.mxu0
    %5290 = vmatprep.subr.bf16.mxu0 %v3945
    %5291 = vmatpush1.bf16.msra.mxu0 %v3944
    %5292 = vmatprep.subr.bf16.mxu0 %v3950
    %5293 = vmatpush1.bf16.msra.mxu0 %v3949
    %5294 = vmatprep.subr.bf16.mxu0 %v3955
    %5295 = vmatpush1.bf16.msra.mxu0 %v3954
    %5296 = vmatprep.subr.bf16.mxu0 %v3960
    %5297 = vmatpush1.bf16.msra.mxu0 %v3959
    %5298 = vmatprep.subr.bf16.mxu0 %v3965
    %5299 = vmatpush1.bf16.msra.mxu0 %v3964
    %5300 = vmatprep.subr.bf16.mxu0 %v3970
    %5301 = vmatpush1.bf16.msra.mxu0 %v3969
    %5302 = vmatprep.subr.bf16.mxu0 %v3975
    %5303 = vmatpush1.bf16.msra.mxu0 %v3974
    %5304 = vmatprep.subr.bf16.mxu0 %v3980
    %5305 = vmatpush1.bf16.msra.mxu0 %v3979
    %5306 = vmatprep.subr.bf16.mxu0 %v3985
    %5307 = vmatpush1.bf16.msra.mxu0 %v3984
    %5308 = vmatprep.subr.bf16.mxu0 %v3990
    %5309 = vmatpush1.bf16.msra.mxu0 %v3989
    %5310 = vmatprep.subr.bf16.mxu0 %v3995
    %5311 = vmatpush1.bf16.msra.mxu0 %v3994
    %5312 = vmatprep.subr.bf16.mxu0 %v4000
    %5313 = vmatpush1.bf16.msra.mxu0 %v3999
    %5314 = vmatprep.subr.bf16.mxu0 %v4005
    %5315 = vmatpush1.bf16.msra.mxu0 %v4004
    %5316 = vmatprep.subr.bf16.mxu0 %v4010
    %5317 = vmatpush1.bf16.msra.mxu0 %v4009
    %5318 = vmatprep.subr.bf16.mxu0 %v4015
    %5319 = vmatpush1.bf16.msra.mxu0 %v4014
    %5320 = vmatprep.subr.bf16.mxu0 %v4020
    %5321 = vmatpush1.bf16.msra.mxu0 %v4019
    %5322 = vmatprep.mubr.bf16.mxu0 %v1485
    %5323 = vmatmul.mubr.bf16.gmra.mrb[0].mxu0 %v1484
    %v5324 = vpop.f32.mrb[0].mxu0
    %v5325 = vadd.f32 %v5212, %v5324
    %v5326 = vpop.f32.mrb[0].mxu0
    %v5327 = vadd.f32 %v5214, %v5326
    %v5328 = vpop.f32.mrb[0].mxu0
    %v5329 = vadd.f32 %v5216, %v5328
    %v5330 = vpop.f32.mrb[0].mxu0
    %v5331 = vadd.f32 %v5218, %v5330
    %5332 = vmatprep.mubr.bf16.mxu0 %v1501
    %5333 = vmatmul.mubr.bf16.gmra.mrb[0].mxu0 %v1500
    %v5334 = vpop.f32.mrb[0].mxu0
    %v5335 = vadd.f32 %v5222, %v5334
    %v5336 = vpop.f32.mrb[0].mxu0
    %v5337 = vadd.f32 %v5224, %v5336
    %v5338 = vpop.f32.mrb[0].mxu0
    %v5339 = vadd.f32 %v5226, %v5338
    %v5340 = vpop.f32.mrb[0].mxu0
    %v5341 = vadd.f32 %v5228, %v5340
    %5342 = vmatprep.mubr.bf16.mxu0 %v1517
    %5343 = vmatmul.mubr.bf16.gmra.mrb[0].mxu0 %v1516
    %v5344 = vpop.f32.mrb[0].mxu0
    %v5345 = vadd.f32 %v5232, %v5344
    %v5346 = vpop.f32.mrb[0].mxu0
    %v5347 = vadd.f32 %v5234, %v5346
    %v5348 = vpop.f32.mrb[0].mxu0
    %v5349 = vadd.f32 %v5236, %v5348
    %v5350 = vpop.f32.mrb[0].mxu0
    %v5351 = vadd.f32 %v5238, %v5350
    %5352 = vmatprep.mubr.bf16.mxu0 %v1533
    %5353 = vmatmul.mubr.bf16.gmra.mrb[0].mxu0 %v1532
    %v5354 = vpop.f32.mrb[0].mxu0
    %v5355 = vadd.f32 %v5242, %v5354
    %v5356 = vpop.f32.mrb[0].mxu0
    %v5357 = vadd.f32 %v5244, %v5356
    %v5358 = vpop.f32.mrb[0].mxu0
    %v5359 = vadd.f32 %v5246, %v5358
    %v5360 = vpop.f32.mrb[0].mxu0
    %v5361 = vadd.f32 %v5248, %v5360
    %5362 = vmatprep.mubr.bf16.mxu0 %v1549
    %5363 = vmatmul.mubr.bf16.gmra.mrb[0].mxu0 %v1548
    %v5364 = vpop.f32.mrb[0].mxu0
    %v5365 = vadd.f32 %v5252, %v5364
    %v5366 = vpop.f32.mrb[0].mxu0
    %v5367 = vadd.f32 %v5254, %v5366
    %v5368 = vpop.f32.mrb[0].mxu0
    %v5369 = vadd.f32 %v5256, %v5368
    %v5370 = vpop.f32.mrb[0].mxu0
    %v5371 = vadd.f32 %v5258, %v5370
    %5372 = vmatprep.mubr.bf16.mxu0 %v1565
    %5373 = vmatmul.mubr.bf16.gmra.mrb[0].mxu0 %v1564
    %v5374 = vpop.f32.mrb[0].mxu0
    %v5375 = vadd.f32 %v5262, %v5374
    %v5376 = vpop.f32.mrb[0].mxu0
    %v5377 = vadd.f32 %v5264, %v5376
    %v5378 = vpop.f32.mrb[0].mxu0
    %v5379 = vadd.f32 %v5266, %v5378
    %v5380 = vpop.f32.mrb[0].mxu0
    %v5381 = vadd.f32 %v5268, %v5380
    %5382 = vmatprep.mubr.bf16.mxu0 %v1581
    %5383 = vmatmul.mubr.bf16.gmra.mrb[0].mxu0 %v1580
    %v5384 = vpop.f32.mrb[0].mxu0
    %v5385 = vadd.f32 %v5272, %v5384
    %v5386 = vpop.f32.mrb[0].mxu0
    %v5387 = vadd.f32 %v5274, %v5386
    %v5388 = vpop.f32.mrb[0].mxu0
    %v5389 = vadd.f32 %v5276, %v5388
    %v5390 = vpop.f32.mrb[0].mxu0
    %v5391 = vadd.f32 %v5278, %v5390
    %5392 = vmatprep.mubr.bf16.mxu0 %v1597
    %5393 = vmatmul.mubr.bf16.gmra.mrb[0].mxu0 %v1596
    %v5394 = vpop.f32.mrb[0].mxu0
    %v5395 = vadd.f32 %v5282, %v5394
    %v5396 = vpop.f32.mrb[0].mxu0
    %v5397 = vadd.f32 %v5284, %v5396
    %v5398 = vpop.f32.mrb[0].mxu0
    %v5399 = vadd.f32 %v5286, %v5398
    %v5400 = vpop.f32.mrb[0].mxu0
    %v5401 = vadd.f32 %v5288, %v5400
    %5402 = vdwg.mxu0
    %5403 = vmatprep.subr.bf16.mxu0 %v4025
    %5404 = vmatpush1.bf16.msra.mxu0 %v4024
    %5405 = vmatprep.subr.bf16.mxu0 %v4030
    %5406 = vmatpush1.bf16.msra.mxu0 %v4029
    %5407 = vmatprep.subr.bf16.mxu0 %v4035
    %5408 = vmatpush1.bf16.msra.mxu0 %v4034
    %5409 = vmatprep.subr.bf16.mxu0 %v4040
    %5410 = vmatpush1.bf16.msra.mxu0 %v4039
    %5411 = vmatprep.subr.bf16.mxu0 %v4045
    %5412 = vmatpush1.bf16.msra.mxu0 %v4044
    %5413 = vmatprep.subr.bf16.mxu0 %v4050
    %5414 = vmatpush1.bf16.msra.mxu0 %v4049
    %5415 = vmatprep.subr.bf16.mxu0 %v4055
    %5416 = vmatpush1.bf16.msra.mxu0 %v4054
    %5417 = vmatprep.subr.bf16.mxu0 %v4060
    %5418 = vmatpush1.bf16.msra.mxu0 %v4059
    %5419 = vmatprep.subr.bf16.mxu0 %v4065
    %5420 = vmatpush1.bf16.msra.mxu0 %v4064
    %5421 = vmatprep.subr.bf16.mxu0 %v4070
    %5422 = vmatpush1.bf16.msra.mxu0 %v4069
    %5423 = vmatprep.subr.bf16.mxu0 %v4075
    %5424 = vmatpush1.bf16.msra.mxu0 %v4074
    %5425 = vmatprep.subr.bf16.mxu0 %v4080
    %5426 = vmatpush1.bf16.msra.mxu0 %v4079
    %5427 = vmatprep.subr.bf16.mxu0 %v4085
    %5428 = vmatpush1.bf16.msra.mxu0 %v4084
    %5429 = vmatprep.subr.bf16.mxu0 %v4090
    %5430 = vmatpush1.bf16.msra.mxu0 %v4089
    %5431 = vmatprep.subr.bf16.mxu0 %v4095
    %5432 = vmatpush1.bf16.msra.mxu0 %v4094
    %5433 = vmatprep.subr.bf16.mxu0 %v4100
    %5434 = vmatpush1.bf16.msra.mxu0 %v4099
    %5435 = vmatprep.mubr.bf16.mxu0 %v1487
    %5436 = vmatmul.mubr.bf16.gmra.mrb[0].mxu0 %v1486
    %v5437 = vpop.f32.mrb[0].mxu0
    %v5438 = vadd.f32 %v5325, %v5437
    %v5439 = vpop.f32.mrb[0].mxu0
    %v5440 = vadd.f32 %v5327, %v5439
    %v5441 = vpop.f32.mrb[0].mxu0
    %v5442 = vadd.f32 %v5329, %v5441
    %v5443 = vpop.f32.mrb[0].mxu0
    %v5444 = vadd.f32 %v5331, %v5443
    %5445 = vmatprep.mubr.bf16.mxu0 %v1503
    %5446 = vmatmul.mubr.bf16.gmra.mrb[0].mxu0 %v1502
    %v5447 = vpop.f32.mrb[0].mxu0
    %v5448 = vadd.f32 %v5335, %v5447
    %v5449 = vpop.f32.mrb[0].mxu0
    %v5450 = vadd.f32 %v5337, %v5449
    %v5451 = vpop.f32.mrb[0].mxu0
    %v5452 = vadd.f32 %v5339, %v5451
    %v5453 = vpop.f32.mrb[0].mxu0
    %v5454 = vadd.f32 %v5341, %v5453
    %5455 = vmatprep.mubr.bf16.mxu0 %v1519
    %5456 = vmatmul.mubr.bf16.gmra.mrb[0].mxu0 %v1518
    %v5457 = vpop.f32.mrb[0].mxu0
    %v5458 = vadd.f32 %v5345, %v5457
    %v5459 = vpop.f32.mrb[0].mxu0
    %v5460 = vadd.f32 %v5347, %v5459
    %v5461 = vpop.f32.mrb[0].mxu0
    %v5462 = vadd.f32 %v5349, %v5461
    %v5463 = vpop.f32.mrb[0].mxu0
    %v5464 = vadd.f32 %v5351, %v5463
    %5465 = vmatprep.mubr.bf16.mxu0 %v1535
    %5466 = vmatmul.mubr.bf16.gmra.mrb[0].mxu0 %v1534
    %v5467 = vpop.f32.mrb[0].mxu0
    %v5468 = vadd.f32 %v5355, %v5467
    %v5469 = vpop.f32.mrb[0].mxu0
    %v5470 = vadd.f32 %v5357, %v5469
    %v5471 = vpop.f32.mrb[0].mxu0
    %v5472 = vadd.f32 %v5359, %v5471
    %v5473 = vpop.f32.mrb[0].mxu0
    %v5474 = vadd.f32 %v5361, %v5473
    %5475 = vmatprep.mubr.bf16.mxu0 %v1551
    %5476 = vmatmul.mubr.bf16.gmra.mrb[0].mxu0 %v1550
    %v5477 = vpop.f32.mrb[0].mxu0
    %v5478 = vadd.f32 %v5365, %v5477
    %v5479 = vpop.f32.mrb[0].mxu0
    %v5480 = vadd.f32 %v5367, %v5479
    %v5481 = vpop.f32.mrb[0].mxu0
    %v5482 = vadd.f32 %v5369, %v5481
    %v5483 = vpop.f32.mrb[0].mxu0
    %v5484 = vadd.f32 %v5371, %v5483
    %5485 = vmatprep.mubr.bf16.mxu0 %v1567
    %5486 = vmatmul.mubr.bf16.gmra.mrb[0].mxu0 %v1566
    %v5487 = vpop.f32.mrb[0].mxu0
    %v5488 = vadd.f32 %v5375, %v5487
    %v5489 = vpop.f32.mrb[0].mxu0
    %v5490 = vadd.f32 %v5377, %v5489
    %v5491 = vpop.f32.mrb[0].mxu0
    %v5492 = vadd.f32 %v5379, %v5491
    %v5493 = vpop.f32.mrb[0].mxu0
    %v5494 = vadd.f32 %v5381, %v5493
    %5495 = vmatprep.mubr.bf16.mxu0 %v1583
    %5496 = vmatmul.mubr.bf16.gmra.mrb[0].mxu0 %v1582
    %v5497 = vpop.f32.mrb[0].mxu0
    %v5498 = vadd.f32 %v5385, %v5497
    %v5499 = vpop.f32.mrb[0].mxu0
    %v5500 = vadd.f32 %v5387, %v5499
    %v5501 = vpop.f32.mrb[0].mxu0
    %v5502 = vadd.f32 %v5389, %v5501
    %v5503 = vpop.f32.mrb[0].mxu0
    %v5504 = vadd.f32 %v5391, %v5503
    %5505 = vmatprep.mubr.bf16.mxu0 %v1599
    %5506 = vmatmul.mubr.bf16.gmra.mrb[0].mxu0 %v1598
    %v5507 = vpop.f32.mrb[0].mxu0
    %v5508 = vadd.f32 %v5395, %v5507
    %v5509 = vpop.f32.mrb[0].mxu0
    %v5510 = vadd.f32 %v5397, %v5509
    %v5511 = vpop.f32.mrb[0].mxu0
    %v5512 = vadd.f32 %v5399, %v5511
    %v5513 = vpop.f32.mrb[0].mxu0
    %v5514 = vadd.f32 %v5401, %v5513
    %5515 = vdwg.mxu0
    %5516 = vmatprep.subr.bf16.mxu0 %v4105
    %5517 = vmatpush1.bf16.msra.mxu0 %v4104
    %5518 = vmatprep.subr.bf16.mxu0 %v4110
    %5519 = vmatpush1.bf16.msra.mxu0 %v4109
    %5520 = vmatprep.subr.bf16.mxu0 %v4115
    %5521 = vmatpush1.bf16.msra.mxu0 %v4114
    %5522 = vmatprep.subr.bf16.mxu0 %v4120
    %5523 = vmatpush1.bf16.msra.mxu0 %v4119
    %5524 = vmatprep.subr.bf16.mxu0 %v4125
    %5525 = vmatpush1.bf16.msra.mxu0 %v4124
    %5526 = vmatprep.subr.bf16.mxu0 %v4130
    %5527 = vmatpush1.bf16.msra.mxu0 %v4129
    %5528 = vmatprep.subr.bf16.mxu0 %v4135
    %5529 = vmatpush1.bf16.msra.mxu0 %v4134
    %5530 = vmatprep.subr.bf16.mxu0 %v4140
    %5531 = vmatpush1.bf16.msra.mxu0 %v4139
    %5532 = vmatprep.subr.bf16.mxu0 %v4145
    %5533 = vmatpush1.bf16.msra.mxu0 %v4144
    %5534 = vmatprep.subr.bf16.mxu0 %v4150
    %5535 = vmatpush1.bf16.msra.mxu0 %v4149
    %5536 = vmatprep.subr.bf16.mxu0 %v4155
    %5537 = vmatpush1.bf16.msra.mxu0 %v4154
    %5538 = vmatprep.subr.bf16.mxu0 %v4160
    %5539 = vmatpush1.bf16.msra.mxu0 %v4159
    %5540 = vmatprep.subr.bf16.mxu0 %v4165
    %5541 = vmatpush1.bf16.msra.mxu0 %v4164
    %5542 = vmatprep.subr.bf16.mxu0 %v4170
    %5543 = vmatpush1.bf16.msra.mxu0 %v4169
    %5544 = vmatprep.subr.bf16.mxu0 %v4175
    %5545 = vmatpush1.bf16.msra.mxu0 %v4174
    %5546 = vmatprep.subr.bf16.mxu0 %v4180
    %5547 = vmatpush1.bf16.msra.mxu0 %v4179
    %5548 = vmatprep.mubr.bf16.mxu0 %v1489
    %5549 = vmatmul.mubr.bf16.gmra.mrb[0].mxu0 %v1488
    %v5550 = vpop.f32.mrb[0].mxu0
    %v5551 = vadd.f32 %v5438, %v5550
    %v5552 = vpop.f32.mrb[0].mxu0
    %v5553 = vadd.f32 %v5440, %v5552
    %v5554 = vpop.f32.mrb[0].mxu0
    %v5555 = vadd.f32 %v5442, %v5554
    %v5556 = vpop.f32.mrb[0].mxu0
    %v5557 = vadd.f32 %v5444, %v5556
    %5558 = vmatprep.mubr.bf16.mxu0 %v1505
    %5559 = vmatmul.mubr.bf16.gmra.mrb[0].mxu0 %v1504
    %v5560 = vpop.f32.mrb[0].mxu0
    %v5561 = vadd.f32 %v5448, %v5560
    %v5562 = vpop.f32.mrb[0].mxu0
    %v5563 = vadd.f32 %v5450, %v5562
    %v5564 = vpop.f32.mrb[0].mxu0
    %v5565 = vadd.f32 %v5452, %v5564
    %v5566 = vpop.f32.mrb[0].mxu0
    %v5567 = vadd.f32 %v5454, %v5566
    %5568 = vmatprep.mubr.bf16.mxu0 %v1521
    %5569 = vmatmul.mubr.bf16.gmra.mrb[0].mxu0 %v1520
    %v5570 = vpop.f32.mrb[0].mxu0
    %v5571 = vadd.f32 %v5458, %v5570
    %v5572 = vpop.f32.mrb[0].mxu0
    %v5573 = vadd.f32 %v5460, %v5572
    %v5574 = vpop.f32.mrb[0].mxu0
    %v5575 = vadd.f32 %v5462, %v5574
    %v5576 = vpop.f32.mrb[0].mxu0
    %v5577 = vadd.f32 %v5464, %v5576
    %5578 = vmatprep.mubr.bf16.mxu0 %v1537
    %5579 = vmatmul.mubr.bf16.gmra.mrb[0].mxu0 %v1536
    %v5580 = vpop.f32.mrb[0].mxu0
    %v5581 = vadd.f32 %v5468, %v5580
    %v5582 = vpop.f32.mrb[0].mxu0
    %v5583 = vadd.f32 %v5470, %v5582
    %v5584 = vpop.f32.mrb[0].mxu0
    %v5585 = vadd.f32 %v5472, %v5584
    %v5586 = vpop.f32.mrb[0].mxu0
    %v5587 = vadd.f32 %v5474, %v5586
    %5588 = vmatprep.mubr.bf16.mxu0 %v1553
    %5589 = vmatmul.mubr.bf16.gmra.mrb[0].mxu0 %v1552
    %v5590 = vpop.f32.mrb[0].mxu0
    %v5591 = vadd.f32 %v5478, %v5590
    %v5592 = vpop.f32.mrb[0].mxu0
    %v5593 = vadd.f32 %v5480, %v5592
    %v5594 = vpop.f32.mrb[0].mxu0
    %v5595 = vadd.f32 %v5482, %v5594
    %v5596 = vpop.f32.mrb[0].mxu0
    %v5597 = vadd.f32 %v5484, %v5596
    %5598 = vmatprep.mubr.bf16.mxu0 %v1569
    %5599 = vmatmul.mubr.bf16.gmra.mrb[0].mxu0 %v1568
    %v5600 = vpop.f32.mrb[0].mxu0
    %v5601 = vadd.f32 %v5488, %v5600
    %v5602 = vpop.f32.mrb[0].mxu0
    %v5603 = vadd.f32 %v5490, %v5602
    %v5604 = vpop.f32.mrb[0].mxu0
    %v5605 = vadd.f32 %v5492, %v5604
    %v5606 = vpop.f32.mrb[0].mxu0
    %v5607 = vadd.f32 %v5494, %v5606
    %5608 = vmatprep.mubr.bf16.mxu0 %v1585
    %5609 = vmatmul.mubr.bf16.gmra.mrb[0].mxu0 %v1584
    %v5610 = vpop.f32.mrb[0].mxu0
    %v5611 = vadd.f32 %v5498, %v5610
    %v5612 = vpop.f32.mrb[0].mxu0
    %v5613 = vadd.f32 %v5500, %v5612
    %v5614 = vpop.f32.mrb[0].mxu0
    %v5615 = vadd.f32 %v5502, %v5614
    %v5616 = vpop.f32.mrb[0].mxu0
    %v5617 = vadd.f32 %v5504, %v5616
    %5618 = vmatprep.mubr.bf16.mxu0 %v1601
    %5619 = vmatmul.mubr.bf16.gmra.mrb[0].mxu0 %v1600
    %v5620 = vpop.f32.mrb[0].mxu0
    %v5621 = vadd.f32 %v5508, %v5620
    %v5622 = vpop.f32.mrb[0].mxu0
    %v5623 = vadd.f32 %v5510, %v5622
    %v5624 = vpop.f32.mrb[0].mxu0
    %v5625 = vadd.f32 %v5512, %v5624
    %v5626 = vpop.f32.mrb[0].mxu0
    %v5627 = vadd.f32 %v5514, %v5626
    %5628 = vdwg.mxu0
    %5629 = vmatprep.subr.bf16.mxu0 %v4185
    %5630 = vmatpush1.bf16.msra.mxu0 %v4184
    %5631 = vmatprep.subr.bf16.mxu0 %v4190
    %5632 = vmatpush1.bf16.msra.mxu0 %v4189
    %5633 = vmatprep.subr.bf16.mxu0 %v4195
    %5634 = vmatpush1.bf16.msra.mxu0 %v4194
    %5635 = vmatprep.subr.bf16.mxu0 %v4200
    %5636 = vmatpush1.bf16.msra.mxu0 %v4199
    %5637 = vmatprep.subr.bf16.mxu0 %v4205
    %5638 = vmatpush1.bf16.msra.mxu0 %v4204
    %5639 = vmatprep.subr.bf16.mxu0 %v4210
    %5640 = vmatpush1.bf16.msra.mxu0 %v4209
    %5641 = vmatprep.subr.bf16.mxu0 %v4215
    %5642 = vmatpush1.bf16.msra.mxu0 %v4214
    %5643 = vmatprep.subr.bf16.mxu0 %v4220
    %5644 = vmatpush1.bf16.msra.mxu0 %v4219
    %5645 = vmatprep.subr.bf16.mxu0 %v4225
    %5646 = vmatpush1.bf16.msra.mxu0 %v4224
    %5647 = vmatprep.subr.bf16.mxu0 %v4230
    %5648 = vmatpush1.bf16.msra.mxu0 %v4229
    %5649 = vmatprep.subr.bf16.mxu0 %v4235
    %5650 = vmatpush1.bf16.msra.mxu0 %v4234
    %5651 = vmatprep.subr.bf16.mxu0 %v4240
    %5652 = vmatpush1.bf16.msra.mxu0 %v4239
    %5653 = vmatprep.subr.bf16.mxu0 %v4245
    %5654 = vmatpush1.bf16.msra.mxu0 %v4244
    %5655 = vmatprep.subr.bf16.mxu0 %v4250
    %5656 = vmatpush1.bf16.msra.mxu0 %v4249
    %5657 = vmatprep.subr.bf16.mxu0 %v4255
    %5658 = vmatpush1.bf16.msra.mxu0 %v4254
    %5659 = vmatprep.subr.bf16.mxu0 %v4260
    %5660 = vmatpush1.bf16.msra.mxu0 %v4259
    %5661 = vmatprep.mubr.bf16.mxu0 %v1491
    %5662 = vmatmul.mubr.bf16.gmra.mrb[0].mxu0 %v1490
    %v5663 = vpop.f32.mrb[0].mxu0
    %v5664 = vadd.f32 %v5551, %v5663
    %v5665 = vpop.f32.mrb[0].mxu0
    %v5666 = vadd.f32 %v5553, %v5665
    %v5667 = vpop.f32.mrb[0].mxu0
    %v5668 = vadd.f32 %v5555, %v5667
    %v5669 = vpop.f32.mrb[0].mxu0
    %v5670 = vadd.f32 %v5557, %v5669
    %5671 = vmatprep.mubr.bf16.mxu0 %v1507
    %5672 = vmatmul.mubr.bf16.gmra.mrb[0].mxu0 %v1506
    %v5673 = vpop.f32.mrb[0].mxu0
    %v5674 = vadd.f32 %v5561, %v5673
    %v5675 = vpop.f32.mrb[0].mxu0
    %v5676 = vadd.f32 %v5563, %v5675
    %v5677 = vpop.f32.mrb[0].mxu0
    %v5678 = vadd.f32 %v5565, %v5677
    %v5679 = vpop.f32.mrb[0].mxu0
    %v5680 = vadd.f32 %v5567, %v5679
    %5681 = vmatprep.mubr.bf16.mxu0 %v1523
    %5682 = vmatmul.mubr.bf16.gmra.mrb[0].mxu0 %v1522
    %v5683 = vpop.f32.mrb[0].mxu0
    %v5684 = vadd.f32 %v5571, %v5683
    %v5685 = vpop.f32.mrb[0].mxu0
    %v5686 = vadd.f32 %v5573, %v5685
    %v5687 = vpop.f32.mrb[0].mxu0
    %v5688 = vadd.f32 %v5575, %v5687
    %v5689 = vpop.f32.mrb[0].mxu0
    %v5690 = vadd.f32 %v5577, %v5689
    %5691 = vmatprep.mubr.bf16.mxu0 %v1539
    %5692 = vmatmul.mubr.bf16.gmra.mrb[0].mxu0 %v1538
    %v5693 = vpop.f32.mrb[0].mxu0
    %v5694 = vadd.f32 %v5581, %v5693
    %v5695 = vpop.f32.mrb[0].mxu0
    %v5696 = vadd.f32 %v5583, %v5695
    %v5697 = vpop.f32.mrb[0].mxu0
    %v5698 = vadd.f32 %v5585, %v5697
    %v5699 = vpop.f32.mrb[0].mxu0
    %v5700 = vadd.f32 %v5587, %v5699
    %5701 = vmatprep.mubr.bf16.mxu0 %v1555
    %5702 = vmatmul.mubr.bf16.gmra.mrb[0].mxu0 %v1554
    %v5703 = vpop.f32.mrb[0].mxu0
    %v5704 = vadd.f32 %v5591, %v5703
    %v5705 = vpop.f32.mrb[0].mxu0
    %v5706 = vadd.f32 %v5593, %v5705
    %v5707 = vpop.f32.mrb[0].mxu0
    %v5708 = vadd.f32 %v5595, %v5707
    %v5709 = vpop.f32.mrb[0].mxu0
    %v5710 = vadd.f32 %v5597, %v5709
    %5711 = vmatprep.mubr.bf16.mxu0 %v1571
    %5712 = vmatmul.mubr.bf16.gmra.mrb[0].mxu0 %v1570
    %v5713 = vpop.f32.mrb[0].mxu0
    %v5714 = vadd.f32 %v5601, %v5713
    %v5715 = vpop.f32.mrb[0].mxu0
    %v5716 = vadd.f32 %v5603, %v5715
    %v5717 = vpop.f32.mrb[0].mxu0
    %v5718 = vadd.f32 %v5605, %v5717
    %v5719 = vpop.f32.mrb[0].mxu0
    %v5720 = vadd.f32 %v5607, %v5719
    %5721 = vmatprep.mubr.bf16.mxu0 %v1587
    %5722 = vmatmul.mubr.bf16.gmra.mrb[0].mxu0 %v1586
    %v5723 = vpop.f32.mrb[0].mxu0
    %v5724 = vadd.f32 %v5611, %v5723
    %v5725 = vpop.f32.mrb[0].mxu0
    %v5726 = vadd.f32 %v5613, %v5725
    %v5727 = vpop.f32.mrb[0].mxu0
    %v5728 = vadd.f32 %v5615, %v5727
    %v5729 = vpop.f32.mrb[0].mxu0
    %v5730 = vadd.f32 %v5617, %v5729
    %5731 = vmatprep.mubr.bf16.mxu0 %v1603
    %5732 = vmatmul.mubr.bf16.gmra.mrb[0].mxu0 %v1602
    %v5733 = vpop.f32.mrb[0].mxu0
    %v5734 = vadd.f32 %v5621, %v5733
    %v5735 = vpop.f32.mrb[0].mxu0
    %v5736 = vadd.f32 %v5623, %v5735
    %v5737 = vpop.f32.mrb[0].mxu0
    %v5738 = vadd.f32 %v5625, %v5737
    %v5739 = vpop.f32.mrb[0].mxu0
    %v5740 = vadd.f32 %v5627, %v5739
    %5741 = vdwg.mxu0
    %5742 = vmatprep.subr.bf16.mxu0 %v4265
    %5743 = vmatpush1.bf16.msra.mxu0 %v4264
    %5744 = vmatprep.subr.bf16.mxu0 %v4270
    %5745 = vmatpush1.bf16.msra.mxu0 %v4269
    %5746 = vmatprep.subr.bf16.mxu0 %v4275
    %5747 = vmatpush1.bf16.msra.mxu0 %v4274
    %5748 = vmatprep.subr.bf16.mxu0 %v4280
    %5749 = vmatpush1.bf16.msra.mxu0 %v4279
    %5750 = vmatprep.subr.bf16.mxu0 %v4285
    %5751 = vmatpush1.bf16.msra.mxu0 %v4284
    %5752 = vmatprep.subr.bf16.mxu0 %v4290
    %5753 = vmatpush1.bf16.msra.mxu0 %v4289
    %5754 = vmatprep.subr.bf16.mxu0 %v4295
    %5755 = vmatpush1.bf16.msra.mxu0 %v4294
    %5756 = vmatprep.subr.bf16.mxu0 %v4300
    %5757 = vmatpush1.bf16.msra.mxu0 %v4299
    %5758 = vmatprep.subr.bf16.mxu0 %v4305
    %5759 = vmatpush1.bf16.msra.mxu0 %v4304
    %5760 = vmatprep.subr.bf16.mxu0 %v4310
    %5761 = vmatpush1.bf16.msra.mxu0 %v4309
    %5762 = vmatprep.subr.bf16.mxu0 %v4315
    %5763 = vmatpush1.bf16.msra.mxu0 %v4314
    %5764 = vmatprep.subr.bf16.mxu0 %v4320
    %5765 = vmatpush1.bf16.msra.mxu0 %v4319
    %5766 = vmatprep.subr.bf16.mxu0 %v4325
    %5767 = vmatpush1.bf16.msra.mxu0 %v4324
    %5768 = vmatprep.subr.bf16.mxu0 %v4330
    %5769 = vmatpush1.bf16.msra.mxu0 %v4329
    %5770 = vmatprep.subr.bf16.mxu0 %v4335
    %5771 = vmatpush1.bf16.msra.mxu0 %v4334
    %5772 = vmatprep.subr.bf16.mxu0 %v4340
    %5773 = vmatpush1.bf16.msra.mxu0 %v4339
    %5774 = vmatprep.mubr.bf16.mxu0 %v1493
    %5775 = vmatmul.mubr.bf16.gmra.mrb[0].mxu0 %v1492
    %v5776 = vpop.f32.mrb[0].mxu0
    %v5777 = vadd.f32 %v5664, %v5776
    %v5778 = vpop.f32.mrb[0].mxu0
    %v5779 = vadd.f32 %v5666, %v5778
    %v5780 = vpop.f32.mrb[0].mxu0
    %v5781 = vadd.f32 %v5668, %v5780
    %v5782 = vpop.f32.mrb[0].mxu0
    %v5783 = vadd.f32 %v5670, %v5782
    %5784 = vmatprep.mubr.bf16.mxu0 %v1509
    %5785 = vmatmul.mubr.bf16.gmra.mrb[0].mxu0 %v1508
    %v5786 = vpop.f32.mrb[0].mxu0
    %v5787 = vadd.f32 %v5674, %v5786
    %v5788 = vpop.f32.mrb[0].mxu0
    %v5789 = vadd.f32 %v5676, %v5788
    %v5790 = vpop.f32.mrb[0].mxu0
    %v5791 = vadd.f32 %v5678, %v5790
    %v5792 = vpop.f32.mrb[0].mxu0
    %v5793 = vadd.f32 %v5680, %v5792
    %5794 = vmatprep.mubr.bf16.mxu0 %v1525
    %5795 = vmatmul.mubr.bf16.gmra.mrb[0].mxu0 %v1524
    %v5796 = vpop.f32.mrb[0].mxu0
    %v5797 = vadd.f32 %v5684, %v5796
    %v5798 = vpop.f32.mrb[0].mxu0
    %v5799 = vadd.f32 %v5686, %v5798
    %v5800 = vpop.f32.mrb[0].mxu0
    %v5801 = vadd.f32 %v5688, %v5800
    %v5802 = vpop.f32.mrb[0].mxu0
    %v5803 = vadd.f32 %v5690, %v5802
    %5804 = vmatprep.mubr.bf16.mxu0 %v1541
    %5805 = vmatmul.mubr.bf16.gmra.mrb[0].mxu0 %v1540
    %v5806 = vpop.f32.mrb[0].mxu0
    %v5807 = vadd.f32 %v5694, %v5806
    %v5808 = vpop.f32.mrb[0].mxu0
    %v5809 = vadd.f32 %v5696, %v5808
    %v5810 = vpop.f32.mrb[0].mxu0
    %v5811 = vadd.f32 %v5698, %v5810
    %v5812 = vpop.f32.mrb[0].mxu0
    %v5813 = vadd.f32 %v5700, %v5812
    %5814 = vmatprep.mubr.bf16.mxu0 %v1557
    %5815 = vmatmul.mubr.bf16.gmra.mrb[0].mxu0 %v1556
    %v5816 = vpop.f32.mrb[0].mxu0
    %v5817 = vadd.f32 %v5704, %v5816
    %v5818 = vpop.f32.mrb[0].mxu0
    %v5819 = vadd.f32 %v5706, %v5818
    %v5820 = vpop.f32.mrb[0].mxu0
    %v5821 = vadd.f32 %v5708, %v5820
    %v5822 = vpop.f32.mrb[0].mxu0
    %v5823 = vadd.f32 %v5710, %v5822
    %5824 = vmatprep.mubr.bf16.mxu0 %v1573
    %5825 = vmatmul.mubr.bf16.gmra.mrb[0].mxu0 %v1572
    %v5826 = vpop.f32.mrb[0].mxu0
    %v5827 = vadd.f32 %v5714, %v5826
    %v5828 = vpop.f32.mrb[0].mxu0
    %v5829 = vadd.f32 %v5716, %v5828
    %v5830 = vpop.f32.mrb[0].mxu0
    %v5831 = vadd.f32 %v5718, %v5830
    %v5832 = vpop.f32.mrb[0].mxu0
    %v5833 = vadd.f32 %v5720, %v5832
    %5834 = vmatprep.mubr.bf16.mxu0 %v1589
    %5835 = vmatmul.mubr.bf16.gmra.mrb[0].mxu0 %v1588
    %v5836 = vpop.f32.mrb[0].mxu0
    %v5837 = vadd.f32 %v5724, %v5836
    %v5838 = vpop.f32.mrb[0].mxu0
    %v5839 = vadd.f32 %v5726, %v5838
    %v5840 = vpop.f32.mrb[0].mxu0
    %v5841 = vadd.f32 %v5728, %v5840
    %v5842 = vpop.f32.mrb[0].mxu0
    %v5843 = vadd.f32 %v5730, %v5842
    %5844 = vmatprep.mubr.bf16.mxu0 %v1605
    %5845 = vmatmul.mubr.bf16.gmra.mrb[0].mxu0 %v1604
    %v5846 = vpop.f32.mrb[0].mxu0
    %v5847 = vadd.f32 %v5734, %v5846
    %v5848 = vpop.f32.mrb[0].mxu0
    %v5849 = vadd.f32 %v5736, %v5848
    %v5850 = vpop.f32.mrb[0].mxu0
    %v5851 = vadd.f32 %v5738, %v5850
    %v5852 = vpop.f32.mrb[0].mxu0
    %v5853 = vadd.f32 %v5740, %v5852
    %5854 = vdwg.mxu0
    %5855 = vmatprep.subr.bf16.mxu0 %v4345
    %5856 = vmatpush1.bf16.msra.mxu0 %v4344
    %5857 = vmatprep.subr.bf16.mxu0 %v4350
    %5858 = vmatpush1.bf16.msra.mxu0 %v4349
    %5859 = vmatprep.subr.bf16.mxu0 %v4355
    %5860 = vmatpush1.bf16.msra.mxu0 %v4354
    %5861 = vmatprep.subr.bf16.mxu0 %v4360
    %5862 = vmatpush1.bf16.msra.mxu0 %v4359
    %5863 = vmatprep.subr.bf16.mxu0 %v4365
    %5864 = vmatpush1.bf16.msra.mxu0 %v4364
    %5865 = vmatprep.subr.bf16.mxu0 %v4370
    %5866 = vmatpush1.bf16.msra.mxu0 %v4369
    %5867 = vmatprep.subr.bf16.mxu0 %v4375
    %5868 = vmatpush1.bf16.msra.mxu0 %v4374
    %5869 = vmatprep.subr.bf16.mxu0 %v4380
    %5870 = vmatpush1.bf16.msra.mxu0 %v4379
    %5871 = vmatprep.subr.bf16.mxu0 %v4385
    %5872 = vmatpush1.bf16.msra.mxu0 %v4384
    %5873 = vmatprep.subr.bf16.mxu0 %v4390
    %5874 = vmatpush1.bf16.msra.mxu0 %v4389
    %5875 = vmatprep.subr.bf16.mxu0 %v4395
    %5876 = vmatpush1.bf16.msra.mxu0 %v4394
    %5877 = vmatprep.subr.bf16.mxu0 %v4400
    %5878 = vmatpush1.bf16.msra.mxu0 %v4399
    %5879 = vmatprep.subr.bf16.mxu0 %v4405
    %5880 = vmatpush1.bf16.msra.mxu0 %v4404
    %5881 = vmatprep.subr.bf16.mxu0 %v4410
    %5882 = vmatpush1.bf16.msra.mxu0 %v4409
    %5883 = vmatprep.subr.bf16.mxu0 %v4415
    %5884 = vmatpush1.bf16.msra.mxu0 %v4414
    %5885 = vmatprep.subr.bf16.mxu0 %v4420
    %5886 = vmatpush1.bf16.msra.mxu0 %v4419
    %5887 = vmatprep.mubr.bf16.mxu0 %v1495
    %5888 = vmatmul.mubr.bf16.gmra.mrb[0].mxu0 %v1494
    %v5889 = vpop.f32.mrb[0].mxu0
    %v5890 = vadd.f32 %v5777, %v5889
    %v5891 = vpop.f32.mrb[0].mxu0
    %v5892 = vadd.f32 %v5779, %v5891
    %v5893 = vpop.f32.mrb[0].mxu0
    %v5894 = vadd.f32 %v5781, %v5893
    %v5895 = vpop.f32.mrb[0].mxu0
    %v5896 = vadd.f32 %v5783, %v5895
    %5897 = vmatprep.mubr.bf16.mxu0 %v1511
    %5898 = vmatmul.mubr.bf16.gmra.mrb[0].mxu0 %v1510
    %v5899 = vpop.f32.mrb[0].mxu0
    %v5900 = vadd.f32 %v5787, %v5899
    %v5901 = vpop.f32.mrb[0].mxu0
    %v5902 = vadd.f32 %v5789, %v5901
    %v5903 = vpop.f32.mrb[0].mxu0
    %v5904 = vadd.f32 %v5791, %v5903
    %v5905 = vpop.f32.mrb[0].mxu0
    %v5906 = vadd.f32 %v5793, %v5905
    %5907 = vmatprep.mubr.bf16.mxu0 %v1527
    %5908 = vmatmul.mubr.bf16.gmra.mrb[0].mxu0 %v1526
    %v5909 = vpop.f32.mrb[0].mxu0
    %v5910 = vadd.f32 %v5797, %v5909
    %v5911 = vpop.f32.mrb[0].mxu0
    %v5912 = vadd.f32 %v5799, %v5911
    %v5913 = vpop.f32.mrb[0].mxu0
    %v5914 = vadd.f32 %v5801, %v5913
    %v5915 = vpop.f32.mrb[0].mxu0
    %v5916 = vadd.f32 %v5803, %v5915
    %5917 = vmatprep.mubr.bf16.mxu0 %v1543
    %5918 = vmatmul.mubr.bf16.gmra.mrb[0].mxu0 %v1542
    %v5919 = vpop.f32.mrb[0].mxu0
    %v5920 = vadd.f32 %v5807, %v5919
    %v5921 = vpop.f32.mrb[0].mxu0
    %v5922 = vadd.f32 %v5809, %v5921
    %v5923 = vpop.f32.mrb[0].mxu0
    %v5924 = vadd.f32 %v5811, %v5923
    %v5925 = vpop.f32.mrb[0].mxu0
    %v5926 = vadd.f32 %v5813, %v5925
    %5927 = vmatprep.mubr.bf16.mxu0 %v1559
    %5928 = vmatmul.mubr.bf16.gmra.mrb[0].mxu0 %v1558
    %v5929 = vpop.f32.mrb[0].mxu0
    %v5930 = vadd.f32 %v5817, %v5929
    %v5931 = vpop.f32.mrb[0].mxu0
    %v5932 = vadd.f32 %v5819, %v5931
    %v5933 = vpop.f32.mrb[0].mxu0
    %v5934 = vadd.f32 %v5821, %v5933
    %v5935 = vpop.f32.mrb[0].mxu0
    %v5936 = vadd.f32 %v5823, %v5935
    %5937 = vmatprep.mubr.bf16.mxu0 %v1575
    %5938 = vmatmul.mubr.bf16.gmra.mrb[0].mxu0 %v1574
    %v5939 = vpop.f32.mrb[0].mxu0
    %v5940 = vadd.f32 %v5827, %v5939
    %v5941 = vpop.f32.mrb[0].mxu0
    %v5942 = vadd.f32 %v5829, %v5941
    %v5943 = vpop.f32.mrb[0].mxu0
    %v5944 = vadd.f32 %v5831, %v5943
    %v5945 = vpop.f32.mrb[0].mxu0
    %v5946 = vadd.f32 %v5833, %v5945
    %5947 = vmatprep.mubr.bf16.mxu0 %v1591
    %5948 = vmatmul.mubr.bf16.gmra.mrb[0].mxu0 %v1590
    %v5949 = vpop.f32.mrb[0].mxu0
    %v5950 = vadd.f32 %v5837, %v5949
    %v5951 = vpop.f32.mrb[0].mxu0
    %v5952 = vadd.f32 %v5839, %v5951
    %v5953 = vpop.f32.mrb[0].mxu0
    %v5954 = vadd.f32 %v5841, %v5953
    %v5955 = vpop.f32.mrb[0].mxu0
    %v5956 = vadd.f32 %v5843, %v5955
    %5957 = vmatprep.mubr.bf16.mxu0 %v1607
    %5958 = vmatmul.mubr.bf16.gmra.mrb[0].mxu0 %v1606
    %v5959 = vpop.f32.mrb[0].mxu0
    %v5960 = vadd.f32 %v5847, %v5959
    %v5961 = vpop.f32.mrb[0].mxu0
    %v5962 = vadd.f32 %v5849, %v5961
    %v5963 = vpop.f32.mrb[0].mxu0
    %v5964 = vadd.f32 %v5851, %v5963
    %v5965 = vpop.f32.mrb[0].mxu0
    %v5966 = vadd.f32 %v5853, %v5965
    %5967 = vdwg.mxu0
    %5968 = vmatprep.subr.bf16.mxu0 %v3787
    %5969 = vmatpush1.bf16.msra.mxu0 %v3786
    %5970 = vmatprep.subr.bf16.mxu0 %v3792
    %5971 = vmatpush1.bf16.msra.mxu0 %v3791
    %5972 = vmatprep.subr.bf16.mxu0 %v3797
    %5973 = vmatpush1.bf16.msra.mxu0 %v3796
    %5974 = vmatprep.subr.bf16.mxu0 %v3802
    %5975 = vmatpush1.bf16.msra.mxu0 %v3801
    %5976 = vmatprep.subr.bf16.mxu0 %v3807
    %5977 = vmatpush1.bf16.msra.mxu0 %v3806
    %5978 = vmatprep.subr.bf16.mxu0 %v3812
    %5979 = vmatpush1.bf16.msra.mxu0 %v3811
    %5980 = vmatprep.subr.bf16.mxu0 %v3817
    %5981 = vmatpush1.bf16.msra.mxu0 %v3816
    %5982 = vmatprep.subr.bf16.mxu0 %v3822
    %5983 = vmatpush1.bf16.msra.mxu0 %v3821
    %5984 = vmatprep.subr.bf16.mxu0 %v3827
    %5985 = vmatpush1.bf16.msra.mxu0 %v3826
    %5986 = vmatprep.subr.bf16.mxu0 %v3832
    %5987 = vmatpush1.bf16.msra.mxu0 %v3831
    %5988 = vmatprep.subr.bf16.mxu0 %v3837
    %5989 = vmatpush1.bf16.msra.mxu0 %v3836
    %5990 = vmatprep.subr.bf16.mxu0 %v3842
    %5991 = vmatpush1.bf16.msra.mxu0 %v3841
    %5992 = vmatprep.subr.bf16.mxu0 %v3847
    %5993 = vmatpush1.bf16.msra.mxu0 %v3846
    %5994 = vmatprep.subr.bf16.mxu0 %v3852
    %5995 = vmatpush1.bf16.msra.mxu0 %v3851
    %5996 = vmatprep.subr.bf16.mxu0 %v3857
    %5997 = vmatpush1.bf16.msra.mxu0 %v3856
    %5998 = vmatprep.subr.bf16.mxu0 %v3862
    %5999 = vmatpush1.bf16.msra.mxu0 %v3861
    %6000 = vmatprep.mubr.bf16.mxu0 %v1481
    %6001 = vmatmul.mubr.bf16.gmra.mrb[0].mxu0 %v1480
    %v6002 = vpop.f32.mrb[0].mxu0
    %v6003 = vadd.f32 %v1046, %v6002
    %v6004 = vpop.f32.mrb[0].mxu0
    %v6005 = vadd.f32 %v1047, %v6004
    %v6006 = vpop.f32.mrb[0].mxu0
    %v6007 = vadd.f32 %v1051, %v6006
    %v6008 = vpop.f32.mrb[0].mxu0
    %v6009 = vadd.f32 %v1052, %v6008
    %6010 = vmatprep.mubr.bf16.mxu0 %v1497
    %6011 = vmatmul.mubr.bf16.gmra.mrb[0].mxu0 %v1496
    %v6012 = vpop.f32.mrb[0].mxu0
    %v6013 = vadd.f32 %v1056, %v6012
    %v6014 = vpop.f32.mrb[0].mxu0
    %v6015 = vpop.f32.mrb[0].mxu0
    %v6016 = vadd.f32 %v1059, %v6015
    %v6017 = vpop.f32.mrb[0].mxu0
    %6018 = vmatprep.mubr.bf16.mxu0 %v1513
    %6019 = vmatmul.mubr.bf16.gmra.mrb[0].mxu0 %v1512
    %v6020 = vpop.f32.mrb[0].mxu0
    %v6021 = vadd.f32 %v1062, %v6020
    %v6022 = vpop.f32.mrb[0].mxu0
    %v6023 = vpop.f32.mrb[0].mxu0
    %v6024 = vadd.f32 %v1065, %v6023
    %v6025 = vpop.f32.mrb[0].mxu0
    %6026 = vmatprep.mubr.bf16.mxu0 %v1529
    %6027 = vmatmul.mubr.bf16.gmra.mrb[0].mxu0 %v1528
    %v6028 = vpop.f32.mrb[0].mxu0
    %v6029 = vadd.f32 %v1068, %v6028
    %v6030 = vpop.f32.mrb[0].mxu0
    %v6031 = vpop.f32.mrb[0].mxu0
    %v6032 = vadd.f32 %v1071, %v6031
    %v6033 = vpop.f32.mrb[0].mxu0
    %6034 = vmatprep.mubr.bf16.mxu0 %v1545
    %6035 = vmatmul.mubr.bf16.gmra.mrb[0].mxu0 %v1544
    %v6036 = vpop.f32.mrb[0].mxu0
    %v6037 = vadd.f32 %v1074, %v6036
    %v6038 = vpop.f32.mrb[0].mxu0
    %v6039 = vpop.f32.mrb[0].mxu0
    %v6040 = vadd.f32 %v1077, %v6039
    %v6041 = vpop.f32.mrb[0].mxu0
    %6042 = vmatprep.mubr.bf16.mxu0 %v1561
    %6043 = vmatmul.mubr.bf16.gmra.mrb[0].mxu0 %v1560
    %v6044 = vpop.f32.mrb[0].mxu0
    %v6045 = vadd.f32 %v1080, %v6044
    %v6046 = vpop.f32.mrb[0].mxu0
    %v6047 = vpop.f32.mrb[0].mxu0
    %v6048 = vadd.f32 %v1083, %v6047
    %v6049 = vpop.f32.mrb[0].mxu0
    %6050 = vmatprep.mubr.bf16.mxu0 %v1577
    %6051 = vmatmul.mubr.bf16.gmra.mrb[0].mxu0 %v1576
    %v6052 = vpop.f32.mrb[0].mxu0
    %v6053 = vadd.f32 %v1086, %v6052
    %v6054 = vpop.f32.mrb[0].mxu0
    %v6055 = vpop.f32.mrb[0].mxu0
    %v6056 = vadd.f32 %v1089, %v6055
    %v6057 = vpop.f32.mrb[0].mxu0
    %6058 = vmatprep.mubr.bf16.mxu0 %v1593
    %6059 = vmatmul.mubr.bf16.gmra.mrb[0].mxu0 %v1592
    %v6060 = vpop.f32.mrb[0].mxu0
    %v6061 = vadd.f32 %v1092, %v6060
    %v6062 = vpop.f32.mrb[0].mxu0
    %v6063 = vpop.f32.mrb[0].mxu0
    %v6064 = vadd.f32 %v1095, %v6063
    %v6065 = vpop.f32.mrb[0].mxu0
    %6066 = vdwg.mxu0
    %6067 = vmatprep.subr.bf16.mxu0 %v3867
    %6068 = vmatpush1.bf16.msra.mxu0 %v3866
    %6069 = vmatprep.subr.bf16.mxu0 %v3872
    %6070 = vmatpush1.bf16.msra.mxu0 %v3871
    %6071 = vmatprep.subr.bf16.mxu0 %v3877
    %6072 = vmatpush1.bf16.msra.mxu0 %v3876
    %6073 = vmatprep.subr.bf16.mxu0 %v3882
    %6074 = vmatpush1.bf16.msra.mxu0 %v3881
    %6075 = vmatprep.subr.bf16.mxu0 %v3887
    %6076 = vmatpush1.bf16.msra.mxu0 %v3886
    %6077 = vmatprep.subr.bf16.mxu0 %v3892
    %6078 = vmatpush1.bf16.msra.mxu0 %v3891
    %6079 = vmatprep.subr.bf16.mxu0 %v3897
    %6080 = vmatpush1.bf16.msra.mxu0 %v3896
    %6081 = vmatprep.subr.bf16.mxu0 %v3902
    %6082 = vmatpush1.bf16.msra.mxu0 %v3901
    %6083 = vmatprep.subr.bf16.mxu0 %v3907
    %6084 = vmatpush1.bf16.msra.mxu0 %v3906
    %6085 = vmatprep.subr.bf16.mxu0 %v3912
    %6086 = vmatpush1.bf16.msra.mxu0 %v3911
    %6087 = vmatprep.subr.bf16.mxu0 %v3917
    %6088 = vmatpush1.bf16.msra.mxu0 %v3916
    %6089 = vmatprep.subr.bf16.mxu0 %v3922
    %6090 = vmatpush1.bf16.msra.mxu0 %v3921
    %6091 = vmatprep.subr.bf16.mxu0 %v3927
    %6092 = vmatpush1.bf16.msra.mxu0 %v3926
    %6093 = vmatprep.subr.bf16.mxu0 %v3932
    %6094 = vmatpush1.bf16.msra.mxu0 %v3931
    %6095 = vmatprep.subr.bf16.mxu0 %v3937
    %6096 = vmatpush1.bf16.msra.mxu0 %v3936
    %6097 = vmatprep.subr.bf16.mxu0 %v3942
    %6098 = vmatpush1.bf16.msra.mxu0 %v3941
    %6099 = vmatprep.mubr.bf16.mxu0 %v1483
    %6100 = vmatmul.mubr.bf16.gmra.mrb[0].mxu0 %v1482
    %v6101 = vpop.f32.mrb[0].mxu0
    %v6102 = vadd.f32 %v6003, %v6101
    %v6103 = vpop.f32.mrb[0].mxu0
    %v6104 = vadd.f32 %v6005, %v6103
    %v6105 = vpop.f32.mrb[0].mxu0
    %v6106 = vadd.f32 %v6007, %v6105
    %v6107 = vpop.f32.mrb[0].mxu0
    %v6108 = vadd.f32 %v6009, %v6107
    %6109 = vmatprep.mubr.bf16.mxu0 %v1499
    %6110 = vmatmul.mubr.bf16.gmra.mrb[0].mxu0 %v1498
    %v6111 = vpop.f32.mrb[0].mxu0
    %v6112 = vadd.f32 %v6013, %v6111
    %v6113 = vpop.f32.mrb[0].mxu0
    %v6114 = vpop.f32.mrb[0].mxu0
    %v6115 = vadd.f32 %v6016, %v6114
    %v6116 = vpop.f32.mrb[0].mxu0
    %6117 = vmatprep.mubr.bf16.mxu0 %v1515
    %6118 = vmatmul.mubr.bf16.gmra.mrb[0].mxu0 %v1514
    %v6119 = vpop.f32.mrb[0].mxu0
    %v6120 = vadd.f32 %v6021, %v6119
    %v6121 = vpop.f32.mrb[0].mxu0
    %v6122 = vpop.f32.mrb[0].mxu0
    %v6123 = vadd.f32 %v6024, %v6122
    %v6124 = vpop.f32.mrb[0].mxu0
    %6125 = vmatprep.mubr.bf16.mxu0 %v1531
    %6126 = vmatmul.mubr.bf16.gmra.mrb[0].mxu0 %v1530
    %v6127 = vpop.f32.mrb[0].mxu0
    %v6128 = vadd.f32 %v6029, %v6127
    %v6129 = vpop.f32.mrb[0].mxu0
    %v6130 = vpop.f32.mrb[0].mxu0
    %v6131 = vadd.f32 %v6032, %v6130
    %v6132 = vpop.f32.mrb[0].mxu0
    %6133 = vmatprep.mubr.bf16.mxu0 %v1547
    %6134 = vmatmul.mubr.bf16.gmra.mrb[0].mxu0 %v1546
    %v6135 = vpop.f32.mrb[0].mxu0
    %v6136 = vadd.f32 %v6037, %v6135
    %v6137 = vpop.f32.mrb[0].mxu0
    %v6138 = vpop.f32.mrb[0].mxu0
    %v6139 = vadd.f32 %v6040, %v6138
    %v6140 = vpop.f32.mrb[0].mxu0
    %6141 = vmatprep.mubr.bf16.mxu0 %v1563
    %6142 = vmatmul.mubr.bf16.gmra.mrb[0].mxu0 %v1562
    %v6143 = vpop.f32.mrb[0].mxu0
    %v6144 = vadd.f32 %v6045, %v6143
    %v6145 = vpop.f32.mrb[0].mxu0
    %v6146 = vpop.f32.mrb[0].mxu0
    %v6147 = vadd.f32 %v6048, %v6146
    %v6148 = vpop.f32.mrb[0].mxu0
    %6149 = vmatprep.mubr.bf16.mxu0 %v1579
    %6150 = vmatmul.mubr.bf16.gmra.mrb[0].mxu0 %v1578
    %v6151 = vpop.f32.mrb[0].mxu0
    %v6152 = vadd.f32 %v6053, %v6151
    %v6153 = vpop.f32.mrb[0].mxu0
    %v6154 = vpop.f32.mrb[0].mxu0
    %v6155 = vadd.f32 %v6056, %v6154
    %v6156 = vpop.f32.mrb[0].mxu0
    %6157 = vmatprep.mubr.bf16.mxu0 %v1595
    %6158 = vmatmul.mubr.bf16.gmra.mrb[0].mxu0 %v1594
    %v6159 = vpop.f32.mrb[0].mxu0
    %v6160 = vadd.f32 %v6061, %v6159
    %v6161 = vpop.f32.mrb[0].mxu0
    %v6162 = vpop.f32.mrb[0].mxu0
    %v6163 = vadd.f32 %v6064, %v6162
    %v6164 = vpop.f32.mrb[0].mxu0
    %6165 = vdwg.mxu0
    %6166 = vmatprep.subr.bf16.mxu0 %v3947
    %6167 = vmatpush1.bf16.msra.mxu0 %v3946
    %6168 = vmatprep.subr.bf16.mxu0 %v3952
    %6169 = vmatpush1.bf16.msra.mxu0 %v3951
    %6170 = vmatprep.subr.bf16.mxu0 %v3957
    %6171 = vmatpush1.bf16.msra.mxu0 %v3956
    %6172 = vmatprep.subr.bf16.mxu0 %v3962
    %6173 = vmatpush1.bf16.msra.mxu0 %v3961
    %6174 = vmatprep.subr.bf16.mxu0 %v3967
    %6175 = vmatpush1.bf16.msra.mxu0 %v3966
    %6176 = vmatprep.subr.bf16.mxu0 %v3972
    %6177 = vmatpush1.bf16.msra.mxu0 %v3971
    %6178 = vmatprep.subr.bf16.mxu0 %v3977
    %6179 = vmatpush1.bf16.msra.mxu0 %v3976
    %6180 = vmatprep.subr.bf16.mxu0 %v3982
    %6181 = vmatpush1.bf16.msra.mxu0 %v3981
    %6182 = vmatprep.subr.bf16.mxu0 %v3987
    %6183 = vmatpush1.bf16.msra.mxu0 %v3986
    %6184 = vmatprep.subr.bf16.mxu0 %v3992
    %6185 = vmatpush1.bf16.msra.mxu0 %v3991
    %6186 = vmatprep.subr.bf16.mxu0 %v3997
    %6187 = vmatpush1.bf16.msra.mxu0 %v3996
    %6188 = vmatprep.subr.bf16.mxu0 %v4002
    %6189 = vmatpush1.bf16.msra.mxu0 %v4001
    %6190 = vmatprep.subr.bf16.mxu0 %v4007
    %6191 = vmatpush1.bf16.msra.mxu0 %v4006
    %6192 = vmatprep.subr.bf16.mxu0 %v4012
    %6193 = vmatpush1.bf16.msra.mxu0 %v4011
    %6194 = vmatprep.subr.bf16.mxu0 %v4017
    %6195 = vmatpush1.bf16.msra.mxu0 %v4016
    %6196 = vmatprep.subr.bf16.mxu0 %v4022
    %6197 = vmatpush1.bf16.msra.mxu0 %v4021
    %6198 = vmatprep.mubr.bf16.mxu0 %v1485
    %6199 = vmatmul.mubr.bf16.gmra.mrb[0].mxu0 %v1484
    %v6200 = vpop.f32.mrb[0].mxu0
    %v6201 = vadd.f32 %v6102, %v6200
    %v6202 = vpop.f32.mrb[0].mxu0
    %v6203 = vadd.f32 %v6104, %v6202
    %v6204 = vpop.f32.mrb[0].mxu0
    %v6205 = vadd.f32 %v6106, %v6204
    %v6206 = vpop.f32.mrb[0].mxu0
    %v6207 = vadd.f32 %v6108, %v6206
    %6208 = vmatprep.mubr.bf16.mxu0 %v1501
    %6209 = vmatmul.mubr.bf16.gmra.mrb[0].mxu0 %v1500
    %v6210 = vpop.f32.mrb[0].mxu0
    %v6211 = vadd.f32 %v6112, %v6210
    %v6212 = vpop.f32.mrb[0].mxu0
    %v6213 = vpop.f32.mrb[0].mxu0
    %v6214 = vadd.f32 %v6115, %v6213
    %v6215 = vpop.f32.mrb[0].mxu0
    %6216 = vmatprep.mubr.bf16.mxu0 %v1517
    %6217 = vmatmul.mubr.bf16.gmra.mrb[0].mxu0 %v1516
    %v6218 = vpop.f32.mrb[0].mxu0
    %v6219 = vadd.f32 %v6120, %v6218
    %v6220 = vpop.f32.mrb[0].mxu0
    %v6221 = vpop.f32.mrb[0].mxu0
    %v6222 = vadd.f32 %v6123, %v6221
    %v6223 = vpop.f32.mrb[0].mxu0
    %6224 = vmatprep.mubr.bf16.mxu0 %v1533
    %6225 = vmatmul.mubr.bf16.gmra.mrb[0].mxu0 %v1532
    %v6226 = vpop.f32.mrb[0].mxu0
    %v6227 = vadd.f32 %v6128, %v6226
    %v6228 = vpop.f32.mrb[0].mxu0
    %v6229 = vpop.f32.mrb[0].mxu0
    %v6230 = vadd.f32 %v6131, %v6229
    %v6231 = vpop.f32.mrb[0].mxu0
    %6232 = vmatprep.mubr.bf16.mxu0 %v1549
    %6233 = vmatmul.mubr.bf16.gmra.mrb[0].mxu0 %v1548
    %v6234 = vpop.f32.mrb[0].mxu0
    %v6235 = vadd.f32 %v6136, %v6234
    %v6236 = vpop.f32.mrb[0].mxu0
    %v6237 = vpop.f32.mrb[0].mxu0
    %v6238 = vadd.f32 %v6139, %v6237
    %v6239 = vpop.f32.mrb[0].mxu0
    %6240 = vmatprep.mubr.bf16.mxu0 %v1565
    %6241 = vmatmul.mubr.bf16.gmra.mrb[0].mxu0 %v1564
    %v6242 = vpop.f32.mrb[0].mxu0
    %v6243 = vadd.f32 %v6144, %v6242
    %v6244 = vpop.f32.mrb[0].mxu0
    %v6245 = vpop.f32.mrb[0].mxu0
    %v6246 = vadd.f32 %v6147, %v6245
    %v6247 = vpop.f32.mrb[0].mxu0
    %6248 = vmatprep.mubr.bf16.mxu0 %v1581
    %6249 = vmatmul.mubr.bf16.gmra.mrb[0].mxu0 %v1580
    %v6250 = vpop.f32.mrb[0].mxu0
    %v6251 = vadd.f32 %v6152, %v6250
    %v6252 = vpop.f32.mrb[0].mxu0
    %v6253 = vpop.f32.mrb[0].mxu0
    %v6254 = vadd.f32 %v6155, %v6253
    %v6255 = vpop.f32.mrb[0].mxu0
    %6256 = vmatprep.mubr.bf16.mxu0 %v1597
    %6257 = vmatmul.mubr.bf16.gmra.mrb[0].mxu0 %v1596
    %v6258 = vpop.f32.mrb[0].mxu0
    %v6259 = vadd.f32 %v6160, %v6258
    %v6260 = vpop.f32.mrb[0].mxu0
    %v6261 = vpop.f32.mrb[0].mxu0
    %v6262 = vadd.f32 %v6163, %v6261
    %v6263 = vpop.f32.mrb[0].mxu0
    %6264 = vdwg.mxu0
    %6265 = vmatprep.subr.bf16.mxu0 %v4027
    %6266 = vmatpush1.bf16.msra.mxu0 %v4026
    %6267 = vmatprep.subr.bf16.mxu0 %v4032
    %6268 = vmatpush1.bf16.msra.mxu0 %v4031
    %6269 = vmatprep.subr.bf16.mxu0 %v4037
    %6270 = vmatpush1.bf16.msra.mxu0 %v4036
    %6271 = vmatprep.subr.bf16.mxu0 %v4042
    %6272 = vmatpush1.bf16.msra.mxu0 %v4041
    %6273 = vmatprep.subr.bf16.mxu0 %v4047
    %6274 = vmatpush1.bf16.msra.mxu0 %v4046
    %6275 = vmatprep.subr.bf16.mxu0 %v4052
    %6276 = vmatpush1.bf16.msra.mxu0 %v4051
    %6277 = vmatprep.subr.bf16.mxu0 %v4057
    %6278 = vmatpush1.bf16.msra.mxu0 %v4056
    %6279 = vmatprep.subr.bf16.mxu0 %v4062
    %6280 = vmatpush1.bf16.msra.mxu0 %v4061
    %6281 = vmatprep.subr.bf16.mxu0 %v4067
    %6282 = vmatpush1.bf16.msra.mxu0 %v4066
    %6283 = vmatprep.subr.bf16.mxu0 %v4072
    %6284 = vmatpush1.bf16.msra.mxu0 %v4071
    %6285 = vmatprep.subr.bf16.mxu0 %v4077
    %6286 = vmatpush1.bf16.msra.mxu0 %v4076
    %6287 = vmatprep.subr.bf16.mxu0 %v4082
    %6288 = vmatpush1.bf16.msra.mxu0 %v4081
    %6289 = vmatprep.subr.bf16.mxu0 %v4087
    %6290 = vmatpush1.bf16.msra.mxu0 %v4086
    %6291 = vmatprep.subr.bf16.mxu0 %v4092
    %6292 = vmatpush1.bf16.msra.mxu0 %v4091
    %6293 = vmatprep.subr.bf16.mxu0 %v4097
    %6294 = vmatpush1.bf16.msra.mxu0 %v4096
    %6295 = vmatprep.subr.bf16.mxu0 %v4102
    %6296 = vmatpush1.bf16.msra.mxu0 %v4101
    %6297 = vmatprep.mubr.bf16.mxu0 %v1487
    %6298 = vmatmul.mubr.bf16.gmra.mrb[0].mxu0 %v1486
    %v6299 = vpop.f32.mrb[0].mxu0
    %v6300 = vadd.f32 %v6201, %v6299
    %v6301 = vpop.f32.mrb[0].mxu0
    %v6302 = vadd.f32 %v6203, %v6301
    %v6303 = vpop.f32.mrb[0].mxu0
    %v6304 = vadd.f32 %v6205, %v6303
    %v6305 = vpop.f32.mrb[0].mxu0
    %v6306 = vadd.f32 %v6207, %v6305
    %6307 = vmatprep.mubr.bf16.mxu0 %v1503
    %6308 = vmatmul.mubr.bf16.gmra.mrb[0].mxu0 %v1502
    %v6309 = vpop.f32.mrb[0].mxu0
    %v6310 = vadd.f32 %v6211, %v6309
    %v6311 = vpop.f32.mrb[0].mxu0
    %v6312 = vpop.f32.mrb[0].mxu0
    %v6313 = vadd.f32 %v6214, %v6312
    %v6314 = vpop.f32.mrb[0].mxu0
    %6315 = vmatprep.mubr.bf16.mxu0 %v1519
    %6316 = vmatmul.mubr.bf16.gmra.mrb[0].mxu0 %v1518
    %v6317 = vpop.f32.mrb[0].mxu0
    %v6318 = vadd.f32 %v6219, %v6317
    %v6319 = vpop.f32.mrb[0].mxu0
    %v6320 = vpop.f32.mrb[0].mxu0
    %v6321 = vadd.f32 %v6222, %v6320
    %v6322 = vpop.f32.mrb[0].mxu0
    %6323 = vmatprep.mubr.bf16.mxu0 %v1535
    %6324 = vmatmul.mubr.bf16.gmra.mrb[0].mxu0 %v1534
    %v6325 = vpop.f32.mrb[0].mxu0
    %v6326 = vadd.f32 %v6227, %v6325
    %v6327 = vpop.f32.mrb[0].mxu0
    %v6328 = vpop.f32.mrb[0].mxu0
    %v6329 = vadd.f32 %v6230, %v6328
    %v6330 = vpop.f32.mrb[0].mxu0
    %6331 = vmatprep.mubr.bf16.mxu0 %v1551
    %6332 = vmatmul.mubr.bf16.gmra.mrb[0].mxu0 %v1550
    %v6333 = vpop.f32.mrb[0].mxu0
    %v6334 = vadd.f32 %v6235, %v6333
    %v6335 = vpop.f32.mrb[0].mxu0
    %v6336 = vpop.f32.mrb[0].mxu0
    %v6337 = vadd.f32 %v6238, %v6336
    %v6338 = vpop.f32.mrb[0].mxu0
    %6339 = vmatprep.mubr.bf16.mxu0 %v1567
    %6340 = vmatmul.mubr.bf16.gmra.mrb[0].mxu0 %v1566
    %v6341 = vpop.f32.mrb[0].mxu0
    %v6342 = vadd.f32 %v6243, %v6341
    %v6343 = vpop.f32.mrb[0].mxu0
    %v6344 = vpop.f32.mrb[0].mxu0
    %v6345 = vadd.f32 %v6246, %v6344
    %v6346 = vpop.f32.mrb[0].mxu0
    %6347 = vmatprep.mubr.bf16.mxu0 %v1583
    %6348 = vmatmul.mubr.bf16.gmra.mrb[0].mxu0 %v1582
    %v6349 = vpop.f32.mrb[0].mxu0
    %v6350 = vadd.f32 %v6251, %v6349
    %v6351 = vpop.f32.mrb[0].mxu0
    %v6352 = vpop.f32.mrb[0].mxu0
    %v6353 = vadd.f32 %v6254, %v6352
    %v6354 = vpop.f32.mrb[0].mxu0
    %6355 = vmatprep.mubr.bf16.mxu0 %v1599
    %6356 = vmatmul.mubr.bf16.gmra.mrb[0].mxu0 %v1598
    %v6357 = vpop.f32.mrb[0].mxu0
    %v6358 = vadd.f32 %v6259, %v6357
    %v6359 = vpop.f32.mrb[0].mxu0
    %v6360 = vpop.f32.mrb[0].mxu0
    %v6361 = vadd.f32 %v6262, %v6360
    %v6362 = vpop.f32.mrb[0].mxu0
    %6363 = vdwg.mxu0
    %6364 = vmatprep.subr.bf16.mxu0 %v4107
    %6365 = vmatpush1.bf16.msra.mxu0 %v4106
    %6366 = vmatprep.subr.bf16.mxu0 %v4112
    %6367 = vmatpush1.bf16.msra.mxu0 %v4111
    %6368 = vmatprep.subr.bf16.mxu0 %v4117
    %6369 = vmatpush1.bf16.msra.mxu0 %v4116
    %6370 = vmatprep.subr.bf16.mxu0 %v4122
    %6371 = vmatpush1.bf16.msra.mxu0 %v4121
    %6372 = vmatprep.subr.bf16.mxu0 %v4127
    %6373 = vmatpush1.bf16.msra.mxu0 %v4126
    %6374 = vmatprep.subr.bf16.mxu0 %v4132
    %6375 = vmatpush1.bf16.msra.mxu0 %v4131
    %6376 = vmatprep.subr.bf16.mxu0 %v4137
    %6377 = vmatpush1.bf16.msra.mxu0 %v4136
    %6378 = vmatprep.subr.bf16.mxu0 %v4142
    %6379 = vmatpush1.bf16.msra.mxu0 %v4141
    %6380 = vmatprep.subr.bf16.mxu0 %v4147
    %6381 = vmatpush1.bf16.msra.mxu0 %v4146
    %6382 = vmatprep.subr.bf16.mxu0 %v4152
    %6383 = vmatpush1.bf16.msra.mxu0 %v4151
    %6384 = vmatprep.subr.bf16.mxu0 %v4157
    %6385 = vmatpush1.bf16.msra.mxu0 %v4156
    %6386 = vmatprep.subr.bf16.mxu0 %v4162
    %6387 = vmatpush1.bf16.msra.mxu0 %v4161
    %6388 = vmatprep.subr.bf16.mxu0 %v4167
    %6389 = vmatpush1.bf16.msra.mxu0 %v4166
    %6390 = vmatprep.subr.bf16.mxu0 %v4172
    %6391 = vmatpush1.bf16.msra.mxu0 %v4171
    %6392 = vmatprep.subr.bf16.mxu0 %v4177
    %6393 = vmatpush1.bf16.msra.mxu0 %v4176
    %6394 = vmatprep.subr.bf16.mxu0 %v4182
    %6395 = vmatpush1.bf16.msra.mxu0 %v4181
    %6396 = vmatprep.mubr.bf16.mxu0 %v1489
    %6397 = vmatmul.mubr.bf16.gmra.mrb[0].mxu0 %v1488
    %v6398 = vpop.f32.mrb[0].mxu0
    %v6399 = vadd.f32 %v6300, %v6398
    %v6400 = vpop.f32.mrb[0].mxu0
    %v6401 = vadd.f32 %v6302, %v6400
    %v6402 = vpop.f32.mrb[0].mxu0
    %v6403 = vadd.f32 %v6304, %v6402
    %v6404 = vpop.f32.mrb[0].mxu0
    %v6405 = vadd.f32 %v6306, %v6404
    %6406 = vmatprep.mubr.bf16.mxu0 %v1505
    %6407 = vmatmul.mubr.bf16.gmra.mrb[0].mxu0 %v1504
    %v6408 = vpop.f32.mrb[0].mxu0
    %v6409 = vadd.f32 %v6310, %v6408
    %v6410 = vpop.f32.mrb[0].mxu0
    %v6411 = vpop.f32.mrb[0].mxu0
    %v6412 = vadd.f32 %v6313, %v6411
    %v6413 = vpop.f32.mrb[0].mxu0
    %6414 = vmatprep.mubr.bf16.mxu0 %v1521
    %6415 = vmatmul.mubr.bf16.gmra.mrb[0].mxu0 %v1520
    %v6416 = vpop.f32.mrb[0].mxu0
    %v6417 = vadd.f32 %v6318, %v6416
    %v6418 = vpop.f32.mrb[0].mxu0
    %v6419 = vpop.f32.mrb[0].mxu0
    %v6420 = vadd.f32 %v6321, %v6419
    %v6421 = vpop.f32.mrb[0].mxu0
    %6422 = vmatprep.mubr.bf16.mxu0 %v1537
    %6423 = vmatmul.mubr.bf16.gmra.mrb[0].mxu0 %v1536
    %v6424 = vpop.f32.mrb[0].mxu0
    %v6425 = vadd.f32 %v6326, %v6424
    %v6426 = vpop.f32.mrb[0].mxu0
    %v6427 = vpop.f32.mrb[0].mxu0
    %v6428 = vadd.f32 %v6329, %v6427
    %v6429 = vpop.f32.mrb[0].mxu0
    %6430 = vmatprep.mubr.bf16.mxu0 %v1553
    %6431 = vmatmul.mubr.bf16.gmra.mrb[0].mxu0 %v1552
    %v6432 = vpop.f32.mrb[0].mxu0
    %v6433 = vadd.f32 %v6334, %v6432
    %v6434 = vpop.f32.mrb[0].mxu0
    %v6435 = vpop.f32.mrb[0].mxu0
    %v6436 = vadd.f32 %v6337, %v6435
    %v6437 = vpop.f32.mrb[0].mxu0
    %6438 = vmatprep.mubr.bf16.mxu0 %v1569
    %6439 = vmatmul.mubr.bf16.gmra.mrb[0].mxu0 %v1568
    %v6440 = vpop.f32.mrb[0].mxu0
    %v6441 = vadd.f32 %v6342, %v6440
    %v6442 = vpop.f32.mrb[0].mxu0
    %v6443 = vpop.f32.mrb[0].mxu0
    %v6444 = vadd.f32 %v6345, %v6443
    %v6445 = vpop.f32.mrb[0].mxu0
    %6446 = vmatprep.mubr.bf16.mxu0 %v1585
    %6447 = vmatmul.mubr.bf16.gmra.mrb[0].mxu0 %v1584
    %v6448 = vpop.f32.mrb[0].mxu0
    %v6449 = vadd.f32 %v6350, %v6448
    %v6450 = vpop.f32.mrb[0].mxu0
    %v6451 = vpop.f32.mrb[0].mxu0
    %v6452 = vadd.f32 %v6353, %v6451
    %v6453 = vpop.f32.mrb[0].mxu0
    %6454 = vmatprep.mubr.bf16.mxu0 %v1601
    %6455 = vmatmul.mubr.bf16.gmra.mrb[0].mxu0 %v1600
    %v6456 = vpop.f32.mrb[0].mxu0
    %v6457 = vadd.f32 %v6358, %v6456
    %v6458 = vpop.f32.mrb[0].mxu0
    %v6459 = vpop.f32.mrb[0].mxu0
    %v6460 = vadd.f32 %v6361, %v6459
    %v6461 = vpop.f32.mrb[0].mxu0
    %6462 = vdwg.mxu0
    %6463 = vmatprep.subr.bf16.mxu0 %v4187
    %6464 = vmatpush1.bf16.msra.mxu0 %v4186
    %6465 = vmatprep.subr.bf16.mxu0 %v4192
    %6466 = vmatpush1.bf16.msra.mxu0 %v4191
    %6467 = vmatprep.subr.bf16.mxu0 %v4197
    %6468 = vmatpush1.bf16.msra.mxu0 %v4196
    %6469 = vmatprep.subr.bf16.mxu0 %v4202
    %6470 = vmatpush1.bf16.msra.mxu0 %v4201
    %6471 = vmatprep.subr.bf16.mxu0 %v4207
    %6472 = vmatpush1.bf16.msra.mxu0 %v4206
    %6473 = vmatprep.subr.bf16.mxu0 %v4212
    %6474 = vmatpush1.bf16.msra.mxu0 %v4211
    %6475 = vmatprep.subr.bf16.mxu0 %v4217
    %6476 = vmatpush1.bf16.msra.mxu0 %v4216
    %6477 = vmatprep.subr.bf16.mxu0 %v4222
    %6478 = vmatpush1.bf16.msra.mxu0 %v4221
    %6479 = vmatprep.subr.bf16.mxu0 %v4227
    %6480 = vmatpush1.bf16.msra.mxu0 %v4226
    %6481 = vmatprep.subr.bf16.mxu0 %v4232
    %6482 = vmatpush1.bf16.msra.mxu0 %v4231
    %6483 = vmatprep.subr.bf16.mxu0 %v4237
    %6484 = vmatpush1.bf16.msra.mxu0 %v4236
    %6485 = vmatprep.subr.bf16.mxu0 %v4242
    %6486 = vmatpush1.bf16.msra.mxu0 %v4241
    %6487 = vmatprep.subr.bf16.mxu0 %v4247
    %6488 = vmatpush1.bf16.msra.mxu0 %v4246
    %6489 = vmatprep.subr.bf16.mxu0 %v4252
    %6490 = vmatpush1.bf16.msra.mxu0 %v4251
    %6491 = vmatprep.subr.bf16.mxu0 %v4257
    %6492 = vmatpush1.bf16.msra.mxu0 %v4256
    %6493 = vmatprep.subr.bf16.mxu0 %v4262
    %6494 = vmatpush1.bf16.msra.mxu0 %v4261
    %6495 = vmatprep.mubr.bf16.mxu0 %v1491
    %6496 = vmatmul.mubr.bf16.gmra.mrb[0].mxu0 %v1490
    %v6497 = vpop.f32.mrb[0].mxu0
    %v6498 = vadd.f32 %v6399, %v6497
    %v6499 = vpop.f32.mrb[0].mxu0
    %v6500 = vadd.f32 %v6401, %v6499
    %v6501 = vpop.f32.mrb[0].mxu0
    %v6502 = vadd.f32 %v6403, %v6501
    %v6503 = vpop.f32.mrb[0].mxu0
    %v6504 = vadd.f32 %v6405, %v6503
    %6505 = vmatprep.mubr.bf16.mxu0 %v1507
    %6506 = vmatmul.mubr.bf16.gmra.mrb[0].mxu0 %v1506
    %v6507 = vpop.f32.mrb[0].mxu0
    %v6508 = vadd.f32 %v6409, %v6507
    %v6509 = vpop.f32.mrb[0].mxu0
    %v6510 = vpop.f32.mrb[0].mxu0
    %v6511 = vadd.f32 %v6412, %v6510
    %v6512 = vpop.f32.mrb[0].mxu0
    %6513 = vmatprep.mubr.bf16.mxu0 %v1523
    %6514 = vmatmul.mubr.bf16.gmra.mrb[0].mxu0 %v1522
    %v6515 = vpop.f32.mrb[0].mxu0
    %v6516 = vadd.f32 %v6417, %v6515
    %v6517 = vpop.f32.mrb[0].mxu0
    %v6518 = vpop.f32.mrb[0].mxu0
    %v6519 = vadd.f32 %v6420, %v6518
    %v6520 = vpop.f32.mrb[0].mxu0
    %6521 = vmatprep.mubr.bf16.mxu0 %v1539
    %6522 = vmatmul.mubr.bf16.gmra.mrb[0].mxu0 %v1538
    %v6523 = vpop.f32.mrb[0].mxu0
    %v6524 = vadd.f32 %v6425, %v6523
    %v6525 = vpop.f32.mrb[0].mxu0
    %v6526 = vpop.f32.mrb[0].mxu0
    %v6527 = vadd.f32 %v6428, %v6526
    %v6528 = vpop.f32.mrb[0].mxu0
    %6529 = vmatprep.mubr.bf16.mxu0 %v1555
    %6530 = vmatmul.mubr.bf16.gmra.mrb[0].mxu0 %v1554
    %v6531 = vpop.f32.mrb[0].mxu0
    %v6532 = vadd.f32 %v6433, %v6531
    %v6533 = vpop.f32.mrb[0].mxu0
    %v6534 = vpop.f32.mrb[0].mxu0
    %v6535 = vadd.f32 %v6436, %v6534
    %v6536 = vpop.f32.mrb[0].mxu0
    %6537 = vmatprep.mubr.bf16.mxu0 %v1571
    %6538 = vmatmul.mubr.bf16.gmra.mrb[0].mxu0 %v1570
    %v6539 = vpop.f32.mrb[0].mxu0
    %v6540 = vadd.f32 %v6441, %v6539
    %v6541 = vpop.f32.mrb[0].mxu0
    %v6542 = vpop.f32.mrb[0].mxu0
    %v6543 = vadd.f32 %v6444, %v6542
    %v6544 = vpop.f32.mrb[0].mxu0
    %6545 = vmatprep.mubr.bf16.mxu0 %v1587
    %6546 = vmatmul.mubr.bf16.gmra.mrb[0].mxu0 %v1586
    %v6547 = vpop.f32.mrb[0].mxu0
    %v6548 = vadd.f32 %v6449, %v6547
    %v6549 = vpop.f32.mrb[0].mxu0
    %v6550 = vpop.f32.mrb[0].mxu0
    %v6551 = vadd.f32 %v6452, %v6550
    %v6552 = vpop.f32.mrb[0].mxu0
    %6553 = vmatprep.mubr.bf16.mxu0 %v1603
    %6554 = vmatmul.mubr.bf16.gmra.mrb[0].mxu0 %v1602
    %v6555 = vpop.f32.mrb[0].mxu0
    %v6556 = vadd.f32 %v6457, %v6555
    %v6557 = vpop.f32.mrb[0].mxu0
    %v6558 = vpop.f32.mrb[0].mxu0
    %v6559 = vadd.f32 %v6460, %v6558
    %v6560 = vpop.f32.mrb[0].mxu0
    %6561 = vdwg.mxu0
    %6562 = vmatprep.subr.bf16.mxu0 %v4267
    %6563 = vmatpush1.bf16.msra.mxu0 %v4266
    %6564 = vmatprep.subr.bf16.mxu0 %v4272
    %6565 = vmatpush1.bf16.msra.mxu0 %v4271
    %6566 = vmatprep.subr.bf16.mxu0 %v4277
    %6567 = vmatpush1.bf16.msra.mxu0 %v4276
    %6568 = vmatprep.subr.bf16.mxu0 %v4282
    %6569 = vmatpush1.bf16.msra.mxu0 %v4281
    %6570 = vmatprep.subr.bf16.mxu0 %v4287
    %6571 = vmatpush1.bf16.msra.mxu0 %v4286
    %6572 = vmatprep.subr.bf16.mxu0 %v4292
    %6573 = vmatpush1.bf16.msra.mxu0 %v4291
    %6574 = vmatprep.subr.bf16.mxu0 %v4297
    %6575 = vmatpush1.bf16.msra.mxu0 %v4296
    %6576 = vmatprep.subr.bf16.mxu0 %v4302
    %6577 = vmatpush1.bf16.msra.mxu0 %v4301
    %6578 = vmatprep.subr.bf16.mxu0 %v4307
    %6579 = vmatpush1.bf16.msra.mxu0 %v4306
    %6580 = vmatprep.subr.bf16.mxu0 %v4312
    %6581 = vmatpush1.bf16.msra.mxu0 %v4311
    %6582 = vmatprep.subr.bf16.mxu0 %v4317
    %6583 = vmatpush1.bf16.msra.mxu0 %v4316
    %6584 = vmatprep.subr.bf16.mxu0 %v4322
    %6585 = vmatpush1.bf16.msra.mxu0 %v4321
    %6586 = vmatprep.subr.bf16.mxu0 %v4327
    %6587 = vmatpush1.bf16.msra.mxu0 %v4326
    %6588 = vmatprep.subr.bf16.mxu0 %v4332
    %6589 = vmatpush1.bf16.msra.mxu0 %v4331
    %6590 = vmatprep.subr.bf16.mxu0 %v4337
    %6591 = vmatpush1.bf16.msra.mxu0 %v4336
    %6592 = vmatprep.subr.bf16.mxu0 %v4342
    %6593 = vmatpush1.bf16.msra.mxu0 %v4341
    %6594 = vmatprep.mubr.bf16.mxu0 %v1493
    %6595 = vmatmul.mubr.bf16.gmra.mrb[0].mxu0 %v1492
    %v6596 = vpop.f32.mrb[0].mxu0
    %v6597 = vadd.f32 %v6498, %v6596
    %v6598 = vpop.f32.mrb[0].mxu0
    %v6599 = vadd.f32 %v6500, %v6598
    %v6600 = vpop.f32.mrb[0].mxu0
    %v6601 = vadd.f32 %v6502, %v6600
    %v6602 = vpop.f32.mrb[0].mxu0
    %v6603 = vadd.f32 %v6504, %v6602
    %6604 = vmatprep.mubr.bf16.mxu0 %v1509
    %6605 = vmatmul.mubr.bf16.gmra.mrb[0].mxu0 %v1508
    %v6606 = vpop.f32.mrb[0].mxu0
    %v6607 = vadd.f32 %v6508, %v6606
    %v6608 = vpop.f32.mrb[0].mxu0
    %v6609 = vpop.f32.mrb[0].mxu0
    %v6610 = vadd.f32 %v6511, %v6609
    %v6611 = vpop.f32.mrb[0].mxu0
    %6612 = vmatprep.mubr.bf16.mxu0 %v1525
    %6613 = vmatmul.mubr.bf16.gmra.mrb[0].mxu0 %v1524
    %v6614 = vpop.f32.mrb[0].mxu0
    %v6615 = vadd.f32 %v6516, %v6614
    %v6616 = vpop.f32.mrb[0].mxu0
    %v6617 = vpop.f32.mrb[0].mxu0
    %v6618 = vadd.f32 %v6519, %v6617
    %v6619 = vpop.f32.mrb[0].mxu0
    %6620 = vmatprep.mubr.bf16.mxu0 %v1541
    %6621 = vmatmul.mubr.bf16.gmra.mrb[0].mxu0 %v1540
    %v6622 = vpop.f32.mrb[0].mxu0
    %v6623 = vadd.f32 %v6524, %v6622
    %v6624 = vpop.f32.mrb[0].mxu0
    %v6625 = vpop.f32.mrb[0].mxu0
    %v6626 = vadd.f32 %v6527, %v6625
    %v6627 = vpop.f32.mrb[0].mxu0
    %6628 = vmatprep.mubr.bf16.mxu0 %v1557
    %6629 = vmatmul.mubr.bf16.gmra.mrb[0].mxu0 %v1556
    %v6630 = vpop.f32.mrb[0].mxu0
    %v6631 = vadd.f32 %v6532, %v6630
    %v6632 = vpop.f32.mrb[0].mxu0
    %v6633 = vpop.f32.mrb[0].mxu0
    %v6634 = vadd.f32 %v6535, %v6633
    %v6635 = vpop.f32.mrb[0].mxu0
    %6636 = vmatprep.mubr.bf16.mxu0 %v1573
    %6637 = vmatmul.mubr.bf16.gmra.mrb[0].mxu0 %v1572
    %v6638 = vpop.f32.mrb[0].mxu0
    %v6639 = vadd.f32 %v6540, %v6638
    %v6640 = vpop.f32.mrb[0].mxu0
    %v6641 = vpop.f32.mrb[0].mxu0
    %v6642 = vadd.f32 %v6543, %v6641
    %v6643 = vpop.f32.mrb[0].mxu0
    %6644 = vmatprep.mubr.bf16.mxu0 %v1589
    %6645 = vmatmul.mubr.bf16.gmra.mrb[0].mxu0 %v1588
    %v6646 = vpop.f32.mrb[0].mxu0
    %v6647 = vadd.f32 %v6548, %v6646
    %v6648 = vpop.f32.mrb[0].mxu0
    %v6649 = vpop.f32.mrb[0].mxu0
    %v6650 = vadd.f32 %v6551, %v6649
    %v6651 = vpop.f32.mrb[0].mxu0
    %6652 = vmatprep.mubr.bf16.mxu0 %v1605
    %6653 = vmatmul.mubr.bf16.gmra.mrb[0].mxu0 %v1604
    %v6654 = vpop.f32.mrb[0].mxu0
    %v6655 = vadd.f32 %v6556, %v6654
    %v6656 = vpop.f32.mrb[0].mxu0
    %v6657 = vpop.f32.mrb[0].mxu0
    %v6658 = vadd.f32 %v6559, %v6657
    %v6659 = vpop.f32.mrb[0].mxu0
    %6660 = vdwg.mxu0
    %6661 = vmatprep.subr.bf16.mxu0 %v4347
    %6662 = vmatpush1.bf16.msra.mxu0 %v4346
    %6663 = vmatprep.subr.bf16.mxu0 %v4352
    %6664 = vmatpush1.bf16.msra.mxu0 %v4351
    %6665 = vmatprep.subr.bf16.mxu0 %v4357
    %6666 = vmatpush1.bf16.msra.mxu0 %v4356
    %6667 = vmatprep.subr.bf16.mxu0 %v4362
    %6668 = vmatpush1.bf16.msra.mxu0 %v4361
    %6669 = vmatprep.subr.bf16.mxu0 %v4367
    %6670 = vmatpush1.bf16.msra.mxu0 %v4366
    %6671 = vmatprep.subr.bf16.mxu0 %v4372
    %6672 = vmatpush1.bf16.msra.mxu0 %v4371
    %6673 = vmatprep.subr.bf16.mxu0 %v4377
    %6674 = vmatpush1.bf16.msra.mxu0 %v4376
    %6675 = vmatprep.subr.bf16.mxu0 %v4382
    %6676 = vmatpush1.bf16.msra.mxu0 %v4381
    %6677 = vmatprep.subr.bf16.mxu0 %v4387
    %6678 = vmatpush1.bf16.msra.mxu0 %v4386
    %6679 = vmatprep.subr.bf16.mxu0 %v4392
    %6680 = vmatpush1.bf16.msra.mxu0 %v4391
    %6681 = vmatprep.subr.bf16.mxu0 %v4397
    %6682 = vmatpush1.bf16.msra.mxu0 %v4396
    %6683 = vmatprep.subr.bf16.mxu0 %v4402
    %6684 = vmatpush1.bf16.msra.mxu0 %v4401
    %6685 = vmatprep.subr.bf16.mxu0 %v4407
    %6686 = vmatpush1.bf16.msra.mxu0 %v4406
    %6687 = vmatprep.subr.bf16.mxu0 %v4412
    %6688 = vmatpush1.bf16.msra.mxu0 %v4411
    %6689 = vmatprep.subr.bf16.mxu0 %v4417
    %6690 = vmatpush1.bf16.msra.mxu0 %v4416
    %6691 = vmatprep.subr.bf16.mxu0 %v4422
    %6692 = vmatpush1.bf16.msra.mxu0 %v4421
    %6693 = vmatprep.mubr.bf16.mxu0 %v1495
    %6694 = vmatmul.mubr.bf16.gmra.mrb[0].mxu0 %v1494
    %v6695 = vpop.f32.mrb[0].mxu0
    %v6696 = vadd.f32 %v6597, %v6695
    %v6697 = vpop.f32.mrb[0].mxu0
    %v6698 = vadd.f32 %v6599, %v6697
    %v6699 = vpop.f32.mrb[0].mxu0
    %v6700 = vadd.f32 %v6601, %v6699
    %v6701 = vpop.f32.mrb[0].mxu0
    %v6702 = vadd.f32 %v6603, %v6701
    %6703 = vmatprep.mubr.bf16.mxu0 %v1511
    %6704 = vmatmul.mubr.bf16.gmra.mrb[0].mxu0 %v1510
    %v6705 = vpop.f32.mrb[0].mxu0
    %v6706 = vadd.f32 %v6607, %v6705
    %v6707 = vpop.f32.mrb[0].mxu0
    %v6708 = vpop.f32.mrb[0].mxu0
    %v6709 = vadd.f32 %v6610, %v6708
    %v6710 = vpop.f32.mrb[0].mxu0
    %6711 = vmatprep.mubr.bf16.mxu0 %v1527
    %6712 = vmatmul.mubr.bf16.gmra.mrb[0].mxu0 %v1526
    %v6713 = vpop.f32.mrb[0].mxu0
    %v6714 = vadd.f32 %v6615, %v6713
    %v6715 = vpop.f32.mrb[0].mxu0
    %v6716 = vpop.f32.mrb[0].mxu0
    %v6717 = vadd.f32 %v6618, %v6716
    %v6718 = vpop.f32.mrb[0].mxu0
    %6719 = vmatprep.mubr.bf16.mxu0 %v1543
    %6720 = vmatmul.mubr.bf16.gmra.mrb[0].mxu0 %v1542
    %v6721 = vpop.f32.mrb[0].mxu0
    %v6722 = vadd.f32 %v6623, %v6721
    %v6723 = vpop.f32.mrb[0].mxu0
    %v6724 = vpop.f32.mrb[0].mxu0
    %v6725 = vadd.f32 %v6626, %v6724
    %v6726 = vpop.f32.mrb[0].mxu0
    %6727 = vmatprep.mubr.bf16.mxu0 %v1559
    %6728 = vmatmul.mubr.bf16.gmra.mrb[0].mxu0 %v1558
    %v6729 = vpop.f32.mrb[0].mxu0
    %v6730 = vadd.f32 %v6631, %v6729
    %v6731 = vpop.f32.mrb[0].mxu0
    %v6732 = vpop.f32.mrb[0].mxu0
    %v6733 = vadd.f32 %v6634, %v6732
    %v6734 = vpop.f32.mrb[0].mxu0
    %6735 = vmatprep.mubr.bf16.mxu0 %v1575
    %6736 = vmatmul.mubr.bf16.gmra.mrb[0].mxu0 %v1574
    %v6737 = vpop.f32.mrb[0].mxu0
    %v6738 = vadd.f32 %v6639, %v6737
    %v6739 = vpop.f32.mrb[0].mxu0
    %v6740 = vpop.f32.mrb[0].mxu0
    %v6741 = vadd.f32 %v6642, %v6740
    %v6742 = vpop.f32.mrb[0].mxu0
    %6743 = vmatprep.mubr.bf16.mxu0 %v1591
    %6744 = vmatmul.mubr.bf16.gmra.mrb[0].mxu0 %v1590
    %v6745 = vpop.f32.mrb[0].mxu0
    %v6746 = vadd.f32 %v6647, %v6745
    %v6747 = vpop.f32.mrb[0].mxu0
    %v6748 = vpop.f32.mrb[0].mxu0
    %v6749 = vadd.f32 %v6650, %v6748
    %v6750 = vpop.f32.mrb[0].mxu0
    %6751 = vmatprep.mubr.bf16.mxu0 %v1607
    %6752 = vmatmul.mubr.bf16.gmra.mrb[0].mxu0 %v1606
    %v6753 = vpop.f32.mrb[0].mxu0
    %v6754 = vadd.f32 %v6655, %v6753
    %v6755 = vpop.f32.mrb[0].mxu0
    %v6756 = vpop.f32.mrb[0].mxu0
    %v6757 = vadd.f32 %v6658, %v6756
    %v6758 = vpop.f32.mrb[0].mxu0
    %6759 = vdwg.mxu0
    %6760 = vmatprep.subr.bf16.mxu0 0
    %6761 = vmatpush1.bf16.msra.mxu0 %v3788
    %6762 = vmatprep.subr.bf16.mxu0 0
    %6763 = vmatpush1.bf16.msra.mxu0 %v3793
    %6764 = vmatprep.subr.bf16.mxu0 0
    %6765 = vmatpush1.bf16.msra.mxu0 %v3798
    %6766 = vmatprep.subr.bf16.mxu0 0
    %6767 = vmatpush1.bf16.msra.mxu0 %v3803
    %6768 = vmatprep.subr.bf16.mxu0 0
    %6769 = vmatpush1.bf16.msra.mxu0 %v3808
    %6770 = vmatprep.subr.bf16.mxu0 0
    %6771 = vmatpush1.bf16.msra.mxu0 %v3813
    %6772 = vmatprep.subr.bf16.mxu0 0
    %6773 = vmatpush1.bf16.msra.mxu0 %v3818
    %6774 = vmatprep.subr.bf16.mxu0 0
    %6775 = vmatpush1.bf16.msra.mxu0 %v3823
    %6776 = vmatprep.subr.bf16.mxu0 0
    %6777 = vmatpush1.bf16.msra.mxu0 %v3828
    %6778 = vmatprep.subr.bf16.mxu0 0
    %6779 = vmatpush1.bf16.msra.mxu0 %v3833
    %6780 = vmatprep.subr.bf16.mxu0 0
    %6781 = vmatpush1.bf16.msra.mxu0 %v3838
    %6782 = vmatprep.subr.bf16.mxu0 0
    %6783 = vmatpush1.bf16.msra.mxu0 %v3843
    %6784 = vmatprep.subr.bf16.mxu0 0
    %6785 = vmatpush1.bf16.msra.mxu0 %v3848
    %6786 = vmatprep.subr.bf16.mxu0 0
    %6787 = vmatpush1.bf16.msra.mxu0 %v3853
    %6788 = vmatprep.subr.bf16.mxu0 0
    %6789 = vmatpush1.bf16.msra.mxu0 %v3858
    %6790 = vmatprep.subr.bf16.mxu0 0
    %6791 = vmatpush1.bf16.msra.mxu0 %v3863
    %6792 = vmatprep.mubr.bf16.mxu0 %v1481
    %6793 = vmatmul.mubr.bf16.gmra.mrb[0].mxu0 %v1480
    %v6794 = vpop.f32.mrb[0].mxu0
    %v6795 = vadd.f32 %v1048, %v6794
    %v6796 = vpop.f32.mrb[0].mxu0
    %v6797 = vpop.f32.mrb[0].mxu0
    %v6798 = vadd.f32 %v1053, %v6797
    %v6799 = vpop.f32.mrb[0].mxu0
    %6800 = vmatprep.mubr.bf16.mxu0 %v1497
    %6801 = vmatmul.mubr.bf16.gmra.mrb[0].mxu0 %v1496
    %v6802 = vpop.f32.mrb[0].mxu0
    %v6803 = vpop.f32.mrb[0].mxu0
    %v6804 = vpop.f32.mrb[0].mxu0
    %v6805 = vpop.f32.mrb[0].mxu0
    %6806 = vmatprep.mubr.bf16.mxu0 %v1513
    %6807 = vmatmul.mubr.bf16.gmra.mrb[0].mxu0 %v1512
    %v6808 = vpop.f32.mrb[0].mxu0
    %v6809 = vpop.f32.mrb[0].mxu0
    %v6810 = vpop.f32.mrb[0].mxu0
    %v6811 = vpop.f32.mrb[0].mxu0
    %6812 = vmatprep.mubr.bf16.mxu0 %v1529
    %6813 = vmatmul.mubr.bf16.gmra.mrb[0].mxu0 %v1528
    %v6814 = vpop.f32.mrb[0].mxu0
    %v6815 = vpop.f32.mrb[0].mxu0
    %v6816 = vpop.f32.mrb[0].mxu0
    %v6817 = vpop.f32.mrb[0].mxu0
    %6818 = vmatprep.mubr.bf16.mxu0 %v1545
    %6819 = vmatmul.mubr.bf16.gmra.mrb[0].mxu0 %v1544
    %v6820 = vpop.f32.mrb[0].mxu0
    %v6821 = vpop.f32.mrb[0].mxu0
    %v6822 = vpop.f32.mrb[0].mxu0
    %v6823 = vpop.f32.mrb[0].mxu0
    %6824 = vmatprep.mubr.bf16.mxu0 %v1561
    %6825 = vmatmul.mubr.bf16.gmra.mrb[0].mxu0 %v1560
    %v6826 = vpop.f32.mrb[0].mxu0
    %v6827 = vpop.f32.mrb[0].mxu0
    %v6828 = vpop.f32.mrb[0].mxu0
    %v6829 = vpop.f32.mrb[0].mxu0
    %6830 = vmatprep.mubr.bf16.mxu0 %v1577
    %6831 = vmatmul.mubr.bf16.gmra.mrb[0].mxu0 %v1576
    %v6832 = vpop.f32.mrb[0].mxu0
    %v6833 = vpop.f32.mrb[0].mxu0
    %v6834 = vpop.f32.mrb[0].mxu0
    %v6835 = vpop.f32.mrb[0].mxu0
    %6836 = vmatprep.mubr.bf16.mxu0 %v1593
    %6837 = vmatmul.mubr.bf16.gmra.mrb[0].mxu0 %v1592
    %v6838 = vpop.f32.mrb[0].mxu0
    %v6839 = vpop.f32.mrb[0].mxu0
    %v6840 = vpop.f32.mrb[0].mxu0
    %v6841 = vpop.f32.mrb[0].mxu0
    %6842 = vdwg.mxu0
    %6843 = vmatprep.subr.bf16.mxu0 0
    %6844 = vmatpush1.bf16.msra.mxu0 %v3868
    %6845 = vmatprep.subr.bf16.mxu0 0
    %6846 = vmatpush1.bf16.msra.mxu0 %v3873
    %6847 = vmatprep.subr.bf16.mxu0 0
    %6848 = vmatpush1.bf16.msra.mxu0 %v3878
    %6849 = vmatprep.subr.bf16.mxu0 0
    %6850 = vmatpush1.bf16.msra.mxu0 %v3883
    %6851 = vmatprep.subr.bf16.mxu0 0
    %6852 = vmatpush1.bf16.msra.mxu0 %v3888
    %6853 = vmatprep.subr.bf16.mxu0 0
    %6854 = vmatpush1.bf16.msra.mxu0 %v3893
    %6855 = vmatprep.subr.bf16.mxu0 0
    %6856 = vmatpush1.bf16.msra.mxu0 %v3898
    %6857 = vmatprep.subr.bf16.mxu0 0
    %6858 = vmatpush1.bf16.msra.mxu0 %v3903
    %6859 = vmatprep.subr.bf16.mxu0 0
    %6860 = vmatpush1.bf16.msra.mxu0 %v3908
    %6861 = vmatprep.subr.bf16.mxu0 0
    %6862 = vmatpush1.bf16.msra.mxu0 %v3913
    %6863 = vmatprep.subr.bf16.mxu0 0
    %6864 = vmatpush1.bf16.msra.mxu0 %v3918
    %6865 = vmatprep.subr.bf16.mxu0 0
    %6866 = vmatpush1.bf16.msra.mxu0 %v3923
    %6867 = vmatprep.subr.bf16.mxu0 0
    %6868 = vmatpush1.bf16.msra.mxu0 %v3928
    %6869 = vmatprep.subr.bf16.mxu0 0
    %6870 = vmatpush1.bf16.msra.mxu0 %v3933
    %6871 = vmatprep.subr.bf16.mxu0 0
    %6872 = vmatpush1.bf16.msra.mxu0 %v3938
    %6873 = vmatprep.subr.bf16.mxu0 0
    %6874 = vmatpush1.bf16.msra.mxu0 %v3943
    %6875 = vmatprep.mubr.bf16.mxu0 %v1483
    %6876 = vmatmul.mubr.bf16.gmra.mrb[0].mxu0 %v1482
    %v6877 = vpop.f32.mrb[0].mxu0
    %v6878 = vadd.f32 %v6795, %v6877
    %v6879 = vpop.f32.mrb[0].mxu0
    %v6880 = vpop.f32.mrb[0].mxu0
    %v6881 = vadd.f32 %v6798, %v6880
    %v6882 = vpop.f32.mrb[0].mxu0
    %6883 = vmatprep.mubr.bf16.mxu0 %v1499
    %6884 = vmatmul.mubr.bf16.gmra.mrb[0].mxu0 %v1498
    %v6885 = vpop.f32.mrb[0].mxu0
    %v6886 = vpop.f32.mrb[0].mxu0
    %v6887 = vpop.f32.mrb[0].mxu0
    %v6888 = vpop.f32.mrb[0].mxu0
    %6889 = vmatprep.mubr.bf16.mxu0 %v1515
    %6890 = vmatmul.mubr.bf16.gmra.mrb[0].mxu0 %v1514
    %v6891 = vpop.f32.mrb[0].mxu0
    %v6892 = vpop.f32.mrb[0].mxu0
    %v6893 = vpop.f32.mrb[0].mxu0
    %v6894 = vpop.f32.mrb[0].mxu0
    %6895 = vmatprep.mubr.bf16.mxu0 %v1531
    %6896 = vmatmul.mubr.bf16.gmra.mrb[0].mxu0 %v1530
    %v6897 = vpop.f32.mrb[0].mxu0
    %v6898 = vpop.f32.mrb[0].mxu0
    %v6899 = vpop.f32.mrb[0].mxu0
    %v6900 = vpop.f32.mrb[0].mxu0
    %6901 = vmatprep.mubr.bf16.mxu0 %v1547
    %6902 = vmatmul.mubr.bf16.gmra.mrb[0].mxu0 %v1546
    %v6903 = vpop.f32.mrb[0].mxu0
    %v6904 = vpop.f32.mrb[0].mxu0
    %v6905 = vpop.f32.mrb[0].mxu0
    %v6906 = vpop.f32.mrb[0].mxu0
    %6907 = vmatprep.mubr.bf16.mxu0 %v1563
    %6908 = vmatmul.mubr.bf16.gmra.mrb[0].mxu0 %v1562
    %v6909 = vpop.f32.mrb[0].mxu0
    %v6910 = vpop.f32.mrb[0].mxu0
    %v6911 = vpop.f32.mrb[0].mxu0
    %v6912 = vpop.f32.mrb[0].mxu0
    %6913 = vmatprep.mubr.bf16.mxu0 %v1579
    %6914 = vmatmul.mubr.bf16.gmra.mrb[0].mxu0 %v1578
    %v6915 = vpop.f32.mrb[0].mxu0
    %v6916 = vpop.f32.mrb[0].mxu0
    %v6917 = vpop.f32.mrb[0].mxu0
    %v6918 = vpop.f32.mrb[0].mxu0
    %6919 = vmatprep.mubr.bf16.mxu0 %v1595
    %6920 = vmatmul.mubr.bf16.gmra.mrb[0].mxu0 %v1594
    %v6921 = vpop.f32.mrb[0].mxu0
    %v6922 = vpop.f32.mrb[0].mxu0
    %v6923 = vpop.f32.mrb[0].mxu0
    %v6924 = vpop.f32.mrb[0].mxu0
    %6925 = vdwg.mxu0
    %6926 = vmatprep.subr.bf16.mxu0 0
    %6927 = vmatpush1.bf16.msra.mxu0 %v3948
    %6928 = vmatprep.subr.bf16.mxu0 0
    %6929 = vmatpush1.bf16.msra.mxu0 %v3953
    %6930 = vmatprep.subr.bf16.mxu0 0
    %6931 = vmatpush1.bf16.msra.mxu0 %v3958
    %6932 = vmatprep.subr.bf16.mxu0 0
    %6933 = vmatpush1.bf16.msra.mxu0 %v3963
    %6934 = vmatprep.subr.bf16.mxu0 0
    %6935 = vmatpush1.bf16.msra.mxu0 %v3968
    %6936 = vmatprep.subr.bf16.mxu0 0
    %6937 = vmatpush1.bf16.msra.mxu0 %v3973
    %6938 = vmatprep.subr.bf16.mxu0 0
    %6939 = vmatpush1.bf16.msra.mxu0 %v3978
    %6940 = vmatprep.subr.bf16.mxu0 0
    %6941 = vmatpush1.bf16.msra.mxu0 %v3983
    %6942 = vmatprep.subr.bf16.mxu0 0
    %6943 = vmatpush1.bf16.msra.mxu0 %v3988
    %6944 = vmatprep.subr.bf16.mxu0 0
    %6945 = vmatpush1.bf16.msra.mxu0 %v3993
    %6946 = vmatprep.subr.bf16.mxu0 0
    %6947 = vmatpush1.bf16.msra.mxu0 %v3998
    %6948 = vmatprep.subr.bf16.mxu0 0
    %6949 = vmatpush1.bf16.msra.mxu0 %v4003
    %6950 = vmatprep.subr.bf16.mxu0 0
    %6951 = vmatpush1.bf16.msra.mxu0 %v4008
    %6952 = vmatprep.subr.bf16.mxu0 0
    %6953 = vmatpush1.bf16.msra.mxu0 %v4013
    %6954 = vmatprep.subr.bf16.mxu0 0
    %6955 = vmatpush1.bf16.msra.mxu0 %v4018
    %6956 = vmatprep.subr.bf16.mxu0 0
    %6957 = vmatpush1.bf16.msra.mxu0 %v4023
    %6958 = vmatprep.mubr.bf16.mxu0 %v1485
    %6959 = vmatmul.mubr.bf16.gmra.mrb[0].mxu0 %v1484
    %v6960 = vpop.f32.mrb[0].mxu0
    %v6961 = vadd.f32 %v6878, %v6960
    %v6962 = vpop.f32.mrb[0].mxu0
    %v6963 = vpop.f32.mrb[0].mxu0
    %v6964 = vadd.f32 %v6881, %v6963
    %v6965 = vpop.f32.mrb[0].mxu0
    %6966 = vmatprep.mubr.bf16.mxu0 %v1501
    %6967 = vmatmul.mubr.bf16.gmra.mrb[0].mxu0 %v1500
    %v6968 = vpop.f32.mrb[0].mxu0
    %v6969 = vpop.f32.mrb[0].mxu0
    %v6970 = vpop.f32.mrb[0].mxu0
    %v6971 = vpop.f32.mrb[0].mxu0
    %6972 = vmatprep.mubr.bf16.mxu0 %v1517
    %6973 = vmatmul.mubr.bf16.gmra.mrb[0].mxu0 %v1516
    %v6974 = vpop.f32.mrb[0].mxu0
    %v6975 = vpop.f32.mrb[0].mxu0
    %v6976 = vpop.f32.mrb[0].mxu0
    %v6977 = vpop.f32.mrb[0].mxu0
    %6978 = vmatprep.mubr.bf16.mxu0 %v1533
    %6979 = vmatmul.mubr.bf16.gmra.mrb[0].mxu0 %v1532
    %v6980 = vpop.f32.mrb[0].mxu0
    %v6981 = vpop.f32.mrb[0].mxu0
    %v6982 = vpop.f32.mrb[0].mxu0
    %v6983 = vpop.f32.mrb[0].mxu0
    %6984 = vmatprep.mubr.bf16.mxu0 %v1549
    %6985 = vmatmul.mubr.bf16.gmra.mrb[0].mxu0 %v1548
    %v6986 = vpop.f32.mrb[0].mxu0
    %v6987 = vpop.f32.mrb[0].mxu0
    %v6988 = vpop.f32.mrb[0].mxu0
    %v6989 = vpop.f32.mrb[0].mxu0
    %6990 = vmatprep.mubr.bf16.mxu0 %v1565
    %6991 = vmatmul.mubr.bf16.gmra.mrb[0].mxu0 %v1564
    %v6992 = vpop.f32.mrb[0].mxu0
    %v6993 = vpop.f32.mrb[0].mxu0
    %v6994 = vpop.f32.mrb[0].mxu0
    %v6995 = vpop.f32.mrb[0].mxu0
    %6996 = vmatprep.mubr.bf16.mxu0 %v1581
    %6997 = vmatmul.mubr.bf16.gmra.mrb[0].mxu0 %v1580
    %v6998 = vpop.f32.mrb[0].mxu0
    %v6999 = vpop.f32.mrb[0].mxu0
    %v7000 = vpop.f32.mrb[0].mxu0
    %v7001 = vpop.f32.mrb[0].mxu0
    %7002 = vmatprep.mubr.bf16.mxu0 %v1597
    %7003 = vmatmul.mubr.bf16.gmra.mrb[0].mxu0 %v1596
    %v7004 = vpop.f32.mrb[0].mxu0
    %v7005 = vpop.f32.mrb[0].mxu0
    %v7006 = vpop.f32.mrb[0].mxu0
    %v7007 = vpop.f32.mrb[0].mxu0
    %7008 = vdwg.mxu0
    %7009 = vmatprep.subr.bf16.mxu0 0
    %7010 = vmatpush1.bf16.msra.mxu0 %v4028
    %7011 = vmatprep.subr.bf16.mxu0 0
    %7012 = vmatpush1.bf16.msra.mxu0 %v4033
    %7013 = vmatprep.subr.bf16.mxu0 0
    %7014 = vmatpush1.bf16.msra.mxu0 %v4038
    %7015 = vmatprep.subr.bf16.mxu0 0
    %7016 = vmatpush1.bf16.msra.mxu0 %v4043
    %7017 = vmatprep.subr.bf16.mxu0 0
    %7018 = vmatpush1.bf16.msra.mxu0 %v4048
    %7019 = vmatprep.subr.bf16.mxu0 0
    %7020 = vmatpush1.bf16.msra.mxu0 %v4053
    %7021 = vmatprep.subr.bf16.mxu0 0
    %7022 = vmatpush1.bf16.msra.mxu0 %v4058
    %7023 = vmatprep.subr.bf16.mxu0 0
    %7024 = vmatpush1.bf16.msra.mxu0 %v4063
    %7025 = vmatprep.subr.bf16.mxu0 0
    %7026 = vmatpush1.bf16.msra.mxu0 %v4068
    %7027 = vmatprep.subr.bf16.mxu0 0
    %7028 = vmatpush1.bf16.msra.mxu0 %v4073
    %7029 = vmatprep.subr.bf16.mxu0 0
    %7030 = vmatpush1.bf16.msra.mxu0 %v4078
    %7031 = vmatprep.subr.bf16.mxu0 0
    %7032 = vmatpush1.bf16.msra.mxu0 %v4083
    %7033 = vmatprep.subr.bf16.mxu0 0
    %7034 = vmatpush1.bf16.msra.mxu0 %v4088
    %7035 = vmatprep.subr.bf16.mxu0 0
    %7036 = vmatpush1.bf16.msra.mxu0 %v4093
    %7037 = vmatprep.subr.bf16.mxu0 0
    %7038 = vmatpush1.bf16.msra.mxu0 %v4098
    %7039 = vmatprep.subr.bf16.mxu0 0
    %7040 = vmatpush1.bf16.msra.mxu0 %v4103
    %7041 = vmatprep.mubr.bf16.mxu0 %v1487
    %7042 = vmatmul.mubr.bf16.gmra.mrb[0].mxu0 %v1486
    %v7043 = vpop.f32.mrb[0].mxu0
    %v7044 = vadd.f32 %v6961, %v7043
    %v7045 = vpop.f32.mrb[0].mxu0
    %v7046 = vpop.f32.mrb[0].mxu0
    %v7047 = vadd.f32 %v6964, %v7046
    %v7048 = vpop.f32.mrb[0].mxu0
    %7049 = vmatprep.mubr.bf16.mxu0 %v1503
    %7050 = vmatmul.mubr.bf16.gmra.mrb[0].mxu0 %v1502
    %v7051 = vpop.f32.mrb[0].mxu0
    %v7052 = vpop.f32.mrb[0].mxu0
    %v7053 = vpop.f32.mrb[0].mxu0
    %v7054 = vpop.f32.mrb[0].mxu0
    %7055 = vmatprep.mubr.bf16.mxu0 %v1519
    %7056 = vmatmul.mubr.bf16.gmra.mrb[0].mxu0 %v1518
    %v7057 = vpop.f32.mrb[0].mxu0
    %v7058 = vpop.f32.mrb[0].mxu0
    %v7059 = vpop.f32.mrb[0].mxu0
    %v7060 = vpop.f32.mrb[0].mxu0
    %7061 = vmatprep.mubr.bf16.mxu0 %v1535
    %7062 = vmatmul.mubr.bf16.gmra.mrb[0].mxu0 %v1534
    %v7063 = vpop.f32.mrb[0].mxu0
    %v7064 = vpop.f32.mrb[0].mxu0
    %v7065 = vpop.f32.mrb[0].mxu0
    %v7066 = vpop.f32.mrb[0].mxu0
    %7067 = vmatprep.mubr.bf16.mxu0 %v1551
    %7068 = vmatmul.mubr.bf16.gmra.mrb[0].mxu0 %v1550
    %v7069 = vpop.f32.mrb[0].mxu0
    %v7070 = vpop.f32.mrb[0].mxu0
    %v7071 = vpop.f32.mrb[0].mxu0
    %v7072 = vpop.f32.mrb[0].mxu0
    %7073 = vmatprep.mubr.bf16.mxu0 %v1567
    %7074 = vmatmul.mubr.bf16.gmra.mrb[0].mxu0 %v1566
    %v7075 = vpop.f32.mrb[0].mxu0
    %v7076 = vpop.f32.mrb[0].mxu0
    %v7077 = vpop.f32.mrb[0].mxu0
    %v7078 = vpop.f32.mrb[0].mxu0
    %7079 = vmatprep.mubr.bf16.mxu0 %v1583
    %7080 = vmatmul.mubr.bf16.gmra.mrb[0].mxu0 %v1582
    %v7081 = vpop.f32.mrb[0].mxu0
    %v7082 = vpop.f32.mrb[0].mxu0
    %v7083 = vpop.f32.mrb[0].mxu0
    %v7084 = vpop.f32.mrb[0].mxu0
    %7085 = vmatprep.mubr.bf16.mxu0 %v1599
    %7086 = vmatmul.mubr.bf16.gmra.mrb[0].mxu0 %v1598
    %v7087 = vpop.f32.mrb[0].mxu0
    %v7088 = vpop.f32.mrb[0].mxu0
    %v7089 = vpop.f32.mrb[0].mxu0
    %v7090 = vpop.f32.mrb[0].mxu0
    %7091 = vdwg.mxu0
    %7092 = vmatprep.subr.bf16.mxu0 0
    %7093 = vmatpush1.bf16.msra.mxu0 %v4108
    %7094 = vmatprep.subr.bf16.mxu0 0
    %7095 = vmatpush1.bf16.msra.mxu0 %v4113
    %7096 = vmatprep.subr.bf16.mxu0 0
    %7097 = vmatpush1.bf16.msra.mxu0 %v4118
    %7098 = vmatprep.subr.bf16.mxu0 0
    %7099 = vmatpush1.bf16.msra.mxu0 %v4123
    %7100 = vmatprep.subr.bf16.mxu0 0
    %7101 = vmatpush1.bf16.msra.mxu0 %v4128
    %7102 = vmatprep.subr.bf16.mxu0 0
    %7103 = vmatpush1.bf16.msra.mxu0 %v4133
    %7104 = vmatprep.subr.bf16.mxu0 0
    %7105 = vmatpush1.bf16.msra.mxu0 %v4138
    %7106 = vmatprep.subr.bf16.mxu0 0
    %7107 = vmatpush1.bf16.msra.mxu0 %v4143
    %7108 = vmatprep.subr.bf16.mxu0 0
    %7109 = vmatpush1.bf16.msra.mxu0 %v4148
    %7110 = vmatprep.subr.bf16.mxu0 0
    %7111 = vmatpush1.bf16.msra.mxu0 %v4153
    %7112 = vmatprep.subr.bf16.mxu0 0
    %7113 = vmatpush1.bf16.msra.mxu0 %v4158
    %7114 = vmatprep.subr.bf16.mxu0 0
    %7115 = vmatpush1.bf16.msra.mxu0 %v4163
    %7116 = vmatprep.subr.bf16.mxu0 0
    %7117 = vmatpush1.bf16.msra.mxu0 %v4168
    %7118 = vmatprep.subr.bf16.mxu0 0
    %7119 = vmatpush1.bf16.msra.mxu0 %v4173
    %7120 = vmatprep.subr.bf16.mxu0 0
    %7121 = vmatpush1.bf16.msra.mxu0 %v4178
    %7122 = vmatprep.subr.bf16.mxu0 0
    %7123 = vmatpush1.bf16.msra.mxu0 %v4183
    %7124 = vmatprep.mubr.bf16.mxu0 %v1489
    %7125 = vmatmul.mubr.bf16.gmra.mrb[0].mxu0 %v1488
    %v7126 = vpop.f32.mrb[0].mxu0
    %v7127 = vadd.f32 %v7044, %v7126
    %v7128 = vpop.f32.mrb[0].mxu0
    %v7129 = vpop.f32.mrb[0].mxu0
    %v7130 = vadd.f32 %v7047, %v7129
    %v7131 = vpop.f32.mrb[0].mxu0
    %7132 = vmatprep.mubr.bf16.mxu0 %v1505
    %7133 = vmatmul.mubr.bf16.gmra.mrb[0].mxu0 %v1504
    %v7134 = vpop.f32.mrb[0].mxu0
    %v7135 = vpop.f32.mrb[0].mxu0
    %v7136 = vpop.f32.mrb[0].mxu0
    %v7137 = vpop.f32.mrb[0].mxu0
    %7138 = vmatprep.mubr.bf16.mxu0 %v1521
    %7139 = vmatmul.mubr.bf16.gmra.mrb[0].mxu0 %v1520
    %v7140 = vpop.f32.mrb[0].mxu0
    %v7141 = vpop.f32.mrb[0].mxu0
    %v7142 = vpop.f32.mrb[0].mxu0
    %v7143 = vpop.f32.mrb[0].mxu0
    %7144 = vmatprep.mubr.bf16.mxu0 %v1537
    %7145 = vmatmul.mubr.bf16.gmra.mrb[0].mxu0 %v1536
    %v7146 = vpop.f32.mrb[0].mxu0
    %v7147 = vpop.f32.mrb[0].mxu0
    %v7148 = vpop.f32.mrb[0].mxu0
    %v7149 = vpop.f32.mrb[0].mxu0
    %7150 = vmatprep.mubr.bf16.mxu0 %v1553
    %7151 = vmatmul.mubr.bf16.gmra.mrb[0].mxu0 %v1552
    %v7152 = vpop.f32.mrb[0].mxu0
    %v7153 = vpop.f32.mrb[0].mxu0
    %v7154 = vpop.f32.mrb[0].mxu0
    %v7155 = vpop.f32.mrb[0].mxu0
    %7156 = vmatprep.mubr.bf16.mxu0 %v1569
    %7157 = vmatmul.mubr.bf16.gmra.mrb[0].mxu0 %v1568
    %v7158 = vpop.f32.mrb[0].mxu0
    %v7159 = vpop.f32.mrb[0].mxu0
    %v7160 = vpop.f32.mrb[0].mxu0
    %v7161 = vpop.f32.mrb[0].mxu0
    %7162 = vmatprep.mubr.bf16.mxu0 %v1585
    %7163 = vmatmul.mubr.bf16.gmra.mrb[0].mxu0 %v1584
    %v7164 = vpop.f32.mrb[0].mxu0
    %v7165 = vpop.f32.mrb[0].mxu0
    %v7166 = vpop.f32.mrb[0].mxu0
    %v7167 = vpop.f32.mrb[0].mxu0
    %7168 = vmatprep.mubr.bf16.mxu0 %v1601
    %7169 = vmatmul.mubr.bf16.gmra.mrb[0].mxu0 %v1600
    %v7170 = vpop.f32.mrb[0].mxu0
    %v7171 = vpop.f32.mrb[0].mxu0
    %v7172 = vpop.f32.mrb[0].mxu0
    %v7173 = vpop.f32.mrb[0].mxu0
    %7174 = vdwg.mxu0
    %7175 = vmatprep.subr.bf16.mxu0 0
    %7176 = vmatpush1.bf16.msra.mxu0 %v4188
    %7177 = vmatprep.subr.bf16.mxu0 0
    %7178 = vmatpush1.bf16.msra.mxu0 %v4193
    %7179 = vmatprep.subr.bf16.mxu0 0
    %7180 = vmatpush1.bf16.msra.mxu0 %v4198
    %7181 = vmatprep.subr.bf16.mxu0 0
    %7182 = vmatpush1.bf16.msra.mxu0 %v4203
    %7183 = vmatprep.subr.bf16.mxu0 0
    %7184 = vmatpush1.bf16.msra.mxu0 %v4208
    %7185 = vmatprep.subr.bf16.mxu0 0
    %7186 = vmatpush1.bf16.msra.mxu0 %v4213
    %7187 = vmatprep.subr.bf16.mxu0 0
    %7188 = vmatpush1.bf16.msra.mxu0 %v4218
    %7189 = vmatprep.subr.bf16.mxu0 0
    %7190 = vmatpush1.bf16.msra.mxu0 %v4223
    %7191 = vmatprep.subr.bf16.mxu0 0
    %7192 = vmatpush1.bf16.msra.mxu0 %v4228
    %7193 = vmatprep.subr.bf16.mxu0 0
    %7194 = vmatpush1.bf16.msra.mxu0 %v4233
    %7195 = vmatprep.subr.bf16.mxu0 0
    %7196 = vmatpush1.bf16.msra.mxu0 %v4238
    %7197 = vmatprep.subr.bf16.mxu0 0
    %7198 = vmatpush1.bf16.msra.mxu0 %v4243
    %7199 = vmatprep.subr.bf16.mxu0 0
    %7200 = vmatpush1.bf16.msra.mxu0 %v4248
    %7201 = vmatprep.subr.bf16.mxu0 0
    %7202 = vmatpush1.bf16.msra.mxu0 %v4253
    %7203 = vmatprep.subr.bf16.mxu0 0
    %7204 = vmatpush1.bf16.msra.mxu0 %v4258
    %7205 = vmatprep.subr.bf16.mxu0 0
    %7206 = vmatpush1.bf16.msra.mxu0 %v4263
    %7207 = vmatprep.mubr.bf16.mxu0 %v1491
    %7208 = vmatmul.mubr.bf16.gmra.mrb[0].mxu0 %v1490
    %v7209 = vpop.f32.mrb[0].mxu0
    %v7210 = vadd.f32 %v7127, %v7209
    %v7211 = vpop.f32.mrb[0].mxu0
    %v7212 = vpop.f32.mrb[0].mxu0
    %v7213 = vadd.f32 %v7130, %v7212
    %v7214 = vpop.f32.mrb[0].mxu0
    %7215 = vmatprep.mubr.bf16.mxu0 %v1507
    %7216 = vmatmul.mubr.bf16.gmra.mrb[0].mxu0 %v1506
    %v7217 = vpop.f32.mrb[0].mxu0
    %v7218 = vpop.f32.mrb[0].mxu0
    %v7219 = vpop.f32.mrb[0].mxu0
    %v7220 = vpop.f32.mrb[0].mxu0
    %7221 = vmatprep.mubr.bf16.mxu0 %v1523
    %7222 = vmatmul.mubr.bf16.gmra.mrb[0].mxu0 %v1522
    %v7223 = vpop.f32.mrb[0].mxu0
    %v7224 = vpop.f32.mrb[0].mxu0
    %v7225 = vpop.f32.mrb[0].mxu0
    %v7226 = vpop.f32.mrb[0].mxu0
    %7227 = vmatprep.mubr.bf16.mxu0 %v1539
    %7228 = vmatmul.mubr.bf16.gmra.mrb[0].mxu0 %v1538
    %v7229 = vpop.f32.mrb[0].mxu0
    %v7230 = vpop.f32.mrb[0].mxu0
    %v7231 = vpop.f32.mrb[0].mxu0
    %v7232 = vpop.f32.mrb[0].mxu0
    %7233 = vmatprep.mubr.bf16.mxu0 %v1555
    %7234 = vmatmul.mubr.bf16.gmra.mrb[0].mxu0 %v1554
    %v7235 = vpop.f32.mrb[0].mxu0
    %v7236 = vpop.f32.mrb[0].mxu0
    %v7237 = vpop.f32.mrb[0].mxu0
    %v7238 = vpop.f32.mrb[0].mxu0
    %7239 = vmatprep.mubr.bf16.mxu0 %v1571
    %7240 = vmatmul.mubr.bf16.gmra.mrb[0].mxu0 %v1570
    %v7241 = vpop.f32.mrb[0].mxu0
    %v7242 = vpop.f32.mrb[0].mxu0
    %v7243 = vpop.f32.mrb[0].mxu0
    %v7244 = vpop.f32.mrb[0].mxu0
    %7245 = vmatprep.mubr.bf16.mxu0 %v1587
    %7246 = vmatmul.mubr.bf16.gmra.mrb[0].mxu0 %v1586
    %v7247 = vpop.f32.mrb[0].mxu0
    %v7248 = vpop.f32.mrb[0].mxu0
    %v7249 = vpop.f32.mrb[0].mxu0
    %v7250 = vpop.f32.mrb[0].mxu0
    %7251 = vmatprep.mubr.bf16.mxu0 %v1603
    %7252 = vmatmul.mubr.bf16.gmra.mrb[0].mxu0 %v1602
    %v7253 = vpop.f32.mrb[0].mxu0
    %v7254 = vpop.f32.mrb[0].mxu0
    %v7255 = vpop.f32.mrb[0].mxu0
    %v7256 = vpop.f32.mrb[0].mxu0
    %7257 = vdwg.mxu0
    %7258 = vmatprep.subr.bf16.mxu0 0
    %7259 = vmatpush1.bf16.msra.mxu0 %v4268
    %7260 = vmatprep.subr.bf16.mxu0 0
    %7261 = vmatpush1.bf16.msra.mxu0 %v4273
    %7262 = vmatprep.subr.bf16.mxu0 0
    %7263 = vmatpush1.bf16.msra.mxu0 %v4278
    %7264 = vmatprep.subr.bf16.mxu0 0
    %7265 = vmatpush1.bf16.msra.mxu0 %v4283
    %7266 = vmatprep.subr.bf16.mxu0 0
    %7267 = vmatpush1.bf16.msra.mxu0 %v4288
    %7268 = vmatprep.subr.bf16.mxu0 0
    %7269 = vmatpush1.bf16.msra.mxu0 %v4293
    %7270 = vmatprep.subr.bf16.mxu0 0
    %7271 = vmatpush1.bf16.msra.mxu0 %v4298
    %7272 = vmatprep.subr.bf16.mxu0 0
    %7273 = vmatpush1.bf16.msra.mxu0 %v4303
    %7274 = vmatprep.subr.bf16.mxu0 0
    %7275 = vmatpush1.bf16.msra.mxu0 %v4308
    %7276 = vmatprep.subr.bf16.mxu0 0
    %7277 = vmatpush1.bf16.msra.mxu0 %v4313
    %7278 = vmatprep.subr.bf16.mxu0 0
    %7279 = vmatpush1.bf16.msra.mxu0 %v4318
    %7280 = vmatprep.subr.bf16.mxu0 0
    %7281 = vmatpush1.bf16.msra.mxu0 %v4323
    %7282 = vmatprep.subr.bf16.mxu0 0
    %7283 = vmatpush1.bf16.msra.mxu0 %v4328
    %7284 = vmatprep.subr.bf16.mxu0 0
    %7285 = vmatpush1.bf16.msra.mxu0 %v4333
    %7286 = vmatprep.subr.bf16.mxu0 0
    %7287 = vmatpush1.bf16.msra.mxu0 %v4338
    %7288 = vmatprep.subr.bf16.mxu0 0
    %7289 = vmatpush1.bf16.msra.mxu0 %v4343
    %7290 = vmatprep.mubr.bf16.mxu0 %v1493
    %7291 = vmatmul.mubr.bf16.gmra.mrb[0].mxu0 %v1492
    %v7292 = vpop.f32.mrb[0].mxu0
    %v7293 = vadd.f32 %v7210, %v7292
    %v7294 = vpop.f32.mrb[0].mxu0
    %v7295 = vpop.f32.mrb[0].mxu0
    %v7296 = vadd.f32 %v7213, %v7295
    %v7297 = vpop.f32.mrb[0].mxu0
    %7298 = vmatprep.mubr.bf16.mxu0 %v1509
    %7299 = vmatmul.mubr.bf16.gmra.mrb[0].mxu0 %v1508
    %v7300 = vpop.f32.mrb[0].mxu0
    %v7301 = vpop.f32.mrb[0].mxu0
    %v7302 = vpop.f32.mrb[0].mxu0
    %v7303 = vpop.f32.mrb[0].mxu0
    %7304 = vmatprep.mubr.bf16.mxu0 %v1525
    %7305 = vmatmul.mubr.bf16.gmra.mrb[0].mxu0 %v1524
    %v7306 = vpop.f32.mrb[0].mxu0
    %v7307 = vpop.f32.mrb[0].mxu0
    %v7308 = vpop.f32.mrb[0].mxu0
    %v7309 = vpop.f32.mrb[0].mxu0
    %7310 = vmatprep.mubr.bf16.mxu0 %v1541
    %7311 = vmatmul.mubr.bf16.gmra.mrb[0].mxu0 %v1540
    %v7312 = vpop.f32.mrb[0].mxu0
    %v7313 = vpop.f32.mrb[0].mxu0
    %v7314 = vpop.f32.mrb[0].mxu0
    %v7315 = vpop.f32.mrb[0].mxu0
    %7316 = vmatprep.mubr.bf16.mxu0 %v1557
    %7317 = vmatmul.mubr.bf16.gmra.mrb[0].mxu0 %v1556
    %v7318 = vpop.f32.mrb[0].mxu0
    %v7319 = vpop.f32.mrb[0].mxu0
    %v7320 = vpop.f32.mrb[0].mxu0
    %v7321 = vpop.f32.mrb[0].mxu0
    %7322 = vmatprep.mubr.bf16.mxu0 %v1573
    %7323 = vmatmul.mubr.bf16.gmra.mrb[0].mxu0 %v1572
    %v7324 = vpop.f32.mrb[0].mxu0
    %v7325 = vpop.f32.mrb[0].mxu0
    %v7326 = vpop.f32.mrb[0].mxu0
    %v7327 = vpop.f32.mrb[0].mxu0
    %7328 = vmatprep.mubr.bf16.mxu0 %v1589
    %7329 = vmatmul.mubr.bf16.gmra.mrb[0].mxu0 %v1588
    %v7330 = vpop.f32.mrb[0].mxu0
    %v7331 = vpop.f32.mrb[0].mxu0
    %v7332 = vpop.f32.mrb[0].mxu0
    %v7333 = vpop.f32.mrb[0].mxu0
    %7334 = vmatprep.mubr.bf16.mxu0 %v1605
    %7335 = vmatmul.mubr.bf16.gmra.mrb[0].mxu0 %v1604
    %v7336 = vpop.f32.mrb[0].mxu0
    %v7337 = vpop.f32.mrb[0].mxu0
    %v7338 = vpop.f32.mrb[0].mxu0
    %v7339 = vpop.f32.mrb[0].mxu0
    %7340 = vdwg.mxu0
    %7341 = vmatprep.subr.bf16.mxu0 0
    %7342 = vmatpush1.bf16.msra.mxu0 %v4348
    %7343 = vmatprep.subr.bf16.mxu0 0
    %7344 = vmatpush1.bf16.msra.mxu0 %v4353
    %7345 = vmatprep.subr.bf16.mxu0 0
    %7346 = vmatpush1.bf16.msra.mxu0 %v4358
    %7347 = vmatprep.subr.bf16.mxu0 0
    %7348 = vmatpush1.bf16.msra.mxu0 %v4363
    %7349 = vmatprep.subr.bf16.mxu0 0
    %7350 = vmatpush1.bf16.msra.mxu0 %v4368
    %7351 = vmatprep.subr.bf16.mxu0 0
    %7352 = vmatpush1.bf16.msra.mxu0 %v4373
    %7353 = vmatprep.subr.bf16.mxu0 0
    %7354 = vmatpush1.bf16.msra.mxu0 %v4378
    %7355 = vmatprep.subr.bf16.mxu0 0
    %7356 = vmatpush1.bf16.msra.mxu0 %v4383
    %7357 = vmatprep.subr.bf16.mxu0 0
    %7358 = vmatpush1.bf16.msra.mxu0 %v4388
    %7359 = vmatprep.subr.bf16.mxu0 0
    %7360 = vmatpush1.bf16.msra.mxu0 %v4393
    %7361 = vmatprep.subr.bf16.mxu0 0
    %7362 = vmatpush1.bf16.msra.mxu0 %v4398
    %7363 = vmatprep.subr.bf16.mxu0 0
    %7364 = vmatpush1.bf16.msra.mxu0 %v4403
    %7365 = vmatprep.subr.bf16.mxu0 0
    %7366 = vmatpush1.bf16.msra.mxu0 %v4408
    %7367 = vmatprep.subr.bf16.mxu0 0
    %7368 = vmatpush1.bf16.msra.mxu0 %v4413
    %7369 = vmatprep.subr.bf16.mxu0 0
    %7370 = vmatpush1.bf16.msra.mxu0 %v4418
    %7371 = vmatprep.subr.bf16.mxu0 0
    %7372 = vmatpush1.bf16.msra.mxu0 %v4423
    %7373 = vmatprep.mubr.bf16.mxu0 %v1495
    %7374 = vmatmul.mubr.bf16.gmra.mrb[0].mxu0 %v1494
    %v7375 = vpop.f32.mrb[0].mxu0
    %v7376 = vadd.f32 %v7293, %v7375
    %v7377 = vpop.f32.mrb[0].mxu0
    %v7378 = vpop.f32.mrb[0].mxu0
    %v7379 = vadd.f32 %v7296, %v7378
    %v7380 = vpop.f32.mrb[0].mxu0
    %7381 = vmatprep.mubr.bf16.mxu0 %v1511
    %7382 = vmatmul.mubr.bf16.gmra.mrb[0].mxu0 %v1510
    %v7383 = vpop.f32.mrb[0].mxu0
    %v7384 = vpop.f32.mrb[0].mxu0
    %v7385 = vpop.f32.mrb[0].mxu0
    %v7386 = vpop.f32.mrb[0].mxu0
    %7387 = vmatprep.mubr.bf16.mxu0 %v1527
    %7388 = vmatmul.mubr.bf16.gmra.mrb[0].mxu0 %v1526
    %v7389 = vpop.f32.mrb[0].mxu0
    %v7390 = vpop.f32.mrb[0].mxu0
    %v7391 = vpop.f32.mrb[0].mxu0
    %v7392 = vpop.f32.mrb[0].mxu0
    %7393 = vmatprep.mubr.bf16.mxu0 %v1543
    %7394 = vmatmul.mubr.bf16.gmra.mrb[0].mxu0 %v1542
    %v7395 = vpop.f32.mrb[0].mxu0
    %v7396 = vpop.f32.mrb[0].mxu0
    %v7397 = vpop.f32.mrb[0].mxu0
    %v7398 = vpop.f32.mrb[0].mxu0
    %7399 = vmatprep.mubr.bf16.mxu0 %v1559
    %7400 = vmatmul.mubr.bf16.gmra.mrb[0].mxu0 %v1558
    %v7401 = vpop.f32.mrb[0].mxu0
    %v7402 = vpop.f32.mrb[0].mxu0
    %v7403 = vpop.f32.mrb[0].mxu0
    %v7404 = vpop.f32.mrb[0].mxu0
    %7405 = vmatprep.mubr.bf16.mxu0 %v1575
    %7406 = vmatmul.mubr.bf16.gmra.mrb[0].mxu0 %v1574
    %v7407 = vpop.f32.mrb[0].mxu0
    %v7408 = vpop.f32.mrb[0].mxu0
    %v7409 = vpop.f32.mrb[0].mxu0
    %v7410 = vpop.f32.mrb[0].mxu0
    %7411 = vmatprep.mubr.bf16.mxu0 %v1591
    %7412 = vmatmul.mubr.bf16.gmra.mrb[0].mxu0 %v1590
    %v7413 = vpop.f32.mrb[0].mxu0
    %v7414 = vpop.f32.mrb[0].mxu0
    %v7415 = vpop.f32.mrb[0].mxu0
    %v7416 = vpop.f32.mrb[0].mxu0
    %7417 = vmatprep.mubr.bf16.mxu0 %v1607
    %7418 = vmatmul.mubr.bf16.gmra.mrb[0].mxu0 %v1606
    %v7419 = vpop.f32.mrb[0].mxu0
    %v7420 = vpop.f32.mrb[0].mxu0
    %v7421 = vpop.f32.mrb[0].mxu0
    %v7422 = vpop.f32.mrb[0].mxu0
    %7423 = vdwg.mxu0
    %v7424 = vpack.c.bf16 %v5894, %v5890
    %v7425 = vpack.c.bf16 %v5904, %v5900
    %v7426 = vpack.c.bf16 %v5914, %v5910
    %v7427 = vpack.c.bf16 %v5924, %v5920
    %v7428 = vpack.c.bf16 %v5934, %v5930
    %v7429 = vpack.c.bf16 %v5944, %v5940
    %v7430 = vpack.c.bf16 %v5954, %v5950
    %v7431 = vpack.c.bf16 %v5964, %v5960
    %v7432 = vpack.c.bf16 %v5896, %v5892
    %v7433 = vpack.c.bf16 %v5906, %v5902
    %v7434 = vpack.c.bf16 %v5916, %v5912
    %v7435 = vpack.c.bf16 %v5926, %v5922
    %v7436 = vpack.c.bf16 %v5936, %v5932
    %v7437 = vpack.c.bf16 %v5946, %v5942
    %v7438 = vpack.c.bf16 %v5956, %v5952
    %v7439 = vpack.c.bf16 %v5966, %v5962
    %v7440 = vpack.c.bf16 %v6700, %v6696
    %v7441 = vpack.c.bf16 %v6709, %v6706
    %v7442 = vpack.c.bf16 %v6717, %v6714
    %v7443 = vpack.c.bf16 %v6725, %v6722
    %v7444 = vpack.c.bf16 %v6733, %v6730
    %v7445 = vpack.c.bf16 %v6741, %v6738
    %v7446 = vpack.c.bf16 %v6749, %v6746
    %v7447 = vpack.c.bf16 %v6757, %v6754
    %v7448 = vld [vmem:[#allocation5] sm:$0xff]
    %v7449 = vld [vmem:[#allocation5 + $0x8] sm:$0xff]
    %v7450 = vld [vmem:[#allocation5 + $0x10] sm:$0xff]
    %v7451 = vld [vmem:[#allocation5 + $0x18] sm:$0xff]
    %v7452 = vld [vmem:[#allocation5 + $0x20] sm:$0xff]
    %v7453 = vld [vmem:[#allocation5 + $0x28] sm:$0xff]
    %v7454 = vld [vmem:[#allocation5 + $0x30] sm:$0xff]
    %v7455 = vld [vmem:[#allocation5 + $0x38] sm:$0xff]
    %v7456 = vld [vmem:[#allocation5 + $0x40] sm:$0xff]
    %v7457 = vld [vmem:[#allocation5 + $0x48] sm:$0xff]
    %v7458 = vld [vmem:[#allocation5 + $0x50] sm:$0xff]
    %v7459 = vld [vmem:[#allocation5 + $0x58] sm:$0xff]
    %v7460 = vld [vmem:[#allocation5 + $0x60] sm:$0xff]
    %v7461 = vld [vmem:[#allocation5 + $0x68] sm:$0xff]
    %v7462 = vld [vmem:[#allocation5 + $0x70] sm:$0xff]
    %v7463 = vld [vmem:[#allocation5 + $0x78] sm:$0xff]
    %7464 = vmatprep.subr.bf16.mxu0 0
    %7465 = vmatpush1.bf16.xpose.msra.mxu0 %v7432
    %7466 = vmatprep.subr.bf16.mxu0 0
    %7467 = vmatpush1.bf16.xpose.msra.mxu0 %v7433
    %7468 = vmatprep.subr.bf16.mxu0 0
    %7469 = vmatpush1.bf16.xpose.msra.mxu0 %v7434
    %7470 = vmatprep.subr.bf16.mxu0 0
    %7471 = vmatpush1.bf16.xpose.msra.mxu0 %v7435
    %7472 = vmatprep.subr.bf16.mxu0 0
    %7473 = vmatpush1.bf16.xpose.msra.mxu0 %v7436
    %7474 = vmatprep.subr.bf16.mxu0 0
    %7475 = vmatpush1.bf16.xpose.msra.mxu0 %v7437
    %7476 = vmatprep.subr.bf16.mxu0 0
    %7477 = vmatpush1.bf16.xpose.msra.mxu0 %v7438
    %7478 = vmatprep.subr.bf16.mxu0 0
    %7479 = vmatpush1.bf16.xpose.msra.mxu0 %v7439
    %7480 = vmatprep.subr.bf16.mxu0 0
    %7481 = vmatpush1.bf16.xpose.msra.mxu0 0
    %7482 = vmatprep.subr.bf16.mxu0 0
    %7483 = vmatpush1.bf16.xpose.msra.mxu0 0
    %7484 = vmatprep.subr.bf16.mxu0 0
    %7485 = vmatpush1.bf16.xpose.msra.mxu0 0
    %7486 = vmatprep.subr.bf16.mxu0 0
    %7487 = vmatpush1.bf16.xpose.msra.mxu0 0
    %7488 = vmatprep.subr.bf16.mxu0 0
    %7489 = vmatpush1.bf16.xpose.msra.mxu0 0
    %7490 = vmatprep.subr.bf16.mxu0 0
    %7491 = vmatpush1.bf16.xpose.msra.mxu0 0
    %7492 = vmatprep.subr.bf16.mxu0 0
    %7493 = vmatpush1.bf16.xpose.msra.mxu0 0
    %7494 = vmatprep.subr.bf16.mxu0 0
    %7495 = vmatpush1.bf16.xpose.msra.mxu0 0
    %7496 = vmatprep.mubr.bf16.mxu0 0
    %7497 = vmatmul.mubr.bf16.gmra.mrb[0].mxu0 %v7424
    %v7498 = vpop.f32.mrb[0].mxu0
    %v7499 = vadd.f32 %v7448, %v7498
    %v7500 = vpop.f32.mrb[0].mxu0
    %v7501 = vpop.f32.mrb[0].mxu0
    %v7502 = vadd.f32 %v7449, %v7501
    %v7503 = vpop.f32.mrb[0].mxu0
    %7504 = vmatprep.mubr.bf16.mxu0 0
    %7505 = vmatmul.mubr.bf16.gmra.mrb[0].mxu0 %v7425
    %v7506 = vpop.f32.mrb[0].mxu0
    %v7507 = vadd.f32 %v7450, %v7506
    %v7508 = vpop.f32.mrb[0].mxu0
    %v7509 = vpop.f32.mrb[0].mxu0
    %v7510 = vadd.f32 %v7451, %v7509
    %v7511 = vpop.f32.mrb[0].mxu0
    %7512 = vmatprep.mubr.bf16.mxu0 0
    %7513 = vmatmul.mubr.bf16.gmra.mrb[0].mxu0 %v7426
    %v7514 = vpop.f32.mrb[0].mxu0
    %v7515 = vadd.f32 %v7452, %v7514
    %v7516 = vpop.f32.mrb[0].mxu0
    %v7517 = vpop.f32.mrb[0].mxu0
    %v7518 = vadd.f32 %v7453, %v7517
    %v7519 = vpop.f32.mrb[0].mxu0
    %7520 = vmatprep.mubr.bf16.mxu0 0
    %7521 = vmatmul.mubr.bf16.gmra.mrb[0].mxu0 %v7427
    %v7522 = vpop.f32.mrb[0].mxu0
    %v7523 = vadd.f32 %v7454, %v7522
    %v7524 = vpop.f32.mrb[0].mxu0
    %v7525 = vpop.f32.mrb[0].mxu0
    %v7526 = vadd.f32 %v7455, %v7525
    %v7527 = vpop.f32.mrb[0].mxu0
    %7528 = vmatprep.mubr.bf16.mxu0 0
    %7529 = vmatmul.mubr.bf16.gmra.mrb[0].mxu0 %v7428
    %v7530 = vpop.f32.mrb[0].mxu0
    %v7531 = vadd.f32 %v7456, %v7530
    %v7532 = vpop.f32.mrb[0].mxu0
    %v7533 = vpop.f32.mrb[0].mxu0
    %v7534 = vadd.f32 %v7457, %v7533
    %v7535 = vpop.f32.mrb[0].mxu0
    %7536 = vmatprep.mubr.bf16.mxu0 0
    %7537 = vmatmul.mubr.bf16.gmra.mrb[0].mxu0 %v7429
    %v7538 = vpop.f32.mrb[0].mxu0
    %v7539 = vadd.f32 %v7458, %v7538
    %v7540 = vpop.f32.mrb[0].mxu0
    %v7541 = vpop.f32.mrb[0].mxu0
    %v7542 = vadd.f32 %v7459, %v7541
    %v7543 = vpop.f32.mrb[0].mxu0
    %7544 = vmatprep.mubr.bf16.mxu0 0
    %7545 = vmatmul.mubr.bf16.gmra.mrb[0].mxu0 %v7430
    %v7546 = vpop.f32.mrb[0].mxu0
    %v7547 = vadd.f32 %v7460, %v7546
    %v7548 = vpop.f32.mrb[0].mxu0
    %v7549 = vpop.f32.mrb[0].mxu0
    %v7550 = vadd.f32 %v7461, %v7549
    %v7551 = vpop.f32.mrb[0].mxu0
    %7552 = vmatprep.mubr.bf16.mxu0 0
    %7553 = vmatmul.mubr.bf16.gmra.mrb[0].mxu0 %v7431
    %v7554 = vpop.f32.mrb[0].mxu0
    %v7555 = vadd.f32 %v7462, %v7554
    %v7556 = vpop.f32.mrb[0].mxu0
    %v7557 = vpop.f32.mrb[0].mxu0
    %v7558 = vadd.f32 %v7463, %v7557
    %v7559 = vpop.f32.mrb[0].mxu0
    %7560 = vdwg.mxu0
    %7561 = vmax.xlane.f32.xlu0 %v7499
    %v7562 = vpop.xlane.xlu0 %7561
    %7563 = vmax.xlane.f32.xlu0 %v7502
    %v7564 = vpop.xlane.xlu0 %7563
    %7565 = vmax.xlane.f32.xlu0 %v7507
    %v7566 = vpop.xlane.xlu0 %7565
    %7567 = vmax.xlane.f32.xlu0 %v7510
    %v7568 = vpop.xlane.xlu0 %7567
    %7569 = vmax.xlane.f32.xlu0 %v7515
    %v7570 = vpop.xlane.xlu0 %7569
    %7571 = vmax.xlane.f32.xlu0 %v7518
    %v7572 = vpop.xlane.xlu0 %7571
    %7573 = vmax.xlane.f32.xlu0 %v7523
    %v7574 = vpop.xlane.xlu0 %7573
    %7575 = vmax.xlane.f32.xlu0 %v7526
    %v7576 = vpop.xlane.xlu0 %7575
    %7577 = vmax.xlane.f32.xlu0 %v7531
    %v7578 = vpop.xlane.xlu0 %7577
    %7579 = vmax.xlane.f32.xlu0 %v7534
    %v7580 = vpop.xlane.xlu0 %7579
    %7581 = vmax.xlane.f32.xlu0 %v7539
    %v7582 = vpop.xlane.xlu0 %7581
    %7583 = vmax.xlane.f32.xlu0 %v7542
    %v7584 = vpop.xlane.xlu0 %7583
    %7585 = vmax.xlane.f32.xlu0 %v7547
    %v7586 = vpop.xlane.xlu0 %7585
    %7587 = vmax.xlane.f32.xlu0 %v7550
    %v7588 = vpop.xlane.xlu0 %7587
    %7589 = vmax.xlane.f32.xlu0 %v7555
    %v7590 = vpop.xlane.xlu0 %7589
    %7591 = vmax.xlane.f32.xlu0 %v7558
    %v7592 = vpop.xlane.xlu0 %7591
    %v7593 = vmax.f32 %v7562, -5e+29
    %v7594 = vmax.f32 %v7564, -5e+29
    %v7595 = vmax.f32 %v7566, -5e+29
    %v7596 = vmax.f32 %v7568, -5e+29
    %v7597 = vmax.f32 %v7570, -5e+29
    %v7598 = vmax.f32 %v7572, -5e+29
    %v7599 = vmax.f32 %v7574, -5e+29
    %v7600 = vmax.f32 %v7576, -5e+29
    %v7601 = vmax.f32 %v7578, -5e+29
    %v7602 = vmax.f32 %v7580, -5e+29
    %v7603 = vmax.f32 %v7582, -5e+29
    %v7604 = vmax.f32 %v7584, -5e+29
    %v7605 = vmax.f32 %v7586, -5e+29
    %v7606 = vmax.f32 %v7588, -5e+29
    %v7607 = vmax.f32 %v7590, -5e+29
    %v7608 = vmax.f32 %v7592, -5e+29
    %v7609 = vsub.f32 %v7499, %v7593
    %v7610 = vsub.f32 %v7502, %v7594
    %v7611 = vsub.f32 %v7507, %v7595
    %v7612 = vsub.f32 %v7510, %v7596
    %v7613 = vsub.f32 %v7515, %v7597
    %v7614 = vsub.f32 %v7518, %v7598
    %v7615 = vsub.f32 %v7523, %v7599
    %v7616 = vsub.f32 %v7526, %v7600
    %v7617 = vsub.f32 %v7531, %v7601
    %v7618 = vsub.f32 %v7534, %v7602
    %v7619 = vsub.f32 %v7539, %v7603
    %v7620 = vsub.f32 %v7542, %v7604
    %v7621 = vsub.f32 %v7547, %v7605
    %v7622 = vsub.f32 %v7550, %v7606
    %v7623 = vsub.f32 %v7555, %v7607
    %v7624 = vsub.f32 %v7558, %v7608
    %v7625 = vmul.f32 %v7609, 1.442695
    %v7626 = vpow.pop %v7625
    %v7627 = vmul.f32 %v7610, 1.442695
    %v7628 = vpow.pop %v7627
    %v7629 = vmul.f32 %v7611, 1.442695
    %v7630 = vpow.pop %v7629
    %v7631 = vmul.f32 %v7612, 1.442695
    %v7632 = vpow.pop %v7631
    %v7633 = vmul.f32 %v7613, 1.442695
    %v7634 = vpow.pop %v7633
    %v7635 = vmul.f32 %v7614, 1.442695
    %v7636 = vpow.pop %v7635
    %v7637 = vmul.f32 %v7615, 1.442695
    %v7638 = vpow.pop %v7637
    %v7639 = vmul.f32 %v7616, 1.442695
    %v7640 = vpow.pop %v7639
    %v7641 = vmul.f32 %v7617, 1.442695
    %v7642 = vpow.pop %v7641
    %v7643 = vmul.f32 %v7618, 1.442695
    %v7644 = vpow.pop %v7643
    %v7645 = vmul.f32 %v7619, 1.442695
    %v7646 = vpow.pop %v7645
    %v7647 = vmul.f32 %v7620, 1.442695
    %v7648 = vpow.pop %v7647
    %v7649 = vmul.f32 %v7621, 1.442695
    %v7650 = vpow.pop %v7649
    %v7651 = vmul.f32 %v7622, 1.442695
    %v7652 = vpow.pop %v7651
    %v7653 = vmul.f32 %v7623, 1.442695
    %v7654 = vpow.pop %v7653
    %v7655 = vmul.f32 %v7624, 1.442695
    %v7656 = vpow.pop %v7655
    %7657 = vadd.xlane.f32.xlu0 %v7626
    %v7658 = vpop.xlane.xlu0 %7657
    %7659 = vadd.xlane.f32.xlu0 %v7628
    %v7660 = vpop.xlane.xlu0 %7659
    %7661 = vadd.xlane.f32.xlu0 %v7630
    %v7662 = vpop.xlane.xlu0 %7661
    %7663 = vadd.xlane.f32.xlu0 %v7632
    %v7664 = vpop.xlane.xlu0 %7663
    %7665 = vadd.xlane.f32.xlu0 %v7634
    %v7666 = vpop.xlane.xlu0 %7665
    %7667 = vadd.xlane.f32.xlu0 %v7636
    %v7668 = vpop.xlane.xlu0 %7667
    %7669 = vadd.xlane.f32.xlu0 %v7638
    %v7670 = vpop.xlane.xlu0 %7669
    %7671 = vadd.xlane.f32.xlu0 %v7640
    %v7672 = vpop.xlane.xlu0 %7671
    %7673 = vadd.xlane.f32.xlu0 %v7642
    %v7674 = vpop.xlane.xlu0 %7673
    %7675 = vadd.xlane.f32.xlu0 %v7644
    %v7676 = vpop.xlane.xlu0 %7675
    %7677 = vadd.xlane.f32.xlu0 %v7646
    %v7678 = vpop.xlane.xlu0 %7677
    %7679 = vadd.xlane.f32.xlu0 %v7648
    %v7680 = vpop.xlane.xlu0 %7679
    %7681 = vadd.xlane.f32.xlu0 %v7650
    %v7682 = vpop.xlane.xlu0 %7681
    %7683 = vadd.xlane.f32.xlu0 %v7652
    %v7684 = vpop.xlane.xlu0 %7683
    %7685 = vadd.xlane.f32.xlu0 %v7654
    %v7686 = vpop.xlane.xlu0 %7685
    %7687 = vadd.xlane.f32.xlu0 %v7656
    %v7688 = vpop.xlane.xlu0 %7687
    %v7689 = vmax.f32 %v7658, 1e-16
    %v7690 = vmax.f32 %v7660, 1e-16
    %v7691 = vmax.f32 %v7662, 1e-16
    %v7692 = vmax.f32 %v7664, 1e-16
    %v7693 = vmax.f32 %v7666, 1e-16
    %v7694 = vmax.f32 %v7668, 1e-16
    %v7695 = vmax.f32 %v7670, 1e-16
    %v7696 = vmax.f32 %v7672, 1e-16
    %v7697 = vmax.f32 %v7674, 1e-16
    %v7698 = vmax.f32 %v7676, 1e-16
    %v7699 = vmax.f32 %v7678, 1e-16
    %v7700 = vmax.f32 %v7680, 1e-16
    %v7701 = vmax.f32 %v7682, 1e-16
    %v7702 = vmax.f32 %v7684, 1e-16
    %v7703 = vmax.f32 %v7686, 1e-16
    %v7704 = vmax.f32 %v7688, 1e-16
    %v7705 = vrcp.pop %v7689
    %v7706 = vrcp.pop %v7690
    %v7707 = vrcp.pop %v7691
    %v7708 = vrcp.pop %v7692
    %v7709 = vrcp.pop %v7693
    %v7710 = vrcp.pop %v7694
    %v7711 = vrcp.pop %v7695
    %v7712 = vrcp.pop %v7696
    %v7713 = vrcp.pop %v7697
    %v7714 = vrcp.pop %v7698
    %v7715 = vrcp.pop %v7699
    %v7716 = vrcp.pop %v7700
    %v7717 = vrcp.pop %v7701
    %v7718 = vrcp.pop %v7702
    %v7719 = vrcp.pop %v7703
    %v7720 = vrcp.pop %v7704
    %v7721 = vmul.f32 %v7626, %v7705
    %v7722 = vmul.f32 %v7628, %v7706
    %v7723 = vmul.f32 %v7630, %v7707
    %v7724 = vmul.f32 %v7632, %v7708
    %v7725 = vmul.f32 %v7634, %v7709
    %v7726 = vmul.f32 %v7636, %v7710
    %v7727 = vmul.f32 %v7638, %v7711
    %v7728 = vmul.f32 %v7640, %v7712
    %v7729 = vmul.f32 %v7642, %v7713
    %v7730 = vmul.f32 %v7644, %v7714
    %v7731 = vmul.f32 %v7646, %v7715
    %v7732 = vmul.f32 %v7648, %v7716
    %v7733 = vmul.f32 %v7650, %v7717
    %v7734 = vmul.f32 %v7652, %v7718
    %v7735 = vmul.f32 %v7654, %v7719
    %v7736 = vmul.f32 %v7656, %v7720
    %v7737 = vpack.c.bf16 %v7722, %v7721
    %v7738 = vpack.c.bf16 %v7724, %v7723
    %v7739 = vpack.c.bf16 %v7726, %v7725
    %v7740 = vpack.c.bf16 %v7728, %v7727
    %v7741 = vpack.c.bf16 %v7730, %v7729
    %v7742 = vpack.c.bf16 %v7732, %v7731
    %v7743 = vpack.c.bf16 %v7734, %v7733
    %v7744 = vpack.c.bf16 %v7736, %v7735
    %7745 = vmatprep.subr.bf16.mxu0 0
    %7746 = vmatpush1.bf16.msra.mxu0 %v7440
    %7747 = vmatprep.subr.bf16.mxu0 0
    %7748 = vmatpush1.bf16.msra.mxu0 %v7441
    %7749 = vmatprep.subr.bf16.mxu0 0
    %7750 = vmatpush1.bf16.msra.mxu0 %v7442
    %7751 = vmatprep.subr.bf16.mxu0 0
    %7752 = vmatpush1.bf16.msra.mxu0 %v7443
    %7753 = vmatprep.subr.bf16.mxu0 0
    %7754 = vmatpush1.bf16.msra.mxu0 %v7444
    %7755 = vmatprep.subr.bf16.mxu0 0
    %7756 = vmatpush1.bf16.msra.mxu0 %v7445
    %7757 = vmatprep.subr.bf16.mxu0 0
    %7758 = vmatpush1.bf16.msra.mxu0 %v7446
    %7759 = vmatprep.subr.bf16.mxu0 0
    %7760 = vmatpush1.bf16.msra.mxu0 %v7447
    %7761 = vmatprep.subr.bf16.mxu0 0
    %7762 = vmatpush1.bf16.msra.mxu0 0
    %7763 = vmatprep.subr.bf16.mxu0 0
    %7764 = vmatpush1.bf16.msra.mxu0 0
    %7765 = vmatprep.subr.bf16.mxu0 0
    %7766 = vmatpush1.bf16.msra.mxu0 0
    %7767 = vmatprep.subr.bf16.mxu0 0
    %7768 = vmatpush1.bf16.msra.mxu0 0
    %7769 = vmatprep.subr.bf16.mxu0 0
    %7770 = vmatpush1.bf16.msra.mxu0 0
    %7771 = vmatprep.subr.bf16.mxu0 0
    %7772 = vmatpush1.bf16.msra.mxu0 0
    %7773 = vmatprep.subr.bf16.mxu0 0
    %7774 = vmatpush1.bf16.msra.mxu0 0
    %7775 = vmatprep.subr.bf16.mxu0 0
    %7776 = vmatpush1.bf16.msra.mxu0 0
    %7777 = vmatprep.mubr.bf16.mxu0 0
    %7778 = vmatmul.mubr.bf16.gmra.mrb[0].mxu0 %v7737
    %v7779 = vpop.f32.mrb[0].mxu0
    %v7780 = vadd.f32 0.0, %v7779
    %v7781 = vpop.f32.mrb[0].mxu0
    %v7782 = vpop.f32.mrb[0].mxu0
    %v7783 = vadd.f32 0.0, %v7782
    %v7784 = vpop.f32.mrb[0].mxu0
    %7785 = vmatprep.mubr.bf16.mxu0 0
    %7786 = vmatmul.mubr.bf16.gmra.mrb[0].mxu0 %v7738
    %v7787 = vpop.f32.mrb[0].mxu0
    %v7788 = vadd.f32 0.0, %v7787
    %v7789 = vpop.f32.mrb[0].mxu0
    %v7790 = vpop.f32.mrb[0].mxu0
    %v7791 = vadd.f32 0.0, %v7790
    %v7792 = vpop.f32.mrb[0].mxu0
    %7793 = vmatprep.mubr.bf16.mxu0 0
    %7794 = vmatmul.mubr.bf16.gmra.mrb[0].mxu0 %v7739
    %v7795 = vpop.f32.mrb[0].mxu0
    %v7796 = vadd.f32 0.0, %v7795
    %v7797 = vpop.f32.mrb[0].mxu0
    %v7798 = vpop.f32.mrb[0].mxu0
    %v7799 = vadd.f32 0.0, %v7798
    %v7800 = vpop.f32.mrb[0].mxu0
    %7801 = vmatprep.mubr.bf16.mxu0 0
    %7802 = vmatmul.mubr.bf16.gmra.mrb[0].mxu0 %v7740
    %v7803 = vpop.f32.mrb[0].mxu0
    %v7804 = vadd.f32 0.0, %v7803
    %v7805 = vpop.f32.mrb[0].mxu0
    %v7806 = vpop.f32.mrb[0].mxu0
    %v7807 = vadd.f32 0.0, %v7806
    %v7808 = vpop.f32.mrb[0].mxu0
    %7809 = vmatprep.mubr.bf16.mxu0 0
    %7810 = vmatmul.mubr.bf16.gmra.mrb[0].mxu0 %v7741
    %v7811 = vpop.f32.mrb[0].mxu0
    %v7812 = vadd.f32 0.0, %v7811
    %v7813 = vpop.f32.mrb[0].mxu0
    %v7814 = vpop.f32.mrb[0].mxu0
    %v7815 = vadd.f32 0.0, %v7814
    %v7816 = vpop.f32.mrb[0].mxu0
    %7817 = vmatprep.mubr.bf16.mxu0 0
    %7818 = vmatmul.mubr.bf16.gmra.mrb[0].mxu0 %v7742
    %v7819 = vpop.f32.mrb[0].mxu0
    %v7820 = vadd.f32 0.0, %v7819
    %v7821 = vpop.f32.mrb[0].mxu0
    %v7822 = vpop.f32.mrb[0].mxu0
    %v7823 = vadd.f32 0.0, %v7822
    %v7824 = vpop.f32.mrb[0].mxu0
    %7825 = vmatprep.mubr.bf16.mxu0 0
    %7826 = vmatmul.mubr.bf16.gmra.mrb[0].mxu0 %v7743
    %v7827 = vpop.f32.mrb[0].mxu0
    %v7828 = vadd.f32 0.0, %v7827
    %v7829 = vpop.f32.mrb[0].mxu0
    %v7830 = vpop.f32.mrb[0].mxu0
    %v7831 = vadd.f32 0.0, %v7830
    %v7832 = vpop.f32.mrb[0].mxu0
    %7833 = vmatprep.mubr.bf16.mxu0 0
    %7834 = vmatmul.mubr.bf16.gmra.mrb[0].mxu0 %v7744
    %v7835 = vpop.f32.mrb[0].mxu0
    %v7836 = vadd.f32 0.0, %v7835
    %v7837 = vpop.f32.mrb[0].mxu0
    %v7838 = vpop.f32.mrb[0].mxu0
    %v7839 = vadd.f32 0.0, %v7838
    %v7840 = vpop.f32.mrb[0].mxu0
    %7841 = vdwg.mxu0
    %v7842 = vadd.f32 %v7780, %v7788
    %v7843 = vadd.f32 %v7783, %v7791
    %v7844 = vadd.f32 %v7842, %v7796
    %v7845 = vadd.f32 %v7843, %v7799
    %v7846 = vadd.f32 %v7844, %v7804
    %v7847 = vadd.f32 %v7845, %v7807
    %v7848 = vadd.f32 %v7846, %v7812
    %v7849 = vadd.f32 %v7847, %v7815
    %v7850 = vadd.f32 %v7848, %v7820
    %v7851 = vadd.f32 %v7849, %v7823
    %v7852 = vadd.f32 %v7850, %v7828
    %v7853 = vadd.f32 %v7851, %v7831
    %v7854 = vadd.f32 %v7852, %v7836
    %v7855 = vadd.f32 %v7853, %v7839
    %v7856 = vmul.f32 %v7854, 0.125
    %v7857 = vmul.f32 %v7855, 0.125
    %v7858 = vadd.f32 %v7856, %v6698
    %v7859 = vadd.f32 %v7857, %v6702
    %7860 = vadd.xlane.f32.xlu0 %v7858
    %v7861 = vpop.xlane.xlu0 %7860
    %7862 = vadd.xlane.f32.xlu0 %v7859
    %v7863 = vpop.xlane.xlu0 %7862
    %v7864 = vrcp.pop 128.0
    %v7865 = vmul.f32 %v7861, %v7864
    %v7866 = vmul.f32 %v7863, %v7864
    %v7867 = vsub.f32 %v7858, %v7865
    %v7868 = vsub.f32 %v7859, %v7866
    %v7869 = vmul.f32 %v7867, %v7867
    %v7870 = vmul.f32 %v7868, %v7868
    %7871 = vadd.xlane.f32.xlu0 %v7869
    %v7872 = vpop.xlane.xlu0 %7871
    %7873 = vadd.xlane.f32.xlu0 %v7870
    %v7874 = vpop.xlane.xlu0 %7873
    %v7875 = vmul.f32 %v7872, %v7864
    %v7876 = vmul.f32 %v7874, %v7864
    %v7877 = vadd.f32 %v7875, 1e-05
    %v7878 = vadd.f32 %v7876, 1e-05
    %v7879 = vrsqrt.pop %v7877
    %v7880 = vrsqrt.pop %v7878
    %v7881 = vmul.f32 %v7867, %v7879
    %v7882 = vmul.f32 %v7868, %v7880
    %v7883 = vld [vmem:[#allocation11] sm:$0x1]
    %v7885 = vlaneseq
    %v7886 = vshrl.u32 %v7885, 7
    %v7887 = vsub.s32 0, %v7886
    %v7888 = vrot.slane %v7883, %v7887
    %v7890 = vmul.f32 %v7881, %v7888
    %v7891 = vmul.f32 %v7882, %v7888
    %v7892 = vld [vmem:[#allocation13] sm:$0x1]
    %v7894 = vlaneseq
    %v7895 = vshrl.u32 %v7894, 7
    %v7896 = vsub.s32 0, %v7895
    %v7897 = vrot.slane %v7892, %v7896
    %v7899 = vadd.f32 %v7890, %v7897
    %v7900 = vadd.f32 %v7891, %v7897
    %v7901 = vadd.f32 %v7899, %v7376
    %v7902 = vadd.f32 %v7900, %v7379
    %v7903 = vadd.f32 %v7901, %v7902
    %v7904 = vrot.slane %v7903, 4
    %v7905 = vadd.f32 %v7903, %v7904
    %v7906 = vrot.slane %v7905, 2
    %v7907 = vadd.f32 %v7905, %v7906
    %v7908 = vrot.slane %v7907, 1
    %v7909 = vadd.f32 %v7907, %v7908
    %v7910 = vrcp.pop 16.0
    %v7911 = vmul.f32 %v7909, %v7910
    %v7912 = vpack.c.bf16 %v7911, %v7911
    %v7913 = vld [vmem:[#allocation14] sm:$0xf]
    %v7914 = vld [vmem:[#allocation14 + $0x4] sm:$0xf]
    %v7915 = vld [vmem:[#allocation14 + $0x8] sm:$0xf]
    %v7916 = vld [vmem:[#allocation14 + $0xc] sm:$0xf]
    %v7917 = vld [vmem:[#allocation14 + $0x10] sm:$0xf]
    %v7918 = vld [vmem:[#allocation14 + $0x14] sm:$0xf]
    %v7919 = vld [vmem:[#allocation14 + $0x18] sm:$0xf]
    %v7920 = vld [vmem:[#allocation14 + $0x1c] sm:$0xf]
    %v7921 = vld [vmem:[#allocation14 + $0x20] sm:$0xf]
    %v7922 = vld [vmem:[#allocation14 + $0x24] sm:$0xf]
    %v7923 = vld [vmem:[#allocation14 + $0x28] sm:$0xf]
    %v7924 = vld [vmem:[#allocation14 + $0x2c] sm:$0xf]
    %v7925 = vld [vmem:[#allocation14 + $0x30] sm:$0xf]
    %v7926 = vld [vmem:[#allocation14 + $0x34] sm:$0xf]
    %v7927 = vld [vmem:[#allocation14 + $0x38] sm:$0xf]
    %v7928 = vld [vmem:[#allocation14 + $0x3c] sm:$0xf]
    %v7929 = vld [vmem:[#allocation16] sm:$0x1]
    %v7946 = vunpack.c.l.b16 %v7913
    %v7947 = vunpack.c.l.b16 %v7914
    %v7948 = vunpack.c.l.b16 %v7915
    %v7949 = vunpack.c.l.b16 %v7916
    %v7950 = vunpack.c.l.b16 %v7917
    %v7951 = vunpack.c.l.b16 %v7918
    %v7952 = vunpack.c.l.b16 %v7919
    %v7953 = vunpack.c.l.b16 %v7920
    %v7954 = vunpack.c.l.b16 %v7921
    %v7955 = vunpack.c.l.b16 %v7922
    %v7956 = vunpack.c.l.b16 %v7923
    %v7957 = vunpack.c.l.b16 %v7924
    %v7958 = vunpack.c.l.b16 %v7925
    %v7959 = vunpack.c.l.b16 %v7926
    %v7960 = vunpack.c.l.b16 %v7927
    %v7961 = vunpack.c.l.b16 %v7928
    %v7962 = vpack.c.b16 %v7947, %v7946
    %v7963 = vpack.c.b16 %v7949, %v7948
    %v7964 = vpack.c.b16 %v7951, %v7950
    %v7965 = vpack.c.b16 %v7953, %v7952
    %v7966 = vpack.c.b16 %v7955, %v7954
    %v7967 = vpack.c.b16 %v7957, %v7956
    %v7968 = vpack.c.b16 %v7959, %v7958
    %v7969 = vpack.c.b16 %v7961, %v7960
    %7978 = vmatprep.subr.bf16.mxu0 0
    %7979 = vmatpush1.bf16.msra.mxu0 %v7962
    %7980 = vmatprep.subr.bf16.mxu0 0
    %7981 = vmatpush1.bf16.msra.mxu0 %v7963
    %7982 = vmatprep.subr.bf16.mxu0 0
    %7983 = vmatpush1.bf16.msra.mxu0 %v7964
    %7984 = vmatprep.subr.bf16.mxu0 0
    %7985 = vmatpush1.bf16.msra.mxu0 %v7965
    %7986 = vmatprep.subr.bf16.mxu0 0
    %7987 = vmatpush1.bf16.msra.mxu0 %v7966
    %7988 = vmatprep.subr.bf16.mxu0 0
    %7989 = vmatpush1.bf16.msra.mxu0 %v7967
    %7990 = vmatprep.subr.bf16.mxu0 0
    %7991 = vmatpush1.bf16.msra.mxu0 %v7968
    %7992 = vmatprep.subr.bf16.mxu0 0
    %7993 = vmatpush1.bf16.msra.mxu0 %v7969
    %7994 = vmatprep.subr.bf16.mxu0 0
    %7995 = vmatpush1.bf16.msra.mxu0 0
    %7996 = vmatprep.subr.bf16.mxu0 0
    %7997 = vmatpush1.bf16.msra.mxu0 0
    %7998 = vmatprep.subr.bf16.mxu0 0
    %7999 = vmatpush1.bf16.msra.mxu0 0
    %8000 = vmatprep.subr.bf16.mxu0 0
    %8001 = vmatpush1.bf16.msra.mxu0 0
    %8002 = vmatprep.subr.bf16.mxu0 0
    %8003 = vmatpush1.bf16.msra.mxu0 0
    %8004 = vmatprep.subr.bf16.mxu0 0
    %8005 = vmatpush1.bf16.msra.mxu0 0
    %8006 = vmatprep.subr.bf16.mxu0 0
    %8007 = vmatpush1.bf16.msra.mxu0 0
    %8008 = vmatprep.subr.bf16.mxu0 0
    %8009 = vmatpush1.bf16.msra.mxu0 0
    %8010 = vmatprep.mubr.bf16.mxu0 0
    %8011 = vmatmul.mubr.bf16.gmra.mrb[0].mxu0 %v7912
    %v8012 = vpop.f32.mrb[0].mxu0
    %v8013 = vadd.f32 %v7929, %v8012
    %v8014 = vpop.f32.mrb[0].mxu0
    %v8015 = vpop.f32.mrb[0].mxu0
    %v8016 = vpop.f32.mrb[0].mxu0
    %8017 = vdwg.mxu0
    %v8018 = vld [vmem:[#allocation7] sm:$0x1]
    %v8019 = vmul.f32 %v8018, 0.8
    %v8020 = vmul.f32 %v8013, 0.2
    %v8021 = vadd.f32 %v8019, %v8020
    %8022 = vst [vmem:[#allocation17] sm:$0x1] %v8021
    // Predicated region
    $region74: #{tpu_custom_call.1} parent=1 // pred_check
      _
    $region75: #{tpu_custom_call.1} parent=1 // pred_check_branch
      %8024 = sbr.rel (0) target = $region77
    $region76: #{tpu_custom_call.1} parent=1 // pred_region
      %s8026 = ssub.s32 16, 16
      %8027 = vsyncadd [#allocation4], %s8026
      %s8029 = sshll.u32 [#allocation17], 4
      %s8030 = int_to_ptr.vmem [resolvable:$true] %s8029
      %8032 = dma.vmem_to_hbm [thread:$0]  %s8030, 16, %s9, [#allocation4]
    $region77: #{tpu_custom_call.1} parent=1 // pred_fallthru
      _
    // Predicated region
    $region78: #{tpu_custom_call.1} parent=1 // pred_check
      _
    $region79: #{tpu_custom_call.1} parent=1 // pred_check_branch
      %8034 = sbr.rel (0) target = $region81
    $region80: #{tpu_custom_call.1} parent=1 // pred_region
      %8035 = dma.done [#allocation4], 16
    $region81: #{tpu_custom_call.1} parent=1 // pred_fallthru
      _
    %8036 = vsyncpa [#allocation3], 1
    %8037 = vsyncpa [#allocation6], 1
    %8038 = vsyncpa [#allocation9], 1
    %8039 = vsyncpa [#allocation12], 1
    %8040 = vsyncpa [#allocation15], 1
    %8041 = vsyncpa [#allocation4], 1

</llo_original>
